<compile_context>
chip_gen: v7x
topology: tpu7x:2x2x1
jax: 0.10.0
libtpu: 0.0.40
codegen_flags: <defaults>
</compile_context>

<pallas_src>
from functools import partial

import jax
import jax.numpy as jnp
from jax.experimental import pallas as pl
from jax.experimental.pallas import tpu as pltpu


# ---------------------------------------------------------------------------
# Pallas kernel: full SPAN forward for one image per grid step.
# ---------------------------------------------------------------------------
def span_kernel(W,                              # static (bound via partial)
                x_ref, masks_ref,
                w_c1, b_c1,
                w_b1c1, b_b1c1, w_b1c2, b_b1c2, w_b1c3, b_b1c3,
                w_b2c1, b_b2c1, w_b2c2, b_b2c2, w_b2c3, b_b2c3,
                w_c2, b_c2,
                w_fuse, b_fuse,
                out_ref):
    HW = x_ref.shape[-1]

    # Border-column masks (precomputed in the wrapper, loaded once per step).
    mask_l = masks_ref[0:1, :]     # 0 where w == 0      (for dx = -1 taps)
    mask_r = masks_ref[1:2, :]     # 0 where w == W - 1  (for dx = +1 taps)

    def sigmoid(v):
        # exp and the approximate reciprocal both run on the EUP slot.
        return pl.reciprocal(1.0 + jnp.exp(-v), approx=True)

    def silu(v):
        return v * sigmoid(v)

    def shift_flat(a, delta):
        # Zero-fill shift along the flattened-HW (lane) axis: out[:, p] = a[:, p+delta].
        if delta == 0:
            return a
        c = a.shape[0]
        if delta > 0:
            z = jnp.zeros((c, delta), a.dtype)
            return jnp.concatenate([a[:, delta:], z], axis=1)
        z = jnp.zeros((c, -delta), a.dtype)
        return jnp.concatenate([z, a[:, :HW + delta]], axis=1)

    def conv3x3(feat_bf, w_ref, b_ref):
        # y (cout, HW) = sum_t W_t (cout, cin) @ tap_t (cin, HW), HW on the MXU N axis.
        # Zero-fill shifts handle the top/bottom halo exactly; the two column masks
        # zero the values that wrapped across a row boundary for dx = +-1 taps.
        acc = None
        t = 0
        for dy in (-1, 0, 1):
            for dx in (-1, 0, 1):
                a = shift_flat(feat_bf, dy * W + dx)
                if dx == -1:
                    a = a * mask_l
                elif dx == 1:
                    a = a * mask_r
                p = jnp.dot(w_ref[t], a, preferred_element_type=jnp.float32)
                acc = p if acc is None else acc + p
                t += 1
        return acc + b_ref[...]                       # (cout, HW) f32

    def tailmm(k, feat_f32):
        # One (num_out, F) block of the fused conv_cat+upsampler matrix.
        return jnp.dot(w_fuse[k], feat_f32.astype(jnp.bfloat16),
                       preferred_element_type=jnp.float32)

    def spab(x_f32, w1, b1, w2, b2, w3, b3):
        o1 = conv3x3(x_f32.astype(jnp.bfloat16), w1, b1)
        o2 = conv3x3(silu(o1).astype(jnp.bfloat16), w2, b2)
        o3 = conv3x3(silu(o2).astype(jnp.bfloat16), w3, b3)
        sim = sigmoid(o3) - 0.5
        return (o3 + x_f32) * sim, o1

    # ---- SPAN.forward (eval path: every Conv3XC collapsed to one 3x3) ----
    x_bf = x_ref[0]                                   # (Cin, HW) bf16
    feat0 = conv3x3(x_bf, w_c1, b_c1)                 # conv_1 -> (F, HW) f32

    # Fused conv_cat+upsampler accumulated incrementally (cat order:
    # [out_feature, out_b2, out_b1, out_b1_2]).
    acc = b_fuse[...] + tailmm(0, feat0)

    out_b1, _ = spab(feat0,
                     w_b1c1, b_b1c1, w_b1c2, b_b1c2, w_b1c3, b_b1c3)
    acc = acc + tailmm(2, out_b1)

    out_b2, out_b1_2 = spab(out_b1,
                            w_b2c1, b_b2c1, w_b2c2, b_b2c2, w_b2c3, b_b2c3)
    acc = acc + tailmm(3, out_b1_2)

    out_b2 = conv3x3(out_b2.astype(jnp.bfloat16), w_c2, b_c2)   # conv_2
    acc = acc + tailmm(1, out_b2)

    out_ref[0] = acc.astype(out_ref.dtype)            # lane-dense (num_out, HW) store


# ---------------------------------------------------------------------------
# Parameter construction (deterministic, synthetic).  Conv3XC collapse done in
# plain-JAX glue, mirroring Conv3XC.update_params exactly.
# ---------------------------------------------------------------------------
def conv3xc_params(key, c_in, c_out, gain=2, scale=0.1):
    ks = jax.random.split(key, 8)
    rnd = lambda k, s: jax.random.normal(k, s, jnp.float32) * scale
    sk_w = rnd(ks[0], (c_out, c_in, 1, 1))
    sk_b = rnd(ks[1], (c_out,))
    w1 = rnd(ks[2], (c_in * gain, c_in, 1, 1))
    b1 = rnd(ks[3], (c_in * gain,))
    w2 = rnd(ks[4], (c_out * gain, c_in * gain, 3, 3))
    b2 = rnd(ks[5], (c_out * gain,))
    w3 = rnd(ks[6], (c_out, c_out * gain, 1, 1))
    b3 = rnd(ks[7], (c_out,))
    # compose 1x1 (w1) -> 3x3 (w2) -> 1x1 (w3) into one 3x3 kernel
    w12 = jnp.einsum('kmyx,mc->kcyx', w2, w1[:, :, 0, 0])
    b12 = jnp.einsum('kmyx,m->k', w2, b1) + b2
    wcc = jnp.einsum('ok,kcyx->ocyx', w3[:, :, 0, 0], w12)
    bcc = jnp.einsum('ok,k->o', w3[:, :, 0, 0], b12) + b3
    # add the 1x1 skip, zero-padded to 3x3 (center tap)
    wcc = wcc.at[:, :, 1, 1].add(sk_w[:, :, 0, 0])
    bcc = bcc + sk_b
    # PyTorch OIHW -> HWIO
    return jnp.transpose(wcc, (2, 3, 1, 0)), bcc


def make_params(key, cin, cout_img, F):
    keys = jax.random.split(key, 12)
    p = {}
    p['c1'] = conv3xc_params(keys[0], cin, F)
    p['b1c1'] = conv3xc_params(keys[1], F, F)
    p['b1c2'] = conv3xc_params(keys[2], F, F)
    p['b1c3'] = conv3xc_params(keys[3], F, F)
    p['b2c1'] = conv3xc_params(keys[4], F, F)
    p['b2c2'] = conv3xc_params(keys[5], F, F)
    p['b2c3'] = conv3xc_params(keys[6], F, F)
    p['c2'] = conv3xc_params(keys[7], F, F)
    # conv_cat: 1x1, 4F -> F  (stored as (Cin, Cout) matrix)
    wcat = jax.random.normal(keys[8], (F, 4 * F), jnp.float32) * 0.05
    bcat = jax.random.normal(keys[9], (F,), jnp.float32) * 0.05
    p['cat'] = (wcat.T, bcat)
    # upsampler: 1x1, F -> num_out_ch
    wup = jax.random.normal(keys[10], (cout_img, F), jnp.float32) * 0.05
    bup = jax.random.normal(keys[11], (cout_img,), jnp.float32) * 0.05
    p['up'] = (wup.T, bup)
    return p


# ---------------------------------------------------------------------------
# Wrapper: weight pre-packing + pallas_call
# ---------------------------------------------------------------------------
CONV_ORDER = ['c1', 'b1c1', 'b1c2', 'b1c3', 'b2c1', 'b2c2', 'b2c3', 'c2']


def span_forward(x_nchw, params, feature_channels, num_out_ch):
    B, Cin, H, W = x_nchw.shape
    F = feature_channels
    HW = H * W

    # Channel-major, flattened-spatial input (exactly NCHW reshaped): (B, Cin, HW).
    x_flat = x_nchw.reshape(B, Cin, HW).astype(jnp.bfloat16)

    # Left/right border-column masks in flattened-HW space.
    col = jnp.arange(HW, dtype=jnp.int32) % W
    masks = jnp.stack([(col != 0), (col != W - 1)]).astype(jnp.bfloat16)   # (2, HW)

    flat_inputs = [x_flat, masks]
    in_specs = [pl.BlockSpec((1, Cin, HW), lambda i: (i, 0, 0)),
                pl.BlockSpec((2, HW), lambda i: (0, 0))]

    for name in CONV_ORDER:
        w, b = params[name]                   # w: (3,3,cin,cout) HWIO, b: (cout,)
        cin, cout = w.shape[2], w.shape[3]
        # (9, cout, cin): one (cout, cin) matrix per tap, tap order = ky*3+kx.
        w9 = jnp.transpose(w, (0, 1, 3, 2)).reshape(9, cout, cin).astype(jnp.bfloat16)
        flat_inputs += [w9, b.reshape(cout, 1).astype(jnp.float32)]
        in_specs += [pl.BlockSpec((9, cout, cin), lambda i: (0, 0, 0)),
                     pl.BlockSpec((cout, 1), lambda i: (0, 0))]

    # Fuse conv_cat (4F->F) and upsampler (F->out): both 1x1 / linear, exact.
    wcat, bcat = params['cat']                # (4F, F), (F,)
    wup, bup = params['up']                   # (F, out), (out,)
    wf = wcat @ wup                           # (4F, out)
    bf = bcat @ wup + bup                     # (out,)
    # Transposed orientation, split into 4 per-feature blocks: (4, out, F).
    wf_t = jnp.transpose(wf).reshape(num_out_ch, 4, F).transpose(1, 0, 2)
    flat_inputs += [wf_t.astype(jnp.bfloat16),
                    bf.reshape(num_out_ch, 1).astype(jnp.float32)]
    in_specs += [pl.BlockSpec((4, num_out_ch, F), lambda i: (0, 0, 0)),
                 pl.BlockSpec((num_out_ch, 1), lambda i: (0, 0))]

    out = pl.pallas_call(
        partial(span_kernel, W),
        out_shape=jax.ShapeDtypeStruct((B, num_out_ch, HW), jnp.float32),
        grid_spec=pltpu.PrefetchScalarGridSpec(
            num_scalar_prefetch=0,
            grid=(B,),
            in_specs=in_specs,
            out_specs=pl.BlockSpec((1, num_out_ch, HW), lambda i: (i, 0, 0))),
        compiler_params=pltpu.CompilerParams(
            dimension_semantics=("parallel",)),
    )(*flat_inputs)
    # (B, num_out_ch, HW) -> NCHW output, no transpose needed.
    return out.reshape(B, num_out_ch, H, W)


# ---------------------------------------------------------------------------
# Pure-JAX f32 reference (same collapsed weights) for validation.  NHWC math.
# ---------------------------------------------------------------------------
def span_ref(x_nhwc, params):
    def sig(v):
        return 1.0 / (1.0 + jnp.exp(-v))

    def silu(v):
        return v * sig(v)

    def c3(x_, name):
        w, b = params[name]
        y = jax.lax.conv_general_dilated(
            x_, w, window_strides=(1, 1), padding=((1, 1), (1, 1)),
            dimension_numbers=('NHWC', 'HWIO', 'NHWC'))
        return y + b.reshape(1, 1, 1, -1)

    def c1(x_, name):
        w, b = params[name]
        return jnp.einsum('bhwc,cd->bhwd', x_, w) + b.reshape(1, 1, 1, -1)

    def spab(feat, n1, n2, n3):
        o1 = c3(feat, n1)
        o2 = c3(silu(o1), n2)
        o3 = c3(silu(o2), n3)
        sim = sig(o3) - 0.5
        return (o3 + feat) * sim, o1, sim

    of = c3(x_nhwc, 'c1')
    b1, _, _ = spab(of, 'b1c1', 'b1c2', 'b1c3')
    b2, b1_2, _ = spab(b1, 'b2c1', 'b2c2', 'b2c3')
    b2 = c3(b2, 'c2')
    cat = jnp.concatenate([of, b2, b1, b1_2], axis=-1)
    return c1(c1(cat, 'cat'), 'up')


if __name__ == "__main__":
    B, H, W = 2, 16, 16
    num_in_ch, num_out_ch, feature_channels = 4, 4, 32

    key = jax.random.PRNGKey(0)
    kx, kp = jax.random.split(key)
    params = make_params(kp, num_in_ch, num_out_ch, feature_channels)

    # PyTorch-style NCHW input.
    x_nchw = jax.random.normal(kx, (B, num_in_ch, H, W), jnp.float32) * 0.5

    out = span_forward(x_nchw, params, feature_channels, num_out_ch)
    out = jax.block_until_ready(out)
    assert out.shape == (B, num_out_ch, H, W)

    # Reference in f32 (NHWC), compared in NCHW.
    ref = jnp.transpose(span_ref(jnp.transpose(x_nchw, (0, 2, 3, 1)), params),
                        (0, 3, 1, 2))
    # bf16 MXU operands + approx reciprocal -> looser tolerance than pure f32.
    max_err = float(jnp.max(jnp.abs(out - ref)))
    assert max_err < 2.5e-2, f"max_err={max_err}"

    print("KERNEL_OK")
</pallas_src>

<mosaic_0001>
module attributes {stable_mosaic.version = 11 : i64} {
  func.func @span_kernel(%arg0: i32, %arg1: memref<1x4x256xbf16, #tpu.memory_space<vmem>>, %arg2: memref<2x256xbf16, #tpu.memory_space<vmem>>, %arg3: memref<9x32x4xbf16, #tpu.memory_space<vmem>>, %arg4: memref<32x1xf32, #tpu.memory_space<vmem>>, %arg5: memref<9x32x32xbf16, #tpu.memory_space<vmem>>, %arg6: memref<32x1xf32, #tpu.memory_space<vmem>>, %arg7: memref<9x32x32xbf16, #tpu.memory_space<vmem>>, %arg8: memref<32x1xf32, #tpu.memory_space<vmem>>, %arg9: memref<9x32x32xbf16, #tpu.memory_space<vmem>>, %arg10: memref<32x1xf32, #tpu.memory_space<vmem>>, %arg11: memref<9x32x32xbf16, #tpu.memory_space<vmem>>, %arg12: memref<32x1xf32, #tpu.memory_space<vmem>>, %arg13: memref<9x32x32xbf16, #tpu.memory_space<vmem>>, %arg14: memref<32x1xf32, #tpu.memory_space<vmem>>, %arg15: memref<9x32x32xbf16, #tpu.memory_space<vmem>>, %arg16: memref<32x1xf32, #tpu.memory_space<vmem>>, %arg17: memref<9x32x32xbf16, #tpu.memory_space<vmem>>, %arg18: memref<32x1xf32, #tpu.memory_space<vmem>>, %arg19: memref<4x4x32xbf16, #tpu.memory_space<vmem>>, %arg20: memref<4x1xf32, #tpu.memory_space<vmem>>, %arg21: memref<1x4x256xf32, #tpu.memory_space<vmem>>) attributes {dimension_semantics = [#tpu.dimension_semantics<parallel>], iteration_bounds = array<i64: 2>, scalar_prefetch = 0 : i64, scratch_operands = 0 : i64, tpu.core_type = #tpu.core_type<tc>, window_params = [{transform_indices = @transform_0, window_bounds = array<i64: 1, 4, 256>}, {pipeline_mode = #tpu.pipeline_mode<synchronous>, transform_indices = @transform_1, window_bounds = array<i64: 2, 256>}, {pipeline_mode = #tpu.pipeline_mode<synchronous>, transform_indices = @transform_2, window_bounds = array<i64: 9, 32, 4>}, {pipeline_mode = #tpu.pipeline_mode<synchronous>, transform_indices = @transform_3, window_bounds = array<i64: 32, 1>}, {pipeline_mode = #tpu.pipeline_mode<synchronous>, transform_indices = @transform_4, window_bounds = array<i64: 9, 32, 32>}, {pipeline_mode = #tpu.pipeline_mode<synchronous>, transform_indices = @transform_5, window_bounds = array<i64: 32, 1>}, {pipeline_mode = #tpu.pipeline_mode<synchronous>, transform_indices = @transform_6, window_bounds = array<i64: 9, 32, 32>}, {pipeline_mode = #tpu.pipeline_mode<synchronous>, transform_indices = @transform_7, window_bounds = array<i64: 32, 1>}, {pipeline_mode = #tpu.pipeline_mode<synchronous>, transform_indices = @transform_8, window_bounds = array<i64: 9, 32, 32>}, {pipeline_mode = #tpu.pipeline_mode<synchronous>, transform_indices = @transform_9, window_bounds = array<i64: 32, 1>}, {pipeline_mode = #tpu.pipeline_mode<synchronous>, transform_indices = @transform_10, window_bounds = array<i64: 9, 32, 32>}, {pipeline_mode = #tpu.pipeline_mode<synchronous>, transform_indices = @transform_11, window_bounds = array<i64: 32, 1>}, {pipeline_mode = #tpu.pipeline_mode<synchronous>, transform_indices = @transform_12, window_bounds = array<i64: 9, 32, 32>}, {pipeline_mode = #tpu.pipeline_mode<synchronous>, transform_indices = @transform_13, window_bounds = array<i64: 32, 1>}, {pipeline_mode = #tpu.pipeline_mode<synchronous>, transform_indices = @transform_14, window_bounds = array<i64: 9, 32, 32>}, {pipeline_mode = #tpu.pipeline_mode<synchronous>, transform_indices = @transform_15, window_bounds = array<i64: 32, 1>}, {pipeline_mode = #tpu.pipeline_mode<synchronous>, transform_indices = @transform_16, window_bounds = array<i64: 9, 32, 32>}, {pipeline_mode = #tpu.pipeline_mode<synchronous>, transform_indices = @transform_17, window_bounds = array<i64: 32, 1>}, {pipeline_mode = #tpu.pipeline_mode<synchronous>, transform_indices = @transform_18, window_bounds = array<i64: 4, 4, 32>}, {pipeline_mode = #tpu.pipeline_mode<synchronous>, transform_indices = @transform_19, window_bounds = array<i64: 4, 1>}, {transform_indices = @transform_20, window_bounds = array<i64: 1, 4, 256>}]} {
    %c0 = arith.constant 0 : index
    %c0_0 = arith.constant 0 : index
    %0 = vector.load %arg2[%c0, %c0_0] : memref<2x256xbf16, #tpu.memory_space<vmem>>, vector<1x256xbf16>
    %c1 = arith.constant 1 : index
    %c0_1 = arith.constant 0 : index
    %1 = vector.load %arg2[%c1, %c0_1] : memref<2x256xbf16, #tpu.memory_space<vmem>>, vector<1x256xbf16>
    %c0_2 = arith.constant 0 : index
    %c0_3 = arith.constant 0 : index
    %c0_4 = arith.constant 0 : index
    %2 = vector.load %arg1[%c0_2, %c0_3, %c0_4] : memref<1x4x256xbf16, #tpu.memory_space<vmem>>, vector<1x4x256xbf16>
    %3 = vector.shape_cast %2 : vector<1x4x256xbf16> to vector<4x256xbf16>
    %cst = arith.constant 0.000000e+00 : bf16
    %4 = vector.broadcast %cst : bf16 to vector<4x17xbf16>
    %5 = vector.extract_strided_slice %3 {offsets = [0, 0], sizes = [4, 239], strides = [1, 1]} : vector<4x256xbf16> to vector<4x239xbf16>
    %6 = tpu.concatenate %4, %5 in 1 : vector<4x17xbf16>, vector<4x239xbf16> -> vector<4x256xbf16>
    %7 = vector.broadcast %0 : vector<1x256xbf16> to vector<4x256xbf16>
    %8 = arith.mulf %6, %7 : vector<4x256xbf16>
    %c0_5 = arith.constant 0 : index
    %c0_6 = arith.constant 0 : index
    %c0_7 = arith.constant 0 : index
    %9 = vector.load %arg3[%c0_5, %c0_6, %c0_7] : memref<9x32x4xbf16, #tpu.memory_space<vmem>>, vector<1x32x4xbf16>
    %10 = vector.shape_cast %9 : vector<1x32x4xbf16> to vector<32x4xbf16>
    %cst_8 = arith.constant dense<0.000000e+00> : vector<32x256xf32>
    %11 = tpu.matmul %10, %8, %cst_8 {dimension_numbers = #tpu.dot_dimension_numbers<[1], [0], [0], [1], [0, 0, 1, 1], [], []>} : vector<32x4xbf16>, vector<4x256xbf16>, vector<32x256xf32> -> vector<32x256xf32>
    %cst_9 = arith.constant 0.000000e+00 : bf16
    %12 = vector.broadcast %cst_9 : bf16 to vector<4x16xbf16>
    %13 = vector.extract_strided_slice %3 {offsets = [0, 0], sizes = [4, 240], strides = [1, 1]} : vector<4x256xbf16> to vector<4x240xbf16>
    %14 = tpu.concatenate %12, %13 in 1 : vector<4x16xbf16>, vector<4x240xbf16> -> vector<4x256xbf16>
    %c1_10 = arith.constant 1 : index
    %c0_11 = arith.constant 0 : index
    %c0_12 = arith.constant 0 : index
    %15 = vector.load %arg3[%c1_10, %c0_11, %c0_12] : memref<9x32x4xbf16, #tpu.memory_space<vmem>>, vector<1x32x4xbf16>
    %16 = vector.shape_cast %15 : vector<1x32x4xbf16> to vector<32x4xbf16>
    %cst_13 = arith.constant dense<0.000000e+00> : vector<32x256xf32>
    %17 = tpu.matmul %16, %14, %cst_13 {dimension_numbers = #tpu.dot_dimension_numbers<[1], [0], [0], [1], [0, 0, 1, 1], [], []>} : vector<32x4xbf16>, vector<4x256xbf16>, vector<32x256xf32> -> vector<32x256xf32>
    %18 = arith.addf %11, %17 : vector<32x256xf32>
    %cst_14 = arith.constant 0.000000e+00 : bf16
    %19 = vector.broadcast %cst_14 : bf16 to vector<4x15xbf16>
    %20 = vector.extract_strided_slice %3 {offsets = [0, 0], sizes = [4, 241], strides = [1, 1]} : vector<4x256xbf16> to vector<4x241xbf16>
    %21 = tpu.concatenate %19, %20 in 1 : vector<4x15xbf16>, vector<4x241xbf16> -> vector<4x256xbf16>
    %22 = vector.broadcast %1 : vector<1x256xbf16> to vector<4x256xbf16>
    %23 = arith.mulf %21, %22 : vector<4x256xbf16>
    %c2 = arith.constant 2 : index
    %c0_15 = arith.constant 0 : index
    %c0_16 = arith.constant 0 : index
    %24 = vector.load %arg3[%c2, %c0_15, %c0_16] : memref<9x32x4xbf16, #tpu.memory_space<vmem>>, vector<1x32x4xbf16>
    %25 = vector.shape_cast %24 : vector<1x32x4xbf16> to vector<32x4xbf16>
    %cst_17 = arith.constant dense<0.000000e+00> : vector<32x256xf32>
    %26 = tpu.matmul %25, %23, %cst_17 {dimension_numbers = #tpu.dot_dimension_numbers<[1], [0], [0], [1], [0, 0, 1, 1], [], []>} : vector<32x4xbf16>, vector<4x256xbf16>, vector<32x256xf32> -> vector<32x256xf32>
    %27 = arith.addf %18, %26 : vector<32x256xf32>
    %cst_18 = arith.constant 0.000000e+00 : bf16
    %28 = vector.broadcast %cst_18 : bf16 to vector<4x1xbf16>
    %29 = vector.extract_strided_slice %3 {offsets = [0, 0], sizes = [4, 255], strides = [1, 1]} : vector<4x256xbf16> to vector<4x255xbf16>
    %30 = tpu.concatenate %28, %29 in 1 : vector<4x1xbf16>, vector<4x255xbf16> -> vector<4x256xbf16>
    %31 = vector.broadcast %0 : vector<1x256xbf16> to vector<4x256xbf16>
    %32 = arith.mulf %30, %31 : vector<4x256xbf16>
    %c3 = arith.constant 3 : index
    %c0_19 = arith.constant 0 : index
    %c0_20 = arith.constant 0 : index
    %33 = vector.load %arg3[%c3, %c0_19, %c0_20] : memref<9x32x4xbf16, #tpu.memory_space<vmem>>, vector<1x32x4xbf16>
    %34 = vector.shape_cast %33 : vector<1x32x4xbf16> to vector<32x4xbf16>
    %cst_21 = arith.constant dense<0.000000e+00> : vector<32x256xf32>
    %35 = tpu.matmul %34, %32, %cst_21 {dimension_numbers = #tpu.dot_dimension_numbers<[1], [0], [0], [1], [0, 0, 1, 1], [], []>} : vector<32x4xbf16>, vector<4x256xbf16>, vector<32x256xf32> -> vector<32x256xf32>
    %36 = arith.addf %27, %35 : vector<32x256xf32>
    %c4 = arith.constant 4 : index
    %c0_22 = arith.constant 0 : index
    %c0_23 = arith.constant 0 : index
    %37 = vector.load %arg3[%c4, %c0_22, %c0_23] : memref<9x32x4xbf16, #tpu.memory_space<vmem>>, vector<1x32x4xbf16>
    %38 = vector.shape_cast %37 : vector<1x32x4xbf16> to vector<32x4xbf16>
    %cst_24 = arith.constant dense<0.000000e+00> : vector<32x256xf32>
    %39 = tpu.matmul %38, %3, %cst_24 {dimension_numbers = #tpu.dot_dimension_numbers<[1], [0], [0], [1], [0, 0, 1, 1], [], []>} : vector<32x4xbf16>, vector<4x256xbf16>, vector<32x256xf32> -> vector<32x256xf32>
    %40 = arith.addf %36, %39 : vector<32x256xf32>
    %cst_25 = arith.constant 0.000000e+00 : bf16
    %41 = vector.broadcast %cst_25 : bf16 to vector<4x1xbf16>
    %42 = vector.extract_strided_slice %3 {offsets = [0, 1], sizes = [4, 255], strides = [1, 1]} : vector<4x256xbf16> to vector<4x255xbf16>
    %43 = tpu.concatenate %42, %41 in 1 : vector<4x255xbf16>, vector<4x1xbf16> -> vector<4x256xbf16>
    %44 = vector.broadcast %1 : vector<1x256xbf16> to vector<4x256xbf16>
    %45 = arith.mulf %43, %44 : vector<4x256xbf16>
    %c5 = arith.constant 5 : index
    %c0_26 = arith.constant 0 : index
    %c0_27 = arith.constant 0 : index
    %46 = vector.load %arg3[%c5, %c0_26, %c0_27] : memref<9x32x4xbf16, #tpu.memory_space<vmem>>, vector<1x32x4xbf16>
    %47 = vector.shape_cast %46 : vector<1x32x4xbf16> to vector<32x4xbf16>
    %cst_28 = arith.constant dense<0.000000e+00> : vector<32x256xf32>
    %48 = tpu.matmul %47, %45, %cst_28 {dimension_numbers = #tpu.dot_dimension_numbers<[1], [0], [0], [1], [0, 0, 1, 1], [], []>} : vector<32x4xbf16>, vector<4x256xbf16>, vector<32x256xf32> -> vector<32x256xf32>
    %49 = arith.addf %40, %48 : vector<32x256xf32>
    %cst_29 = arith.constant 0.000000e+00 : bf16
    %50 = vector.broadcast %cst_29 : bf16 to vector<4x15xbf16>
    %51 = vector.extract_strided_slice %3 {offsets = [0, 15], sizes = [4, 241], strides = [1, 1]} : vector<4x256xbf16> to vector<4x241xbf16>
    %52 = tpu.concatenate %51, %50 in 1 : vector<4x241xbf16>, vector<4x15xbf16> -> vector<4x256xbf16>
    %53 = vector.broadcast %0 : vector<1x256xbf16> to vector<4x256xbf16>
    %54 = arith.mulf %52, %53 : vector<4x256xbf16>
    %c6 = arith.constant 6 : index
    %c0_30 = arith.constant 0 : index
    %c0_31 = arith.constant 0 : index
    %55 = vector.load %arg3[%c6, %c0_30, %c0_31] : memref<9x32x4xbf16, #tpu.memory_space<vmem>>, vector<1x32x4xbf16>
    %56 = vector.shape_cast %55 : vector<1x32x4xbf16> to vector<32x4xbf16>
    %cst_32 = arith.constant dense<0.000000e+00> : vector<32x256xf32>
    %57 = tpu.matmul %56, %54, %cst_32 {dimension_numbers = #tpu.dot_dimension_numbers<[1], [0], [0], [1], [0, 0, 1, 1], [], []>} : vector<32x4xbf16>, vector<4x256xbf16>, vector<32x256xf32> -> vector<32x256xf32>
    %58 = arith.addf %49, %57 : vector<32x256xf32>
    %cst_33 = arith.constant 0.000000e+00 : bf16
    %59 = vector.broadcast %cst_33 : bf16 to vector<4x16xbf16>
    %60 = vector.extract_strided_slice %3 {offsets = [0, 16], sizes = [4, 240], strides = [1, 1]} : vector<4x256xbf16> to vector<4x240xbf16>
    %61 = tpu.concatenate %60, %59 in 1 : vector<4x240xbf16>, vector<4x16xbf16> -> vector<4x256xbf16>
    %c7 = arith.constant 7 : index
    %c0_34 = arith.constant 0 : index
    %c0_35 = arith.constant 0 : index
    %62 = vector.load %arg3[%c7, %c0_34, %c0_35] : memref<9x32x4xbf16, #tpu.memory_space<vmem>>, vector<1x32x4xbf16>
    %63 = vector.shape_cast %62 : vector<1x32x4xbf16> to vector<32x4xbf16>
    %cst_36 = arith.constant dense<0.000000e+00> : vector<32x256xf32>
    %64 = tpu.matmul %63, %61, %cst_36 {dimension_numbers = #tpu.dot_dimension_numbers<[1], [0], [0], [1], [0, 0, 1, 1], [], []>} : vector<32x4xbf16>, vector<4x256xbf16>, vector<32x256xf32> -> vector<32x256xf32>
    %65 = arith.addf %58, %64 : vector<32x256xf32>
    %cst_37 = arith.constant 0.000000e+00 : bf16
    %66 = vector.broadcast %cst_37 : bf16 to vector<4x17xbf16>
    %67 = vector.extract_strided_slice %3 {offsets = [0, 17], sizes = [4, 239], strides = [1, 1]} : vector<4x256xbf16> to vector<4x239xbf16>
    %68 = tpu.concatenate %67, %66 in 1 : vector<4x239xbf16>, vector<4x17xbf16> -> vector<4x256xbf16>
    %69 = vector.broadcast %1 : vector<1x256xbf16> to vector<4x256xbf16>
    %70 = arith.mulf %68, %69 : vector<4x256xbf16>
    %c8 = arith.constant 8 : index
    %c0_38 = arith.constant 0 : index
    %c0_39 = arith.constant 0 : index
    %71 = vector.load %arg3[%c8, %c0_38, %c0_39] : memref<9x32x4xbf16, #tpu.memory_space<vmem>>, vector<1x32x4xbf16>
    %72 = vector.shape_cast %71 : vector<1x32x4xbf16> to vector<32x4xbf16>
    %cst_40 = arith.constant dense<0.000000e+00> : vector<32x256xf32>
    %73 = tpu.matmul %72, %70, %cst_40 {dimension_numbers = #tpu.dot_dimension_numbers<[1], [0], [0], [1], [0, 0, 1, 1], [], []>} : vector<32x4xbf16>, vector<4x256xbf16>, vector<32x256xf32> -> vector<32x256xf32>
    %74 = arith.addf %65, %73 : vector<32x256xf32>
    %c0_41 = arith.constant 0 : index
    %c0_42 = arith.constant 0 : index
    %75 = vector.load %arg4[%c0_41, %c0_42] : memref<32x1xf32, #tpu.memory_space<vmem>>, vector<32x1xf32>
    %76 = vector.broadcast %75 : vector<32x1xf32> to vector<32x256xf32>
    %77 = arith.addf %74, %76 : vector<32x256xf32>
    %c0_43 = arith.constant 0 : index
    %c0_44 = arith.constant 0 : index
    %78 = vector.load %arg20[%c0_43, %c0_44] : memref<4x1xf32, #tpu.memory_space<vmem>>, vector<4x1xf32>
    %c0_45 = arith.constant 0 : index
    %c0_46 = arith.constant 0 : index
    %c0_47 = arith.constant 0 : index
    %79 = vector.load %arg19[%c0_45, %c0_46, %c0_47] : memref<4x4x32xbf16, #tpu.memory_space<vmem>>, vector<1x4x32xbf16>
    %80 = vector.shape_cast %79 : vector<1x4x32xbf16> to vector<4x32xbf16>
    %81 = arith.truncf %77 : vector<32x256xf32> to vector<32x256xbf16>
    %cst_48 = arith.constant dense<0.000000e+00> : vector<4x256xf32>
    %82 = tpu.matmul %80, %81, %cst_48 {dimension_numbers = #tpu.dot_dimension_numbers<[1], [0], [0], [1], [0, 0, 1, 1], [], []>} : vector<4x32xbf16>, vector<32x256xbf16>, vector<4x256xf32> -> vector<4x256xf32>
    %83 = vector.broadcast %78 : vector<4x1xf32> to vector<4x256xf32>
    %84 = arith.addf %83, %82 : vector<4x256xf32>
    %85 = arith.truncf %77 : vector<32x256xf32> to vector<32x256xbf16>
    %cst_49 = arith.constant 0.000000e+00 : bf16
    %86 = vector.broadcast %cst_49 : bf16 to vector<32x17xbf16>
    %87 = vector.extract_strided_slice %85 {offsets = [0, 0], sizes = [32, 239], strides = [1, 1]} : vector<32x256xbf16> to vector<32x239xbf16>
    %88 = tpu.concatenate %86, %87 in 1 : vector<32x17xbf16>, vector<32x239xbf16> -> vector<32x256xbf16>
    %89 = vector.broadcast %0 : vector<1x256xbf16> to vector<32x256xbf16>
    %90 = arith.mulf %88, %89 : vector<32x256xbf16>
    %c0_50 = arith.constant 0 : index
    %c0_51 = arith.constant 0 : index
    %c0_52 = arith.constant 0 : index
    %91 = vector.load %arg5[%c0_50, %c0_51, %c0_52] : memref<9x32x32xbf16, #tpu.memory_space<vmem>>, vector<1x32x32xbf16>
    %92 = vector.shape_cast %91 : vector<1x32x32xbf16> to vector<32x32xbf16>
    %cst_53 = arith.constant dense<0.000000e+00> : vector<32x256xf32>
    %93 = tpu.matmul %92, %90, %cst_53 {dimension_numbers = #tpu.dot_dimension_numbers<[1], [0], [0], [1], [0, 0, 1, 1], [], []>} : vector<32x32xbf16>, vector<32x256xbf16>, vector<32x256xf32> -> vector<32x256xf32>
    %cst_54 = arith.constant 0.000000e+00 : bf16
    %94 = vector.broadcast %cst_54 : bf16 to vector<32x16xbf16>
    %95 = vector.extract_strided_slice %85 {offsets = [0, 0], sizes = [32, 240], strides = [1, 1]} : vector<32x256xbf16> to vector<32x240xbf16>
    %96 = tpu.concatenate %94, %95 in 1 : vector<32x16xbf16>, vector<32x240xbf16> -> vector<32x256xbf16>
    %c1_55 = arith.constant 1 : index
    %c0_56 = arith.constant 0 : index
    %c0_57 = arith.constant 0 : index
    %97 = vector.load %arg5[%c1_55, %c0_56, %c0_57] : memref<9x32x32xbf16, #tpu.memory_space<vmem>>, vector<1x32x32xbf16>
    %98 = vector.shape_cast %97 : vector<1x32x32xbf16> to vector<32x32xbf16>
    %cst_58 = arith.constant dense<0.000000e+00> : vector<32x256xf32>
    %99 = tpu.matmul %98, %96, %cst_58 {dimension_numbers = #tpu.dot_dimension_numbers<[1], [0], [0], [1], [0, 0, 1, 1], [], []>} : vector<32x32xbf16>, vector<32x256xbf16>, vector<32x256xf32> -> vector<32x256xf32>
    %100 = arith.addf %93, %99 : vector<32x256xf32>
    %cst_59 = arith.constant 0.000000e+00 : bf16
    %101 = vector.broadcast %cst_59 : bf16 to vector<32x15xbf16>
    %102 = vector.extract_strided_slice %85 {offsets = [0, 0], sizes = [32, 241], strides = [1, 1]} : vector<32x256xbf16> to vector<32x241xbf16>
    %103 = tpu.concatenate %101, %102 in 1 : vector<32x15xbf16>, vector<32x241xbf16> -> vector<32x256xbf16>
    %104 = vector.broadcast %1 : vector<1x256xbf16> to vector<32x256xbf16>
    %105 = arith.mulf %103, %104 : vector<32x256xbf16>
    %c2_60 = arith.constant 2 : index
    %c0_61 = arith.constant 0 : index
    %c0_62 = arith.constant 0 : index
    %106 = vector.load %arg5[%c2_60, %c0_61, %c0_62] : memref<9x32x32xbf16, #tpu.memory_space<vmem>>, vector<1x32x32xbf16>
    %107 = vector.shape_cast %106 : vector<1x32x32xbf16> to vector<32x32xbf16>
    %cst_63 = arith.constant dense<0.000000e+00> : vector<32x256xf32>
    %108 = tpu.matmul %107, %105, %cst_63 {dimension_numbers = #tpu.dot_dimension_numbers<[1], [0], [0], [1], [0, 0, 1, 1], [], []>} : vector<32x32xbf16>, vector<32x256xbf16>, vector<32x256xf32> -> vector<32x256xf32>
    %109 = arith.addf %100, %108 : vector<32x256xf32>
    %cst_64 = arith.constant 0.000000e+00 : bf16
    %110 = vector.broadcast %cst_64 : bf16 to vector<32x1xbf16>
    %111 = vector.extract_strided_slice %85 {offsets = [0, 0], sizes = [32, 255], strides = [1, 1]} : vector<32x256xbf16> to vector<32x255xbf16>
    %112 = tpu.concatenate %110, %111 in 1 : vector<32x1xbf16>, vector<32x255xbf16> -> vector<32x256xbf16>
    %113 = vector.broadcast %0 : vector<1x256xbf16> to vector<32x256xbf16>
    %114 = arith.mulf %112, %113 : vector<32x256xbf16>
    %c3_65 = arith.constant 3 : index
    %c0_66 = arith.constant 0 : index
    %c0_67 = arith.constant 0 : index
    %115 = vector.load %arg5[%c3_65, %c0_66, %c0_67] : memref<9x32x32xbf16, #tpu.memory_space<vmem>>, vector<1x32x32xbf16>
    %116 = vector.shape_cast %115 : vector<1x32x32xbf16> to vector<32x32xbf16>
    %cst_68 = arith.constant dense<0.000000e+00> : vector<32x256xf32>
    %117 = tpu.matmul %116, %114, %cst_68 {dimension_numbers = #tpu.dot_dimension_numbers<[1], [0], [0], [1], [0, 0, 1, 1], [], []>} : vector<32x32xbf16>, vector<32x256xbf16>, vector<32x256xf32> -> vector<32x256xf32>
    %118 = arith.addf %109, %117 : vector<32x256xf32>
    %c4_69 = arith.constant 4 : index
    %c0_70 = arith.constant 0 : index
    %c0_71 = arith.constant 0 : index
    %119 = vector.load %arg5[%c4_69, %c0_70, %c0_71] : memref<9x32x32xbf16, #tpu.memory_space<vmem>>, vector<1x32x32xbf16>
    %120 = vector.shape_cast %119 : vector<1x32x32xbf16> to vector<32x32xbf16>
    %cst_72 = arith.constant dense<0.000000e+00> : vector<32x256xf32>
    %121 = tpu.matmul %120, %85, %cst_72 {dimension_numbers = #tpu.dot_dimension_numbers<[1], [0], [0], [1], [0, 0, 1, 1], [], []>} : vector<32x32xbf16>, vector<32x256xbf16>, vector<32x256xf32> -> vector<32x256xf32>
    %122 = arith.addf %118, %121 : vector<32x256xf32>
    %cst_73 = arith.constant 0.000000e+00 : bf16
    %123 = vector.broadcast %cst_73 : bf16 to vector<32x1xbf16>
    %124 = vector.extract_strided_slice %85 {offsets = [0, 1], sizes = [32, 255], strides = [1, 1]} : vector<32x256xbf16> to vector<32x255xbf16>
    %125 = tpu.concatenate %124, %123 in 1 : vector<32x255xbf16>, vector<32x1xbf16> -> vector<32x256xbf16>
    %126 = vector.broadcast %1 : vector<1x256xbf16> to vector<32x256xbf16>
    %127 = arith.mulf %125, %126 : vector<32x256xbf16>
    %c5_74 = arith.constant 5 : index
    %c0_75 = arith.constant 0 : index
    %c0_76 = arith.constant 0 : index
    %128 = vector.load %arg5[%c5_74, %c0_75, %c0_76] : memref<9x32x32xbf16, #tpu.memory_space<vmem>>, vector<1x32x32xbf16>
    %129 = vector.shape_cast %128 : vector<1x32x32xbf16> to vector<32x32xbf16>
    %cst_77 = arith.constant dense<0.000000e+00> : vector<32x256xf32>
    %130 = tpu.matmul %129, %127, %cst_77 {dimension_numbers = #tpu.dot_dimension_numbers<[1], [0], [0], [1], [0, 0, 1, 1], [], []>} : vector<32x32xbf16>, vector<32x256xbf16>, vector<32x256xf32> -> vector<32x256xf32>
    %131 = arith.addf %122, %130 : vector<32x256xf32>
    %cst_78 = arith.constant 0.000000e+00 : bf16
    %132 = vector.broadcast %cst_78 : bf16 to vector<32x15xbf16>
    %133 = vector.extract_strided_slice %85 {offsets = [0, 15], sizes = [32, 241], strides = [1, 1]} : vector<32x256xbf16> to vector<32x241xbf16>
    %134 = tpu.concatenate %133, %132 in 1 : vector<32x241xbf16>, vector<32x15xbf16> -> vector<32x256xbf16>
    %135 = vector.broadcast %0 : vector<1x256xbf16> to vector<32x256xbf16>
    %136 = arith.mulf %134, %135 : vector<32x256xbf16>
    %c6_79 = arith.constant 6 : index
    %c0_80 = arith.constant 0 : index
    %c0_81 = arith.constant 0 : index
    %137 = vector.load %arg5[%c6_79, %c0_80, %c0_81] : memref<9x32x32xbf16, #tpu.memory_space<vmem>>, vector<1x32x32xbf16>
    %138 = vector.shape_cast %137 : vector<1x32x32xbf16> to vector<32x32xbf16>
    %cst_82 = arith.constant dense<0.000000e+00> : vector<32x256xf32>
    %139 = tpu.matmul %138, %136, %cst_82 {dimension_numbers = #tpu.dot_dimension_numbers<[1], [0], [0], [1], [0, 0, 1, 1], [], []>} : vector<32x32xbf16>, vector<32x256xbf16>, vector<32x256xf32> -> vector<32x256xf32>
    %140 = arith.addf %131, %139 : vector<32x256xf32>
    %cst_83 = arith.constant 0.000000e+00 : bf16
    %141 = vector.broadcast %cst_83 : bf16 to vector<32x16xbf16>
    %142 = vector.extract_strided_slice %85 {offsets = [0, 16], sizes = [32, 240], strides = [1, 1]} : vector<32x256xbf16> to vector<32x240xbf16>
    %143 = tpu.concatenate %142, %141 in 1 : vector<32x240xbf16>, vector<32x16xbf16> -> vector<32x256xbf16>
    %c7_84 = arith.constant 7 : index
    %c0_85 = arith.constant 0 : index
    %c0_86 = arith.constant 0 : index
    %144 = vector.load %arg5[%c7_84, %c0_85, %c0_86] : memref<9x32x32xbf16, #tpu.memory_space<vmem>>, vector<1x32x32xbf16>
    %145 = vector.shape_cast %144 : vector<1x32x32xbf16> to vector<32x32xbf16>
    %cst_87 = arith.constant dense<0.000000e+00> : vector<32x256xf32>
    %146 = tpu.matmul %145, %143, %cst_87 {dimension_numbers = #tpu.dot_dimension_numbers<[1], [0], [0], [1], [0, 0, 1, 1], [], []>} : vector<32x32xbf16>, vector<32x256xbf16>, vector<32x256xf32> -> vector<32x256xf32>
    %147 = arith.addf %140, %146 : vector<32x256xf32>
    %cst_88 = arith.constant 0.000000e+00 : bf16
    %148 = vector.broadcast %cst_88 : bf16 to vector<32x17xbf16>
    %149 = vector.extract_strided_slice %85 {offsets = [0, 17], sizes = [32, 239], strides = [1, 1]} : vector<32x256xbf16> to vector<32x239xbf16>
    %150 = tpu.concatenate %149, %148 in 1 : vector<32x239xbf16>, vector<32x17xbf16> -> vector<32x256xbf16>
    %151 = vector.broadcast %1 : vector<1x256xbf16> to vector<32x256xbf16>
    %152 = arith.mulf %150, %151 : vector<32x256xbf16>
    %c8_89 = arith.constant 8 : index
    %c0_90 = arith.constant 0 : index
    %c0_91 = arith.constant 0 : index
    %153 = vector.load %arg5[%c8_89, %c0_90, %c0_91] : memref<9x32x32xbf16, #tpu.memory_space<vmem>>, vector<1x32x32xbf16>
    %154 = vector.shape_cast %153 : vector<1x32x32xbf16> to vector<32x32xbf16>
    %cst_92 = arith.constant dense<0.000000e+00> : vector<32x256xf32>
    %155 = tpu.matmul %154, %152, %cst_92 {dimension_numbers = #tpu.dot_dimension_numbers<[1], [0], [0], [1], [0, 0, 1, 1], [], []>} : vector<32x32xbf16>, vector<32x256xbf16>, vector<32x256xf32> -> vector<32x256xf32>
    %156 = arith.addf %147, %155 : vector<32x256xf32>
    %c0_93 = arith.constant 0 : index
    %c0_94 = arith.constant 0 : index
    %157 = vector.load %arg6[%c0_93, %c0_94] : memref<32x1xf32, #tpu.memory_space<vmem>>, vector<32x1xf32>
    %158 = vector.broadcast %157 : vector<32x1xf32> to vector<32x256xf32>
    %159 = arith.addf %156, %158 : vector<32x256xf32>
    %cst_95 = arith.constant 0.000000e+00 : f32
    %160 = vector.broadcast %cst_95 : f32 to vector<32x256xf32>
    %161 = arith.subf %160, %159 : vector<32x256xf32>
    %162 = math.exp %161 : vector<32x256xf32>
    %cst_96 = arith.constant 1.000000e+00 : f32
    %163 = vector.broadcast %cst_96 : f32 to vector<32x256xf32>
    %164 = arith.addf %163, %162 : vector<32x256xf32>
    %165 = tpu.reciprocal %164 {approx = true} : vector<32x256xf32> -> vector<32x256xf32>
    %166 = arith.mulf %159, %165 : vector<32x256xf32>
    %167 = arith.truncf %166 : vector<32x256xf32> to vector<32x256xbf16>
    %cst_97 = arith.constant 0.000000e+00 : bf16
    %168 = vector.broadcast %cst_97 : bf16 to vector<32x17xbf16>
    %169 = vector.extract_strided_slice %167 {offsets = [0, 0], sizes = [32, 239], strides = [1, 1]} : vector<32x256xbf16> to vector<32x239xbf16>
    %170 = tpu.concatenate %168, %169 in 1 : vector<32x17xbf16>, vector<32x239xbf16> -> vector<32x256xbf16>
    %171 = vector.broadcast %0 : vector<1x256xbf16> to vector<32x256xbf16>
    %172 = arith.mulf %170, %171 : vector<32x256xbf16>
    %c0_98 = arith.constant 0 : index
    %c0_99 = arith.constant 0 : index
    %c0_100 = arith.constant 0 : index
    %173 = vector.load %arg7[%c0_98, %c0_99, %c0_100] : memref<9x32x32xbf16, #tpu.memory_space<vmem>>, vector<1x32x32xbf16>
    %174 = vector.shape_cast %173 : vector<1x32x32xbf16> to vector<32x32xbf16>
    %cst_101 = arith.constant dense<0.000000e+00> : vector<32x256xf32>
    %175 = tpu.matmul %174, %172, %cst_101 {dimension_numbers = #tpu.dot_dimension_numbers<[1], [0], [0], [1], [0, 0, 1, 1], [], []>} : vector<32x32xbf16>, vector<32x256xbf16>, vector<32x256xf32> -> vector<32x256xf32>
    %cst_102 = arith.constant 0.000000e+00 : bf16
    %176 = vector.broadcast %cst_102 : bf16 to vector<32x16xbf16>
    %177 = vector.extract_strided_slice %167 {offsets = [0, 0], sizes = [32, 240], strides = [1, 1]} : vector<32x256xbf16> to vector<32x240xbf16>
    %178 = tpu.concatenate %176, %177 in 1 : vector<32x16xbf16>, vector<32x240xbf16> -> vector<32x256xbf16>
    %c1_103 = arith.constant 1 : index
    %c0_104 = arith.constant 0 : index
    %c0_105 = arith.constant 0 : index
    %179 = vector.load %arg7[%c1_103, %c0_104, %c0_105] : memref<9x32x32xbf16, #tpu.memory_space<vmem>>, vector<1x32x32xbf16>
    %180 = vector.shape_cast %179 : vector<1x32x32xbf16> to vector<32x32xbf16>
    %cst_106 = arith.constant dense<0.000000e+00> : vector<32x256xf32>
    %181 = tpu.matmul %180, %178, %cst_106 {dimension_numbers = #tpu.dot_dimension_numbers<[1], [0], [0], [1], [0, 0, 1, 1], [], []>} : vector<32x32xbf16>, vector<32x256xbf16>, vector<32x256xf32> -> vector<32x256xf32>
    %182 = arith.addf %175, %181 : vector<32x256xf32>
    %cst_107 = arith.constant 0.000000e+00 : bf16
    %183 = vector.broadcast %cst_107 : bf16 to vector<32x15xbf16>
    %184 = vector.extract_strided_slice %167 {offsets = [0, 0], sizes = [32, 241], strides = [1, 1]} : vector<32x256xbf16> to vector<32x241xbf16>
    %185 = tpu.concatenate %183, %184 in 1 : vector<32x15xbf16>, vector<32x241xbf16> -> vector<32x256xbf16>
    %186 = vector.broadcast %1 : vector<1x256xbf16> to vector<32x256xbf16>
    %187 = arith.mulf %185, %186 : vector<32x256xbf16>
    %c2_108 = arith.constant 2 : index
    %c0_109 = arith.constant 0 : index
    %c0_110 = arith.constant 0 : index
    %188 = vector.load %arg7[%c2_108, %c0_109, %c0_110] : memref<9x32x32xbf16, #tpu.memory_space<vmem>>, vector<1x32x32xbf16>
    %189 = vector.shape_cast %188 : vector<1x32x32xbf16> to vector<32x32xbf16>
    %cst_111 = arith.constant dense<0.000000e+00> : vector<32x256xf32>
    %190 = tpu.matmul %189, %187, %cst_111 {dimension_numbers = #tpu.dot_dimension_numbers<[1], [0], [0], [1], [0, 0, 1, 1], [], []>} : vector<32x32xbf16>, vector<32x256xbf16>, vector<32x256xf32> -> vector<32x256xf32>
    %191 = arith.addf %182, %190 : vector<32x256xf32>
    %cst_112 = arith.constant 0.000000e+00 : bf16
    %192 = vector.broadcast %cst_112 : bf16 to vector<32x1xbf16>
    %193 = vector.extract_strided_slice %167 {offsets = [0, 0], sizes = [32, 255], strides = [1, 1]} : vector<32x256xbf16> to vector<32x255xbf16>
    %194 = tpu.concatenate %192, %193 in 1 : vector<32x1xbf16>, vector<32x255xbf16> -> vector<32x256xbf16>
    %195 = vector.broadcast %0 : vector<1x256xbf16> to vector<32x256xbf16>
    %196 = arith.mulf %194, %195 : vector<32x256xbf16>
    %c3_113 = arith.constant 3 : index
    %c0_114 = arith.constant 0 : index
    %c0_115 = arith.constant 0 : index
    %197 = vector.load %arg7[%c3_113, %c0_114, %c0_115] : memref<9x32x32xbf16, #tpu.memory_space<vmem>>, vector<1x32x32xbf16>
    %198 = vector.shape_cast %197 : vector<1x32x32xbf16> to vector<32x32xbf16>
    %cst_116 = arith.constant dense<0.000000e+00> : vector<32x256xf32>
    %199 = tpu.matmul %198, %196, %cst_116 {dimension_numbers = #tpu.dot_dimension_numbers<[1], [0], [0], [1], [0, 0, 1, 1], [], []>} : vector<32x32xbf16>, vector<32x256xbf16>, vector<32x256xf32> -> vector<32x256xf32>
    %200 = arith.addf %191, %199 : vector<32x256xf32>
    %c4_117 = arith.constant 4 : index
    %c0_118 = arith.constant 0 : index
    %c0_119 = arith.constant 0 : index
    %201 = vector.load %arg7[%c4_117, %c0_118, %c0_119] : memref<9x32x32xbf16, #tpu.memory_space<vmem>>, vector<1x32x32xbf16>
    %202 = vector.shape_cast %201 : vector<1x32x32xbf16> to vector<32x32xbf16>
    %cst_120 = arith.constant dense<0.000000e+00> : vector<32x256xf32>
    %203 = tpu.matmul %202, %167, %cst_120 {dimension_numbers = #tpu.dot_dimension_numbers<[1], [0], [0], [1], [0, 0, 1, 1], [], []>} : vector<32x32xbf16>, vector<32x256xbf16>, vector<32x256xf32> -> vector<32x256xf32>
    %204 = arith.addf %200, %203 : vector<32x256xf32>
    %cst_121 = arith.constant 0.000000e+00 : bf16
    %205 = vector.broadcast %cst_121 : bf16 to vector<32x1xbf16>
    %206 = vector.extract_strided_slice %167 {offsets = [0, 1], sizes = [32, 255], strides = [1, 1]} : vector<32x256xbf16> to vector<32x255xbf16>
    %207 = tpu.concatenate %206, %205 in 1 : vector<32x255xbf16>, vector<32x1xbf16> -> vector<32x256xbf16>
    %208 = vector.broadcast %1 : vector<1x256xbf16> to vector<32x256xbf16>
    %209 = arith.mulf %207, %208 : vector<32x256xbf16>
    %c5_122 = arith.constant 5 : index
    %c0_123 = arith.constant 0 : index
    %c0_124 = arith.constant 0 : index
    %210 = vector.load %arg7[%c5_122, %c0_123, %c0_124] : memref<9x32x32xbf16, #tpu.memory_space<vmem>>, vector<1x32x32xbf16>
    %211 = vector.shape_cast %210 : vector<1x32x32xbf16> to vector<32x32xbf16>
    %cst_125 = arith.constant dense<0.000000e+00> : vector<32x256xf32>
    %212 = tpu.matmul %211, %209, %cst_125 {dimension_numbers = #tpu.dot_dimension_numbers<[1], [0], [0], [1], [0, 0, 1, 1], [], []>} : vector<32x32xbf16>, vector<32x256xbf16>, vector<32x256xf32> -> vector<32x256xf32>
    %213 = arith.addf %204, %212 : vector<32x256xf32>
    %cst_126 = arith.constant 0.000000e+00 : bf16
    %214 = vector.broadcast %cst_126 : bf16 to vector<32x15xbf16>
    %215 = vector.extract_strided_slice %167 {offsets = [0, 15], sizes = [32, 241], strides = [1, 1]} : vector<32x256xbf16> to vector<32x241xbf16>
    %216 = tpu.concatenate %215, %214 in 1 : vector<32x241xbf16>, vector<32x15xbf16> -> vector<32x256xbf16>
    %217 = vector.broadcast %0 : vector<1x256xbf16> to vector<32x256xbf16>
    %218 = arith.mulf %216, %217 : vector<32x256xbf16>
    %c6_127 = arith.constant 6 : index
    %c0_128 = arith.constant 0 : index
    %c0_129 = arith.constant 0 : index
    %219 = vector.load %arg7[%c6_127, %c0_128, %c0_129] : memref<9x32x32xbf16, #tpu.memory_space<vmem>>, vector<1x32x32xbf16>
    %220 = vector.shape_cast %219 : vector<1x32x32xbf16> to vector<32x32xbf16>
    %cst_130 = arith.constant dense<0.000000e+00> : vector<32x256xf32>
    %221 = tpu.matmul %220, %218, %cst_130 {dimension_numbers = #tpu.dot_dimension_numbers<[1], [0], [0], [1], [0, 0, 1, 1], [], []>} : vector<32x32xbf16>, vector<32x256xbf16>, vector<32x256xf32> -> vector<32x256xf32>
    %222 = arith.addf %213, %221 : vector<32x256xf32>
    %cst_131 = arith.constant 0.000000e+00 : bf16
    %223 = vector.broadcast %cst_131 : bf16 to vector<32x16xbf16>
    %224 = vector.extract_strided_slice %167 {offsets = [0, 16], sizes = [32, 240], strides = [1, 1]} : vector<32x256xbf16> to vector<32x240xbf16>
    %225 = tpu.concatenate %224, %223 in 1 : vector<32x240xbf16>, vector<32x16xbf16> -> vector<32x256xbf16>
    %c7_132 = arith.constant 7 : index
    %c0_133 = arith.constant 0 : index
    %c0_134 = arith.constant 0 : index
    %226 = vector.load %arg7[%c7_132, %c0_133, %c0_134] : memref<9x32x32xbf16, #tpu.memory_space<vmem>>, vector<1x32x32xbf16>
    %227 = vector.shape_cast %226 : vector<1x32x32xbf16> to vector<32x32xbf16>
    %cst_135 = arith.constant dense<0.000000e+00> : vector<32x256xf32>
    %228 = tpu.matmul %227, %225, %cst_135 {dimension_numbers = #tpu.dot_dimension_numbers<[1], [0], [0], [1], [0, 0, 1, 1], [], []>} : vector<32x32xbf16>, vector<32x256xbf16>, vector<32x256xf32> -> vector<32x256xf32>
    %229 = arith.addf %222, %228 : vector<32x256xf32>
    %cst_136 = arith.constant 0.000000e+00 : bf16
    %230 = vector.broadcast %cst_136 : bf16 to vector<32x17xbf16>
    %231 = vector.extract_strided_slice %167 {offsets = [0, 17], sizes = [32, 239], strides = [1, 1]} : vector<32x256xbf16> to vector<32x239xbf16>
    %232 = tpu.concatenate %231, %230 in 1 : vector<32x239xbf16>, vector<32x17xbf16> -> vector<32x256xbf16>
    %233 = vector.broadcast %1 : vector<1x256xbf16> to vector<32x256xbf16>
    %234 = arith.mulf %232, %233 : vector<32x256xbf16>
    %c8_137 = arith.constant 8 : index
    %c0_138 = arith.constant 0 : index
    %c0_139 = arith.constant 0 : index
    %235 = vector.load %arg7[%c8_137, %c0_138, %c0_139] : memref<9x32x32xbf16, #tpu.memory_space<vmem>>, vector<1x32x32xbf16>
    %236 = vector.shape_cast %235 : vector<1x32x32xbf16> to vector<32x32xbf16>
    %cst_140 = arith.constant dense<0.000000e+00> : vector<32x256xf32>
    %237 = tpu.matmul %236, %234, %cst_140 {dimension_numbers = #tpu.dot_dimension_numbers<[1], [0], [0], [1], [0, 0, 1, 1], [], []>} : vector<32x32xbf16>, vector<32x256xbf16>, vector<32x256xf32> -> vector<32x256xf32>
    %238 = arith.addf %229, %237 : vector<32x256xf32>
    %c0_141 = arith.constant 0 : index
    %c0_142 = arith.constant 0 : index
    %239 = vector.load %arg8[%c0_141, %c0_142] : memref<32x1xf32, #tpu.memory_space<vmem>>, vector<32x1xf32>
    %240 = vector.broadcast %239 : vector<32x1xf32> to vector<32x256xf32>
    %241 = arith.addf %238, %240 : vector<32x256xf32>
    %cst_143 = arith.constant 0.000000e+00 : f32
    %242 = vector.broadcast %cst_143 : f32 to vector<32x256xf32>
    %243 = arith.subf %242, %241 : vector<32x256xf32>
    %244 = math.exp %243 : vector<32x256xf32>
    %cst_144 = arith.constant 1.000000e+00 : f32
    %245 = vector.broadcast %cst_144 : f32 to vector<32x256xf32>
    %246 = arith.addf %245, %244 : vector<32x256xf32>
    %247 = tpu.reciprocal %246 {approx = true} : vector<32x256xf32> -> vector<32x256xf32>
    %248 = arith.mulf %241, %247 : vector<32x256xf32>
    %249 = arith.truncf %248 : vector<32x256xf32> to vector<32x256xbf16>
    %cst_145 = arith.constant 0.000000e+00 : bf16
    %250 = vector.broadcast %cst_145 : bf16 to vector<32x17xbf16>
    %251 = vector.extract_strided_slice %249 {offsets = [0, 0], sizes = [32, 239], strides = [1, 1]} : vector<32x256xbf16> to vector<32x239xbf16>
    %252 = tpu.concatenate %250, %251 in 1 : vector<32x17xbf16>, vector<32x239xbf16> -> vector<32x256xbf16>
    %253 = vector.broadcast %0 : vector<1x256xbf16> to vector<32x256xbf16>
    %254 = arith.mulf %252, %253 : vector<32x256xbf16>
    %c0_146 = arith.constant 0 : index
    %c0_147 = arith.constant 0 : index
    %c0_148 = arith.constant 0 : index
    %255 = vector.load %arg9[%c0_146, %c0_147, %c0_148] : memref<9x32x32xbf16, #tpu.memory_space<vmem>>, vector<1x32x32xbf16>
    %256 = vector.shape_cast %255 : vector<1x32x32xbf16> to vector<32x32xbf16>
    %cst_149 = arith.constant dense<0.000000e+00> : vector<32x256xf32>
    %257 = tpu.matmul %256, %254, %cst_149 {dimension_numbers = #tpu.dot_dimension_numbers<[1], [0], [0], [1], [0, 0, 1, 1], [], []>} : vector<32x32xbf16>, vector<32x256xbf16>, vector<32x256xf32> -> vector<32x256xf32>
    %cst_150 = arith.constant 0.000000e+00 : bf16
    %258 = vector.broadcast %cst_150 : bf16 to vector<32x16xbf16>
    %259 = vector.extract_strided_slice %249 {offsets = [0, 0], sizes = [32, 240], strides = [1, 1]} : vector<32x256xbf16> to vector<32x240xbf16>
    %260 = tpu.concatenate %258, %259 in 1 : vector<32x16xbf16>, vector<32x240xbf16> -> vector<32x256xbf16>
    %c1_151 = arith.constant 1 : index
    %c0_152 = arith.constant 0 : index
    %c0_153 = arith.constant 0 : index
    %261 = vector.load %arg9[%c1_151, %c0_152, %c0_153] : memref<9x32x32xbf16, #tpu.memory_space<vmem>>, vector<1x32x32xbf16>
    %262 = vector.shape_cast %261 : vector<1x32x32xbf16> to vector<32x32xbf16>
    %cst_154 = arith.constant dense<0.000000e+00> : vector<32x256xf32>
    %263 = tpu.matmul %262, %260, %cst_154 {dimension_numbers = #tpu.dot_dimension_numbers<[1], [0], [0], [1], [0, 0, 1, 1], [], []>} : vector<32x32xbf16>, vector<32x256xbf16>, vector<32x256xf32> -> vector<32x256xf32>
    %264 = arith.addf %257, %263 : vector<32x256xf32>
    %cst_155 = arith.constant 0.000000e+00 : bf16
    %265 = vector.broadcast %cst_155 : bf16 to vector<32x15xbf16>
    %266 = vector.extract_strided_slice %249 {offsets = [0, 0], sizes = [32, 241], strides = [1, 1]} : vector<32x256xbf16> to vector<32x241xbf16>
    %267 = tpu.concatenate %265, %266 in 1 : vector<32x15xbf16>, vector<32x241xbf16> -> vector<32x256xbf16>
    %268 = vector.broadcast %1 : vector<1x256xbf16> to vector<32x256xbf16>
    %269 = arith.mulf %267, %268 : vector<32x256xbf16>
    %c2_156 = arith.constant 2 : index
    %c0_157 = arith.constant 0 : index
    %c0_158 = arith.constant 0 : index
    %270 = vector.load %arg9[%c2_156, %c0_157, %c0_158] : memref<9x32x32xbf16, #tpu.memory_space<vmem>>, vector<1x32x32xbf16>
    %271 = vector.shape_cast %270 : vector<1x32x32xbf16> to vector<32x32xbf16>
    %cst_159 = arith.constant dense<0.000000e+00> : vector<32x256xf32>
    %272 = tpu.matmul %271, %269, %cst_159 {dimension_numbers = #tpu.dot_dimension_numbers<[1], [0], [0], [1], [0, 0, 1, 1], [], []>} : vector<32x32xbf16>, vector<32x256xbf16>, vector<32x256xf32> -> vector<32x256xf32>
    %273 = arith.addf %264, %272 : vector<32x256xf32>
    %cst_160 = arith.constant 0.000000e+00 : bf16
    %274 = vector.broadcast %cst_160 : bf16 to vector<32x1xbf16>
    %275 = vector.extract_strided_slice %249 {offsets = [0, 0], sizes = [32, 255], strides = [1, 1]} : vector<32x256xbf16> to vector<32x255xbf16>
    %276 = tpu.concatenate %274, %275 in 1 : vector<32x1xbf16>, vector<32x255xbf16> -> vector<32x256xbf16>
    %277 = vector.broadcast %0 : vector<1x256xbf16> to vector<32x256xbf16>
    %278 = arith.mulf %276, %277 : vector<32x256xbf16>
    %c3_161 = arith.constant 3 : index
    %c0_162 = arith.constant 0 : index
    %c0_163 = arith.constant 0 : index
    %279 = vector.load %arg9[%c3_161, %c0_162, %c0_163] : memref<9x32x32xbf16, #tpu.memory_space<vmem>>, vector<1x32x32xbf16>
    %280 = vector.shape_cast %279 : vector<1x32x32xbf16> to vector<32x32xbf16>
    %cst_164 = arith.constant dense<0.000000e+00> : vector<32x256xf32>
    %281 = tpu.matmul %280, %278, %cst_164 {dimension_numbers = #tpu.dot_dimension_numbers<[1], [0], [0], [1], [0, 0, 1, 1], [], []>} : vector<32x32xbf16>, vector<32x256xbf16>, vector<32x256xf32> -> vector<32x256xf32>
    %282 = arith.addf %273, %281 : vector<32x256xf32>
    %c4_165 = arith.constant 4 : index
    %c0_166 = arith.constant 0 : index
    %c0_167 = arith.constant 0 : index
    %283 = vector.load %arg9[%c4_165, %c0_166, %c0_167] : memref<9x32x32xbf16, #tpu.memory_space<vmem>>, vector<1x32x32xbf16>
    %284 = vector.shape_cast %283 : vector<1x32x32xbf16> to vector<32x32xbf16>
    %cst_168 = arith.constant dense<0.000000e+00> : vector<32x256xf32>
    %285 = tpu.matmul %284, %249, %cst_168 {dimension_numbers = #tpu.dot_dimension_numbers<[1], [0], [0], [1], [0, 0, 1, 1], [], []>} : vector<32x32xbf16>, vector<32x256xbf16>, vector<32x256xf32> -> vector<32x256xf32>
    %286 = arith.addf %282, %285 : vector<32x256xf32>
    %cst_169 = arith.constant 0.000000e+00 : bf16
    %287 = vector.broadcast %cst_169 : bf16 to vector<32x1xbf16>
    %288 = vector.extract_strided_slice %249 {offsets = [0, 1], sizes = [32, 255], strides = [1, 1]} : vector<32x256xbf16> to vector<32x255xbf16>
    %289 = tpu.concatenate %288, %287 in 1 : vector<32x255xbf16>, vector<32x1xbf16> -> vector<32x256xbf16>
    %290 = vector.broadcast %1 : vector<1x256xbf16> to vector<32x256xbf16>
    %291 = arith.mulf %289, %290 : vector<32x256xbf16>
    %c5_170 = arith.constant 5 : index
    %c0_171 = arith.constant 0 : index
    %c0_172 = arith.constant 0 : index
    %292 = vector.load %arg9[%c5_170, %c0_171, %c0_172] : memref<9x32x32xbf16, #tpu.memory_space<vmem>>, vector<1x32x32xbf16>
    %293 = vector.shape_cast %292 : vector<1x32x32xbf16> to vector<32x32xbf16>
    %cst_173 = arith.constant dense<0.000000e+00> : vector<32x256xf32>
    %294 = tpu.matmul %293, %291, %cst_173 {dimension_numbers = #tpu.dot_dimension_numbers<[1], [0], [0], [1], [0, 0, 1, 1], [], []>} : vector<32x32xbf16>, vector<32x256xbf16>, vector<32x256xf32> -> vector<32x256xf32>
    %295 = arith.addf %286, %294 : vector<32x256xf32>
    %cst_174 = arith.constant 0.000000e+00 : bf16
    %296 = vector.broadcast %cst_174 : bf16 to vector<32x15xbf16>
    %297 = vector.extract_strided_slice %249 {offsets = [0, 15], sizes = [32, 241], strides = [1, 1]} : vector<32x256xbf16> to vector<32x241xbf16>
    %298 = tpu.concatenate %297, %296 in 1 : vector<32x241xbf16>, vector<32x15xbf16> -> vector<32x256xbf16>
    %299 = vector.broadcast %0 : vector<1x256xbf16> to vector<32x256xbf16>
    %300 = arith.mulf %298, %299 : vector<32x256xbf16>
    %c6_175 = arith.constant 6 : index
    %c0_176 = arith.constant 0 : index
    %c0_177 = arith.constant 0 : index
    %301 = vector.load %arg9[%c6_175, %c0_176, %c0_177] : memref<9x32x32xbf16, #tpu.memory_space<vmem>>, vector<1x32x32xbf16>
    %302 = vector.shape_cast %301 : vector<1x32x32xbf16> to vector<32x32xbf16>
    %cst_178 = arith.constant dense<0.000000e+00> : vector<32x256xf32>
    %303 = tpu.matmul %302, %300, %cst_178 {dimension_numbers = #tpu.dot_dimension_numbers<[1], [0], [0], [1], [0, 0, 1, 1], [], []>} : vector<32x32xbf16>, vector<32x256xbf16>, vector<32x256xf32> -> vector<32x256xf32>
    %304 = arith.addf %295, %303 : vector<32x256xf32>
    %cst_179 = arith.constant 0.000000e+00 : bf16
    %305 = vector.broadcast %cst_179 : bf16 to vector<32x16xbf16>
    %306 = vector.extract_strided_slice %249 {offsets = [0, 16], sizes = [32, 240], strides = [1, 1]} : vector<32x256xbf16> to vector<32x240xbf16>
    %307 = tpu.concatenate %306, %305 in 1 : vector<32x240xbf16>, vector<32x16xbf16> -> vector<32x256xbf16>
    %c7_180 = arith.constant 7 : index
    %c0_181 = arith.constant 0 : index
    %c0_182 = arith.constant 0 : index
    %308 = vector.load %arg9[%c7_180, %c0_181, %c0_182] : memref<9x32x32xbf16, #tpu.memory_space<vmem>>, vector<1x32x32xbf16>
    %309 = vector.shape_cast %308 : vector<1x32x32xbf16> to vector<32x32xbf16>
    %cst_183 = arith.constant dense<0.000000e+00> : vector<32x256xf32>
    %310 = tpu.matmul %309, %307, %cst_183 {dimension_numbers = #tpu.dot_dimension_numbers<[1], [0], [0], [1], [0, 0, 1, 1], [], []>} : vector<32x32xbf16>, vector<32x256xbf16>, vector<32x256xf32> -> vector<32x256xf32>
    %311 = arith.addf %304, %310 : vector<32x256xf32>
    %cst_184 = arith.constant 0.000000e+00 : bf16
    %312 = vector.broadcast %cst_184 : bf16 to vector<32x17xbf16>
    %313 = vector.extract_strided_slice %249 {offsets = [0, 17], sizes = [32, 239], strides = [1, 1]} : vector<32x256xbf16> to vector<32x239xbf16>
    %314 = tpu.concatenate %313, %312 in 1 : vector<32x239xbf16>, vector<32x17xbf16> -> vector<32x256xbf16>
    %315 = vector.broadcast %1 : vector<1x256xbf16> to vector<32x256xbf16>
    %316 = arith.mulf %314, %315 : vector<32x256xbf16>
    %c8_185 = arith.constant 8 : index
    %c0_186 = arith.constant 0 : index
    %c0_187 = arith.constant 0 : index
    %317 = vector.load %arg9[%c8_185, %c0_186, %c0_187] : memref<9x32x32xbf16, #tpu.memory_space<vmem>>, vector<1x32x32xbf16>
    %318 = vector.shape_cast %317 : vector<1x32x32xbf16> to vector<32x32xbf16>
    %cst_188 = arith.constant dense<0.000000e+00> : vector<32x256xf32>
    %319 = tpu.matmul %318, %316, %cst_188 {dimension_numbers = #tpu.dot_dimension_numbers<[1], [0], [0], [1], [0, 0, 1, 1], [], []>} : vector<32x32xbf16>, vector<32x256xbf16>, vector<32x256xf32> -> vector<32x256xf32>
    %320 = arith.addf %311, %319 : vector<32x256xf32>
    %c0_189 = arith.constant 0 : index
    %c0_190 = arith.constant 0 : index
    %321 = vector.load %arg10[%c0_189, %c0_190] : memref<32x1xf32, #tpu.memory_space<vmem>>, vector<32x1xf32>
    %322 = vector.broadcast %321 : vector<32x1xf32> to vector<32x256xf32>
    %323 = arith.addf %320, %322 : vector<32x256xf32>
    %cst_191 = arith.constant 0.000000e+00 : f32
    %324 = vector.broadcast %cst_191 : f32 to vector<32x256xf32>
    %325 = arith.subf %324, %323 : vector<32x256xf32>
    %326 = math.exp %325 : vector<32x256xf32>
    %cst_192 = arith.constant 1.000000e+00 : f32
    %327 = vector.broadcast %cst_192 : f32 to vector<32x256xf32>
    %328 = arith.addf %327, %326 : vector<32x256xf32>
    %329 = tpu.reciprocal %328 {approx = true} : vector<32x256xf32> -> vector<32x256xf32>
    %cst_193 = arith.constant 5.000000e-01 : f32
    %330 = vector.broadcast %cst_193 : f32 to vector<32x256xf32>
    %331 = arith.subf %329, %330 : vector<32x256xf32>
    %332 = arith.addf %323, %77 : vector<32x256xf32>
    %333 = arith.mulf %332, %331 : vector<32x256xf32>
    %c2_194 = arith.constant 2 : index
    %c0_195 = arith.constant 0 : index
    %c0_196 = arith.constant 0 : index
    %334 = vector.load %arg19[%c2_194, %c0_195, %c0_196] : memref<4x4x32xbf16, #tpu.memory_space<vmem>>, vector<1x4x32xbf16>
    %335 = vector.shape_cast %334 : vector<1x4x32xbf16> to vector<4x32xbf16>
    %336 = arith.truncf %333 : vector<32x256xf32> to vector<32x256xbf16>
    %cst_197 = arith.constant dense<0.000000e+00> : vector<4x256xf32>
    %337 = tpu.matmul %335, %336, %cst_197 {dimension_numbers = #tpu.dot_dimension_numbers<[1], [0], [0], [1], [0, 0, 1, 1], [], []>} : vector<4x32xbf16>, vector<32x256xbf16>, vector<4x256xf32> -> vector<4x256xf32>
    %338 = arith.addf %84, %337 : vector<4x256xf32>
    %339 = arith.truncf %333 : vector<32x256xf32> to vector<32x256xbf16>
    %cst_198 = arith.constant 0.000000e+00 : bf16
    %340 = vector.broadcast %cst_198 : bf16 to vector<32x17xbf16>
    %341 = vector.extract_strided_slice %339 {offsets = [0, 0], sizes = [32, 239], strides = [1, 1]} : vector<32x256xbf16> to vector<32x239xbf16>
    %342 = tpu.concatenate %340, %341 in 1 : vector<32x17xbf16>, vector<32x239xbf16> -> vector<32x256xbf16>
    %343 = vector.broadcast %0 : vector<1x256xbf16> to vector<32x256xbf16>
    %344 = arith.mulf %342, %343 : vector<32x256xbf16>
    %c0_199 = arith.constant 0 : index
    %c0_200 = arith.constant 0 : index
    %c0_201 = arith.constant 0 : index
    %345 = vector.load %arg11[%c0_199, %c0_200, %c0_201] : memref<9x32x32xbf16, #tpu.memory_space<vmem>>, vector<1x32x32xbf16>
    %346 = vector.shape_cast %345 : vector<1x32x32xbf16> to vector<32x32xbf16>
    %cst_202 = arith.constant dense<0.000000e+00> : vector<32x256xf32>
    %347 = tpu.matmul %346, %344, %cst_202 {dimension_numbers = #tpu.dot_dimension_numbers<[1], [0], [0], [1], [0, 0, 1, 1], [], []>} : vector<32x32xbf16>, vector<32x256xbf16>, vector<32x256xf32> -> vector<32x256xf32>
    %cst_203 = arith.constant 0.000000e+00 : bf16
    %348 = vector.broadcast %cst_203 : bf16 to vector<32x16xbf16>
    %349 = vector.extract_strided_slice %339 {offsets = [0, 0], sizes = [32, 240], strides = [1, 1]} : vector<32x256xbf16> to vector<32x240xbf16>
    %350 = tpu.concatenate %348, %349 in 1 : vector<32x16xbf16>, vector<32x240xbf16> -> vector<32x256xbf16>
    %c1_204 = arith.constant 1 : index
    %c0_205 = arith.constant 0 : index
    %c0_206 = arith.constant 0 : index
    %351 = vector.load %arg11[%c1_204, %c0_205, %c0_206] : memref<9x32x32xbf16, #tpu.memory_space<vmem>>, vector<1x32x32xbf16>
    %352 = vector.shape_cast %351 : vector<1x32x32xbf16> to vector<32x32xbf16>
    %cst_207 = arith.constant dense<0.000000e+00> : vector<32x256xf32>
    %353 = tpu.matmul %352, %350, %cst_207 {dimension_numbers = #tpu.dot_dimension_numbers<[1], [0], [0], [1], [0, 0, 1, 1], [], []>} : vector<32x32xbf16>, vector<32x256xbf16>, vector<32x256xf32> -> vector<32x256xf32>
    %354 = arith.addf %347, %353 : vector<32x256xf32>
    %cst_208 = arith.constant 0.000000e+00 : bf16
    %355 = vector.broadcast %cst_208 : bf16 to vector<32x15xbf16>
    %356 = vector.extract_strided_slice %339 {offsets = [0, 0], sizes = [32, 241], strides = [1, 1]} : vector<32x256xbf16> to vector<32x241xbf16>
    %357 = tpu.concatenate %355, %356 in 1 : vector<32x15xbf16>, vector<32x241xbf16> -> vector<32x256xbf16>
    %358 = vector.broadcast %1 : vector<1x256xbf16> to vector<32x256xbf16>
    %359 = arith.mulf %357, %358 : vector<32x256xbf16>
    %c2_209 = arith.constant 2 : index
    %c0_210 = arith.constant 0 : index
    %c0_211 = arith.constant 0 : index
    %360 = vector.load %arg11[%c2_209, %c0_210, %c0_211] : memref<9x32x32xbf16, #tpu.memory_space<vmem>>, vector<1x32x32xbf16>
    %361 = vector.shape_cast %360 : vector<1x32x32xbf16> to vector<32x32xbf16>
    %cst_212 = arith.constant dense<0.000000e+00> : vector<32x256xf32>
    %362 = tpu.matmul %361, %359, %cst_212 {dimension_numbers = #tpu.dot_dimension_numbers<[1], [0], [0], [1], [0, 0, 1, 1], [], []>} : vector<32x32xbf16>, vector<32x256xbf16>, vector<32x256xf32> -> vector<32x256xf32>
    %363 = arith.addf %354, %362 : vector<32x256xf32>
    %cst_213 = arith.constant 0.000000e+00 : bf16
    %364 = vector.broadcast %cst_213 : bf16 to vector<32x1xbf16>
    %365 = vector.extract_strided_slice %339 {offsets = [0, 0], sizes = [32, 255], strides = [1, 1]} : vector<32x256xbf16> to vector<32x255xbf16>
    %366 = tpu.concatenate %364, %365 in 1 : vector<32x1xbf16>, vector<32x255xbf16> -> vector<32x256xbf16>
    %367 = vector.broadcast %0 : vector<1x256xbf16> to vector<32x256xbf16>
    %368 = arith.mulf %366, %367 : vector<32x256xbf16>
    %c3_214 = arith.constant 3 : index
    %c0_215 = arith.constant 0 : index
    %c0_216 = arith.constant 0 : index
    %369 = vector.load %arg11[%c3_214, %c0_215, %c0_216] : memref<9x32x32xbf16, #tpu.memory_space<vmem>>, vector<1x32x32xbf16>
    %370 = vector.shape_cast %369 : vector<1x32x32xbf16> to vector<32x32xbf16>
    %cst_217 = arith.constant dense<0.000000e+00> : vector<32x256xf32>
    %371 = tpu.matmul %370, %368, %cst_217 {dimension_numbers = #tpu.dot_dimension_numbers<[1], [0], [0], [1], [0, 0, 1, 1], [], []>} : vector<32x32xbf16>, vector<32x256xbf16>, vector<32x256xf32> -> vector<32x256xf32>
    %372 = arith.addf %363, %371 : vector<32x256xf32>
    %c4_218 = arith.constant 4 : index
    %c0_219 = arith.constant 0 : index
    %c0_220 = arith.constant 0 : index
    %373 = vector.load %arg11[%c4_218, %c0_219, %c0_220] : memref<9x32x32xbf16, #tpu.memory_space<vmem>>, vector<1x32x32xbf16>
    %374 = vector.shape_cast %373 : vector<1x32x32xbf16> to vector<32x32xbf16>
    %cst_221 = arith.constant dense<0.000000e+00> : vector<32x256xf32>
    %375 = tpu.matmul %374, %339, %cst_221 {dimension_numbers = #tpu.dot_dimension_numbers<[1], [0], [0], [1], [0, 0, 1, 1], [], []>} : vector<32x32xbf16>, vector<32x256xbf16>, vector<32x256xf32> -> vector<32x256xf32>
    %376 = arith.addf %372, %375 : vector<32x256xf32>
    %cst_222 = arith.constant 0.000000e+00 : bf16
    %377 = vector.broadcast %cst_222 : bf16 to vector<32x1xbf16>
    %378 = vector.extract_strided_slice %339 {offsets = [0, 1], sizes = [32, 255], strides = [1, 1]} : vector<32x256xbf16> to vector<32x255xbf16>
    %379 = tpu.concatenate %378, %377 in 1 : vector<32x255xbf16>, vector<32x1xbf16> -> vector<32x256xbf16>
    %380 = vector.broadcast %1 : vector<1x256xbf16> to vector<32x256xbf16>
    %381 = arith.mulf %379, %380 : vector<32x256xbf16>
    %c5_223 = arith.constant 5 : index
    %c0_224 = arith.constant 0 : index
    %c0_225 = arith.constant 0 : index
    %382 = vector.load %arg11[%c5_223, %c0_224, %c0_225] : memref<9x32x32xbf16, #tpu.memory_space<vmem>>, vector<1x32x32xbf16>
    %383 = vector.shape_cast %382 : vector<1x32x32xbf16> to vector<32x32xbf16>
    %cst_226 = arith.constant dense<0.000000e+00> : vector<32x256xf32>
    %384 = tpu.matmul %383, %381, %cst_226 {dimension_numbers = #tpu.dot_dimension_numbers<[1], [0], [0], [1], [0, 0, 1, 1], [], []>} : vector<32x32xbf16>, vector<32x256xbf16>, vector<32x256xf32> -> vector<32x256xf32>
    %385 = arith.addf %376, %384 : vector<32x256xf32>
    %cst_227 = arith.constant 0.000000e+00 : bf16
    %386 = vector.broadcast %cst_227 : bf16 to vector<32x15xbf16>
    %387 = vector.extract_strided_slice %339 {offsets = [0, 15], sizes = [32, 241], strides = [1, 1]} : vector<32x256xbf16> to vector<32x241xbf16>
    %388 = tpu.concatenate %387, %386 in 1 : vector<32x241xbf16>, vector<32x15xbf16> -> vector<32x256xbf16>
    %389 = vector.broadcast %0 : vector<1x256xbf16> to vector<32x256xbf16>
    %390 = arith.mulf %388, %389 : vector<32x256xbf16>
    %c6_228 = arith.constant 6 : index
    %c0_229 = arith.constant 0 : index
    %c0_230 = arith.constant 0 : index
    %391 = vector.load %arg11[%c6_228, %c0_229, %c0_230] : memref<9x32x32xbf16, #tpu.memory_space<vmem>>, vector<1x32x32xbf16>
    %392 = vector.shape_cast %391 : vector<1x32x32xbf16> to vector<32x32xbf16>
    %cst_231 = arith.constant dense<0.000000e+00> : vector<32x256xf32>
    %393 = tpu.matmul %392, %390, %cst_231 {dimension_numbers = #tpu.dot_dimension_numbers<[1], [0], [0], [1], [0, 0, 1, 1], [], []>} : vector<32x32xbf16>, vector<32x256xbf16>, vector<32x256xf32> -> vector<32x256xf32>
    %394 = arith.addf %385, %393 : vector<32x256xf32>
    %cst_232 = arith.constant 0.000000e+00 : bf16
    %395 = vector.broadcast %cst_232 : bf16 to vector<32x16xbf16>
    %396 = vector.extract_strided_slice %339 {offsets = [0, 16], sizes = [32, 240], strides = [1, 1]} : vector<32x256xbf16> to vector<32x240xbf16>
    %397 = tpu.concatenate %396, %395 in 1 : vector<32x240xbf16>, vector<32x16xbf16> -> vector<32x256xbf16>
    %c7_233 = arith.constant 7 : index
    %c0_234 = arith.constant 0 : index
    %c0_235 = arith.constant 0 : index
    %398 = vector.load %arg11[%c7_233, %c0_234, %c0_235] : memref<9x32x32xbf16, #tpu.memory_space<vmem>>, vector<1x32x32xbf16>
    %399 = vector.shape_cast %398 : vector<1x32x32xbf16> to vector<32x32xbf16>
    %cst_236 = arith.constant dense<0.000000e+00> : vector<32x256xf32>
    %400 = tpu.matmul %399, %397, %cst_236 {dimension_numbers = #tpu.dot_dimension_numbers<[1], [0], [0], [1], [0, 0, 1, 1], [], []>} : vector<32x32xbf16>, vector<32x256xbf16>, vector<32x256xf32> -> vector<32x256xf32>
    %401 = arith.addf %394, %400 : vector<32x256xf32>
    %cst_237 = arith.constant 0.000000e+00 : bf16
    %402 = vector.broadcast %cst_237 : bf16 to vector<32x17xbf16>
    %403 = vector.extract_strided_slice %339 {offsets = [0, 17], sizes = [32, 239], strides = [1, 1]} : vector<32x256xbf16> to vector<32x239xbf16>
    %404 = tpu.concatenate %403, %402 in 1 : vector<32x239xbf16>, vector<32x17xbf16> -> vector<32x256xbf16>
    %405 = vector.broadcast %1 : vector<1x256xbf16> to vector<32x256xbf16>
    %406 = arith.mulf %404, %405 : vector<32x256xbf16>
    %c8_238 = arith.constant 8 : index
    %c0_239 = arith.constant 0 : index
    %c0_240 = arith.constant 0 : index
    %407 = vector.load %arg11[%c8_238, %c0_239, %c0_240] : memref<9x32x32xbf16, #tpu.memory_space<vmem>>, vector<1x32x32xbf16>
    %408 = vector.shape_cast %407 : vector<1x32x32xbf16> to vector<32x32xbf16>
    %cst_241 = arith.constant dense<0.000000e+00> : vector<32x256xf32>
    %409 = tpu.matmul %408, %406, %cst_241 {dimension_numbers = #tpu.dot_dimension_numbers<[1], [0], [0], [1], [0, 0, 1, 1], [], []>} : vector<32x32xbf16>, vector<32x256xbf16>, vector<32x256xf32> -> vector<32x256xf32>
    %410 = arith.addf %401, %409 : vector<32x256xf32>
    %c0_242 = arith.constant 0 : index
    %c0_243 = arith.constant 0 : index
    %411 = vector.load %arg12[%c0_242, %c0_243] : memref<32x1xf32, #tpu.memory_space<vmem>>, vector<32x1xf32>
    %412 = vector.broadcast %411 : vector<32x1xf32> to vector<32x256xf32>
    %413 = arith.addf %410, %412 : vector<32x256xf32>
    %cst_244 = arith.constant 0.000000e+00 : f32
    %414 = vector.broadcast %cst_244 : f32 to vector<32x256xf32>
    %415 = arith.subf %414, %413 : vector<32x256xf32>
    %416 = math.exp %415 : vector<32x256xf32>
    %cst_245 = arith.constant 1.000000e+00 : f32
    %417 = vector.broadcast %cst_245 : f32 to vector<32x256xf32>
    %418 = arith.addf %417, %416 : vector<32x256xf32>
    %419 = tpu.reciprocal %418 {approx = true} : vector<32x256xf32> -> vector<32x256xf32>
    %420 = arith.mulf %413, %419 : vector<32x256xf32>
    %421 = arith.truncf %420 : vector<32x256xf32> to vector<32x256xbf16>
    %cst_246 = arith.constant 0.000000e+00 : bf16
    %422 = vector.broadcast %cst_246 : bf16 to vector<32x17xbf16>
    %423 = vector.extract_strided_slice %421 {offsets = [0, 0], sizes = [32, 239], strides = [1, 1]} : vector<32x256xbf16> to vector<32x239xbf16>
    %424 = tpu.concatenate %422, %423 in 1 : vector<32x17xbf16>, vector<32x239xbf16> -> vector<32x256xbf16>
    %425 = vector.broadcast %0 : vector<1x256xbf16> to vector<32x256xbf16>
    %426 = arith.mulf %424, %425 : vector<32x256xbf16>
    %c0_247 = arith.constant 0 : index
    %c0_248 = arith.constant 0 : index
    %c0_249 = arith.constant 0 : index
    %427 = vector.load %arg13[%c0_247, %c0_248, %c0_249] : memref<9x32x32xbf16, #tpu.memory_space<vmem>>, vector<1x32x32xbf16>
    %428 = vector.shape_cast %427 : vector<1x32x32xbf16> to vector<32x32xbf16>
    %cst_250 = arith.constant dense<0.000000e+00> : vector<32x256xf32>
    %429 = tpu.matmul %428, %426, %cst_250 {dimension_numbers = #tpu.dot_dimension_numbers<[1], [0], [0], [1], [0, 0, 1, 1], [], []>} : vector<32x32xbf16>, vector<32x256xbf16>, vector<32x256xf32> -> vector<32x256xf32>
    %cst_251 = arith.constant 0.000000e+00 : bf16
    %430 = vector.broadcast %cst_251 : bf16 to vector<32x16xbf16>
    %431 = vector.extract_strided_slice %421 {offsets = [0, 0], sizes = [32, 240], strides = [1, 1]} : vector<32x256xbf16> to vector<32x240xbf16>
    %432 = tpu.concatenate %430, %431 in 1 : vector<32x16xbf16>, vector<32x240xbf16> -> vector<32x256xbf16>
    %c1_252 = arith.constant 1 : index
    %c0_253 = arith.constant 0 : index
    %c0_254 = arith.constant 0 : index
    %433 = vector.load %arg13[%c1_252, %c0_253, %c0_254] : memref<9x32x32xbf16, #tpu.memory_space<vmem>>, vector<1x32x32xbf16>
    %434 = vector.shape_cast %433 : vector<1x32x32xbf16> to vector<32x32xbf16>
    %cst_255 = arith.constant dense<0.000000e+00> : vector<32x256xf32>
    %435 = tpu.matmul %434, %432, %cst_255 {dimension_numbers = #tpu.dot_dimension_numbers<[1], [0], [0], [1], [0, 0, 1, 1], [], []>} : vector<32x32xbf16>, vector<32x256xbf16>, vector<32x256xf32> -> vector<32x256xf32>
    %436 = arith.addf %429, %435 : vector<32x256xf32>
    %cst_256 = arith.constant 0.000000e+00 : bf16
    %437 = vector.broadcast %cst_256 : bf16 to vector<32x15xbf16>
    %438 = vector.extract_strided_slice %421 {offsets = [0, 0], sizes = [32, 241], strides = [1, 1]} : vector<32x256xbf16> to vector<32x241xbf16>
    %439 = tpu.concatenate %437, %438 in 1 : vector<32x15xbf16>, vector<32x241xbf16> -> vector<32x256xbf16>
    %440 = vector.broadcast %1 : vector<1x256xbf16> to vector<32x256xbf16>
    %441 = arith.mulf %439, %440 : vector<32x256xbf16>
    %c2_257 = arith.constant 2 : index
    %c0_258 = arith.constant 0 : index
    %c0_259 = arith.constant 0 : index
    %442 = vector.load %arg13[%c2_257, %c0_258, %c0_259] : memref<9x32x32xbf16, #tpu.memory_space<vmem>>, vector<1x32x32xbf16>
    %443 = vector.shape_cast %442 : vector<1x32x32xbf16> to vector<32x32xbf16>
    %cst_260 = arith.constant dense<0.000000e+00> : vector<32x256xf32>
    %444 = tpu.matmul %443, %441, %cst_260 {dimension_numbers = #tpu.dot_dimension_numbers<[1], [0], [0], [1], [0, 0, 1, 1], [], []>} : vector<32x32xbf16>, vector<32x256xbf16>, vector<32x256xf32> -> vector<32x256xf32>
    %445 = arith.addf %436, %444 : vector<32x256xf32>
    %cst_261 = arith.constant 0.000000e+00 : bf16
    %446 = vector.broadcast %cst_261 : bf16 to vector<32x1xbf16>
    %447 = vector.extract_strided_slice %421 {offsets = [0, 0], sizes = [32, 255], strides = [1, 1]} : vector<32x256xbf16> to vector<32x255xbf16>
    %448 = tpu.concatenate %446, %447 in 1 : vector<32x1xbf16>, vector<32x255xbf16> -> vector<32x256xbf16>
    %449 = vector.broadcast %0 : vector<1x256xbf16> to vector<32x256xbf16>
    %450 = arith.mulf %448, %449 : vector<32x256xbf16>
    %c3_262 = arith.constant 3 : index
    %c0_263 = arith.constant 0 : index
    %c0_264 = arith.constant 0 : index
    %451 = vector.load %arg13[%c3_262, %c0_263, %c0_264] : memref<9x32x32xbf16, #tpu.memory_space<vmem>>, vector<1x32x32xbf16>
    %452 = vector.shape_cast %451 : vector<1x32x32xbf16> to vector<32x32xbf16>
    %cst_265 = arith.constant dense<0.000000e+00> : vector<32x256xf32>
    %453 = tpu.matmul %452, %450, %cst_265 {dimension_numbers = #tpu.dot_dimension_numbers<[1], [0], [0], [1], [0, 0, 1, 1], [], []>} : vector<32x32xbf16>, vector<32x256xbf16>, vector<32x256xf32> -> vector<32x256xf32>
    %454 = arith.addf %445, %453 : vector<32x256xf32>
    %c4_266 = arith.constant 4 : index
    %c0_267 = arith.constant 0 : index
    %c0_268 = arith.constant 0 : index
    %455 = vector.load %arg13[%c4_266, %c0_267, %c0_268] : memref<9x32x32xbf16, #tpu.memory_space<vmem>>, vector<1x32x32xbf16>
    %456 = vector.shape_cast %455 : vector<1x32x32xbf16> to vector<32x32xbf16>
    %cst_269 = arith.constant dense<0.000000e+00> : vector<32x256xf32>
    %457 = tpu.matmul %456, %421, %cst_269 {dimension_numbers = #tpu.dot_dimension_numbers<[1], [0], [0], [1], [0, 0, 1, 1], [], []>} : vector<32x32xbf16>, vector<32x256xbf16>, vector<32x256xf32> -> vector<32x256xf32>
    %458 = arith.addf %454, %457 : vector<32x256xf32>
    %cst_270 = arith.constant 0.000000e+00 : bf16
    %459 = vector.broadcast %cst_270 : bf16 to vector<32x1xbf16>
    %460 = vector.extract_strided_slice %421 {offsets = [0, 1], sizes = [32, 255], strides = [1, 1]} : vector<32x256xbf16> to vector<32x255xbf16>
    %461 = tpu.concatenate %460, %459 in 1 : vector<32x255xbf16>, vector<32x1xbf16> -> vector<32x256xbf16>
    %462 = vector.broadcast %1 : vector<1x256xbf16> to vector<32x256xbf16>
    %463 = arith.mulf %461, %462 : vector<32x256xbf16>
    %c5_271 = arith.constant 5 : index
    %c0_272 = arith.constant 0 : index
    %c0_273 = arith.constant 0 : index
    %464 = vector.load %arg13[%c5_271, %c0_272, %c0_273] : memref<9x32x32xbf16, #tpu.memory_space<vmem>>, vector<1x32x32xbf16>
    %465 = vector.shape_cast %464 : vector<1x32x32xbf16> to vector<32x32xbf16>
    %cst_274 = arith.constant dense<0.000000e+00> : vector<32x256xf32>
    %466 = tpu.matmul %465, %463, %cst_274 {dimension_numbers = #tpu.dot_dimension_numbers<[1], [0], [0], [1], [0, 0, 1, 1], [], []>} : vector<32x32xbf16>, vector<32x256xbf16>, vector<32x256xf32> -> vector<32x256xf32>
    %467 = arith.addf %458, %466 : vector<32x256xf32>
    %cst_275 = arith.constant 0.000000e+00 : bf16
    %468 = vector.broadcast %cst_275 : bf16 to vector<32x15xbf16>
    %469 = vector.extract_strided_slice %421 {offsets = [0, 15], sizes = [32, 241], strides = [1, 1]} : vector<32x256xbf16> to vector<32x241xbf16>
    %470 = tpu.concatenate %469, %468 in 1 : vector<32x241xbf16>, vector<32x15xbf16> -> vector<32x256xbf16>
    %471 = vector.broadcast %0 : vector<1x256xbf16> to vector<32x256xbf16>
    %472 = arith.mulf %470, %471 : vector<32x256xbf16>
    %c6_276 = arith.constant 6 : index
    %c0_277 = arith.constant 0 : index
    %c0_278 = arith.constant 0 : index
    %473 = vector.load %arg13[%c6_276, %c0_277, %c0_278] : memref<9x32x32xbf16, #tpu.memory_space<vmem>>, vector<1x32x32xbf16>
    %474 = vector.shape_cast %473 : vector<1x32x32xbf16> to vector<32x32xbf16>
    %cst_279 = arith.constant dense<0.000000e+00> : vector<32x256xf32>
    %475 = tpu.matmul %474, %472, %cst_279 {dimension_numbers = #tpu.dot_dimension_numbers<[1], [0], [0], [1], [0, 0, 1, 1], [], []>} : vector<32x32xbf16>, vector<32x256xbf16>, vector<32x256xf32> -> vector<32x256xf32>
    %476 = arith.addf %467, %475 : vector<32x256xf32>
    %cst_280 = arith.constant 0.000000e+00 : bf16
    %477 = vector.broadcast %cst_280 : bf16 to vector<32x16xbf16>
    %478 = vector.extract_strided_slice %421 {offsets = [0, 16], sizes = [32, 240], strides = [1, 1]} : vector<32x256xbf16> to vector<32x240xbf16>
    %479 = tpu.concatenate %478, %477 in 1 : vector<32x240xbf16>, vector<32x16xbf16> -> vector<32x256xbf16>
    %c7_281 = arith.constant 7 : index
    %c0_282 = arith.constant 0 : index
    %c0_283 = arith.constant 0 : index
    %480 = vector.load %arg13[%c7_281, %c0_282, %c0_283] : memref<9x32x32xbf16, #tpu.memory_space<vmem>>, vector<1x32x32xbf16>
    %481 = vector.shape_cast %480 : vector<1x32x32xbf16> to vector<32x32xbf16>
    %cst_284 = arith.constant dense<0.000000e+00> : vector<32x256xf32>
    %482 = tpu.matmul %481, %479, %cst_284 {dimension_numbers = #tpu.dot_dimension_numbers<[1], [0], [0], [1], [0, 0, 1, 1], [], []>} : vector<32x32xbf16>, vector<32x256xbf16>, vector<32x256xf32> -> vector<32x256xf32>
    %483 = arith.addf %476, %482 : vector<32x256xf32>
    %cst_285 = arith.constant 0.000000e+00 : bf16
    %484 = vector.broadcast %cst_285 : bf16 to vector<32x17xbf16>
    %485 = vector.extract_strided_slice %421 {offsets = [0, 17], sizes = [32, 239], strides = [1, 1]} : vector<32x256xbf16> to vector<32x239xbf16>
    %486 = tpu.concatenate %485, %484 in 1 : vector<32x239xbf16>, vector<32x17xbf16> -> vector<32x256xbf16>
    %487 = vector.broadcast %1 : vector<1x256xbf16> to vector<32x256xbf16>
    %488 = arith.mulf %486, %487 : vector<32x256xbf16>
    %c8_286 = arith.constant 8 : index
    %c0_287 = arith.constant 0 : index
    %c0_288 = arith.constant 0 : index
    %489 = vector.load %arg13[%c8_286, %c0_287, %c0_288] : memref<9x32x32xbf16, #tpu.memory_space<vmem>>, vector<1x32x32xbf16>
    %490 = vector.shape_cast %489 : vector<1x32x32xbf16> to vector<32x32xbf16>
    %cst_289 = arith.constant dense<0.000000e+00> : vector<32x256xf32>
    %491 = tpu.matmul %490, %488, %cst_289 {dimension_numbers = #tpu.dot_dimension_numbers<[1], [0], [0], [1], [0, 0, 1, 1], [], []>} : vector<32x32xbf16>, vector<32x256xbf16>, vector<32x256xf32> -> vector<32x256xf32>
    %492 = arith.addf %483, %491 : vector<32x256xf32>
    %c0_290 = arith.constant 0 : index
    %c0_291 = arith.constant 0 : index
    %493 = vector.load %arg14[%c0_290, %c0_291] : memref<32x1xf32, #tpu.memory_space<vmem>>, vector<32x1xf32>
    %494 = vector.broadcast %493 : vector<32x1xf32> to vector<32x256xf32>
    %495 = arith.addf %492, %494 : vector<32x256xf32>
    %cst_292 = arith.constant 0.000000e+00 : f32
    %496 = vector.broadcast %cst_292 : f32 to vector<32x256xf32>
    %497 = arith.subf %496, %495 : vector<32x256xf32>
    %498 = math.exp %497 : vector<32x256xf32>
    %cst_293 = arith.constant 1.000000e+00 : f32
    %499 = vector.broadcast %cst_293 : f32 to vector<32x256xf32>
    %500 = arith.addf %499, %498 : vector<32x256xf32>
    %501 = tpu.reciprocal %500 {approx = true} : vector<32x256xf32> -> vector<32x256xf32>
    %502 = arith.mulf %495, %501 : vector<32x256xf32>
    %503 = arith.truncf %502 : vector<32x256xf32> to vector<32x256xbf16>
    %cst_294 = arith.constant 0.000000e+00 : bf16
    %504 = vector.broadcast %cst_294 : bf16 to vector<32x17xbf16>
    %505 = vector.extract_strided_slice %503 {offsets = [0, 0], sizes = [32, 239], strides = [1, 1]} : vector<32x256xbf16> to vector<32x239xbf16>
    %506 = tpu.concatenate %504, %505 in 1 : vector<32x17xbf16>, vector<32x239xbf16> -> vector<32x256xbf16>
    %507 = vector.broadcast %0 : vector<1x256xbf16> to vector<32x256xbf16>
    %508 = arith.mulf %506, %507 : vector<32x256xbf16>
    %c0_295 = arith.constant 0 : index
    %c0_296 = arith.constant 0 : index
    %c0_297 = arith.constant 0 : index
    %509 = vector.load %arg15[%c0_295, %c0_296, %c0_297] : memref<9x32x32xbf16, #tpu.memory_space<vmem>>, vector<1x32x32xbf16>
    %510 = vector.shape_cast %509 : vector<1x32x32xbf16> to vector<32x32xbf16>
    %cst_298 = arith.constant dense<0.000000e+00> : vector<32x256xf32>
    %511 = tpu.matmul %510, %508, %cst_298 {dimension_numbers = #tpu.dot_dimension_numbers<[1], [0], [0], [1], [0, 0, 1, 1], [], []>} : vector<32x32xbf16>, vector<32x256xbf16>, vector<32x256xf32> -> vector<32x256xf32>
    %cst_299 = arith.constant 0.000000e+00 : bf16
    %512 = vector.broadcast %cst_299 : bf16 to vector<32x16xbf16>
    %513 = vector.extract_strided_slice %503 {offsets = [0, 0], sizes = [32, 240], strides = [1, 1]} : vector<32x256xbf16> to vector<32x240xbf16>
    %514 = tpu.concatenate %512, %513 in 1 : vector<32x16xbf16>, vector<32x240xbf16> -> vector<32x256xbf16>
    %c1_300 = arith.constant 1 : index
    %c0_301 = arith.constant 0 : index
    %c0_302 = arith.constant 0 : index
    %515 = vector.load %arg15[%c1_300, %c0_301, %c0_302] : memref<9x32x32xbf16, #tpu.memory_space<vmem>>, vector<1x32x32xbf16>
    %516 = vector.shape_cast %515 : vector<1x32x32xbf16> to vector<32x32xbf16>
    %cst_303 = arith.constant dense<0.000000e+00> : vector<32x256xf32>
    %517 = tpu.matmul %516, %514, %cst_303 {dimension_numbers = #tpu.dot_dimension_numbers<[1], [0], [0], [1], [0, 0, 1, 1], [], []>} : vector<32x32xbf16>, vector<32x256xbf16>, vector<32x256xf32> -> vector<32x256xf32>
    %518 = arith.addf %511, %517 : vector<32x256xf32>
    %cst_304 = arith.constant 0.000000e+00 : bf16
    %519 = vector.broadcast %cst_304 : bf16 to vector<32x15xbf16>
    %520 = vector.extract_strided_slice %503 {offsets = [0, 0], sizes = [32, 241], strides = [1, 1]} : vector<32x256xbf16> to vector<32x241xbf16>
    %521 = tpu.concatenate %519, %520 in 1 : vector<32x15xbf16>, vector<32x241xbf16> -> vector<32x256xbf16>
    %522 = vector.broadcast %1 : vector<1x256xbf16> to vector<32x256xbf16>
    %523 = arith.mulf %521, %522 : vector<32x256xbf16>
    %c2_305 = arith.constant 2 : index
    %c0_306 = arith.constant 0 : index
    %c0_307 = arith.constant 0 : index
    %524 = vector.load %arg15[%c2_305, %c0_306, %c0_307] : memref<9x32x32xbf16, #tpu.memory_space<vmem>>, vector<1x32x32xbf16>
    %525 = vector.shape_cast %524 : vector<1x32x32xbf16> to vector<32x32xbf16>
    %cst_308 = arith.constant dense<0.000000e+00> : vector<32x256xf32>
    %526 = tpu.matmul %525, %523, %cst_308 {dimension_numbers = #tpu.dot_dimension_numbers<[1], [0], [0], [1], [0, 0, 1, 1], [], []>} : vector<32x32xbf16>, vector<32x256xbf16>, vector<32x256xf32> -> vector<32x256xf32>
    %527 = arith.addf %518, %526 : vector<32x256xf32>
    %cst_309 = arith.constant 0.000000e+00 : bf16
    %528 = vector.broadcast %cst_309 : bf16 to vector<32x1xbf16>
    %529 = vector.extract_strided_slice %503 {offsets = [0, 0], sizes = [32, 255], strides = [1, 1]} : vector<32x256xbf16> to vector<32x255xbf16>
    %530 = tpu.concatenate %528, %529 in 1 : vector<32x1xbf16>, vector<32x255xbf16> -> vector<32x256xbf16>
    %531 = vector.broadcast %0 : vector<1x256xbf16> to vector<32x256xbf16>
    %532 = arith.mulf %530, %531 : vector<32x256xbf16>
    %c3_310 = arith.constant 3 : index
    %c0_311 = arith.constant 0 : index
    %c0_312 = arith.constant 0 : index
    %533 = vector.load %arg15[%c3_310, %c0_311, %c0_312] : memref<9x32x32xbf16, #tpu.memory_space<vmem>>, vector<1x32x32xbf16>
    %534 = vector.shape_cast %533 : vector<1x32x32xbf16> to vector<32x32xbf16>
    %cst_313 = arith.constant dense<0.000000e+00> : vector<32x256xf32>
    %535 = tpu.matmul %534, %532, %cst_313 {dimension_numbers = #tpu.dot_dimension_numbers<[1], [0], [0], [1], [0, 0, 1, 1], [], []>} : vector<32x32xbf16>, vector<32x256xbf16>, vector<32x256xf32> -> vector<32x256xf32>
    %536 = arith.addf %527, %535 : vector<32x256xf32>
    %c4_314 = arith.constant 4 : index
    %c0_315 = arith.constant 0 : index
    %c0_316 = arith.constant 0 : index
    %537 = vector.load %arg15[%c4_314, %c0_315, %c0_316] : memref<9x32x32xbf16, #tpu.memory_space<vmem>>, vector<1x32x32xbf16>
    %538 = vector.shape_cast %537 : vector<1x32x32xbf16> to vector<32x32xbf16>
    %cst_317 = arith.constant dense<0.000000e+00> : vector<32x256xf32>
    %539 = tpu.matmul %538, %503, %cst_317 {dimension_numbers = #tpu.dot_dimension_numbers<[1], [0], [0], [1], [0, 0, 1, 1], [], []>} : vector<32x32xbf16>, vector<32x256xbf16>, vector<32x256xf32> -> vector<32x256xf32>
    %540 = arith.addf %536, %539 : vector<32x256xf32>
    %cst_318 = arith.constant 0.000000e+00 : bf16
    %541 = vector.broadcast %cst_318 : bf16 to vector<32x1xbf16>
    %542 = vector.extract_strided_slice %503 {offsets = [0, 1], sizes = [32, 255], strides = [1, 1]} : vector<32x256xbf16> to vector<32x255xbf16>
    %543 = tpu.concatenate %542, %541 in 1 : vector<32x255xbf16>, vector<32x1xbf16> -> vector<32x256xbf16>
    %544 = vector.broadcast %1 : vector<1x256xbf16> to vector<32x256xbf16>
    %545 = arith.mulf %543, %544 : vector<32x256xbf16>
    %c5_319 = arith.constant 5 : index
    %c0_320 = arith.constant 0 : index
    %c0_321 = arith.constant 0 : index
    %546 = vector.load %arg15[%c5_319, %c0_320, %c0_321] : memref<9x32x32xbf16, #tpu.memory_space<vmem>>, vector<1x32x32xbf16>
    %547 = vector.shape_cast %546 : vector<1x32x32xbf16> to vector<32x32xbf16>
    %cst_322 = arith.constant dense<0.000000e+00> : vector<32x256xf32>
    %548 = tpu.matmul %547, %545, %cst_322 {dimension_numbers = #tpu.dot_dimension_numbers<[1], [0], [0], [1], [0, 0, 1, 1], [], []>} : vector<32x32xbf16>, vector<32x256xbf16>, vector<32x256xf32> -> vector<32x256xf32>
    %549 = arith.addf %540, %548 : vector<32x256xf32>
    %cst_323 = arith.constant 0.000000e+00 : bf16
    %550 = vector.broadcast %cst_323 : bf16 to vector<32x15xbf16>
    %551 = vector.extract_strided_slice %503 {offsets = [0, 15], sizes = [32, 241], strides = [1, 1]} : vector<32x256xbf16> to vector<32x241xbf16>
    %552 = tpu.concatenate %551, %550 in 1 : vector<32x241xbf16>, vector<32x15xbf16> -> vector<32x256xbf16>
    %553 = vector.broadcast %0 : vector<1x256xbf16> to vector<32x256xbf16>
    %554 = arith.mulf %552, %553 : vector<32x256xbf16>
    %c6_324 = arith.constant 6 : index
    %c0_325 = arith.constant 0 : index
    %c0_326 = arith.constant 0 : index
    %555 = vector.load %arg15[%c6_324, %c0_325, %c0_326] : memref<9x32x32xbf16, #tpu.memory_space<vmem>>, vector<1x32x32xbf16>
    %556 = vector.shape_cast %555 : vector<1x32x32xbf16> to vector<32x32xbf16>
    %cst_327 = arith.constant dense<0.000000e+00> : vector<32x256xf32>
    %557 = tpu.matmul %556, %554, %cst_327 {dimension_numbers = #tpu.dot_dimension_numbers<[1], [0], [0], [1], [0, 0, 1, 1], [], []>} : vector<32x32xbf16>, vector<32x256xbf16>, vector<32x256xf32> -> vector<32x256xf32>
    %558 = arith.addf %549, %557 : vector<32x256xf32>
    %cst_328 = arith.constant 0.000000e+00 : bf16
    %559 = vector.broadcast %cst_328 : bf16 to vector<32x16xbf16>
    %560 = vector.extract_strided_slice %503 {offsets = [0, 16], sizes = [32, 240], strides = [1, 1]} : vector<32x256xbf16> to vector<32x240xbf16>
    %561 = tpu.concatenate %560, %559 in 1 : vector<32x240xbf16>, vector<32x16xbf16> -> vector<32x256xbf16>
    %c7_329 = arith.constant 7 : index
    %c0_330 = arith.constant 0 : index
    %c0_331 = arith.constant 0 : index
    %562 = vector.load %arg15[%c7_329, %c0_330, %c0_331] : memref<9x32x32xbf16, #tpu.memory_space<vmem>>, vector<1x32x32xbf16>
    %563 = vector.shape_cast %562 : vector<1x32x32xbf16> to vector<32x32xbf16>
    %cst_332 = arith.constant dense<0.000000e+00> : vector<32x256xf32>
    %564 = tpu.matmul %563, %561, %cst_332 {dimension_numbers = #tpu.dot_dimension_numbers<[1], [0], [0], [1], [0, 0, 1, 1], [], []>} : vector<32x32xbf16>, vector<32x256xbf16>, vector<32x256xf32> -> vector<32x256xf32>
    %565 = arith.addf %558, %564 : vector<32x256xf32>
    %cst_333 = arith.constant 0.000000e+00 : bf16
    %566 = vector.broadcast %cst_333 : bf16 to vector<32x17xbf16>
    %567 = vector.extract_strided_slice %503 {offsets = [0, 17], sizes = [32, 239], strides = [1, 1]} : vector<32x256xbf16> to vector<32x239xbf16>
    %568 = tpu.concatenate %567, %566 in 1 : vector<32x239xbf16>, vector<32x17xbf16> -> vector<32x256xbf16>
    %569 = vector.broadcast %1 : vector<1x256xbf16> to vector<32x256xbf16>
    %570 = arith.mulf %568, %569 : vector<32x256xbf16>
    %c8_334 = arith.constant 8 : index
    %c0_335 = arith.constant 0 : index
    %c0_336 = arith.constant 0 : index
    %571 = vector.load %arg15[%c8_334, %c0_335, %c0_336] : memref<9x32x32xbf16, #tpu.memory_space<vmem>>, vector<1x32x32xbf16>
    %572 = vector.shape_cast %571 : vector<1x32x32xbf16> to vector<32x32xbf16>
    %cst_337 = arith.constant dense<0.000000e+00> : vector<32x256xf32>
    %573 = tpu.matmul %572, %570, %cst_337 {dimension_numbers = #tpu.dot_dimension_numbers<[1], [0], [0], [1], [0, 0, 1, 1], [], []>} : vector<32x32xbf16>, vector<32x256xbf16>, vector<32x256xf32> -> vector<32x256xf32>
    %574 = arith.addf %565, %573 : vector<32x256xf32>
    %c0_338 = arith.constant 0 : index
    %c0_339 = arith.constant 0 : index
    %575 = vector.load %arg16[%c0_338, %c0_339] : memref<32x1xf32, #tpu.memory_space<vmem>>, vector<32x1xf32>
    %576 = vector.broadcast %575 : vector<32x1xf32> to vector<32x256xf32>
    %577 = arith.addf %574, %576 : vector<32x256xf32>
    %cst_340 = arith.constant 0.000000e+00 : f32
    %578 = vector.broadcast %cst_340 : f32 to vector<32x256xf32>
    %579 = arith.subf %578, %577 : vector<32x256xf32>
    %580 = math.exp %579 : vector<32x256xf32>
    %cst_341 = arith.constant 1.000000e+00 : f32
    %581 = vector.broadcast %cst_341 : f32 to vector<32x256xf32>
    %582 = arith.addf %581, %580 : vector<32x256xf32>
    %583 = tpu.reciprocal %582 {approx = true} : vector<32x256xf32> -> vector<32x256xf32>
    %cst_342 = arith.constant 5.000000e-01 : f32
    %584 = vector.broadcast %cst_342 : f32 to vector<32x256xf32>
    %585 = arith.subf %583, %584 : vector<32x256xf32>
    %586 = arith.addf %577, %333 : vector<32x256xf32>
    %587 = arith.mulf %586, %585 : vector<32x256xf32>
    %c3_343 = arith.constant 3 : index
    %c0_344 = arith.constant 0 : index
    %c0_345 = arith.constant 0 : index
    %588 = vector.load %arg19[%c3_343, %c0_344, %c0_345] : memref<4x4x32xbf16, #tpu.memory_space<vmem>>, vector<1x4x32xbf16>
    %589 = vector.shape_cast %588 : vector<1x4x32xbf16> to vector<4x32xbf16>
    %590 = arith.truncf %413 : vector<32x256xf32> to vector<32x256xbf16>
    %cst_346 = arith.constant dense<0.000000e+00> : vector<4x256xf32>
    %591 = tpu.matmul %589, %590, %cst_346 {dimension_numbers = #tpu.dot_dimension_numbers<[1], [0], [0], [1], [0, 0, 1, 1], [], []>} : vector<4x32xbf16>, vector<32x256xbf16>, vector<4x256xf32> -> vector<4x256xf32>
    %592 = arith.addf %338, %591 : vector<4x256xf32>
    %593 = arith.truncf %587 : vector<32x256xf32> to vector<32x256xbf16>
    %cst_347 = arith.constant 0.000000e+00 : bf16
    %594 = vector.broadcast %cst_347 : bf16 to vector<32x17xbf16>
    %595 = vector.extract_strided_slice %593 {offsets = [0, 0], sizes = [32, 239], strides = [1, 1]} : vector<32x256xbf16> to vector<32x239xbf16>
    %596 = tpu.concatenate %594, %595 in 1 : vector<32x17xbf16>, vector<32x239xbf16> -> vector<32x256xbf16>
    %597 = vector.broadcast %0 : vector<1x256xbf16> to vector<32x256xbf16>
    %598 = arith.mulf %596, %597 : vector<32x256xbf16>
    %c0_348 = arith.constant 0 : index
    %c0_349 = arith.constant 0 : index
    %c0_350 = arith.constant 0 : index
    %599 = vector.load %arg17[%c0_348, %c0_349, %c0_350] : memref<9x32x32xbf16, #tpu.memory_space<vmem>>, vector<1x32x32xbf16>
    %600 = vector.shape_cast %599 : vector<1x32x32xbf16> to vector<32x32xbf16>
    %cst_351 = arith.constant dense<0.000000e+00> : vector<32x256xf32>
    %601 = tpu.matmul %600, %598, %cst_351 {dimension_numbers = #tpu.dot_dimension_numbers<[1], [0], [0], [1], [0, 0, 1, 1], [], []>} : vector<32x32xbf16>, vector<32x256xbf16>, vector<32x256xf32> -> vector<32x256xf32>
    %cst_352 = arith.constant 0.000000e+00 : bf16
    %602 = vector.broadcast %cst_352 : bf16 to vector<32x16xbf16>
    %603 = vector.extract_strided_slice %593 {offsets = [0, 0], sizes = [32, 240], strides = [1, 1]} : vector<32x256xbf16> to vector<32x240xbf16>
    %604 = tpu.concatenate %602, %603 in 1 : vector<32x16xbf16>, vector<32x240xbf16> -> vector<32x256xbf16>
    %c1_353 = arith.constant 1 : index
    %c0_354 = arith.constant 0 : index
    %c0_355 = arith.constant 0 : index
    %605 = vector.load %arg17[%c1_353, %c0_354, %c0_355] : memref<9x32x32xbf16, #tpu.memory_space<vmem>>, vector<1x32x32xbf16>
    %606 = vector.shape_cast %605 : vector<1x32x32xbf16> to vector<32x32xbf16>
    %cst_356 = arith.constant dense<0.000000e+00> : vector<32x256xf32>
    %607 = tpu.matmul %606, %604, %cst_356 {dimension_numbers = #tpu.dot_dimension_numbers<[1], [0], [0], [1], [0, 0, 1, 1], [], []>} : vector<32x32xbf16>, vector<32x256xbf16>, vector<32x256xf32> -> vector<32x256xf32>
    %608 = arith.addf %601, %607 : vector<32x256xf32>
    %cst_357 = arith.constant 0.000000e+00 : bf16
    %609 = vector.broadcast %cst_357 : bf16 to vector<32x15xbf16>
    %610 = vector.extract_strided_slice %593 {offsets = [0, 0], sizes = [32, 241], strides = [1, 1]} : vector<32x256xbf16> to vector<32x241xbf16>
    %611 = tpu.concatenate %609, %610 in 1 : vector<32x15xbf16>, vector<32x241xbf16> -> vector<32x256xbf16>
    %612 = vector.broadcast %1 : vector<1x256xbf16> to vector<32x256xbf16>
    %613 = arith.mulf %611, %612 : vector<32x256xbf16>
    %c2_358 = arith.constant 2 : index
    %c0_359 = arith.constant 0 : index
    %c0_360 = arith.constant 0 : index
    %614 = vector.load %arg17[%c2_358, %c0_359, %c0_360] : memref<9x32x32xbf16, #tpu.memory_space<vmem>>, vector<1x32x32xbf16>
    %615 = vector.shape_cast %614 : vector<1x32x32xbf16> to vector<32x32xbf16>
    %cst_361 = arith.constant dense<0.000000e+00> : vector<32x256xf32>
    %616 = tpu.matmul %615, %613, %cst_361 {dimension_numbers = #tpu.dot_dimension_numbers<[1], [0], [0], [1], [0, 0, 1, 1], [], []>} : vector<32x32xbf16>, vector<32x256xbf16>, vector<32x256xf32> -> vector<32x256xf32>
    %617 = arith.addf %608, %616 : vector<32x256xf32>
    %cst_362 = arith.constant 0.000000e+00 : bf16
    %618 = vector.broadcast %cst_362 : bf16 to vector<32x1xbf16>
    %619 = vector.extract_strided_slice %593 {offsets = [0, 0], sizes = [32, 255], strides = [1, 1]} : vector<32x256xbf16> to vector<32x255xbf16>
    %620 = tpu.concatenate %618, %619 in 1 : vector<32x1xbf16>, vector<32x255xbf16> -> vector<32x256xbf16>
    %621 = vector.broadcast %0 : vector<1x256xbf16> to vector<32x256xbf16>
    %622 = arith.mulf %620, %621 : vector<32x256xbf16>
    %c3_363 = arith.constant 3 : index
    %c0_364 = arith.constant 0 : index
    %c0_365 = arith.constant 0 : index
    %623 = vector.load %arg17[%c3_363, %c0_364, %c0_365] : memref<9x32x32xbf16, #tpu.memory_space<vmem>>, vector<1x32x32xbf16>
    %624 = vector.shape_cast %623 : vector<1x32x32xbf16> to vector<32x32xbf16>
    %cst_366 = arith.constant dense<0.000000e+00> : vector<32x256xf32>
    %625 = tpu.matmul %624, %622, %cst_366 {dimension_numbers = #tpu.dot_dimension_numbers<[1], [0], [0], [1], [0, 0, 1, 1], [], []>} : vector<32x32xbf16>, vector<32x256xbf16>, vector<32x256xf32> -> vector<32x256xf32>
    %626 = arith.addf %617, %625 : vector<32x256xf32>
    %c4_367 = arith.constant 4 : index
    %c0_368 = arith.constant 0 : index
    %c0_369 = arith.constant 0 : index
    %627 = vector.load %arg17[%c4_367, %c0_368, %c0_369] : memref<9x32x32xbf16, #tpu.memory_space<vmem>>, vector<1x32x32xbf16>
    %628 = vector.shape_cast %627 : vector<1x32x32xbf16> to vector<32x32xbf16>
    %cst_370 = arith.constant dense<0.000000e+00> : vector<32x256xf32>
    %629 = tpu.matmul %628, %593, %cst_370 {dimension_numbers = #tpu.dot_dimension_numbers<[1], [0], [0], [1], [0, 0, 1, 1], [], []>} : vector<32x32xbf16>, vector<32x256xbf16>, vector<32x256xf32> -> vector<32x256xf32>
    %630 = arith.addf %626, %629 : vector<32x256xf32>
    %cst_371 = arith.constant 0.000000e+00 : bf16
    %631 = vector.broadcast %cst_371 : bf16 to vector<32x1xbf16>
    %632 = vector.extract_strided_slice %593 {offsets = [0, 1], sizes = [32, 255], strides = [1, 1]} : vector<32x256xbf16> to vector<32x255xbf16>
    %633 = tpu.concatenate %632, %631 in 1 : vector<32x255xbf16>, vector<32x1xbf16> -> vector<32x256xbf16>
    %634 = vector.broadcast %1 : vector<1x256xbf16> to vector<32x256xbf16>
    %635 = arith.mulf %633, %634 : vector<32x256xbf16>
    %c5_372 = arith.constant 5 : index
    %c0_373 = arith.constant 0 : index
    %c0_374 = arith.constant 0 : index
    %636 = vector.load %arg17[%c5_372, %c0_373, %c0_374] : memref<9x32x32xbf16, #tpu.memory_space<vmem>>, vector<1x32x32xbf16>
    %637 = vector.shape_cast %636 : vector<1x32x32xbf16> to vector<32x32xbf16>
    %cst_375 = arith.constant dense<0.000000e+00> : vector<32x256xf32>
    %638 = tpu.matmul %637, %635, %cst_375 {dimension_numbers = #tpu.dot_dimension_numbers<[1], [0], [0], [1], [0, 0, 1, 1], [], []>} : vector<32x32xbf16>, vector<32x256xbf16>, vector<32x256xf32> -> vector<32x256xf32>
    %639 = arith.addf %630, %638 : vector<32x256xf32>
    %cst_376 = arith.constant 0.000000e+00 : bf16
    %640 = vector.broadcast %cst_376 : bf16 to vector<32x15xbf16>
    %641 = vector.extract_strided_slice %593 {offsets = [0, 15], sizes = [32, 241], strides = [1, 1]} : vector<32x256xbf16> to vector<32x241xbf16>
    %642 = tpu.concatenate %641, %640 in 1 : vector<32x241xbf16>, vector<32x15xbf16> -> vector<32x256xbf16>
    %643 = vector.broadcast %0 : vector<1x256xbf16> to vector<32x256xbf16>
    %644 = arith.mulf %642, %643 : vector<32x256xbf16>
    %c6_377 = arith.constant 6 : index
    %c0_378 = arith.constant 0 : index
    %c0_379 = arith.constant 0 : index
    %645 = vector.load %arg17[%c6_377, %c0_378, %c0_379] : memref<9x32x32xbf16, #tpu.memory_space<vmem>>, vector<1x32x32xbf16>
    %646 = vector.shape_cast %645 : vector<1x32x32xbf16> to vector<32x32xbf16>
    %cst_380 = arith.constant dense<0.000000e+00> : vector<32x256xf32>
    %647 = tpu.matmul %646, %644, %cst_380 {dimension_numbers = #tpu.dot_dimension_numbers<[1], [0], [0], [1], [0, 0, 1, 1], [], []>} : vector<32x32xbf16>, vector<32x256xbf16>, vector<32x256xf32> -> vector<32x256xf32>
    %648 = arith.addf %639, %647 : vector<32x256xf32>
    %cst_381 = arith.constant 0.000000e+00 : bf16
    %649 = vector.broadcast %cst_381 : bf16 to vector<32x16xbf16>
    %650 = vector.extract_strided_slice %593 {offsets = [0, 16], sizes = [32, 240], strides = [1, 1]} : vector<32x256xbf16> to vector<32x240xbf16>
    %651 = tpu.concatenate %650, %649 in 1 : vector<32x240xbf16>, vector<32x16xbf16> -> vector<32x256xbf16>
    %c7_382 = arith.constant 7 : index
    %c0_383 = arith.constant 0 : index
    %c0_384 = arith.constant 0 : index
    %652 = vector.load %arg17[%c7_382, %c0_383, %c0_384] : memref<9x32x32xbf16, #tpu.memory_space<vmem>>, vector<1x32x32xbf16>
    %653 = vector.shape_cast %652 : vector<1x32x32xbf16> to vector<32x32xbf16>
    %cst_385 = arith.constant dense<0.000000e+00> : vector<32x256xf32>
    %654 = tpu.matmul %653, %651, %cst_385 {dimension_numbers = #tpu.dot_dimension_numbers<[1], [0], [0], [1], [0, 0, 1, 1], [], []>} : vector<32x32xbf16>, vector<32x256xbf16>, vector<32x256xf32> -> vector<32x256xf32>
    %655 = arith.addf %648, %654 : vector<32x256xf32>
    %cst_386 = arith.constant 0.000000e+00 : bf16
    %656 = vector.broadcast %cst_386 : bf16 to vector<32x17xbf16>
    %657 = vector.extract_strided_slice %593 {offsets = [0, 17], sizes = [32, 239], strides = [1, 1]} : vector<32x256xbf16> to vector<32x239xbf16>
    %658 = tpu.concatenate %657, %656 in 1 : vector<32x239xbf16>, vector<32x17xbf16> -> vector<32x256xbf16>
    %659 = vector.broadcast %1 : vector<1x256xbf16> to vector<32x256xbf16>
    %660 = arith.mulf %658, %659 : vector<32x256xbf16>
    %c8_387 = arith.constant 8 : index
    %c0_388 = arith.constant 0 : index
    %c0_389 = arith.constant 0 : index
    %661 = vector.load %arg17[%c8_387, %c0_388, %c0_389] : memref<9x32x32xbf16, #tpu.memory_space<vmem>>, vector<1x32x32xbf16>
    %662 = vector.shape_cast %661 : vector<1x32x32xbf16> to vector<32x32xbf16>
    %cst_390 = arith.constant dense<0.000000e+00> : vector<32x256xf32>
    %663 = tpu.matmul %662, %660, %cst_390 {dimension_numbers = #tpu.dot_dimension_numbers<[1], [0], [0], [1], [0, 0, 1, 1], [], []>} : vector<32x32xbf16>, vector<32x256xbf16>, vector<32x256xf32> -> vector<32x256xf32>
    %664 = arith.addf %655, %663 : vector<32x256xf32>
    %c0_391 = arith.constant 0 : index
    %c0_392 = arith.constant 0 : index
    %665 = vector.load %arg18[%c0_391, %c0_392] : memref<32x1xf32, #tpu.memory_space<vmem>>, vector<32x1xf32>
    %666 = vector.broadcast %665 : vector<32x1xf32> to vector<32x256xf32>
    %667 = arith.addf %664, %666 : vector<32x256xf32>
    %c1_393 = arith.constant 1 : index
    %c0_394 = arith.constant 0 : index
    %c0_395 = arith.constant 0 : index
    %668 = vector.load %arg19[%c1_393, %c0_394, %c0_395] : memref<4x4x32xbf16, #tpu.memory_space<vmem>>, vector<1x4x32xbf16>
    %669 = vector.shape_cast %668 : vector<1x4x32xbf16> to vector<4x32xbf16>
    %670 = arith.truncf %667 : vector<32x256xf32> to vector<32x256xbf16>
    %cst_396 = arith.constant dense<0.000000e+00> : vector<4x256xf32>
    %671 = tpu.matmul %669, %670, %cst_396 {dimension_numbers = #tpu.dot_dimension_numbers<[1], [0], [0], [1], [0, 0, 1, 1], [], []>} : vector<4x32xbf16>, vector<32x256xbf16>, vector<4x256xf32> -> vector<4x256xf32>
    %672 = arith.addf %592, %671 : vector<4x256xf32>
    %c0_397 = arith.constant 0 : index
    %c0_398 = arith.constant 0 : index
    %c0_399 = arith.constant 0 : index
    %673 = vector.load %arg21[%c0_397, %c0_398, %c0_399] : memref<1x4x256xf32, #tpu.memory_space<vmem>>, vector<1x4x256xf32>
    %674 = vector.shape_cast %673 : vector<1x4x256xf32> to vector<4x256xf32>
    %675 = vector.shape_cast %672 : vector<4x256xf32> to vector<1x4x256xf32>
    tpu.vector_store %arg21[%c0_397, %c0_398, %c0_399], %675 {strides = array<i32>} : memref<1x4x256xf32, #tpu.memory_space<vmem>>, vector<1x4x256xf32>,
    return
  }
  func.func @transform_0(%arg0: i32) -> (i32, i32, i32) {
    %c0_i32 = arith.constant 0 : i32
    %c0_i32_0 = arith.constant 0 : i32
    %c0_i32_1 = arith.constant 0 : i32
    return %arg0, %c0_i32, %c0_i32_0 : i32, i32, i32
  }
  func.func @transform_1(%arg0: i32) -> (i32, i32) {
    %c0_i32 = arith.constant 0 : i32
    %c0_i32_0 = arith.constant 0 : i32
    %c0_i32_1 = arith.constant 0 : i32
    return %c0_i32, %c0_i32_0 : i32, i32
  }
  func.func @transform_2(%arg0: i32) -> (i32, i32, i32) {
    %c0_i32 = arith.constant 0 : i32
    %c0_i32_0 = arith.constant 0 : i32
    %c0_i32_1 = arith.constant 0 : i32
    %c0_i32_2 = arith.constant 0 : i32
    return %c0_i32, %c0_i32_0, %c0_i32_1 : i32, i32, i32
  }
  func.func @transform_3(%arg0: i32) -> (i32, i32) {
    %c0_i32 = arith.constant 0 : i32
    %c0_i32_0 = arith.constant 0 : i32
    %c0_i32_1 = arith.constant 0 : i32
    return %c0_i32, %c0_i32_0 : i32, i32
  }
  func.func @transform_4(%arg0: i32) -> (i32, i32, i32) {
    %c0_i32 = arith.constant 0 : i32
    %c0_i32_0 = arith.constant 0 : i32
    %c0_i32_1 = arith.constant 0 : i32
    %c0_i32_2 = arith.constant 0 : i32
    return %c0_i32, %c0_i32_0, %c0_i32_1 : i32, i32, i32
  }
  func.func @transform_5(%arg0: i32) -> (i32, i32) {
    %c0_i32 = arith.constant 0 : i32
    %c0_i32_0 = arith.constant 0 : i32
    %c0_i32_1 = arith.constant 0 : i32
    return %c0_i32, %c0_i32_0 : i32, i32
  }
  func.func @transform_6(%arg0: i32) -> (i32, i32, i32) {
    %c0_i32 = arith.constant 0 : i32
    %c0_i32_0 = arith.constant 0 : i32
    %c0_i32_1 = arith.constant 0 : i32
    %c0_i32_2 = arith.constant 0 : i32
    return %c0_i32, %c0_i32_0, %c0_i32_1 : i32, i32, i32
  }
  func.func @transform_7(%arg0: i32) -> (i32, i32) {
    %c0_i32 = arith.constant 0 : i32
    %c0_i32_0 = arith.constant 0 : i32
    %c0_i32_1 = arith.constant 0 : i32
    return %c0_i32, %c0_i32_0 : i32, i32
  }
  func.func @transform_8(%arg0: i32) -> (i32, i32, i32) {
    %c0_i32 = arith.constant 0 : i32
    %c0_i32_0 = arith.constant 0 : i32
    %c0_i32_1 = arith.constant 0 : i32
    %c0_i32_2 = arith.constant 0 : i32
    return %c0_i32, %c0_i32_0, %c0_i32_1 : i32, i32, i32
  }
  func.func @transform_9(%arg0: i32) -> (i32, i32) {
    %c0_i32 = arith.constant 0 : i32
    %c0_i32_0 = arith.constant 0 : i32
    %c0_i32_1 = arith.constant 0 : i32
    return %c0_i32, %c0_i32_0 : i32, i32
  }
  func.func @transform_10(%arg0: i32) -> (i32, i32, i32) {
    %c0_i32 = arith.constant 0 : i32
    %c0_i32_0 = arith.constant 0 : i32
    %c0_i32_1 = arith.constant 0 : i32
    %c0_i32_2 = arith.constant 0 : i32
    return %c0_i32, %c0_i32_0, %c0_i32_1 : i32, i32, i32
  }
  func.func @transform_11(%arg0: i32) -> (i32, i32) {
    %c0_i32 = arith.constant 0 : i32
    %c0_i32_0 = arith.constant 0 : i32
    %c0_i32_1 = arith.constant 0 : i32
    return %c0_i32, %c0_i32_0 : i32, i32
  }
  func.func @transform_12(%arg0: i32) -> (i32, i32, i32) {
    %c0_i32 = arith.constant 0 : i32
    %c0_i32_0 = arith.constant 0 : i32
    %c0_i32_1 = arith.constant 0 : i32
    %c0_i32_2 = arith.constant 0 : i32
    return %c0_i32, %c0_i32_0, %c0_i32_1 : i32, i32, i32
  }
  func.func @transform_13(%arg0: i32) -> (i32, i32) {
    %c0_i32 = arith.constant 0 : i32
    %c0_i32_0 = arith.constant 0 : i32
    %c0_i32_1 = arith.constant 0 : i32
    return %c0_i32, %c0_i32_0 : i32, i32
  }
  func.func @transform_14(%arg0: i32) -> (i32, i32, i32) {
    %c0_i32 = arith.constant 0 : i32
    %c0_i32_0 = arith.constant 0 : i32
    %c0_i32_1 = arith.constant 0 : i32
    %c0_i32_2 = arith.constant 0 : i32
    return %c0_i32, %c0_i32_0, %c0_i32_1 : i32, i32, i32
  }
  func.func @transform_15(%arg0: i32) -> (i32, i32) {
    %c0_i32 = arith.constant 0 : i32
    %c0_i32_0 = arith.constant 0 : i32
    %c0_i32_1 = arith.constant 0 : i32
    return %c0_i32, %c0_i32_0 : i32, i32
  }
  func.func @transform_16(%arg0: i32) -> (i32, i32, i32) {
    %c0_i32 = arith.constant 0 : i32
    %c0_i32_0 = arith.constant 0 : i32
    %c0_i32_1 = arith.constant 0 : i32
    %c0_i32_2 = arith.constant 0 : i32
    return %c0_i32, %c0_i32_0, %c0_i32_1 : i32, i32, i32
  }
  func.func @transform_17(%arg0: i32) -> (i32, i32) {
    %c0_i32 = arith.constant 0 : i32
    %c0_i32_0 = arith.constant 0 : i32
    %c0_i32_1 = arith.constant 0 : i32
    return %c0_i32, %c0_i32_0 : i32, i32
  }
  func.func @transform_18(%arg0: i32) -> (i32, i32, i32) {
    %c0_i32 = arith.constant 0 : i32
    %c0_i32_0 = arith.constant 0 : i32
    %c0_i32_1 = arith.constant 0 : i32
    %c0_i32_2 = arith.constant 0 : i32
    return %c0_i32, %c0_i32_0, %c0_i32_1 : i32, i32, i32
  }
  func.func @transform_19(%arg0: i32) -> (i32, i32) {
    %c0_i32 = arith.constant 0 : i32
    %c0_i32_0 = arith.constant 0 : i32
    %c0_i32_1 = arith.constant 0 : i32
    return %c0_i32, %c0_i32_0 : i32, i32
  }
  func.func @transform_20(%arg0: i32) -> (i32, i32, i32) {
    %c0_i32 = arith.constant 0 : i32
    %c0_i32_0 = arith.constant 0 : i32
    %c0_i32_1 = arith.constant 0 : i32
    return %arg0, %c0_i32, %c0_i32_0 : i32, i32, i32
  }
}

</mosaic_0001>

<llo_original>
// kernel: tpu_custom_call.1
$region0: #{tpu_custom_call.1}
  #allocation0 [shape = 'u32[]', space=smem, size = 0x4, offset = 0x4, fixed_abs, tag = 'smem constant byte address 0x4 - core index']
  #allocation1 [shape = 'u32[144,128]{1,0:T(1,128)}', space=vmem, size = 0x12000, scoped, tag = 'internal scratch']
  %s0 = inlined_call_operand.hbm [shape: bf16[2,4,256], index: 0, kind: input, shape index: {}]
  %s1 = inlined_call_operand.vmem [shape: bf16[2,256], index: 1, kind: input, shape index: {}]
  %s2 = inlined_call_operand.vmem [shape: bf16[9,32,4], index: 2, kind: input, shape index: {}]
  %s3 = inlined_call_operand.vmem [shape: f32[32,1], index: 3, kind: input, shape index: {}]
  %s4 = inlined_call_operand.vmem [shape: bf16[9,32,32], index: 4, kind: input, shape index: {}]
  %s5 = inlined_call_operand.vmem [shape: f32[32,1], index: 5, kind: input, shape index: {}]
  %s6 = inlined_call_operand.vmem [shape: bf16[9,32,32], index: 6, kind: input, shape index: {}]
  %s7 = inlined_call_operand.vmem [shape: f32[32,1], index: 7, kind: input, shape index: {}]
  %s8 = inlined_call_operand.vmem [shape: bf16[9,32,32], index: 8, kind: input, shape index: {}]
  %s9 = inlined_call_operand.vmem [shape: f32[32,1], index: 9, kind: input, shape index: {}]
  %s10 = inlined_call_operand.hbm [shape: bf16[9,32,32], index: 10, kind: input, shape index: {}]
  %s11 = inlined_call_operand.vmem [shape: f32[32,1], index: 11, kind: input, shape index: {}]
  %s12 = inlined_call_operand.hbm [shape: bf16[9,32,32], index: 12, kind: input, shape index: {}]
  %s13 = inlined_call_operand.vmem [shape: f32[32,1], index: 13, kind: input, shape index: {}]
  %s14 = inlined_call_operand.hbm [shape: bf16[9,32,32], index: 14, kind: input, shape index: {}]
  %s15 = inlined_call_operand.vmem [shape: f32[32,1], index: 15, kind: input, shape index: {}]
  %s16 = inlined_call_operand.hbm [shape: bf16[9,32,32], index: 16, kind: input, shape index: {}]
  %s17 = inlined_call_operand.vmem [shape: f32[32,1], index: 17, kind: input, shape index: {}]
  %s18 = inlined_call_operand.vmem [shape: bf16[4,4,32], index: 18, kind: input, shape index: {}]
  %s19 = inlined_call_operand.vmem [shape: f32[4,1], index: 19, kind: input, shape index: {}]
  %s20 = inlined_call_operand.hbm [shape: f32[2,4,256], index: 20, kind: output, shape index: {}]
  %s21 = sld [smem:[#allocation0]]
  $region133: #{tpu_custom_call.1} parent=0
    _
  %s23 = ssub.s32 1, %s21
  %s24 = scalar_select 0, %s23, %s21
  $region1: #{tpu_custom_call.1} parent=0
    #allocation2 [shape = 'u8[4096]{0}', space=vmem, size = 0x1000, scoped, tag = 'input window, operand 0']
    #allocation3 [shape = 's32[2]{0}', space=sflag, size = 0x8, scoped, tag = 'scoped memory for tpu_custom_call.1']
    #allocation4 [shape = 's32[2]{0}', space=sflag, size = 0x8, scoped, tag = 'scoped memory for tpu_custom_call.1']
    #allocation5 [shape = 'u8[73728]{0}', space=vmem, size = 0x12000, scoped, tag = 'input window, operand 10, single buffered']
    #allocation6 [shape = 's32[1]{0}', space=sflag, size = 0x4, scoped, tag = 'scoped memory for tpu_custom_call.1']
    #allocation7 [shape = 'u8[73728]{0}', space=vmem, size = 0x12000, scoped, tag = 'input window, operand 12, single buffered']
    #allocation8 [shape = 'u8[73728]{0}', space=vmem, size = 0x12000, scoped, tag = 'input window, operand 14, single buffered']
    #allocation9 [shape = 's32[1]{0}', space=sflag, size = 0x4, scoped, tag = 'scoped memory for tpu_custom_call.1']
    #allocation10 [shape = 'u8[73728]{0}', space=vmem, size = 0x12000, scoped, tag = 'input window, operand 16, single buffered']
    #allocation11 [shape = 'u8[8192]{0}', space=vmem, size = 0x2000, scoped, tag = 'output window, operand 0']
    %25 = vsyncpa [#allocation3], 0
    %s26 = scalar_lea.sflag [#allocation3], 1
    %27 = vsyncpa %s26, 0
    %28 = vsyncpa [#allocation6], 0
    %29 = vsyncpa [#allocation9], 0
    %30 = vsyncpa [#allocation4], 0
    %s31 = scalar_lea.sflag [#allocation4], 1
    %32 = vsyncpa %s31, 0
    loop: start=0, step=1, limit=4
    $region2: #{tpu_custom_call.1} parent=1 // loop_pre_header
      _
    $region3: #{tpu_custom_call.1} parent=1 // loop_header
      %s34 = sphi 0, %s38
      %p35 = scmp.ge.s32.totalorder %s34, 4
      %s44 = sphi 0, %s46
      %s47 = sphi 0, %s44
      %s48 = sphi 0, %s47
      %s64 = sphi 0, %s48
      %s68 = sphi 0, %s68
      %s70 = sphi 0, %s68
      %s71 = sphi 0, %s70
      %s85 = sphi 0, %s71
      %s89 = sphi 0, %s89
      %s91 = sphi 0, %s89
      %s92 = sphi 0, %s91
      %s106 = sphi 0, %s92
      %s110 = sphi 0, %s110
      %s112 = sphi 0, %s110
      %s113 = sphi 0, %s112
      %s127 = sphi 0, %s113
      %s131 = sphi 0, %s131
      %s133 = sphi 0, %s131
      %s134 = sphi 0, %s133
      %s148 = sphi 0, %s134
      %s152 = sphi 0, %s152
      %s154 = sphi 0, %s152
      %s155 = sphi 0, %s154
      %s169 = sphi 0, %s155
      %s173 = sphi 0, %s173
      %s175 = sphi 0, %s173
      %s176 = sphi 0, %s175
      %s190 = sphi 0, %s176
      %s194 = sphi 0, %s194
      %s196 = sphi 0, %s194
      %s197 = sphi 0, %s196
      %s211 = sphi 0, %s197
      %s215 = sphi 0, %s215
      %s217 = sphi 0, %s215
      %s218 = sphi 0, %s217
      %s232 = sphi 0, %s218
      %s236 = sphi 0, %s236
      %s238 = sphi 0, %s236
      %s239 = sphi 0, %s238
      %s253 = sphi 0, %s239
      %s257 = sphi 0, %s257
      %s259 = sphi 0, %s257
      %s260 = sphi 0, %s259
      %s274 = sphi 0, %s260
      %s278 = sphi 0, %s278
      %s280 = sphi 0, %s278
      %s281 = sphi 0, %s280
      %s295 = sphi 0, %s281
      %s299 = sphi 0, %s299
      %s301 = sphi 0, %s299
      %s302 = sphi 0, %s301
      %s316 = sphi 0, %s302
      %s320 = sphi 0, %s320
      %s322 = sphi 0, %s320
      %s323 = sphi 0, %s322
      %s337 = sphi 0, %s323
      %s341 = sphi 0, %s341
      %s343 = sphi 0, %s341
      %s344 = sphi 0, %s343
      %s358 = sphi 0, %s344
      %s362 = sphi 0, %s362
      %s364 = sphi 0, %s362
      %s365 = sphi 0, %s364
      %s379 = sphi 0, %s365
      %s383 = sphi 0, %s383
      %s385 = sphi 0, %s383
      %s386 = sphi 0, %s385
      %s400 = sphi 0, %s386
      %s404 = sphi 0, %s404
      %s406 = sphi 0, %s404
      %s407 = sphi 0, %s406
      %s421 = sphi 0, %s407
      %s425 = sphi 0, %s425
      %s427 = sphi 0, %s425
      %s428 = sphi 0, %s427
      %s442 = sphi 0, %s428
      %s446 = sphi 0, %s446
      %s448 = sphi 0, %s446
      %s449 = sphi 0, %s448
      %s463 = sphi 0, %s449
      %s469 = sphi 0, %s471
      %s472 = sphi 0, %s469
      %s473 = sphi 0, %s472
      %s489 = sphi 0, %s473
    $region4: #{tpu_custom_call.1} parent=1 // loop_header_branch
      %37 = sbr.rel (%p35) target = $region8
    $region5: #{tpu_custom_call.1} parent=1 // loop_body
      %s39 = ssub.s32 %s34, 1
      %s40 = ssub.s32 %s34, 2
      %s41 = sadd.s32 %s34, 1
      %s42 = ssub.s32 %s34, %s41
      %p43 = scmp.eq.s32.totalorder %s42, 0
      %s45 = sadd.s32 %s44, 1
      %s46 = scalar_select %p43, %s44, %s45
      %p49 = pneg %p43
      %p50 = scmp.eq.s32.totalorder %s34, 1
      %p51 = por %p49, %p50
      %p52 = scmp.ne.s32.totalorder %s44, %s47
      %p53 = scmp.eq.s32.totalorder %s34, 0
      %p54 = por %p52, %p53
      %p55 = scmp.ne.s32.totalorder %s44, %s47
      %p56 = scmp.eq.s32.totalorder %s39, 1
      %p57 = por %p55, %p56
      %p58 = scmp.ne.s32.totalorder %s47, %s48
      %p59 = scmp.eq.s32.totalorder %s39, 0
      %p60 = por %p58, %p59
      %p61 = scmp.ne.s32.totalorder %s47, %s48
      %p62 = scmp.eq.s32.totalorder %s40, 1
      %p63 = por %p61, %p62
      %p65 = scmp.ne.s32.totalorder %s48, %s64
      %p66 = scmp.eq.s32.totalorder %s40, 0
      %p67 = por %p65, %p66
      %s69 = sadd.s32 %s68, 1
      %p72 = scmp.eq.s32.totalorder %s34, 1
      %p73 = scmp.ne.s32.totalorder %s68, %s70
      %p74 = scmp.eq.s32.totalorder %s34, 0
      %p75 = por %p73, %p74
      %p76 = scmp.ne.s32.totalorder %s68, %s70
      %p77 = scmp.eq.s32.totalorder %s39, 1
      %p78 = por %p76, %p77
      %p79 = scmp.ne.s32.totalorder %s70, %s71
      %p80 = scmp.eq.s32.totalorder %s39, 0
      %p81 = por %p79, %p80
      %p82 = scmp.ne.s32.totalorder %s70, %s71
      %p83 = scmp.eq.s32.totalorder %s40, 1
      %p84 = por %p82, %p83
      %p86 = scmp.ne.s32.totalorder %s71, %s85
      %p87 = scmp.eq.s32.totalorder %s40, 0
      %p88 = por %p86, %p87
      %s90 = sadd.s32 %s89, 1
      %p93 = scmp.eq.s32.totalorder %s34, 1
      %p94 = scmp.ne.s32.totalorder %s89, %s91
      %p95 = scmp.eq.s32.totalorder %s34, 0
      %p96 = por %p94, %p95
      %p97 = scmp.ne.s32.totalorder %s89, %s91
      %p98 = scmp.eq.s32.totalorder %s39, 1
      %p99 = por %p97, %p98
      %p100 = scmp.ne.s32.totalorder %s91, %s92
      %p101 = scmp.eq.s32.totalorder %s39, 0
      %p102 = por %p100, %p101
      %p103 = scmp.ne.s32.totalorder %s91, %s92
      %p104 = scmp.eq.s32.totalorder %s40, 1
      %p105 = por %p103, %p104
      %p107 = scmp.ne.s32.totalorder %s92, %s106
      %p108 = scmp.eq.s32.totalorder %s40, 0
      %p109 = por %p107, %p108
      %s111 = sadd.s32 %s110, 1
      %p114 = scmp.eq.s32.totalorder %s34, 1
      %p115 = scmp.ne.s32.totalorder %s110, %s112
      %p116 = scmp.eq.s32.totalorder %s34, 0
      %p117 = por %p115, %p116
      %p118 = scmp.ne.s32.totalorder %s110, %s112
      %p119 = scmp.eq.s32.totalorder %s39, 1
      %p120 = por %p118, %p119
      %p121 = scmp.ne.s32.totalorder %s112, %s113
      %p122 = scmp.eq.s32.totalorder %s39, 0
      %p123 = por %p121, %p122
      %p124 = scmp.ne.s32.totalorder %s112, %s113
      %p125 = scmp.eq.s32.totalorder %s40, 1
      %p126 = por %p124, %p125
      %p128 = scmp.ne.s32.totalorder %s113, %s127
      %p129 = scmp.eq.s32.totalorder %s40, 0
      %p130 = por %p128, %p129
      %s132 = sadd.s32 %s131, 1
      %p135 = scmp.eq.s32.totalorder %s34, 1
      %p136 = scmp.ne.s32.totalorder %s131, %s133
      %p137 = scmp.eq.s32.totalorder %s34, 0
      %p138 = por %p136, %p137
      %p139 = scmp.ne.s32.totalorder %s131, %s133
      %p140 = scmp.eq.s32.totalorder %s39, 1
      %p141 = por %p139, %p140
      %p142 = scmp.ne.s32.totalorder %s133, %s134
      %p143 = scmp.eq.s32.totalorder %s39, 0
      %p144 = por %p142, %p143
      %p145 = scmp.ne.s32.totalorder %s133, %s134
      %p146 = scmp.eq.s32.totalorder %s40, 1
      %p147 = por %p145, %p146
      %p149 = scmp.ne.s32.totalorder %s134, %s148
      %p150 = scmp.eq.s32.totalorder %s40, 0
      %p151 = por %p149, %p150
      %s153 = sadd.s32 %s152, 1
      %p156 = scmp.eq.s32.totalorder %s34, 1
      %p157 = scmp.ne.s32.totalorder %s152, %s154
      %p158 = scmp.eq.s32.totalorder %s34, 0
      %p159 = por %p157, %p158
      %p160 = scmp.ne.s32.totalorder %s152, %s154
      %p161 = scmp.eq.s32.totalorder %s39, 1
      %p162 = por %p160, %p161
      %p163 = scmp.ne.s32.totalorder %s154, %s155
      %p164 = scmp.eq.s32.totalorder %s39, 0
      %p165 = por %p163, %p164
      %p166 = scmp.ne.s32.totalorder %s154, %s155
      %p167 = scmp.eq.s32.totalorder %s40, 1
      %p168 = por %p166, %p167
      %p170 = scmp.ne.s32.totalorder %s155, %s169
      %p171 = scmp.eq.s32.totalorder %s40, 0
      %p172 = por %p170, %p171
      %s174 = sadd.s32 %s173, 1
      %p177 = scmp.eq.s32.totalorder %s34, 1
      %p178 = scmp.ne.s32.totalorder %s173, %s175
      %p179 = scmp.eq.s32.totalorder %s34, 0
      %p180 = por %p178, %p179
      %p181 = scmp.ne.s32.totalorder %s173, %s175
      %p182 = scmp.eq.s32.totalorder %s39, 1
      %p183 = por %p181, %p182
      %p184 = scmp.ne.s32.totalorder %s175, %s176
      %p185 = scmp.eq.s32.totalorder %s39, 0
      %p186 = por %p184, %p185
      %p187 = scmp.ne.s32.totalorder %s175, %s176
      %p188 = scmp.eq.s32.totalorder %s40, 1
      %p189 = por %p187, %p188
      %p191 = scmp.ne.s32.totalorder %s176, %s190
      %p192 = scmp.eq.s32.totalorder %s40, 0
      %p193 = por %p191, %p192
      %s195 = sadd.s32 %s194, 1
      %p198 = scmp.eq.s32.totalorder %s34, 1
      %p199 = scmp.ne.s32.totalorder %s194, %s196
      %p200 = scmp.eq.s32.totalorder %s34, 0
      %p201 = por %p199, %p200
      %p202 = scmp.ne.s32.totalorder %s194, %s196
      %p203 = scmp.eq.s32.totalorder %s39, 1
      %p204 = por %p202, %p203
      %p205 = scmp.ne.s32.totalorder %s196, %s197
      %p206 = scmp.eq.s32.totalorder %s39, 0
      %p207 = por %p205, %p206
      %p208 = scmp.ne.s32.totalorder %s196, %s197
      %p209 = scmp.eq.s32.totalorder %s40, 1
      %p210 = por %p208, %p209
      %p212 = scmp.ne.s32.totalorder %s197, %s211
      %p213 = scmp.eq.s32.totalorder %s40, 0
      %p214 = por %p212, %p213
      %s216 = sadd.s32 %s215, 1
      %p219 = scmp.eq.s32.totalorder %s34, 1
      %p220 = scmp.ne.s32.totalorder %s215, %s217
      %p221 = scmp.eq.s32.totalorder %s34, 0
      %p222 = por %p220, %p221
      %p223 = scmp.ne.s32.totalorder %s215, %s217
      %p224 = scmp.eq.s32.totalorder %s39, 1
      %p225 = por %p223, %p224
      %p226 = scmp.ne.s32.totalorder %s217, %s218
      %p227 = scmp.eq.s32.totalorder %s39, 0
      %p228 = por %p226, %p227
      %p229 = scmp.ne.s32.totalorder %s217, %s218
      %p230 = scmp.eq.s32.totalorder %s40, 1
      %p231 = por %p229, %p230
      %p233 = scmp.ne.s32.totalorder %s218, %s232
      %p234 = scmp.eq.s32.totalorder %s40, 0
      %p235 = por %p233, %p234
      %s237 = sadd.s32 %s236, 1
      %p240 = scmp.eq.s32.totalorder %s34, 1
      %p241 = scmp.ne.s32.totalorder %s236, %s238
      %p242 = scmp.eq.s32.totalorder %s34, 0
      %p243 = por %p241, %p242
      %p244 = scmp.ne.s32.totalorder %s236, %s238
      %p245 = scmp.eq.s32.totalorder %s39, 1
      %p246 = por %p244, %p245
      %p247 = scmp.ne.s32.totalorder %s238, %s239
      %p248 = scmp.eq.s32.totalorder %s39, 0
      %p249 = por %p247, %p248
      %p250 = scmp.ne.s32.totalorder %s238, %s239
      %p251 = scmp.eq.s32.totalorder %s40, 1
      %p252 = por %p250, %p251
      %p254 = scmp.ne.s32.totalorder %s239, %s253
      %p255 = scmp.eq.s32.totalorder %s40, 0
      %p256 = por %p254, %p255
      %s258 = sadd.s32 %s257, 1
      %p261 = scmp.eq.s32.totalorder %s34, 1
      %p262 = scmp.ne.s32.totalorder %s257, %s259
      %p263 = scmp.eq.s32.totalorder %s34, 0
      %p264 = por %p262, %p263
      %p265 = scmp.ne.s32.totalorder %s257, %s259
      %p266 = scmp.eq.s32.totalorder %s39, 1
      %p267 = por %p265, %p266
      %p268 = scmp.ne.s32.totalorder %s259, %s260
      %p269 = scmp.eq.s32.totalorder %s39, 0
      %p270 = por %p268, %p269
      %p271 = scmp.ne.s32.totalorder %s259, %s260
      %p272 = scmp.eq.s32.totalorder %s40, 1
      %p273 = por %p271, %p272
      %p275 = scmp.ne.s32.totalorder %s260, %s274
      %p276 = scmp.eq.s32.totalorder %s40, 0
      %p277 = por %p275, %p276
      %s279 = sadd.s32 %s278, 1
      %p282 = scmp.eq.s32.totalorder %s34, 1
      %p283 = scmp.ne.s32.totalorder %s278, %s280
      %p284 = scmp.eq.s32.totalorder %s34, 0
      %p285 = por %p283, %p284
      %p286 = scmp.ne.s32.totalorder %s278, %s280
      %p287 = scmp.eq.s32.totalorder %s39, 1
      %p288 = por %p286, %p287
      %p289 = scmp.ne.s32.totalorder %s280, %s281
      %p290 = scmp.eq.s32.totalorder %s39, 0
      %p291 = por %p289, %p290
      %p292 = scmp.ne.s32.totalorder %s280, %s281
      %p293 = scmp.eq.s32.totalorder %s40, 1
      %p294 = por %p292, %p293
      %p296 = scmp.ne.s32.totalorder %s281, %s295
      %p297 = scmp.eq.s32.totalorder %s40, 0
      %p298 = por %p296, %p297
      %s300 = sadd.s32 %s299, 1
      %p303 = scmp.eq.s32.totalorder %s34, 1
      %p304 = scmp.ne.s32.totalorder %s299, %s301
      %p305 = scmp.eq.s32.totalorder %s34, 0
      %p306 = por %p304, %p305
      %p307 = scmp.ne.s32.totalorder %s299, %s301
      %p308 = scmp.eq.s32.totalorder %s39, 1
      %p309 = por %p307, %p308
      %p310 = scmp.ne.s32.totalorder %s301, %s302
      %p311 = scmp.eq.s32.totalorder %s39, 0
      %p312 = por %p310, %p311
      %p313 = scmp.ne.s32.totalorder %s301, %s302
      %p314 = scmp.eq.s32.totalorder %s40, 1
      %p315 = por %p313, %p314
      %p317 = scmp.ne.s32.totalorder %s302, %s316
      %p318 = scmp.eq.s32.totalorder %s40, 0
      %p319 = por %p317, %p318
      %s321 = sadd.s32 %s320, 1
      %p324 = scmp.eq.s32.totalorder %s34, 1
      %p325 = scmp.ne.s32.totalorder %s320, %s322
      %p326 = scmp.eq.s32.totalorder %s34, 0
      %p327 = por %p325, %p326
      %p328 = scmp.ne.s32.totalorder %s320, %s322
      %p329 = scmp.eq.s32.totalorder %s39, 1
      %p330 = por %p328, %p329
      %p331 = scmp.ne.s32.totalorder %s322, %s323
      %p332 = scmp.eq.s32.totalorder %s39, 0
      %p333 = por %p331, %p332
      %p334 = scmp.ne.s32.totalorder %s322, %s323
      %p335 = scmp.eq.s32.totalorder %s40, 1
      %p336 = por %p334, %p335
      %p338 = scmp.ne.s32.totalorder %s323, %s337
      %p339 = scmp.eq.s32.totalorder %s40, 0
      %p340 = por %p338, %p339
      %s342 = sadd.s32 %s341, 1
      %p345 = scmp.eq.s32.totalorder %s34, 1
      %p346 = scmp.ne.s32.totalorder %s341, %s343
      %p347 = scmp.eq.s32.totalorder %s34, 0
      %p348 = por %p346, %p347
      %p349 = scmp.ne.s32.totalorder %s341, %s343
      %p350 = scmp.eq.s32.totalorder %s39, 1
      %p351 = por %p349, %p350
      %p352 = scmp.ne.s32.totalorder %s343, %s344
      %p353 = scmp.eq.s32.totalorder %s39, 0
      %p354 = por %p352, %p353
      %p355 = scmp.ne.s32.totalorder %s343, %s344
      %p356 = scmp.eq.s32.totalorder %s40, 1
      %p357 = por %p355, %p356
      %p359 = scmp.ne.s32.totalorder %s344, %s358
      %p360 = scmp.eq.s32.totalorder %s40, 0
      %p361 = por %p359, %p360
      %s363 = sadd.s32 %s362, 1
      %p366 = scmp.eq.s32.totalorder %s34, 1
      %p367 = scmp.ne.s32.totalorder %s362, %s364
      %p368 = scmp.eq.s32.totalorder %s34, 0
      %p369 = por %p367, %p368
      %p370 = scmp.ne.s32.totalorder %s362, %s364
      %p371 = scmp.eq.s32.totalorder %s39, 1
      %p372 = por %p370, %p371
      %p373 = scmp.ne.s32.totalorder %s364, %s365
      %p374 = scmp.eq.s32.totalorder %s39, 0
      %p375 = por %p373, %p374
      %p376 = scmp.ne.s32.totalorder %s364, %s365
      %p377 = scmp.eq.s32.totalorder %s40, 1
      %p378 = por %p376, %p377
      %p380 = scmp.ne.s32.totalorder %s365, %s379
      %p381 = scmp.eq.s32.totalorder %s40, 0
      %p382 = por %p380, %p381
      %s384 = sadd.s32 %s383, 1
      %p387 = scmp.eq.s32.totalorder %s34, 1
      %p388 = scmp.ne.s32.totalorder %s383, %s385
      %p389 = scmp.eq.s32.totalorder %s34, 0
      %p390 = por %p388, %p389
      %p391 = scmp.ne.s32.totalorder %s383, %s385
      %p392 = scmp.eq.s32.totalorder %s39, 1
      %p393 = por %p391, %p392
      %p394 = scmp.ne.s32.totalorder %s385, %s386
      %p395 = scmp.eq.s32.totalorder %s39, 0
      %p396 = por %p394, %p395
      %p397 = scmp.ne.s32.totalorder %s385, %s386
      %p398 = scmp.eq.s32.totalorder %s40, 1
      %p399 = por %p397, %p398
      %p401 = scmp.ne.s32.totalorder %s386, %s400
      %p402 = scmp.eq.s32.totalorder %s40, 0
      %p403 = por %p401, %p402
      %s405 = sadd.s32 %s404, 1
      %p408 = scmp.eq.s32.totalorder %s34, 1
      %p409 = scmp.ne.s32.totalorder %s404, %s406
      %p410 = scmp.eq.s32.totalorder %s34, 0
      %p411 = por %p409, %p410
      %p412 = scmp.ne.s32.totalorder %s404, %s406
      %p413 = scmp.eq.s32.totalorder %s39, 1
      %p414 = por %p412, %p413
      %p415 = scmp.ne.s32.totalorder %s406, %s407
      %p416 = scmp.eq.s32.totalorder %s39, 0
      %p417 = por %p415, %p416
      %p418 = scmp.ne.s32.totalorder %s406, %s407
      %p419 = scmp.eq.s32.totalorder %s40, 1
      %p420 = por %p418, %p419
      %p422 = scmp.ne.s32.totalorder %s407, %s421
      %p423 = scmp.eq.s32.totalorder %s40, 0
      %p424 = por %p422, %p423
      %s426 = sadd.s32 %s425, 1
      %p429 = scmp.eq.s32.totalorder %s34, 1
      %p430 = scmp.ne.s32.totalorder %s425, %s427
      %p431 = scmp.eq.s32.totalorder %s34, 0
      %p432 = por %p430, %p431
      %p433 = scmp.ne.s32.totalorder %s425, %s427
      %p434 = scmp.eq.s32.totalorder %s39, 1
      %p435 = por %p433, %p434
      %p436 = scmp.ne.s32.totalorder %s427, %s428
      %p437 = scmp.eq.s32.totalorder %s39, 0
      %p438 = por %p436, %p437
      %p439 = scmp.ne.s32.totalorder %s427, %s428
      %p440 = scmp.eq.s32.totalorder %s40, 1
      %p441 = por %p439, %p440
      %p443 = scmp.ne.s32.totalorder %s428, %s442
      %p444 = scmp.eq.s32.totalorder %s40, 0
      %p445 = por %p443, %p444
      %s447 = sadd.s32 %s446, 1
      %p450 = scmp.eq.s32.totalorder %s34, 1
      %p451 = scmp.ne.s32.totalorder %s446, %s448
      %p452 = scmp.eq.s32.totalorder %s34, 0
      %p453 = por %p451, %p452
      %p454 = scmp.ne.s32.totalorder %s446, %s448
      %p455 = scmp.eq.s32.totalorder %s39, 1
      %p456 = por %p454, %p455
      %p457 = scmp.ne.s32.totalorder %s448, %s449
      %p458 = scmp.eq.s32.totalorder %s39, 0
      %p459 = por %p457, %p458
      %p460 = scmp.ne.s32.totalorder %s448, %s449
      %p461 = scmp.eq.s32.totalorder %s40, 1
      %p462 = por %p460, %p461
      %p464 = scmp.ne.s32.totalorder %s449, %s463
      %p465 = scmp.eq.s32.totalorder %s40, 0
      %p466 = por %p464, %p465
      %s467 = ssub.s32 %s34, %s41
      %p468 = scmp.eq.s32.totalorder %s467, 0
      %s470 = sadd.s32 %s469, 1
      %s471 = scalar_select %p468, %s469, %s470
      %p474 = pneg %p468
      %p475 = scmp.eq.s32.totalorder %s34, 1
      %p476 = por %p474, %p475
      %p477 = scmp.ne.s32.totalorder %s469, %s472
      %p478 = scmp.eq.s32.totalorder %s34, 0
      %p479 = por %p477, %p478
      %p480 = scmp.ne.s32.totalorder %s469, %s472
      %p481 = scmp.eq.s32.totalorder %s39, 1
      %p482 = por %p480, %p481
      %p483 = scmp.ne.s32.totalorder %s472, %s473
      %p484 = scmp.eq.s32.totalorder %s39, 0
      %p485 = por %p483, %p484
      %p486 = scmp.ne.s32.totalorder %s472, %s473
      %p487 = scmp.eq.s32.totalorder %s40, 1
      %p488 = por %p486, %p487
      %p490 = scmp.ne.s32.totalorder %s473, %s489
      %p491 = scmp.eq.s32.totalorder %s40, 0
      %p492 = por %p490, %p491
      %p493 = scmp.le.s32.totalorder 1, %s34
      %p494 = scmp.lt.s32.totalorder %s34, 3
      %p495 = pnand %p493, %p494
      %p496 = pneg %p495
      // Predicated region
      $region9: #{tpu_custom_call.1} parent=5 // pred_check
        _
      $region10: #{tpu_custom_call.1} parent=5 // pred_check_branch
        %498 = sbr.rel (%p495) target = $region12
      $region11: #{tpu_custom_call.1} parent=5 // pred_region
        %s499 = ssub.s32 %s34, 1
        // Predicated region
        $region13: #{tpu_custom_call.1} parent=11 // pred_check
          %p500 = pneg %p81
        $region14: #{tpu_custom_call.1} parent=11 // pred_check_branch
          %502 = sbr.rel (%p500) target = $region16
        $region15: #{tpu_custom_call.1} parent=11 // pred_region
          _
        $region16: #{tpu_custom_call.1} parent=11 // pred_fallthru
          _
        // Predicated region
        $region17: #{tpu_custom_call.1} parent=11 // pred_check
          %p503 = pneg %p102
        $region18: #{tpu_custom_call.1} parent=11 // pred_check_branch
          %505 = sbr.rel (%p503) target = $region20
        $region19: #{tpu_custom_call.1} parent=11 // pred_region
          _
        $region20: #{tpu_custom_call.1} parent=11 // pred_fallthru
          _
        // Predicated region
        $region21: #{tpu_custom_call.1} parent=11 // pred_check
          %p506 = pneg %p123
        $region22: #{tpu_custom_call.1} parent=11 // pred_check_branch
          %508 = sbr.rel (%p506) target = $region24
        $region23: #{tpu_custom_call.1} parent=11 // pred_region
          _
        $region24: #{tpu_custom_call.1} parent=11 // pred_fallthru
          _
        // Predicated region
        $region25: #{tpu_custom_call.1} parent=11 // pred_check
          %p509 = pneg %p144
        $region26: #{tpu_custom_call.1} parent=11 // pred_check_branch
          %511 = sbr.rel (%p509) target = $region28
        $region27: #{tpu_custom_call.1} parent=11 // pred_region
          _
        $region28: #{tpu_custom_call.1} parent=11 // pred_fallthru
          _
        // Predicated region
        $region29: #{tpu_custom_call.1} parent=11 // pred_check
          %p512 = pneg %p165
        $region30: #{tpu_custom_call.1} parent=11 // pred_check_branch
          %514 = sbr.rel (%p512) target = $region32
        $region31: #{tpu_custom_call.1} parent=11 // pred_region
          _
        $region32: #{tpu_custom_call.1} parent=11 // pred_fallthru
          _
        // Predicated region
        $region33: #{tpu_custom_call.1} parent=11 // pred_check
          %p515 = pneg %p186
        $region34: #{tpu_custom_call.1} parent=11 // pred_check_branch
          %517 = sbr.rel (%p515) target = $region36
        $region35: #{tpu_custom_call.1} parent=11 // pred_region
          _
        $region36: #{tpu_custom_call.1} parent=11 // pred_fallthru
          _
        // Predicated region
        $region37: #{tpu_custom_call.1} parent=11 // pred_check
          %p518 = pneg %p207
        $region38: #{tpu_custom_call.1} parent=11 // pred_check_branch
          %520 = sbr.rel (%p518) target = $region40
        $region39: #{tpu_custom_call.1} parent=11 // pred_region
          _
        $region40: #{tpu_custom_call.1} parent=11 // pred_fallthru
          _
        // Predicated region
        $region41: #{tpu_custom_call.1} parent=11 // pred_check
          %p521 = pneg %p228
        $region42: #{tpu_custom_call.1} parent=11 // pred_check_branch
          %523 = sbr.rel (%p521) target = $region44
        $region43: #{tpu_custom_call.1} parent=11 // pred_region
          _
        $region44: #{tpu_custom_call.1} parent=11 // pred_fallthru
          _
        // Predicated region
        $region45: #{tpu_custom_call.1} parent=11 // pred_check
          %p524 = pneg %p249
        $region46: #{tpu_custom_call.1} parent=11 // pred_check_branch
          %526 = sbr.rel (%p524) target = $region48
        $region47: #{tpu_custom_call.1} parent=11 // pred_region
          _
        $region48: #{tpu_custom_call.1} parent=11 // pred_fallthru
          _
        // Predicated region
        $region49: #{tpu_custom_call.1} parent=11 // pred_check
          %p527 = pneg %p270
        $region50: #{tpu_custom_call.1} parent=11 // pred_check_branch
          %529 = sbr.rel (%p527) target = $region52
        $region51: #{tpu_custom_call.1} parent=11 // pred_region
          %s531 = ssub.s32 2304, 2304
          %532 = vsyncadd [#allocation6], %s531
          %s533 = sshll.u32 [#allocation5], 4
          %s534 = int_to_ptr.vmem [resolvable:$true] %s533
          %539 = dma.hbm_to_vmem [thread:$0]  %s10, 2304, %s534, [#allocation6], 64, 64, 4
        $region52: #{tpu_custom_call.1} parent=11 // pred_fallthru
          _
        // Predicated region
        $region53: #{tpu_custom_call.1} parent=11 // pred_check
          %p540 = pneg %p291
        $region54: #{tpu_custom_call.1} parent=11 // pred_check_branch
          %542 = sbr.rel (%p540) target = $region56
        $region55: #{tpu_custom_call.1} parent=11 // pred_region
          _
        $region56: #{tpu_custom_call.1} parent=11 // pred_fallthru
          _
        // Predicated region
        $region57: #{tpu_custom_call.1} parent=11 // pred_check
          %p543 = pneg %p312
        $region58: #{tpu_custom_call.1} parent=11 // pred_check_branch
          %545 = sbr.rel (%p543) target = $region60
        $region59: #{tpu_custom_call.1} parent=11 // pred_region
          %s547 = ssub.s32 2304, 2304
          %548 = vsyncadd [#allocation6], %s547
          %s549 = sshll.u32 [#allocation7], 4
          %s550 = int_to_ptr.vmem [resolvable:$true] %s549
          %555 = dma.hbm_to_vmem [thread:$0]  %s12, 2304, %s550, [#allocation6], 64, 64, 4
        $region60: #{tpu_custom_call.1} parent=11 // pred_fallthru
          _
        // Predicated region
        $region61: #{tpu_custom_call.1} parent=11 // pred_check
          %p556 = pneg %p333
        $region62: #{tpu_custom_call.1} parent=11 // pred_check_branch
          %558 = sbr.rel (%p556) target = $region64
        $region63: #{tpu_custom_call.1} parent=11 // pred_region
          _
        $region64: #{tpu_custom_call.1} parent=11 // pred_fallthru
          _
        // Predicated region
        $region65: #{tpu_custom_call.1} parent=11 // pred_check
          %p559 = pneg %p354
        $region66: #{tpu_custom_call.1} parent=11 // pred_check_branch
          %561 = sbr.rel (%p559) target = $region68
        $region67: #{tpu_custom_call.1} parent=11 // pred_region
          %s563 = ssub.s32 2304, 2304
          %564 = vsyncadd [#allocation9], %s563
          %s565 = sshll.u32 [#allocation8], 4
          %s566 = int_to_ptr.vmem [resolvable:$true] %s565
          %571 = dma.hbm_to_vmem [thread:$0]  %s14, 2304, %s566, [#allocation9], 64, 64, 4
        $region68: #{tpu_custom_call.1} parent=11 // pred_fallthru
          _
        // Predicated region
        $region69: #{tpu_custom_call.1} parent=11 // pred_check
          %p572 = pneg %p375
        $region70: #{tpu_custom_call.1} parent=11 // pred_check_branch
          %574 = sbr.rel (%p572) target = $region72
        $region71: #{tpu_custom_call.1} parent=11 // pred_region
          _
        $region72: #{tpu_custom_call.1} parent=11 // pred_fallthru
          _
        // Predicated region
        $region73: #{tpu_custom_call.1} parent=11 // pred_check
          %p575 = pneg %p396
        $region74: #{tpu_custom_call.1} parent=11 // pred_check_branch
          %577 = sbr.rel (%p575) target = $region76
        $region75: #{tpu_custom_call.1} parent=11 // pred_region
          %s579 = ssub.s32 2304, 2304
          %580 = vsyncadd [#allocation9], %s579
          %s581 = sshll.u32 [#allocation10], 4
          %s582 = int_to_ptr.vmem [resolvable:$true] %s581
          %587 = dma.hbm_to_vmem [thread:$0]  %s16, 2304, %s582, [#allocation9], 64, 64, 4
        $region76: #{tpu_custom_call.1} parent=11 // pred_fallthru
          _
        // Predicated region
        $region77: #{tpu_custom_call.1} parent=11 // pred_check
          %p588 = pneg %p417
        $region78: #{tpu_custom_call.1} parent=11 // pred_check_branch
          %590 = sbr.rel (%p588) target = $region80
        $region79: #{tpu_custom_call.1} parent=11 // pred_region
          _
        $region80: #{tpu_custom_call.1} parent=11 // pred_fallthru
          _
        // Predicated region
        $region81: #{tpu_custom_call.1} parent=11 // pred_check
          %p591 = pneg %p438
        $region82: #{tpu_custom_call.1} parent=11 // pred_check_branch
          %593 = sbr.rel (%p591) target = $region84
        $region83: #{tpu_custom_call.1} parent=11 // pred_region
          _
        $region84: #{tpu_custom_call.1} parent=11 // pred_fallthru
          _
        // Predicated region
        $region85: #{tpu_custom_call.1} parent=11 // pred_check
          %p594 = pneg %p459
        $region86: #{tpu_custom_call.1} parent=11 // pred_check_branch
          %596 = sbr.rel (%p594) target = $region88
        $region87: #{tpu_custom_call.1} parent=11 // pred_region
          _
        $region88: #{tpu_custom_call.1} parent=11 // pred_fallthru
          _
      $region12: #{tpu_custom_call.1} parent=5 // pred_fallthru
        _
      %p597 = scmp.lt.s32.totalorder %s34, 2
      // Predicated region
      $region89: #{tpu_custom_call.1} parent=5 // pred_check
        %p598 = pneg %p597
      $region90: #{tpu_custom_call.1} parent=5 // pred_check_branch
        %600 = sbr.rel (%p598) target = $region92
      $region91: #{tpu_custom_call.1} parent=5 // pred_region
        // Predicated region
        $region93: #{tpu_custom_call.1} parent=91 // pred_check
          %p601 = pneg %p54
        $region94: #{tpu_custom_call.1} parent=91 // pred_check_branch
          %603 = sbr.rel (%p601) target = $region96
        $region95: #{tpu_custom_call.1} parent=91 // pred_region
          %s604 = sand.u32 %s44, 1
          %s605 = scalar_lea.sflag [#allocation3], %s604
          %s606 = sand.u32 %s44, 1
          %s607 = smul.addr %s606, 4
          %s608 = scalar_lea.vmem [#allocation2], %s607
          %s610 = ssub.s32 64, 64
          %611 = vsyncadd %s605, %s610
          %s612 = smul.addr %s34, 2
          %s613 = smul.addr %s612, 32
          %s614 = scalar_lea.hbm %s0, %s613
          %s616 = sshll.u32 %s608, 4
          %s617 = int_to_ptr.vmem [resolvable:$true] %s616
          %619 = dma.hbm_to_vmem [thread:$0]  %s614, 64, %s617, %s605
        $region96: #{tpu_custom_call.1} parent=91 // pred_fallthru
          _
      $region92: #{tpu_custom_call.1} parent=5 // pred_fallthru
        _
      %p620 = scmp.le.s32.totalorder 1, %s34
      %p621 = scmp.lt.s32.totalorder %s34, 3
      %p622 = pnand %p620, %p621
      %p623 = pneg %p622
      // Predicated region
      $region97: #{tpu_custom_call.1} parent=5 // pred_check
        _
      $region98: #{tpu_custom_call.1} parent=5 // pred_check_branch
        %625 = sbr.rel (%p622) target = $region100
      $region99: #{tpu_custom_call.1} parent=5 // pred_region
        %s626 = ssub.s32 %s34, 1
        %s627 = sand.u32 %s47, 1
        %s628 = scalar_lea.sflag [#allocation3], %s627
        %s629 = sand.u32 %s47, 1
        %s630 = smul.addr %s629, 4
        %s631 = scalar_lea.vmem [#allocation2], %s630
        // Predicated region
        $region101: #{tpu_custom_call.1} parent=99 // pred_check
          %p632 = pneg %p60
        $region102: #{tpu_custom_call.1} parent=99 // pred_check_branch
          %634 = sbr.rel (%p632) target = $region104
        $region103: #{tpu_custom_call.1} parent=99 // pred_region
          %635 = dma.done %s628, 64
        $region104: #{tpu_custom_call.1} parent=99 // pred_fallthru
          _
        // Predicated region
        $region105: #{tpu_custom_call.1} parent=99 // pred_check
          %p636 = pneg %p270
        $region106: #{tpu_custom_call.1} parent=99 // pred_check_branch
          %638 = sbr.rel (%p636) target = $region108
        $region107: #{tpu_custom_call.1} parent=99 // pred_region
          %639 = dma.done [#allocation6], 2304
        $region108: #{tpu_custom_call.1} parent=99 // pred_fallthru
          _
        // Predicated region
        $region109: #{tpu_custom_call.1} parent=99 // pred_check
          %p640 = pneg %p312
        $region110: #{tpu_custom_call.1} parent=99 // pred_check_branch
          %642 = sbr.rel (%p640) target = $region112
        $region111: #{tpu_custom_call.1} parent=99 // pred_region
          %643 = dma.done [#allocation6], 2304
        $region112: #{tpu_custom_call.1} parent=99 // pred_fallthru
          _
        // Predicated region
        $region113: #{tpu_custom_call.1} parent=99 // pred_check
          %p644 = pneg %p354
        $region114: #{tpu_custom_call.1} parent=99 // pred_check_branch
          %646 = sbr.rel (%p644) target = $region116
        $region115: #{tpu_custom_call.1} parent=99 // pred_region
          %647 = dma.done [#allocation9], 2304
        $region116: #{tpu_custom_call.1} parent=99 // pred_fallthru
          _
        // Predicated region
        $region117: #{tpu_custom_call.1} parent=99 // pred_check
          %p648 = pneg %p396
        $region118: #{tpu_custom_call.1} parent=99 // pred_check_branch
          %650 = sbr.rel (%p648) target = $region120
        $region119: #{tpu_custom_call.1} parent=99 // pred_region
          %651 = dma.done [#allocation9], 2304
        $region120: #{tpu_custom_call.1} parent=99 // pred_fallthru
          _
        %s652 = sand.u32 %s47, 1
        %s653 = scalar_lea.sflag [#allocation3], %s652
        %s654 = sand.u32 %s47, 1
        %s655 = smul.addr %s654, 4
        %s656 = scalar_lea.vmem [#allocation2], %s655
        %p657 = pneg %p60
        %p658 = pneg %p57
        %p659 = pneg %p81
        %p660 = pneg %p78
        %p661 = pneg %p102
        %p662 = pneg %p99
        %p663 = pneg %p123
        %p664 = pneg %p120
        %p665 = pneg %p144
        %p666 = pneg %p141
        %p667 = pneg %p165
        %p668 = pneg %p162
        %p669 = pneg %p186
        %p670 = pneg %p183
        %p671 = pneg %p207
        %p672 = pneg %p204
        %p673 = pneg %p228
        %p674 = pneg %p225
        %p675 = pneg %p249
        %p676 = pneg %p246
        %p677 = pneg %p270
        %p678 = pneg %p267
        %p679 = pneg %p291
        %p680 = pneg %p288
        %p681 = pneg %p312
        %p682 = pneg %p309
        %p683 = pneg %p333
        %p684 = pneg %p330
        %p685 = pneg %p354
        %p686 = pneg %p351
        %p687 = pneg %p375
        %p688 = pneg %p372
        %p689 = pneg %p396
        %p690 = pneg %p393
        %p691 = pneg %p417
        %p692 = pneg %p414
        %p693 = pneg %p438
        %p694 = pneg %p435
        %p695 = pneg %p459
        %p696 = pneg %p456
        %p697 = pneg %p485
        %p698 = pneg %p482
        %s699 = sand.u32 %s472, 1
        %s700 = scalar_lea.sflag [#allocation4], %s699
        %s701 = sand.u32 %s472, 1
        %s702 = smul.addr %s701, 8
        %s703 = scalar_lea.vmem [#allocation11], %s702
        %v705 = vld [vmem:[%s1] sm:$0x3]
        %v706 = vld [vmem:[%s631] sm:$0xf]
        %v709 = vunpack.c.l.s4 1983009808
        %v710 = vunpack.c.0.s8 %v709
        %v711 = vlaneseq
        %v712 = vshrl.u32 %v711, 7
        %v713 = vsub.s32 %v710, %v712
        %v714 = vrot.slane %v706, %v713
        %v715 = vcombine.high %v714, %v714
        %716 = vrot.lane.b32.xlu0 %v714, 17
        %v717 = vpop.permute.xlu0 %716
        %718 = vrot.lane.b32.xlu0 %v715, 17
        %v719 = vpop.permute.xlu0 %718
        %vm720 = vcmask 138240
        %v721 = vsel %vm720, %v717, %v719
        %vm723 = vcmask 138240
        %v726 = vsel %vm723, 0, %v717
        %v730 = vunpack.c.l.s4 1966171168
        %v731 = vunpack.c.0.s8 %v730
        %v732 = vlaneseq
        %v733 = vshrl.u32 %v732, 7
        %v734 = vsub.s32 %v731, %v733
        %v735 = vrot.slane %v705, %v734
        %v736 = vcombine.high %v735, %v735
        %v738 = vunpack.c.l.s4 1966171168
        %v739 = vunpack.c.0.s8 %v738
        %v740 = vlaneseq
        %v741 = vshrl.u32 %v740, 7
        %v742 = vsub.s32 %v739, %v741
        %v743 = vrot.slane %v735, %v742
        %v745 = vunpack.c.l.s4 1966171168
        %v746 = vunpack.c.0.s8 %v745
        %v747 = vlaneseq
        %v748 = vshrl.u32 %v747, 7
        %v749 = vsub.s32 %v746, %v748
        %v750 = vrot.slane %v736, %v749
        %v752 = vpack.i.b16 %v743, %v743
        %v754 = vlaneseq
        %v755 = vshrl.u32 %v754, 7
        %v756 = vsub.s32 0, %v755
        %v757 = vrot.slane %v752, %v756
        %v759 = vpack.i.b16 %v750, %v750
        %v761 = vlaneseq
        %v762 = vshrl.u32 %v761, 7
        %v763 = vsub.s32 0, %v762
        %v764 = vrot.slane %v759, %v763
        %v765 = vmul.bf16 %v726, %v757
        %v766 = vmul.bf16 %v721, %v764
        %v767 = vld [vmem:[%s2] sm:$0xf]
        %v768 = vld [vmem:[%s2 + $0x4] sm:$0xf]
        %v769 = vld [vmem:[%s2 + $0x8] sm:$0xf]
        %v770 = vld [vmem:[%s2 + $0xc] sm:$0xf]
        %771 = vrot.lane.b32.xlu0 %v714, 16
        %v772 = vpop.permute.xlu0 %771
        %773 = vrot.lane.b32.xlu0 %v715, 16
        %v774 = vpop.permute.xlu0 %773
        %vm775 = vcmask 130048
        %v776 = vsel %vm775, %v772, %v774
        %vm777 = vcmask 130048
        %v779 = vsel %vm777, 0, %v772
        %s780 = scalar_lea.vmem %s2, 16
        %v781 = vld [vmem:[%s780] sm:$0xf]
        %v782 = vld [vmem:[%s780 + $0x4] sm:$0xf]
        %v783 = vld [vmem:[%s780 + $0x8] sm:$0xf]
        %v784 = vld [vmem:[%s780 + $0xc] sm:$0xf]
        %v789 = vunpack.c.l.b16 %v781
        %v790 = vunpack.c.l.b16 %v782
        %v791 = vunpack.c.l.b16 %v783
        %v792 = vunpack.c.l.b16 %v784
        %v793 = vpack.c.b16 %v790, %v789
        %v794 = vpack.c.b16 %v792, %v791
        %vm795 = vcmask 31744
        %v797 = vsel %vm795, %v793, 0
        %v800 = vsel %vm795, %v794, 0
        %vm802 = vcmask 1041408
        %v803 = vsel %vm802, %v779, 0
        %v806 = vsel %vm802, %v776, 0
        %808 = vmatprep.subr.bf16.mxu0 %v806
        %809 = vmatpush1.bf16.msra.mxu0 %v803
        %810 = vmatprep.subr.bf16.mxu0 0
        %811 = vmatpush1.bf16.msra.mxu0 0
        %812 = vmatprep.subr.bf16.mxu0 0
        %813 = vmatpush1.bf16.msra.mxu0 0
        %814 = vmatprep.subr.bf16.mxu0 0
        %815 = vmatpush1.bf16.msra.mxu0 0
        %816 = vmatprep.subr.bf16.mxu0 0
        %817 = vmatpush1.bf16.msra.mxu0 0
        %818 = vmatprep.subr.bf16.mxu0 0
        %819 = vmatpush1.bf16.msra.mxu0 0
        %820 = vmatprep.subr.bf16.mxu0 0
        %821 = vmatpush1.bf16.msra.mxu0 0
        %822 = vmatprep.subr.bf16.mxu0 0
        %823 = vmatpush1.bf16.msra.mxu0 0
        %824 = vmatprep.subr.bf16.mxu0 0
        %825 = vmatpush1.bf16.msra.mxu0 0
        %826 = vmatprep.subr.bf16.mxu0 0
        %827 = vmatpush1.bf16.msra.mxu0 0
        %828 = vmatprep.subr.bf16.mxu0 0
        %829 = vmatpush1.bf16.msra.mxu0 0
        %830 = vmatprep.subr.bf16.mxu0 0
        %831 = vmatpush1.bf16.msra.mxu0 0
        %832 = vmatprep.subr.bf16.mxu0 0
        %833 = vmatpush1.bf16.msra.mxu0 0
        %834 = vmatprep.subr.bf16.mxu0 0
        %835 = vmatpush1.bf16.msra.mxu0 0
        %836 = vmatprep.subr.bf16.mxu0 0
        %837 = vmatpush1.bf16.msra.mxu0 0
        %838 = vmatprep.subr.bf16.mxu0 0
        %839 = vmatpush1.bf16.msra.mxu0 0
        %840 = vmatprep.mubr.bf16.mxu0 0
        %841 = vmatmul.mubr.bf16.gmra.mrb[0].mxu0 %v797
        %v842 = vpop.f32.mrb[0].mxu0
        %v843 = vadd.f32 0.0, %v842
        %v844 = vpop.f32.mrb[0].mxu0
        %v845 = vadd.f32 0.0, %v844
        %v846 = vpop.f32.mrb[0].mxu0
        %v847 = vadd.f32 0.0, %v846
        %v848 = vpop.f32.mrb[0].mxu0
        %v849 = vadd.f32 0.0, %v848
        %850 = vmatprep.mubr.bf16.mxu0 0
        %851 = vmatmul.mubr.bf16.gmra.mrb[0].mxu0 %v800
        %v852 = vpop.f32.mrb[0].mxu0
        %v853 = vadd.f32 0.0, %v852
        %v854 = vpop.f32.mrb[0].mxu0
        %v855 = vadd.f32 0.0, %v854
        %v856 = vpop.f32.mrb[0].mxu0
        %v857 = vadd.f32 0.0, %v856
        %v858 = vpop.f32.mrb[0].mxu0
        %v859 = vadd.f32 0.0, %v858
        %860 = vdwg.mxu0
        %v865 = vunpack.c.l.b16 %v767
        %v866 = vunpack.c.l.b16 %v768
        %v867 = vunpack.c.l.b16 %v769
        %v868 = vunpack.c.l.b16 %v770
        %v869 = vpack.c.b16 %v866, %v865
        %v870 = vpack.c.b16 %v868, %v867
        %v872 = vsel %vm795, %v869, 0
        %v875 = vsel %vm795, %v870, 0
        %v878 = vsel %vm802, %v765, 0
        %v881 = vsel %vm802, %v766, 0
        %883 = vmatprep.subr.bf16.mxu0 %v881
        %884 = vmatpush1.bf16.msra.mxu0 %v878
        %885 = vmatprep.subr.bf16.mxu0 0
        %886 = vmatpush1.bf16.msra.mxu0 0
        %887 = vmatprep.subr.bf16.mxu0 0
        %888 = vmatpush1.bf16.msra.mxu0 0
        %889 = vmatprep.subr.bf16.mxu0 0
        %890 = vmatpush1.bf16.msra.mxu0 0
        %891 = vmatprep.subr.bf16.mxu0 0
        %892 = vmatpush1.bf16.msra.mxu0 0
        %893 = vmatprep.subr.bf16.mxu0 0
        %894 = vmatpush1.bf16.msra.mxu0 0
        %895 = vmatprep.subr.bf16.mxu0 0
        %896 = vmatpush1.bf16.msra.mxu0 0
        %897 = vmatprep.subr.bf16.mxu0 0
        %898 = vmatpush1.bf16.msra.mxu0 0
        %899 = vmatprep.subr.bf16.mxu0 0
        %900 = vmatpush1.bf16.msra.mxu0 0
        %901 = vmatprep.subr.bf16.mxu0 0
        %902 = vmatpush1.bf16.msra.mxu0 0
        %903 = vmatprep.subr.bf16.mxu0 0
        %904 = vmatpush1.bf16.msra.mxu0 0
        %905 = vmatprep.subr.bf16.mxu0 0
        %906 = vmatpush1.bf16.msra.mxu0 0
        %907 = vmatprep.subr.bf16.mxu0 0
        %908 = vmatpush1.bf16.msra.mxu0 0
        %909 = vmatprep.subr.bf16.mxu0 0
        %910 = vmatpush1.bf16.msra.mxu0 0
        %911 = vmatprep.subr.bf16.mxu0 0
        %912 = vmatpush1.bf16.msra.mxu0 0
        %913 = vmatprep.subr.bf16.mxu0 0
        %914 = vmatpush1.bf16.msra.mxu0 0
        %915 = vmatprep.mubr.bf16.mxu0 0
        %916 = vmatmul.mubr.bf16.gmra.mrb[0].mxu0 %v872
        %v917 = vpop.f32.mrb[0].mxu0
        %v918 = vadd.f32 %v843, %v917
        %v919 = vpop.f32.mrb[0].mxu0
        %v920 = vadd.f32 %v845, %v919
        %v921 = vpop.f32.mrb[0].mxu0
        %v922 = vadd.f32 %v847, %v921
        %v923 = vpop.f32.mrb[0].mxu0
        %v924 = vadd.f32 %v849, %v923
        %925 = vmatprep.mubr.bf16.mxu0 0
        %926 = vmatmul.mubr.bf16.gmra.mrb[0].mxu0 %v875
        %v927 = vpop.f32.mrb[0].mxu0
        %v928 = vadd.f32 %v853, %v927
        %v929 = vpop.f32.mrb[0].mxu0
        %v930 = vadd.f32 %v855, %v929
        %v931 = vpop.f32.mrb[0].mxu0
        %v932 = vadd.f32 %v857, %v931
        %v933 = vpop.f32.mrb[0].mxu0
        %v934 = vadd.f32 %v859, %v933
        %935 = vdwg.mxu0
        %936 = vrot.lane.b32.xlu0 %v714, 15
        %v937 = vpop.permute.xlu0 %936
        %938 = vrot.lane.b32.xlu0 %v715, 15
        %v939 = vpop.permute.xlu0 %938
        %vm940 = vcmask 121856
        %v941 = vsel %vm940, %v937, %v939
        %vm943 = vcmask 121856
        %v945 = vsel %vm943, 0, %v937
        %v947 = vshrl.u32 %v743, 16
        %v948 = vpack.i.b16 %v947, %v947
        %v950 = vlaneseq
        %v951 = vshrl.u32 %v950, 7
        %v952 = vsub.s32 0, %v951
        %v953 = vrot.slane %v948, %v952
        %v954 = vshrl.u32 %v750, 16
        %v955 = vpack.i.b16 %v954, %v954
        %v957 = vlaneseq
        %v958 = vshrl.u32 %v957, 7
        %v959 = vsub.s32 0, %v958
        %v960 = vrot.slane %v955, %v959
        %v961 = vmul.bf16 %v945, %v953
        %v962 = vmul.bf16 %v941, %v960
        %s963 = scalar_lea.vmem %s2, 32
        %v964 = vld [vmem:[%s963] sm:$0xf]
        %v965 = vld [vmem:[%s963 + $0x4] sm:$0xf]
        %v966 = vld [vmem:[%s963 + $0x8] sm:$0xf]
        %v967 = vld [vmem:[%s963 + $0xc] sm:$0xf]
        %v972 = vunpack.c.l.b16 %v964
        %v973 = vunpack.c.l.b16 %v965
        %v974 = vunpack.c.l.b16 %v966
        %v975 = vunpack.c.l.b16 %v967
        %v976 = vpack.c.b16 %v973, %v972
        %v977 = vpack.c.b16 %v975, %v974
        %v979 = vsel %vm795, %v976, 0
        %v982 = vsel %vm795, %v977, 0
        %v985 = vsel %vm802, %v961, 0
        %v988 = vsel %vm802, %v962, 0
        %990 = vmatprep.subr.bf16.mxu0 %v988
        %991 = vmatpush1.bf16.msra.mxu0 %v985
        %992 = vmatprep.subr.bf16.mxu0 0
        %993 = vmatpush1.bf16.msra.mxu0 0
        %994 = vmatprep.subr.bf16.mxu0 0
        %995 = vmatpush1.bf16.msra.mxu0 0
        %996 = vmatprep.subr.bf16.mxu0 0
        %997 = vmatpush1.bf16.msra.mxu0 0
        %998 = vmatprep.subr.bf16.mxu0 0
        %999 = vmatpush1.bf16.msra.mxu0 0
        %1000 = vmatprep.subr.bf16.mxu0 0
        %1001 = vmatpush1.bf16.msra.mxu0 0
        %1002 = vmatprep.subr.bf16.mxu0 0
        %1003 = vmatpush1.bf16.msra.mxu0 0
        %1004 = vmatprep.subr.bf16.mxu0 0
        %1005 = vmatpush1.bf16.msra.mxu0 0
        %1006 = vmatprep.subr.bf16.mxu0 0
        %1007 = vmatpush1.bf16.msra.mxu0 0
        %1008 = vmatprep.subr.bf16.mxu0 0
        %1009 = vmatpush1.bf16.msra.mxu0 0
        %1010 = vmatprep.subr.bf16.mxu0 0
        %1011 = vmatpush1.bf16.msra.mxu0 0
        %1012 = vmatprep.subr.bf16.mxu0 0
        %1013 = vmatpush1.bf16.msra.mxu0 0
        %1014 = vmatprep.subr.bf16.mxu0 0
        %1015 = vmatpush1.bf16.msra.mxu0 0
        %1016 = vmatprep.subr.bf16.mxu0 0
        %1017 = vmatpush1.bf16.msra.mxu0 0
        %1018 = vmatprep.subr.bf16.mxu0 0
        %1019 = vmatpush1.bf16.msra.mxu0 0
        %1020 = vmatprep.subr.bf16.mxu0 0
        %1021 = vmatpush1.bf16.msra.mxu0 0
        %1022 = vmatprep.mubr.bf16.mxu0 0
        %1023 = vmatmul.mubr.bf16.gmra.mrb[0].mxu0 %v979
        %v1024 = vpop.f32.mrb[0].mxu0
        %v1025 = vadd.f32 0.0, %v1024
        %v1026 = vpop.f32.mrb[0].mxu0
        %v1027 = vadd.f32 0.0, %v1026
        %v1028 = vpop.f32.mrb[0].mxu0
        %v1029 = vadd.f32 0.0, %v1028
        %v1030 = vpop.f32.mrb[0].mxu0
        %v1031 = vadd.f32 0.0, %v1030
        %1032 = vmatprep.mubr.bf16.mxu0 0
        %1033 = vmatmul.mubr.bf16.gmra.mrb[0].mxu0 %v982
        %v1034 = vpop.f32.mrb[0].mxu0
        %v1035 = vadd.f32 0.0, %v1034
        %v1036 = vpop.f32.mrb[0].mxu0
        %v1037 = vadd.f32 0.0, %v1036
        %v1038 = vpop.f32.mrb[0].mxu0
        %v1039 = vadd.f32 0.0, %v1038
        %v1040 = vpop.f32.mrb[0].mxu0
        %v1041 = vadd.f32 0.0, %v1040
        %1042 = vdwg.mxu0
        %v1043 = vadd.f32 %v918, %v1025
        %v1044 = vadd.f32 %v920, %v1027
        %v1045 = vadd.f32 %v922, %v1029
        %v1046 = vadd.f32 %v924, %v1031
        %v1047 = vadd.f32 %v928, %v1035
        %v1048 = vadd.f32 %v930, %v1037
        %v1049 = vadd.f32 %v932, %v1039
        %v1050 = vadd.f32 %v934, %v1041
        %1051 = vrot.lane.b32.xlu0 %v714, 1
        %v1052 = vpop.permute.xlu0 %1051
        %1053 = vrot.lane.b32.xlu0 %v715, 1
        %v1054 = vpop.permute.xlu0 %1053
        %vm1055 = vcmask 7168
        %v1056 = vsel %vm1055, %v1052, %v1054
        %vm1058 = vcmask 7168
        %v1060 = vsel %vm1058, 0, %v1052
        %v1062 = vmul.bf16 %v1060, %v757
        %v1063 = vmul.bf16 %v1056, %v764
        %s1064 = scalar_lea.vmem %s2, 48
        %v1065 = vld [vmem:[%s1064] sm:$0xf]
        %v1066 = vld [vmem:[%s1064 + $0x4] sm:$0xf]
        %v1067 = vld [vmem:[%s1064 + $0x8] sm:$0xf]
        %v1068 = vld [vmem:[%s1064 + $0xc] sm:$0xf]
        %v1073 = vunpack.c.l.b16 %v1065
        %v1074 = vunpack.c.l.b16 %v1066
        %v1075 = vunpack.c.l.b16 %v1067
        %v1076 = vunpack.c.l.b16 %v1068
        %v1077 = vpack.c.b16 %v1074, %v1073
        %v1078 = vpack.c.b16 %v1076, %v1075
        %v1080 = vsel %vm795, %v1077, 0
        %v1083 = vsel %vm795, %v1078, 0
        %v1086 = vsel %vm802, %v1062, 0
        %v1089 = vsel %vm802, %v1063, 0
        %1091 = vmatprep.subr.bf16.mxu0 %v1089
        %1092 = vmatpush1.bf16.msra.mxu0 %v1086
        %1093 = vmatprep.subr.bf16.mxu0 0
        %1094 = vmatpush1.bf16.msra.mxu0 0
        %1095 = vmatprep.subr.bf16.mxu0 0
        %1096 = vmatpush1.bf16.msra.mxu0 0
        %1097 = vmatprep.subr.bf16.mxu0 0
        %1098 = vmatpush1.bf16.msra.mxu0 0
        %1099 = vmatprep.subr.bf16.mxu0 0
        %1100 = vmatpush1.bf16.msra.mxu0 0
        %1101 = vmatprep.subr.bf16.mxu0 0
        %1102 = vmatpush1.bf16.msra.mxu0 0
        %1103 = vmatprep.subr.bf16.mxu0 0
        %1104 = vmatpush1.bf16.msra.mxu0 0
        %1105 = vmatprep.subr.bf16.mxu0 0
        %1106 = vmatpush1.bf16.msra.mxu0 0
        %1107 = vmatprep.subr.bf16.mxu0 0
        %1108 = vmatpush1.bf16.msra.mxu0 0
        %1109 = vmatprep.subr.bf16.mxu0 0
        %1110 = vmatpush1.bf16.msra.mxu0 0
        %1111 = vmatprep.subr.bf16.mxu0 0
        %1112 = vmatpush1.bf16.msra.mxu0 0
        %1113 = vmatprep.subr.bf16.mxu0 0
        %1114 = vmatpush1.bf16.msra.mxu0 0
        %1115 = vmatprep.subr.bf16.mxu0 0
        %1116 = vmatpush1.bf16.msra.mxu0 0
        %1117 = vmatprep.subr.bf16.mxu0 0
        %1118 = vmatpush1.bf16.msra.mxu0 0
        %1119 = vmatprep.subr.bf16.mxu0 0
        %1120 = vmatpush1.bf16.msra.mxu0 0
        %1121 = vmatprep.subr.bf16.mxu0 0
        %1122 = vmatpush1.bf16.msra.mxu0 0
        %1123 = vmatprep.mubr.bf16.mxu0 0
        %1124 = vmatmul.mubr.bf16.gmra.mrb[0].mxu0 %v1080
        %v1125 = vpop.f32.mrb[0].mxu0
        %v1126 = vadd.f32 0.0, %v1125
        %v1127 = vpop.f32.mrb[0].mxu0
        %v1128 = vadd.f32 0.0, %v1127
        %v1129 = vpop.f32.mrb[0].mxu0
        %v1130 = vadd.f32 0.0, %v1129
        %v1131 = vpop.f32.mrb[0].mxu0
        %v1132 = vadd.f32 0.0, %v1131
        %1133 = vmatprep.mubr.bf16.mxu0 0
        %1134 = vmatmul.mubr.bf16.gmra.mrb[0].mxu0 %v1083
        %v1135 = vpop.f32.mrb[0].mxu0
        %v1136 = vadd.f32 0.0, %v1135
        %v1137 = vpop.f32.mrb[0].mxu0
        %v1138 = vadd.f32 0.0, %v1137
        %v1139 = vpop.f32.mrb[0].mxu0
        %v1140 = vadd.f32 0.0, %v1139
        %v1141 = vpop.f32.mrb[0].mxu0
        %v1142 = vadd.f32 0.0, %v1141
        %1143 = vdwg.mxu0
        %v1144 = vadd.f32 %v1043, %v1126
        %v1145 = vadd.f32 %v1044, %v1128
        %v1146 = vadd.f32 %v1045, %v1130
        %v1147 = vadd.f32 %v1046, %v1132
        %v1148 = vadd.f32 %v1047, %v1136
        %v1149 = vadd.f32 %v1048, %v1138
        %v1150 = vadd.f32 %v1049, %v1140
        %v1151 = vadd.f32 %v1050, %v1142
        %s1152 = scalar_lea.vmem %s2, 64
        %v1153 = vld [vmem:[%s1152] sm:$0xf]
        %v1154 = vld [vmem:[%s1152 + $0x4] sm:$0xf]
        %v1155 = vld [vmem:[%s1152 + $0x8] sm:$0xf]
        %v1156 = vld [vmem:[%s1152 + $0xc] sm:$0xf]
        %v1161 = vunpack.c.l.b16 %v1153
        %v1162 = vunpack.c.l.b16 %v1154
        %v1163 = vunpack.c.l.b16 %v1155
        %v1164 = vunpack.c.l.b16 %v1156
        %v1165 = vpack.c.b16 %v1162, %v1161
        %v1166 = vpack.c.b16 %v1164, %v1163
        %v1168 = vsel %vm795, %v1165, 0
        %v1171 = vsel %vm795, %v1166, 0
        %v1174 = vsel %vm802, %v714, 0
        %v1177 = vsel %vm802, %v715, 0
        %1179 = vmatprep.subr.bf16.mxu0 %v1177
        %1180 = vmatpush1.bf16.msra.mxu0 %v1174
        %1181 = vmatprep.subr.bf16.mxu0 0
        %1182 = vmatpush1.bf16.msra.mxu0 0
        %1183 = vmatprep.subr.bf16.mxu0 0
        %1184 = vmatpush1.bf16.msra.mxu0 0
        %1185 = vmatprep.subr.bf16.mxu0 0
        %1186 = vmatpush1.bf16.msra.mxu0 0
        %1187 = vmatprep.subr.bf16.mxu0 0
        %1188 = vmatpush1.bf16.msra.mxu0 0
        %1189 = vmatprep.subr.bf16.mxu0 0
        %1190 = vmatpush1.bf16.msra.mxu0 0
        %1191 = vmatprep.subr.bf16.mxu0 0
        %1192 = vmatpush1.bf16.msra.mxu0 0
        %1193 = vmatprep.subr.bf16.mxu0 0
        %1194 = vmatpush1.bf16.msra.mxu0 0
        %1195 = vmatprep.subr.bf16.mxu0 0
        %1196 = vmatpush1.bf16.msra.mxu0 0
        %1197 = vmatprep.subr.bf16.mxu0 0
        %1198 = vmatpush1.bf16.msra.mxu0 0
        %1199 = vmatprep.subr.bf16.mxu0 0
        %1200 = vmatpush1.bf16.msra.mxu0 0
        %1201 = vmatprep.subr.bf16.mxu0 0
        %1202 = vmatpush1.bf16.msra.mxu0 0
        %1203 = vmatprep.subr.bf16.mxu0 0
        %1204 = vmatpush1.bf16.msra.mxu0 0
        %1205 = vmatprep.subr.bf16.mxu0 0
        %1206 = vmatpush1.bf16.msra.mxu0 0
        %1207 = vmatprep.subr.bf16.mxu0 0
        %1208 = vmatpush1.bf16.msra.mxu0 0
        %1209 = vmatprep.subr.bf16.mxu0 0
        %1210 = vmatpush1.bf16.msra.mxu0 0
        %1211 = vmatprep.mubr.bf16.mxu0 0
        %1212 = vmatmul.mubr.bf16.gmra.mrb[0].mxu0 %v1168
        %v1213 = vpop.f32.mrb[0].mxu0
        %v1214 = vadd.f32 0.0, %v1213
        %v1215 = vpop.f32.mrb[0].mxu0
        %v1216 = vadd.f32 0.0, %v1215
        %v1217 = vpop.f32.mrb[0].mxu0
        %v1218 = vadd.f32 0.0, %v1217
        %v1219 = vpop.f32.mrb[0].mxu0
        %v1220 = vadd.f32 0.0, %v1219
        %1221 = vmatprep.mubr.bf16.mxu0 0
        %1222 = vmatmul.mubr.bf16.gmra.mrb[0].mxu0 %v1171
        %v1223 = vpop.f32.mrb[0].mxu0
        %v1224 = vadd.f32 0.0, %v1223
        %v1225 = vpop.f32.mrb[0].mxu0
        %v1226 = vadd.f32 0.0, %v1225
        %v1227 = vpop.f32.mrb[0].mxu0
        %v1228 = vadd.f32 0.0, %v1227
        %v1229 = vpop.f32.mrb[0].mxu0
        %v1230 = vadd.f32 0.0, %v1229
        %1231 = vdwg.mxu0
        %v1232 = vadd.f32 %v1144, %v1214
        %v1233 = vadd.f32 %v1145, %v1216
        %v1234 = vadd.f32 %v1146, %v1218
        %v1235 = vadd.f32 %v1147, %v1220
        %v1236 = vadd.f32 %v1148, %v1224
        %v1237 = vadd.f32 %v1149, %v1226
        %v1238 = vadd.f32 %v1150, %v1228
        %v1239 = vadd.f32 %v1151, %v1230
        %1240 = vrot.lane.b32.xlu0 %v714, 127
        %v1241 = vpop.permute.xlu0 %1240
        %1242 = vrot.lane.b32.xlu0 %v715, 127
        %v1243 = vpop.permute.xlu0 %1242
        %vm1244 = vcmask 1039360
        %v1245 = vsel %vm1244, %v1241, %v1243
        %vm1247 = vcmask 1039360
        %v1249 = vsel %vm1247, %v1243, 0
        %v1251 = vmul.bf16 %v1245, %v953
        %v1252 = vmul.bf16 %v1249, %v960
        %s1253 = scalar_lea.vmem %s2, 80
        %v1254 = vld [vmem:[%s1253] sm:$0xf]
        %v1255 = vld [vmem:[%s1253 + $0x4] sm:$0xf]
        %v1256 = vld [vmem:[%s1253 + $0x8] sm:$0xf]
        %v1257 = vld [vmem:[%s1253 + $0xc] sm:$0xf]
        %v1262 = vunpack.c.l.b16 %v1254
        %v1263 = vunpack.c.l.b16 %v1255
        %v1264 = vunpack.c.l.b16 %v1256
        %v1265 = vunpack.c.l.b16 %v1257
        %v1266 = vpack.c.b16 %v1263, %v1262
        %v1267 = vpack.c.b16 %v1265, %v1264
        %v1269 = vsel %vm795, %v1266, 0
        %v1272 = vsel %vm795, %v1267, 0
        %v1275 = vsel %vm802, %v1251, 0
        %v1278 = vsel %vm802, %v1252, 0
        %1280 = vmatprep.subr.bf16.mxu0 %v1278
        %1281 = vmatpush1.bf16.msra.mxu0 %v1275
        %1282 = vmatprep.subr.bf16.mxu0 0
        %1283 = vmatpush1.bf16.msra.mxu0 0
        %1284 = vmatprep.subr.bf16.mxu0 0
        %1285 = vmatpush1.bf16.msra.mxu0 0
        %1286 = vmatprep.subr.bf16.mxu0 0
        %1287 = vmatpush1.bf16.msra.mxu0 0
        %1288 = vmatprep.subr.bf16.mxu0 0
        %1289 = vmatpush1.bf16.msra.mxu0 0
        %1290 = vmatprep.subr.bf16.mxu0 0
        %1291 = vmatpush1.bf16.msra.mxu0 0
        %1292 = vmatprep.subr.bf16.mxu0 0
        %1293 = vmatpush1.bf16.msra.mxu0 0
        %1294 = vmatprep.subr.bf16.mxu0 0
        %1295 = vmatpush1.bf16.msra.mxu0 0
        %1296 = vmatprep.subr.bf16.mxu0 0
        %1297 = vmatpush1.bf16.msra.mxu0 0
        %1298 = vmatprep.subr.bf16.mxu0 0
        %1299 = vmatpush1.bf16.msra.mxu0 0
        %1300 = vmatprep.subr.bf16.mxu0 0
        %1301 = vmatpush1.bf16.msra.mxu0 0
        %1302 = vmatprep.subr.bf16.mxu0 0
        %1303 = vmatpush1.bf16.msra.mxu0 0
        %1304 = vmatprep.subr.bf16.mxu0 0
        %1305 = vmatpush1.bf16.msra.mxu0 0
        %1306 = vmatprep.subr.bf16.mxu0 0
        %1307 = vmatpush1.bf16.msra.mxu0 0
        %1308 = vmatprep.subr.bf16.mxu0 0
        %1309 = vmatpush1.bf16.msra.mxu0 0
        %1310 = vmatprep.subr.bf16.mxu0 0
        %1311 = vmatpush1.bf16.msra.mxu0 0
        %1312 = vmatprep.mubr.bf16.mxu0 0
        %1313 = vmatmul.mubr.bf16.gmra.mrb[0].mxu0 %v1269
        %v1314 = vpop.f32.mrb[0].mxu0
        %v1315 = vadd.f32 0.0, %v1314
        %v1316 = vpop.f32.mrb[0].mxu0
        %v1317 = vadd.f32 0.0, %v1316
        %v1318 = vpop.f32.mrb[0].mxu0
        %v1319 = vadd.f32 0.0, %v1318
        %v1320 = vpop.f32.mrb[0].mxu0
        %v1321 = vadd.f32 0.0, %v1320
        %1322 = vmatprep.mubr.bf16.mxu0 0
        %1323 = vmatmul.mubr.bf16.gmra.mrb[0].mxu0 %v1272
        %v1324 = vpop.f32.mrb[0].mxu0
        %v1325 = vadd.f32 0.0, %v1324
        %v1326 = vpop.f32.mrb[0].mxu0
        %v1327 = vadd.f32 0.0, %v1326
        %v1328 = vpop.f32.mrb[0].mxu0
        %v1329 = vadd.f32 0.0, %v1328
        %v1330 = vpop.f32.mrb[0].mxu0
        %v1331 = vadd.f32 0.0, %v1330
        %1332 = vdwg.mxu0
        %v1333 = vadd.f32 %v1232, %v1315
        %v1334 = vadd.f32 %v1233, %v1317
        %v1335 = vadd.f32 %v1234, %v1319
        %v1336 = vadd.f32 %v1235, %v1321
        %v1337 = vadd.f32 %v1236, %v1325
        %v1338 = vadd.f32 %v1237, %v1327
        %v1339 = vadd.f32 %v1238, %v1329
        %v1340 = vadd.f32 %v1239, %v1331
        %1341 = vrot.lane.b32.xlu0 %v714, 113
        %v1342 = vpop.permute.xlu0 %1341
        %1343 = vrot.lane.b32.xlu0 %v715, 113
        %v1344 = vpop.permute.xlu0 %1343
        %vm1345 = vcmask 924672
        %v1346 = vsel %vm1345, %v1342, %v1344
        %vm1348 = vcmask 924672
        %v1350 = vsel %vm1348, %v1344, 0
        %v1352 = vmul.bf16 %v1346, %v757
        %v1353 = vmul.bf16 %v1350, %v764
        %s1354 = scalar_lea.vmem %s2, 96
        %v1355 = vld [vmem:[%s1354] sm:$0xf]
        %v1356 = vld [vmem:[%s1354 + $0x4] sm:$0xf]
        %v1357 = vld [vmem:[%s1354 + $0x8] sm:$0xf]
        %v1358 = vld [vmem:[%s1354 + $0xc] sm:$0xf]
        %v1363 = vunpack.c.l.b16 %v1355
        %v1364 = vunpack.c.l.b16 %v1356
        %v1365 = vunpack.c.l.b16 %v1357
        %v1366 = vunpack.c.l.b16 %v1358
        %v1367 = vpack.c.b16 %v1364, %v1363
        %v1368 = vpack.c.b16 %v1366, %v1365
        %v1370 = vsel %vm795, %v1367, 0
        %v1373 = vsel %vm795, %v1368, 0
        %v1376 = vsel %vm802, %v1352, 0
        %v1379 = vsel %vm802, %v1353, 0
        %1381 = vmatprep.subr.bf16.mxu0 %v1379
        %1382 = vmatpush1.bf16.msra.mxu0 %v1376
        %1383 = vmatprep.subr.bf16.mxu0 0
        %1384 = vmatpush1.bf16.msra.mxu0 0
        %1385 = vmatprep.subr.bf16.mxu0 0
        %1386 = vmatpush1.bf16.msra.mxu0 0
        %1387 = vmatprep.subr.bf16.mxu0 0
        %1388 = vmatpush1.bf16.msra.mxu0 0
        %1389 = vmatprep.subr.bf16.mxu0 0
        %1390 = vmatpush1.bf16.msra.mxu0 0
        %1391 = vmatprep.subr.bf16.mxu0 0
        %1392 = vmatpush1.bf16.msra.mxu0 0
        %1393 = vmatprep.subr.bf16.mxu0 0
        %1394 = vmatpush1.bf16.msra.mxu0 0
        %1395 = vmatprep.subr.bf16.mxu0 0
        %1396 = vmatpush1.bf16.msra.mxu0 0
        %1397 = vmatprep.subr.bf16.mxu0 0
        %1398 = vmatpush1.bf16.msra.mxu0 0
        %1399 = vmatprep.subr.bf16.mxu0 0
        %1400 = vmatpush1.bf16.msra.mxu0 0
        %1401 = vmatprep.subr.bf16.mxu0 0
        %1402 = vmatpush1.bf16.msra.mxu0 0
        %1403 = vmatprep.subr.bf16.mxu0 0
        %1404 = vmatpush1.bf16.msra.mxu0 0
        %1405 = vmatprep.subr.bf16.mxu0 0
        %1406 = vmatpush1.bf16.msra.mxu0 0
        %1407 = vmatprep.subr.bf16.mxu0 0
        %1408 = vmatpush1.bf16.msra.mxu0 0
        %1409 = vmatprep.subr.bf16.mxu0 0
        %1410 = vmatpush1.bf16.msra.mxu0 0
        %1411 = vmatprep.subr.bf16.mxu0 0
        %1412 = vmatpush1.bf16.msra.mxu0 0
        %1413 = vmatprep.mubr.bf16.mxu0 0
        %1414 = vmatmul.mubr.bf16.gmra.mrb[0].mxu0 %v1370
        %v1415 = vpop.f32.mrb[0].mxu0
        %v1416 = vadd.f32 0.0, %v1415
        %v1417 = vpop.f32.mrb[0].mxu0
        %v1418 = vadd.f32 0.0, %v1417
        %v1419 = vpop.f32.mrb[0].mxu0
        %v1420 = vadd.f32 0.0, %v1419
        %v1421 = vpop.f32.mrb[0].mxu0
        %v1422 = vadd.f32 0.0, %v1421
        %1423 = vmatprep.mubr.bf16.mxu0 0
        %1424 = vmatmul.mubr.bf16.gmra.mrb[0].mxu0 %v1373
        %v1425 = vpop.f32.mrb[0].mxu0
        %v1426 = vadd.f32 0.0, %v1425
        %v1427 = vpop.f32.mrb[0].mxu0
        %v1428 = vadd.f32 0.0, %v1427
        %v1429 = vpop.f32.mrb[0].mxu0
        %v1430 = vadd.f32 0.0, %v1429
        %v1431 = vpop.f32.mrb[0].mxu0
        %v1432 = vadd.f32 0.0, %v1431
        %1433 = vdwg.mxu0
        %v1434 = vadd.f32 %v1333, %v1416
        %v1435 = vadd.f32 %v1334, %v1418
        %v1436 = vadd.f32 %v1335, %v1420
        %v1437 = vadd.f32 %v1336, %v1422
        %v1438 = vadd.f32 %v1337, %v1426
        %v1439 = vadd.f32 %v1338, %v1428
        %v1440 = vadd.f32 %v1339, %v1430
        %v1441 = vadd.f32 %v1340, %v1432
        %1442 = vrot.lane.b32.xlu0 %v714, 112
        %v1443 = vpop.permute.xlu0 %1442
        %1444 = vrot.lane.b32.xlu0 %v715, 112
        %v1445 = vpop.permute.xlu0 %1444
        %vm1446 = vcmask 916480
        %v1447 = vsel %vm1446, %v1443, %v1445
        %vm1448 = vcmask 916480
        %v1450 = vsel %vm1448, %v1445, 0
        %s1451 = scalar_lea.vmem %s2, 112
        %v1452 = vld [vmem:[%s1451] sm:$0xf]
        %v1453 = vld [vmem:[%s1451 + $0x4] sm:$0xf]
        %v1454 = vld [vmem:[%s1451 + $0x8] sm:$0xf]
        %v1455 = vld [vmem:[%s1451 + $0xc] sm:$0xf]
        %v1460 = vunpack.c.l.b16 %v1452
        %v1461 = vunpack.c.l.b16 %v1453
        %v1462 = vunpack.c.l.b16 %v1454
        %v1463 = vunpack.c.l.b16 %v1455
        %v1464 = vpack.c.b16 %v1461, %v1460
        %v1465 = vpack.c.b16 %v1463, %v1462
        %v1467 = vsel %vm795, %v1464, 0
        %v1470 = vsel %vm795, %v1465, 0
        %v1473 = vsel %vm802, %v1447, 0
        %v1475 = vsel %vm802, %v1450, 0
        %1477 = vmatprep.subr.bf16.mxu0 %v1475
        %1478 = vmatpush1.bf16.msra.mxu0 %v1473
        %1479 = vmatprep.subr.bf16.mxu0 0
        %1480 = vmatpush1.bf16.msra.mxu0 0
        %1481 = vmatprep.subr.bf16.mxu0 0
        %1482 = vmatpush1.bf16.msra.mxu0 0
        %1483 = vmatprep.subr.bf16.mxu0 0
        %1484 = vmatpush1.bf16.msra.mxu0 0
        %1485 = vmatprep.subr.bf16.mxu0 0
        %1486 = vmatpush1.bf16.msra.mxu0 0
        %1487 = vmatprep.subr.bf16.mxu0 0
        %1488 = vmatpush1.bf16.msra.mxu0 0
        %1489 = vmatprep.subr.bf16.mxu0 0
        %1490 = vmatpush1.bf16.msra.mxu0 0
        %1491 = vmatprep.subr.bf16.mxu0 0
        %1492 = vmatpush1.bf16.msra.mxu0 0
        %1493 = vmatprep.subr.bf16.mxu0 0
        %1494 = vmatpush1.bf16.msra.mxu0 0
        %1495 = vmatprep.subr.bf16.mxu0 0
        %1496 = vmatpush1.bf16.msra.mxu0 0
        %1497 = vmatprep.subr.bf16.mxu0 0
        %1498 = vmatpush1.bf16.msra.mxu0 0
        %1499 = vmatprep.subr.bf16.mxu0 0
        %1500 = vmatpush1.bf16.msra.mxu0 0
        %1501 = vmatprep.subr.bf16.mxu0 0
        %1502 = vmatpush1.bf16.msra.mxu0 0
        %1503 = vmatprep.subr.bf16.mxu0 0
        %1504 = vmatpush1.bf16.msra.mxu0 0
        %1505 = vmatprep.subr.bf16.mxu0 0
        %1506 = vmatpush1.bf16.msra.mxu0 0
        %1507 = vmatprep.subr.bf16.mxu0 0
        %1508 = vmatpush1.bf16.msra.mxu0 0
        %1509 = vmatprep.mubr.bf16.mxu0 0
        %1510 = vmatmul.mubr.bf16.gmra.mrb[0].mxu0 %v1467
        %v1511 = vpop.f32.mrb[0].mxu0
        %v1512 = vadd.f32 0.0, %v1511
        %v1513 = vpop.f32.mrb[0].mxu0
        %v1514 = vadd.f32 0.0, %v1513
        %v1515 = vpop.f32.mrb[0].mxu0
        %v1516 = vadd.f32 0.0, %v1515
        %v1517 = vpop.f32.mrb[0].mxu0
        %v1518 = vadd.f32 0.0, %v1517
        %1519 = vmatprep.mubr.bf16.mxu0 0
        %1520 = vmatmul.mubr.bf16.gmra.mrb[0].mxu0 %v1470
        %v1521 = vpop.f32.mrb[0].mxu0
        %v1522 = vadd.f32 0.0, %v1521
        %v1523 = vpop.f32.mrb[0].mxu0
        %v1524 = vadd.f32 0.0, %v1523
        %v1525 = vpop.f32.mrb[0].mxu0
        %v1526 = vadd.f32 0.0, %v1525
        %v1527 = vpop.f32.mrb[0].mxu0
        %v1528 = vadd.f32 0.0, %v1527
        %1529 = vdwg.mxu0
        %v1530 = vadd.f32 %v1434, %v1512
        %v1531 = vadd.f32 %v1435, %v1514
        %v1532 = vadd.f32 %v1436, %v1516
        %v1533 = vadd.f32 %v1437, %v1518
        %v1534 = vadd.f32 %v1438, %v1522
        %v1535 = vadd.f32 %v1439, %v1524
        %v1536 = vadd.f32 %v1440, %v1526
        %v1537 = vadd.f32 %v1441, %v1528
        %1538 = vrot.lane.b32.xlu0 %v714, 111
        %v1539 = vpop.permute.xlu0 %1538
        %1540 = vrot.lane.b32.xlu0 %v715, 111
        %v1541 = vpop.permute.xlu0 %1540
        %vm1542 = vcmask 908288
        %v1543 = vsel %vm1542, %v1539, %v1541
        %vm1545 = vcmask 908288
        %v1547 = vsel %vm1545, %v1541, 0
        %v1549 = vmul.bf16 %v1543, %v953
        %v1550 = vmul.bf16 %v1547, %v960
        %s1551 = scalar_lea.vmem %s2, 128
        %v1552 = vld [vmem:[%s1551] sm:$0xf]
        %v1553 = vld [vmem:[%s1551 + $0x4] sm:$0xf]
        %v1554 = vld [vmem:[%s1551 + $0x8] sm:$0xf]
        %v1555 = vld [vmem:[%s1551 + $0xc] sm:$0xf]
        %v1560 = vunpack.c.l.b16 %v1552
        %v1561 = vunpack.c.l.b16 %v1553
        %v1562 = vunpack.c.l.b16 %v1554
        %v1563 = vunpack.c.l.b16 %v1555
        %v1564 = vpack.c.b16 %v1561, %v1560
        %v1565 = vpack.c.b16 %v1563, %v1562
        %v1567 = vsel %vm795, %v1564, 0
        %v1570 = vsel %vm795, %v1565, 0
        %v1573 = vsel %vm802, %v1549, 0
        %v1576 = vsel %vm802, %v1550, 0
        %1578 = vmatprep.subr.bf16.mxu0 %v1576
        %1579 = vmatpush1.bf16.msra.mxu0 %v1573
        %1580 = vmatprep.subr.bf16.mxu0 0
        %1581 = vmatpush1.bf16.msra.mxu0 0
        %1582 = vmatprep.subr.bf16.mxu0 0
        %1583 = vmatpush1.bf16.msra.mxu0 0
        %1584 = vmatprep.subr.bf16.mxu0 0
        %1585 = vmatpush1.bf16.msra.mxu0 0
        %1586 = vmatprep.subr.bf16.mxu0 0
        %1587 = vmatpush1.bf16.msra.mxu0 0
        %1588 = vmatprep.subr.bf16.mxu0 0
        %1589 = vmatpush1.bf16.msra.mxu0 0
        %1590 = vmatprep.subr.bf16.mxu0 0
        %1591 = vmatpush1.bf16.msra.mxu0 0
        %1592 = vmatprep.subr.bf16.mxu0 0
        %1593 = vmatpush1.bf16.msra.mxu0 0
        %1594 = vmatprep.subr.bf16.mxu0 0
        %1595 = vmatpush1.bf16.msra.mxu0 0
        %1596 = vmatprep.subr.bf16.mxu0 0
        %1597 = vmatpush1.bf16.msra.mxu0 0
        %1598 = vmatprep.subr.bf16.mxu0 0
        %1599 = vmatpush1.bf16.msra.mxu0 0
        %1600 = vmatprep.subr.bf16.mxu0 0
        %1601 = vmatpush1.bf16.msra.mxu0 0
        %1602 = vmatprep.subr.bf16.mxu0 0
        %1603 = vmatpush1.bf16.msra.mxu0 0
        %1604 = vmatprep.subr.bf16.mxu0 0
        %1605 = vmatpush1.bf16.msra.mxu0 0
        %1606 = vmatprep.subr.bf16.mxu0 0
        %1607 = vmatpush1.bf16.msra.mxu0 0
        %1608 = vmatprep.subr.bf16.mxu0 0
        %1609 = vmatpush1.bf16.msra.mxu0 0
        %1610 = vmatprep.mubr.bf16.mxu0 0
        %1611 = vmatmul.mubr.bf16.gmra.mrb[0].mxu0 %v1567
        %v1612 = vpop.f32.mrb[0].mxu0
        %v1613 = vadd.f32 0.0, %v1612
        %v1614 = vpop.f32.mrb[0].mxu0
        %v1615 = vadd.f32 0.0, %v1614
        %v1616 = vpop.f32.mrb[0].mxu0
        %v1617 = vadd.f32 0.0, %v1616
        %v1618 = vpop.f32.mrb[0].mxu0
        %v1619 = vadd.f32 0.0, %v1618
        %1620 = vmatprep.mubr.bf16.mxu0 0
        %1621 = vmatmul.mubr.bf16.gmra.mrb[0].mxu0 %v1570
        %v1622 = vpop.f32.mrb[0].mxu0
        %v1623 = vadd.f32 0.0, %v1622
        %v1624 = vpop.f32.mrb[0].mxu0
        %v1625 = vadd.f32 0.0, %v1624
        %v1626 = vpop.f32.mrb[0].mxu0
        %v1627 = vadd.f32 0.0, %v1626
        %v1628 = vpop.f32.mrb[0].mxu0
        %v1629 = vadd.f32 0.0, %v1628
        %1630 = vdwg.mxu0
        %v1631 = vadd.f32 %v1530, %v1613
        %v1632 = vadd.f32 %v1531, %v1615
        %v1633 = vadd.f32 %v1532, %v1617
        %v1634 = vadd.f32 %v1533, %v1619
        %v1635 = vadd.f32 %v1534, %v1623
        %v1636 = vadd.f32 %v1535, %v1625
        %v1637 = vadd.f32 %v1536, %v1627
        %v1638 = vadd.f32 %v1537, %v1629
        %v1639 = vld [vmem:[%s3] sm:$0xff]
        %v1640 = vld [vmem:[%s3 + $0x8] sm:$0xff]
        %v1641 = vld [vmem:[%s3 + $0x10] sm:$0xff]
        %v1642 = vld [vmem:[%s3 + $0x18] sm:$0xff]
        %1644 = vset.pattern.permute.xlu0 0
        %1645 = vperm.xlu0 %1644, %v1639
        %v1646 = vpop.permute.xlu0 %1645
        %1649 = vset.pattern.permute.xlu0 0
        %1650 = vperm.xlu0 %1649, %v1640
        %v1651 = vpop.permute.xlu0 %1650
        %1654 = vset.pattern.permute.xlu0 0
        %1655 = vperm.xlu0 %1654, %v1641
        %v1656 = vpop.permute.xlu0 %1655
        %1659 = vset.pattern.permute.xlu0 0
        %1660 = vperm.xlu0 %1659, %v1642
        %v1661 = vpop.permute.xlu0 %1660
        %v1663 = vadd.f32 %v1631, %v1646
        %v1664 = vadd.f32 %v1632, %v1646
        %v1665 = vadd.f32 %v1633, %v1651
        %v1666 = vadd.f32 %v1634, %v1651
        %v1667 = vadd.f32 %v1635, %v1656
        %v1668 = vadd.f32 %v1636, %v1656
        %v1669 = vadd.f32 %v1637, %v1661
        %v1670 = vadd.f32 %v1638, %v1661
        %v1671 = vld [vmem:[%s19] sm:$0xf]
        %v1672 = vld [vmem:[%s18] sm:$0x3]
        %v1673 = vpack.c.bf16 %v1665, %v1663
        %v1674 = vpack.c.bf16 %v1666, %v1664
        %v1675 = vpack.c.bf16 %v1669, %v1667
        %v1676 = vpack.c.bf16 %v1670, %v1668
        %vm1677 = vcmask 261120
        %v1679 = vsel %vm1677, %v1672, 0
        %1681 = vmatprep.subr.bf16.mxu0 %v1674
        %1682 = vmatpush1.bf16.msra.mxu0 %v1673
        %1683 = vmatprep.subr.bf16.mxu0 %v1676
        %1684 = vmatpush1.bf16.msra.mxu0 %v1675
        %1685 = vmatprep.subr.bf16.mxu0 0
        %1686 = vmatpush1.bf16.msra.mxu0 0
        %1687 = vmatprep.subr.bf16.mxu0 0
        %1688 = vmatpush1.bf16.msra.mxu0 0
        %1689 = vmatprep.subr.bf16.mxu0 0
        %1690 = vmatpush1.bf16.msra.mxu0 0
        %1691 = vmatprep.subr.bf16.mxu0 0
        %1692 = vmatpush1.bf16.msra.mxu0 0
        %1693 = vmatprep.subr.bf16.mxu0 0
        %1694 = vmatpush1.bf16.msra.mxu0 0
        %1695 = vmatprep.subr.bf16.mxu0 0
        %1696 = vmatpush1.bf16.msra.mxu0 0
        %1697 = vmatprep.subr.bf16.mxu0 0
        %1698 = vmatpush1.bf16.msra.mxu0 0
        %1699 = vmatprep.subr.bf16.mxu0 0
        %1700 = vmatpush1.bf16.msra.mxu0 0
        %1701 = vmatprep.subr.bf16.mxu0 0
        %1702 = vmatpush1.bf16.msra.mxu0 0
        %1703 = vmatprep.subr.bf16.mxu0 0
        %1704 = vmatpush1.bf16.msra.mxu0 0
        %1705 = vmatprep.subr.bf16.mxu0 0
        %1706 = vmatpush1.bf16.msra.mxu0 0
        %1707 = vmatprep.subr.bf16.mxu0 0
        %1708 = vmatpush1.bf16.msra.mxu0 0
        %1709 = vmatprep.subr.bf16.mxu0 0
        %1710 = vmatpush1.bf16.msra.mxu0 0
        %1711 = vmatprep.subr.bf16.mxu0 0
        %1712 = vmatpush1.bf16.msra.mxu0 0
        %1713 = vmatprep.mubr.bf16.mxu0 0
        %1714 = vmatmul.mubr.bf16.gmra.mrb[0].mxu0 %v1679
        %v1715 = vpop.f32.mrb[0].mxu0
        %v1716 = vadd.f32 0.0, %v1715
        %v1717 = vpop.f32.mrb[0].mxu0
        %v1718 = vadd.f32 0.0, %v1717
        %v1719 = vpop.f32.mrb[0].mxu0
        %v1720 = vpop.f32.mrb[0].mxu0
        %1721 = vdwg.mxu0
        %1723 = vset.pattern.permute.xlu0 0
        %1724 = vperm.xlu0 %1723, %v1671
        %v1725 = vpop.permute.xlu0 %1724
        %v1727 = vadd.f32 %v1725, %v1716
        %v1728 = vadd.f32 %v1725, %v1718
        %1733 = vrot.lane.b32.xlu0 %v1673, 17
        %v1734 = vpop.permute.xlu0 %1733
        %1735 = vrot.lane.b32.xlu0 %v1674, 17
        %v1736 = vpop.permute.xlu0 %1735
        %1737 = vrot.lane.b32.xlu0 %v1675, 17
        %v1738 = vpop.permute.xlu0 %1737
        %1739 = vrot.lane.b32.xlu0 %v1676, 17
        %v1740 = vpop.permute.xlu0 %1739
        %v1741 = vsel %vm720, %v1734, %v1736
        %v1742 = vsel %vm720, %v1738, %v1740
        %v1746 = vsel %vm723, 0, %v1734
        %v1749 = vsel %vm723, 0, %v1738
        %v1751 = vmul.bf16 %v1746, %v757
        %v1752 = vmul.bf16 %v1741, %v764
        %v1753 = vmul.bf16 %v1749, %v757
        %v1754 = vmul.bf16 %v1742, %v764
        %v1755 = vld [vmem:[%s4] sm:$0xf]
        %v1756 = vld [vmem:[%s4 + $0x4] sm:$0xf]
        %v1757 = vld [vmem:[%s4 + $0x8] sm:$0xf]
        %v1758 = vld [vmem:[%s4 + $0xc] sm:$0xf]
        %1759 = vrot.lane.b32.xlu0 %v1673, 16
        %v1760 = vpop.permute.xlu0 %1759
        %1761 = vrot.lane.b32.xlu0 %v1674, 16
        %v1762 = vpop.permute.xlu0 %1761
        %1763 = vrot.lane.b32.xlu0 %v1675, 16
        %v1764 = vpop.permute.xlu0 %1763
        %1765 = vrot.lane.b32.xlu0 %v1676, 16
        %v1766 = vpop.permute.xlu0 %1765
        %v1767 = vsel %vm775, %v1760, %v1762
        %v1768 = vsel %vm775, %v1764, %v1766
        %v1772 = vsel %vm777, 0, %v1760
        %v1775 = vsel %vm777, 0, %v1764
        %s1777 = scalar_lea.vmem %s4, 16
        %v1778 = vld [vmem:[%s1777] sm:$0xf]
        %v1779 = vld [vmem:[%s1777 + $0x4] sm:$0xf]
        %v1780 = vld [vmem:[%s1777 + $0x8] sm:$0xf]
        %v1781 = vld [vmem:[%s1777 + $0xc] sm:$0xf]
        %v1786 = vunpack.c.l.b16 %v1778
        %v1787 = vunpack.c.l.b16 %v1779
        %v1788 = vunpack.c.l.b16 %v1780
        %v1789 = vunpack.c.l.b16 %v1781
        %v1790 = vpack.c.b16 %v1787, %v1786
        %v1791 = vpack.c.b16 %v1789, %v1788
        %v1793 = vsel %vm1677, %v1790, 0
        %v1796 = vsel %vm1677, %v1791, 0
        %1798 = vmatprep.subr.bf16.mxu0 %v1767
        %1799 = vmatpush1.bf16.msra.mxu0 %v1772
        %1800 = vmatprep.subr.bf16.mxu0 %v1768
        %1801 = vmatpush1.bf16.msra.mxu0 %v1775
        %1802 = vmatprep.subr.bf16.mxu0 0
        %1803 = vmatpush1.bf16.msra.mxu0 0
        %1804 = vmatprep.subr.bf16.mxu0 0
        %1805 = vmatpush1.bf16.msra.mxu0 0
        %1806 = vmatprep.subr.bf16.mxu0 0
        %1807 = vmatpush1.bf16.msra.mxu0 0
        %1808 = vmatprep.subr.bf16.mxu0 0
        %1809 = vmatpush1.bf16.msra.mxu0 0
        %1810 = vmatprep.subr.bf16.mxu0 0
        %1811 = vmatpush1.bf16.msra.mxu0 0
        %1812 = vmatprep.subr.bf16.mxu0 0
        %1813 = vmatpush1.bf16.msra.mxu0 0
        %1814 = vmatprep.subr.bf16.mxu0 0
        %1815 = vmatpush1.bf16.msra.mxu0 0
        %1816 = vmatprep.subr.bf16.mxu0 0
        %1817 = vmatpush1.bf16.msra.mxu0 0
        %1818 = vmatprep.subr.bf16.mxu0 0
        %1819 = vmatpush1.bf16.msra.mxu0 0
        %1820 = vmatprep.subr.bf16.mxu0 0
        %1821 = vmatpush1.bf16.msra.mxu0 0
        %1822 = vmatprep.subr.bf16.mxu0 0
        %1823 = vmatpush1.bf16.msra.mxu0 0
        %1824 = vmatprep.subr.bf16.mxu0 0
        %1825 = vmatpush1.bf16.msra.mxu0 0
        %1826 = vmatprep.subr.bf16.mxu0 0
        %1827 = vmatpush1.bf16.msra.mxu0 0
        %1828 = vmatprep.subr.bf16.mxu0 0
        %1829 = vmatpush1.bf16.msra.mxu0 0
        %1830 = vmatprep.mubr.bf16.mxu0 0
        %1831 = vmatmul.mubr.bf16.gmra.mrb[0].mxu0 %v1793
        %v1832 = vpop.f32.mrb[0].mxu0
        %v1833 = vadd.f32 0.0, %v1832
        %v1834 = vpop.f32.mrb[0].mxu0
        %v1835 = vadd.f32 0.0, %v1834
        %v1836 = vpop.f32.mrb[0].mxu0
        %v1837 = vadd.f32 0.0, %v1836
        %v1838 = vpop.f32.mrb[0].mxu0
        %v1839 = vadd.f32 0.0, %v1838
        %1840 = vmatprep.mubr.bf16.mxu0 0
        %1841 = vmatmul.mubr.bf16.gmra.mrb[0].mxu0 %v1796
        %v1842 = vpop.f32.mrb[0].mxu0
        %v1843 = vadd.f32 0.0, %v1842
        %v1844 = vpop.f32.mrb[0].mxu0
        %v1845 = vadd.f32 0.0, %v1844
        %v1846 = vpop.f32.mrb[0].mxu0
        %v1847 = vadd.f32 0.0, %v1846
        %v1848 = vpop.f32.mrb[0].mxu0
        %v1849 = vadd.f32 0.0, %v1848
        %1850 = vdwg.mxu0
        %v1855 = vunpack.c.l.b16 %v1755
        %v1856 = vunpack.c.l.b16 %v1756
        %v1857 = vunpack.c.l.b16 %v1757
        %v1858 = vunpack.c.l.b16 %v1758
        %v1859 = vpack.c.b16 %v1856, %v1855
        %v1860 = vpack.c.b16 %v1858, %v1857
        %v1862 = vsel %vm1677, %v1859, 0
        %v1865 = vsel %vm1677, %v1860, 0
        %1867 = vmatprep.subr.bf16.mxu0 %v1752
        %1868 = vmatpush1.bf16.msra.mxu0 %v1751
        %1869 = vmatprep.subr.bf16.mxu0 %v1754
        %1870 = vmatpush1.bf16.msra.mxu0 %v1753
        %1871 = vmatprep.subr.bf16.mxu0 0
        %1872 = vmatpush1.bf16.msra.mxu0 0
        %1873 = vmatprep.subr.bf16.mxu0 0
        %1874 = vmatpush1.bf16.msra.mxu0 0
        %1875 = vmatprep.subr.bf16.mxu0 0
        %1876 = vmatpush1.bf16.msra.mxu0 0
        %1877 = vmatprep.subr.bf16.mxu0 0
        %1878 = vmatpush1.bf16.msra.mxu0 0
        %1879 = vmatprep.subr.bf16.mxu0 0
        %1880 = vmatpush1.bf16.msra.mxu0 0
        %1881 = vmatprep.subr.bf16.mxu0 0
        %1882 = vmatpush1.bf16.msra.mxu0 0
        %1883 = vmatprep.subr.bf16.mxu0 0
        %1884 = vmatpush1.bf16.msra.mxu0 0
        %1885 = vmatprep.subr.bf16.mxu0 0
        %1886 = vmatpush1.bf16.msra.mxu0 0
        %1887 = vmatprep.subr.bf16.mxu0 0
        %1888 = vmatpush1.bf16.msra.mxu0 0
        %1889 = vmatprep.subr.bf16.mxu0 0
        %1890 = vmatpush1.bf16.msra.mxu0 0
        %1891 = vmatprep.subr.bf16.mxu0 0
        %1892 = vmatpush1.bf16.msra.mxu0 0
        %1893 = vmatprep.subr.bf16.mxu0 0
        %1894 = vmatpush1.bf16.msra.mxu0 0
        %1895 = vmatprep.subr.bf16.mxu0 0
        %1896 = vmatpush1.bf16.msra.mxu0 0
        %1897 = vmatprep.subr.bf16.mxu0 0
        %1898 = vmatpush1.bf16.msra.mxu0 0
        %1899 = vmatprep.mubr.bf16.mxu0 0
        %1900 = vmatmul.mubr.bf16.gmra.mrb[0].mxu0 %v1862
        %v1901 = vpop.f32.mrb[0].mxu0
        %v1902 = vadd.f32 %v1833, %v1901
        %v1903 = vpop.f32.mrb[0].mxu0
        %v1904 = vadd.f32 %v1835, %v1903
        %v1905 = vpop.f32.mrb[0].mxu0
        %v1906 = vadd.f32 %v1837, %v1905
        %v1907 = vpop.f32.mrb[0].mxu0
        %v1908 = vadd.f32 %v1839, %v1907
        %1909 = vmatprep.mubr.bf16.mxu0 0
        %1910 = vmatmul.mubr.bf16.gmra.mrb[0].mxu0 %v1865
        %v1911 = vpop.f32.mrb[0].mxu0
        %v1912 = vadd.f32 %v1843, %v1911
        %v1913 = vpop.f32.mrb[0].mxu0
        %v1914 = vadd.f32 %v1845, %v1913
        %v1915 = vpop.f32.mrb[0].mxu0
        %v1916 = vadd.f32 %v1847, %v1915
        %v1917 = vpop.f32.mrb[0].mxu0
        %v1918 = vadd.f32 %v1849, %v1917
        %1919 = vdwg.mxu0
        %1920 = vrot.lane.b32.xlu0 %v1673, 15
        %v1921 = vpop.permute.xlu0 %1920
        %1922 = vrot.lane.b32.xlu0 %v1674, 15
        %v1923 = vpop.permute.xlu0 %1922
        %1924 = vrot.lane.b32.xlu0 %v1675, 15
        %v1925 = vpop.permute.xlu0 %1924
        %1926 = vrot.lane.b32.xlu0 %v1676, 15
        %v1927 = vpop.permute.xlu0 %1926
        %v1928 = vsel %vm940, %v1921, %v1923
        %v1929 = vsel %vm940, %v1925, %v1927
        %v1933 = vsel %vm943, 0, %v1921
        %v1936 = vsel %vm943, 0, %v1925
        %v1938 = vmul.bf16 %v1933, %v953
        %v1939 = vmul.bf16 %v1928, %v960
        %v1940 = vmul.bf16 %v1936, %v953
        %v1941 = vmul.bf16 %v1929, %v960
        %s1942 = scalar_lea.vmem %s4, 32
        %v1943 = vld [vmem:[%s1942] sm:$0xf]
        %v1944 = vld [vmem:[%s1942 + $0x4] sm:$0xf]
        %v1945 = vld [vmem:[%s1942 + $0x8] sm:$0xf]
        %v1946 = vld [vmem:[%s1942 + $0xc] sm:$0xf]
        %v1951 = vunpack.c.l.b16 %v1943
        %v1952 = vunpack.c.l.b16 %v1944
        %v1953 = vunpack.c.l.b16 %v1945
        %v1954 = vunpack.c.l.b16 %v1946
        %v1955 = vpack.c.b16 %v1952, %v1951
        %v1956 = vpack.c.b16 %v1954, %v1953
        %v1958 = vsel %vm1677, %v1955, 0
        %v1961 = vsel %vm1677, %v1956, 0
        %1963 = vmatprep.subr.bf16.mxu0 %v1939
        %1964 = vmatpush1.bf16.msra.mxu0 %v1938
        %1965 = vmatprep.subr.bf16.mxu0 %v1941
        %1966 = vmatpush1.bf16.msra.mxu0 %v1940
        %1967 = vmatprep.subr.bf16.mxu0 0
        %1968 = vmatpush1.bf16.msra.mxu0 0
        %1969 = vmatprep.subr.bf16.mxu0 0
        %1970 = vmatpush1.bf16.msra.mxu0 0
        %1971 = vmatprep.subr.bf16.mxu0 0
        %1972 = vmatpush1.bf16.msra.mxu0 0
        %1973 = vmatprep.subr.bf16.mxu0 0
        %1974 = vmatpush1.bf16.msra.mxu0 0
        %1975 = vmatprep.subr.bf16.mxu0 0
        %1976 = vmatpush1.bf16.msra.mxu0 0
        %1977 = vmatprep.subr.bf16.mxu0 0
        %1978 = vmatpush1.bf16.msra.mxu0 0
        %1979 = vmatprep.subr.bf16.mxu0 0
        %1980 = vmatpush1.bf16.msra.mxu0 0
        %1981 = vmatprep.subr.bf16.mxu0 0
        %1982 = vmatpush1.bf16.msra.mxu0 0
        %1983 = vmatprep.subr.bf16.mxu0 0
        %1984 = vmatpush1.bf16.msra.mxu0 0
        %1985 = vmatprep.subr.bf16.mxu0 0
        %1986 = vmatpush1.bf16.msra.mxu0 0
        %1987 = vmatprep.subr.bf16.mxu0 0
        %1988 = vmatpush1.bf16.msra.mxu0 0
        %1989 = vmatprep.subr.bf16.mxu0 0
        %1990 = vmatpush1.bf16.msra.mxu0 0
        %1991 = vmatprep.subr.bf16.mxu0 0
        %1992 = vmatpush1.bf16.msra.mxu0 0
        %1993 = vmatprep.subr.bf16.mxu0 0
        %1994 = vmatpush1.bf16.msra.mxu0 0
        %1995 = vmatprep.mubr.bf16.mxu0 0
        %1996 = vmatmul.mubr.bf16.gmra.mrb[0].mxu0 %v1958
        %v1997 = vpop.f32.mrb[0].mxu0
        %v1998 = vadd.f32 0.0, %v1997
        %v1999 = vpop.f32.mrb[0].mxu0
        %v2000 = vadd.f32 0.0, %v1999
        %v2001 = vpop.f32.mrb[0].mxu0
        %v2002 = vadd.f32 0.0, %v2001
        %v2003 = vpop.f32.mrb[0].mxu0
        %v2004 = vadd.f32 0.0, %v2003
        %2005 = vmatprep.mubr.bf16.mxu0 0
        %2006 = vmatmul.mubr.bf16.gmra.mrb[0].mxu0 %v1961
        %v2007 = vpop.f32.mrb[0].mxu0
        %v2008 = vadd.f32 0.0, %v2007
        %v2009 = vpop.f32.mrb[0].mxu0
        %v2010 = vadd.f32 0.0, %v2009
        %v2011 = vpop.f32.mrb[0].mxu0
        %v2012 = vadd.f32 0.0, %v2011
        %v2013 = vpop.f32.mrb[0].mxu0
        %v2014 = vadd.f32 0.0, %v2013
        %2015 = vdwg.mxu0
        %v2016 = vadd.f32 %v1902, %v1998
        %v2017 = vadd.f32 %v1904, %v2000
        %v2018 = vadd.f32 %v1906, %v2002
        %v2019 = vadd.f32 %v1908, %v2004
        %v2020 = vadd.f32 %v1912, %v2008
        %v2021 = vadd.f32 %v1914, %v2010
        %v2022 = vadd.f32 %v1916, %v2012
        %v2023 = vadd.f32 %v1918, %v2014
        %2024 = vrot.lane.b32.xlu0 %v1673, 1
        %v2025 = vpop.permute.xlu0 %2024
        %2026 = vrot.lane.b32.xlu0 %v1674, 1
        %v2027 = vpop.permute.xlu0 %2026
        %2028 = vrot.lane.b32.xlu0 %v1675, 1
        %v2029 = vpop.permute.xlu0 %2028
        %2030 = vrot.lane.b32.xlu0 %v1676, 1
        %v2031 = vpop.permute.xlu0 %2030
        %v2032 = vsel %vm1055, %v2025, %v2027
        %v2033 = vsel %vm1055, %v2029, %v2031
        %v2037 = vsel %vm1058, 0, %v2025
        %v2040 = vsel %vm1058, 0, %v2029
        %v2042 = vmul.bf16 %v2037, %v757
        %v2043 = vmul.bf16 %v2032, %v764
        %v2044 = vmul.bf16 %v2040, %v757
        %v2045 = vmul.bf16 %v2033, %v764
        %s2046 = scalar_lea.vmem %s4, 48
        %v2047 = vld [vmem:[%s2046] sm:$0xf]
        %v2048 = vld [vmem:[%s2046 + $0x4] sm:$0xf]
        %v2049 = vld [vmem:[%s2046 + $0x8] sm:$0xf]
        %v2050 = vld [vmem:[%s2046 + $0xc] sm:$0xf]
        %v2055 = vunpack.c.l.b16 %v2047
        %v2056 = vunpack.c.l.b16 %v2048
        %v2057 = vunpack.c.l.b16 %v2049
        %v2058 = vunpack.c.l.b16 %v2050
        %v2059 = vpack.c.b16 %v2056, %v2055
        %v2060 = vpack.c.b16 %v2058, %v2057
        %v2062 = vsel %vm1677, %v2059, 0
        %v2065 = vsel %vm1677, %v2060, 0
        %2067 = vmatprep.subr.bf16.mxu0 %v2043
        %2068 = vmatpush1.bf16.msra.mxu0 %v2042
        %2069 = vmatprep.subr.bf16.mxu0 %v2045
        %2070 = vmatpush1.bf16.msra.mxu0 %v2044
        %2071 = vmatprep.subr.bf16.mxu0 0
        %2072 = vmatpush1.bf16.msra.mxu0 0
        %2073 = vmatprep.subr.bf16.mxu0 0
        %2074 = vmatpush1.bf16.msra.mxu0 0
        %2075 = vmatprep.subr.bf16.mxu0 0
        %2076 = vmatpush1.bf16.msra.mxu0 0
        %2077 = vmatprep.subr.bf16.mxu0 0
        %2078 = vmatpush1.bf16.msra.mxu0 0
        %2079 = vmatprep.subr.bf16.mxu0 0
        %2080 = vmatpush1.bf16.msra.mxu0 0
        %2081 = vmatprep.subr.bf16.mxu0 0
        %2082 = vmatpush1.bf16.msra.mxu0 0
        %2083 = vmatprep.subr.bf16.mxu0 0
        %2084 = vmatpush1.bf16.msra.mxu0 0
        %2085 = vmatprep.subr.bf16.mxu0 0
        %2086 = vmatpush1.bf16.msra.mxu0 0
        %2087 = vmatprep.subr.bf16.mxu0 0
        %2088 = vmatpush1.bf16.msra.mxu0 0
        %2089 = vmatprep.subr.bf16.mxu0 0
        %2090 = vmatpush1.bf16.msra.mxu0 0
        %2091 = vmatprep.subr.bf16.mxu0 0
        %2092 = vmatpush1.bf16.msra.mxu0 0
        %2093 = vmatprep.subr.bf16.mxu0 0
        %2094 = vmatpush1.bf16.msra.mxu0 0
        %2095 = vmatprep.subr.bf16.mxu0 0
        %2096 = vmatpush1.bf16.msra.mxu0 0
        %2097 = vmatprep.subr.bf16.mxu0 0
        %2098 = vmatpush1.bf16.msra.mxu0 0
        %2099 = vmatprep.mubr.bf16.mxu0 0
        %2100 = vmatmul.mubr.bf16.gmra.mrb[0].mxu0 %v2062
        %v2101 = vpop.f32.mrb[0].mxu0
        %v2102 = vadd.f32 0.0, %v2101
        %v2103 = vpop.f32.mrb[0].mxu0
        %v2104 = vadd.f32 0.0, %v2103
        %v2105 = vpop.f32.mrb[0].mxu0
        %v2106 = vadd.f32 0.0, %v2105
        %v2107 = vpop.f32.mrb[0].mxu0
        %v2108 = vadd.f32 0.0, %v2107
        %2109 = vmatprep.mubr.bf16.mxu0 0
        %2110 = vmatmul.mubr.bf16.gmra.mrb[0].mxu0 %v2065
        %v2111 = vpop.f32.mrb[0].mxu0
        %v2112 = vadd.f32 0.0, %v2111
        %v2113 = vpop.f32.mrb[0].mxu0
        %v2114 = vadd.f32 0.0, %v2113
        %v2115 = vpop.f32.mrb[0].mxu0
        %v2116 = vadd.f32 0.0, %v2115
        %v2117 = vpop.f32.mrb[0].mxu0
        %v2118 = vadd.f32 0.0, %v2117
        %2119 = vdwg.mxu0
        %v2120 = vadd.f32 %v2016, %v2102
        %v2121 = vadd.f32 %v2017, %v2104
        %v2122 = vadd.f32 %v2018, %v2106
        %v2123 = vadd.f32 %v2019, %v2108
        %v2124 = vadd.f32 %v2020, %v2112
        %v2125 = vadd.f32 %v2021, %v2114
        %v2126 = vadd.f32 %v2022, %v2116
        %v2127 = vadd.f32 %v2023, %v2118
        %s2128 = scalar_lea.vmem %s4, 64
        %v2129 = vld [vmem:[%s2128] sm:$0xf]
        %v2130 = vld [vmem:[%s2128 + $0x4] sm:$0xf]
        %v2131 = vld [vmem:[%s2128 + $0x8] sm:$0xf]
        %v2132 = vld [vmem:[%s2128 + $0xc] sm:$0xf]
        %v2137 = vunpack.c.l.b16 %v2129
        %v2138 = vunpack.c.l.b16 %v2130
        %v2139 = vunpack.c.l.b16 %v2131
        %v2140 = vunpack.c.l.b16 %v2132
        %v2141 = vpack.c.b16 %v2138, %v2137
        %v2142 = vpack.c.b16 %v2140, %v2139
        %v2144 = vsel %vm1677, %v2141, 0
        %v2147 = vsel %vm1677, %v2142, 0
        %2149 = vmatprep.subr.bf16.mxu0 %v1674
        %2150 = vmatpush1.bf16.msra.mxu0 %v1673
        %2151 = vmatprep.subr.bf16.mxu0 %v1676
        %2152 = vmatpush1.bf16.msra.mxu0 %v1675
        %2153 = vmatprep.subr.bf16.mxu0 0
        %2154 = vmatpush1.bf16.msra.mxu0 0
        %2155 = vmatprep.subr.bf16.mxu0 0
        %2156 = vmatpush1.bf16.msra.mxu0 0
        %2157 = vmatprep.subr.bf16.mxu0 0
        %2158 = vmatpush1.bf16.msra.mxu0 0
        %2159 = vmatprep.subr.bf16.mxu0 0
        %2160 = vmatpush1.bf16.msra.mxu0 0
        %2161 = vmatprep.subr.bf16.mxu0 0
        %2162 = vmatpush1.bf16.msra.mxu0 0
        %2163 = vmatprep.subr.bf16.mxu0 0
        %2164 = vmatpush1.bf16.msra.mxu0 0
        %2165 = vmatprep.subr.bf16.mxu0 0
        %2166 = vmatpush1.bf16.msra.mxu0 0
        %2167 = vmatprep.subr.bf16.mxu0 0
        %2168 = vmatpush1.bf16.msra.mxu0 0
        %2169 = vmatprep.subr.bf16.mxu0 0
        %2170 = vmatpush1.bf16.msra.mxu0 0
        %2171 = vmatprep.subr.bf16.mxu0 0
        %2172 = vmatpush1.bf16.msra.mxu0 0
        %2173 = vmatprep.subr.bf16.mxu0 0
        %2174 = vmatpush1.bf16.msra.mxu0 0
        %2175 = vmatprep.subr.bf16.mxu0 0
        %2176 = vmatpush1.bf16.msra.mxu0 0
        %2177 = vmatprep.subr.bf16.mxu0 0
        %2178 = vmatpush1.bf16.msra.mxu0 0
        %2179 = vmatprep.subr.bf16.mxu0 0
        %2180 = vmatpush1.bf16.msra.mxu0 0
        %2181 = vmatprep.mubr.bf16.mxu0 0
        %2182 = vmatmul.mubr.bf16.gmra.mrb[0].mxu0 %v2144
        %v2183 = vpop.f32.mrb[0].mxu0
        %v2184 = vadd.f32 0.0, %v2183
        %v2185 = vpop.f32.mrb[0].mxu0
        %v2186 = vadd.f32 0.0, %v2185
        %v2187 = vpop.f32.mrb[0].mxu0
        %v2188 = vadd.f32 0.0, %v2187
        %v2189 = vpop.f32.mrb[0].mxu0
        %v2190 = vadd.f32 0.0, %v2189
        %2191 = vmatprep.mubr.bf16.mxu0 0
        %2192 = vmatmul.mubr.bf16.gmra.mrb[0].mxu0 %v2147
        %v2193 = vpop.f32.mrb[0].mxu0
        %v2194 = vadd.f32 0.0, %v2193
        %v2195 = vpop.f32.mrb[0].mxu0
        %v2196 = vadd.f32 0.0, %v2195
        %v2197 = vpop.f32.mrb[0].mxu0
        %v2198 = vadd.f32 0.0, %v2197
        %v2199 = vpop.f32.mrb[0].mxu0
        %v2200 = vadd.f32 0.0, %v2199
        %2201 = vdwg.mxu0
        %v2202 = vadd.f32 %v2120, %v2184
        %v2203 = vadd.f32 %v2121, %v2186
        %v2204 = vadd.f32 %v2122, %v2188
        %v2205 = vadd.f32 %v2123, %v2190
        %v2206 = vadd.f32 %v2124, %v2194
        %v2207 = vadd.f32 %v2125, %v2196
        %v2208 = vadd.f32 %v2126, %v2198
        %v2209 = vadd.f32 %v2127, %v2200
        %2210 = vrot.lane.b32.xlu0 %v1673, 127
        %v2211 = vpop.permute.xlu0 %2210
        %2212 = vrot.lane.b32.xlu0 %v1674, 127
        %v2213 = vpop.permute.xlu0 %2212
        %2214 = vrot.lane.b32.xlu0 %v1675, 127
        %v2215 = vpop.permute.xlu0 %2214
        %2216 = vrot.lane.b32.xlu0 %v1676, 127
        %v2217 = vpop.permute.xlu0 %2216
        %v2218 = vsel %vm1244, %v2211, %v2213
        %v2219 = vsel %vm1244, %v2215, %v2217
        %v2223 = vsel %vm1247, %v2213, 0
        %v2226 = vsel %vm1247, %v2217, 0
        %v2228 = vmul.bf16 %v2218, %v953
        %v2229 = vmul.bf16 %v2223, %v960
        %v2230 = vmul.bf16 %v2219, %v953
        %v2231 = vmul.bf16 %v2226, %v960
        %s2232 = scalar_lea.vmem %s4, 80
        %v2233 = vld [vmem:[%s2232] sm:$0xf]
        %v2234 = vld [vmem:[%s2232 + $0x4] sm:$0xf]
        %v2235 = vld [vmem:[%s2232 + $0x8] sm:$0xf]
        %v2236 = vld [vmem:[%s2232 + $0xc] sm:$0xf]
        %v2241 = vunpack.c.l.b16 %v2233
        %v2242 = vunpack.c.l.b16 %v2234
        %v2243 = vunpack.c.l.b16 %v2235
        %v2244 = vunpack.c.l.b16 %v2236
        %v2245 = vpack.c.b16 %v2242, %v2241
        %v2246 = vpack.c.b16 %v2244, %v2243
        %v2248 = vsel %vm1677, %v2245, 0
        %v2251 = vsel %vm1677, %v2246, 0
        %2253 = vmatprep.subr.bf16.mxu0 %v2229
        %2254 = vmatpush1.bf16.msra.mxu0 %v2228
        %2255 = vmatprep.subr.bf16.mxu0 %v2231
        %2256 = vmatpush1.bf16.msra.mxu0 %v2230
        %2257 = vmatprep.subr.bf16.mxu0 0
        %2258 = vmatpush1.bf16.msra.mxu0 0
        %2259 = vmatprep.subr.bf16.mxu0 0
        %2260 = vmatpush1.bf16.msra.mxu0 0
        %2261 = vmatprep.subr.bf16.mxu0 0
        %2262 = vmatpush1.bf16.msra.mxu0 0
        %2263 = vmatprep.subr.bf16.mxu0 0
        %2264 = vmatpush1.bf16.msra.mxu0 0
        %2265 = vmatprep.subr.bf16.mxu0 0
        %2266 = vmatpush1.bf16.msra.mxu0 0
        %2267 = vmatprep.subr.bf16.mxu0 0
        %2268 = vmatpush1.bf16.msra.mxu0 0
        %2269 = vmatprep.subr.bf16.mxu0 0
        %2270 = vmatpush1.bf16.msra.mxu0 0
        %2271 = vmatprep.subr.bf16.mxu0 0
        %2272 = vmatpush1.bf16.msra.mxu0 0
        %2273 = vmatprep.subr.bf16.mxu0 0
        %2274 = vmatpush1.bf16.msra.mxu0 0
        %2275 = vmatprep.subr.bf16.mxu0 0
        %2276 = vmatpush1.bf16.msra.mxu0 0
        %2277 = vmatprep.subr.bf16.mxu0 0
        %2278 = vmatpush1.bf16.msra.mxu0 0
        %2279 = vmatprep.subr.bf16.mxu0 0
        %2280 = vmatpush1.bf16.msra.mxu0 0
        %2281 = vmatprep.subr.bf16.mxu0 0
        %2282 = vmatpush1.bf16.msra.mxu0 0
        %2283 = vmatprep.subr.bf16.mxu0 0
        %2284 = vmatpush1.bf16.msra.mxu0 0
        %2285 = vmatprep.mubr.bf16.mxu0 0
        %2286 = vmatmul.mubr.bf16.gmra.mrb[0].mxu0 %v2248
        %v2287 = vpop.f32.mrb[0].mxu0
        %v2288 = vadd.f32 0.0, %v2287
        %v2289 = vpop.f32.mrb[0].mxu0
        %v2290 = vadd.f32 0.0, %v2289
        %v2291 = vpop.f32.mrb[0].mxu0
        %v2292 = vadd.f32 0.0, %v2291
        %v2293 = vpop.f32.mrb[0].mxu0
        %v2294 = vadd.f32 0.0, %v2293
        %2295 = vmatprep.mubr.bf16.mxu0 0
        %2296 = vmatmul.mubr.bf16.gmra.mrb[0].mxu0 %v2251
        %v2297 = vpop.f32.mrb[0].mxu0
        %v2298 = vadd.f32 0.0, %v2297
        %v2299 = vpop.f32.mrb[0].mxu0
        %v2300 = vadd.f32 0.0, %v2299
        %v2301 = vpop.f32.mrb[0].mxu0
        %v2302 = vadd.f32 0.0, %v2301
        %v2303 = vpop.f32.mrb[0].mxu0
        %v2304 = vadd.f32 0.0, %v2303
        %2305 = vdwg.mxu0
        %v2306 = vadd.f32 %v2202, %v2288
        %v2307 = vadd.f32 %v2203, %v2290
        %v2308 = vadd.f32 %v2204, %v2292
        %v2309 = vadd.f32 %v2205, %v2294
        %v2310 = vadd.f32 %v2206, %v2298
        %v2311 = vadd.f32 %v2207, %v2300
        %v2312 = vadd.f32 %v2208, %v2302
        %v2313 = vadd.f32 %v2209, %v2304
        %2314 = vrot.lane.b32.xlu0 %v1673, 113
        %v2315 = vpop.permute.xlu0 %2314
        %2316 = vrot.lane.b32.xlu0 %v1674, 113
        %v2317 = vpop.permute.xlu0 %2316
        %2318 = vrot.lane.b32.xlu0 %v1675, 113
        %v2319 = vpop.permute.xlu0 %2318
        %2320 = vrot.lane.b32.xlu0 %v1676, 113
        %v2321 = vpop.permute.xlu0 %2320
        %v2322 = vsel %vm1345, %v2315, %v2317
        %v2323 = vsel %vm1345, %v2319, %v2321
        %v2327 = vsel %vm1348, %v2317, 0
        %v2330 = vsel %vm1348, %v2321, 0
        %v2332 = vmul.bf16 %v2322, %v757
        %v2333 = vmul.bf16 %v2327, %v764
        %v2334 = vmul.bf16 %v2323, %v757
        %v2335 = vmul.bf16 %v2330, %v764
        %s2336 = scalar_lea.vmem %s4, 96
        %v2337 = vld [vmem:[%s2336] sm:$0xf]
        %v2338 = vld [vmem:[%s2336 + $0x4] sm:$0xf]
        %v2339 = vld [vmem:[%s2336 + $0x8] sm:$0xf]
        %v2340 = vld [vmem:[%s2336 + $0xc] sm:$0xf]
        %v2345 = vunpack.c.l.b16 %v2337
        %v2346 = vunpack.c.l.b16 %v2338
        %v2347 = vunpack.c.l.b16 %v2339
        %v2348 = vunpack.c.l.b16 %v2340
        %v2349 = vpack.c.b16 %v2346, %v2345
        %v2350 = vpack.c.b16 %v2348, %v2347
        %v2352 = vsel %vm1677, %v2349, 0
        %v2355 = vsel %vm1677, %v2350, 0
        %2357 = vmatprep.subr.bf16.mxu0 %v2333
        %2358 = vmatpush1.bf16.msra.mxu0 %v2332
        %2359 = vmatprep.subr.bf16.mxu0 %v2335
        %2360 = vmatpush1.bf16.msra.mxu0 %v2334
        %2361 = vmatprep.subr.bf16.mxu0 0
        %2362 = vmatpush1.bf16.msra.mxu0 0
        %2363 = vmatprep.subr.bf16.mxu0 0
        %2364 = vmatpush1.bf16.msra.mxu0 0
        %2365 = vmatprep.subr.bf16.mxu0 0
        %2366 = vmatpush1.bf16.msra.mxu0 0
        %2367 = vmatprep.subr.bf16.mxu0 0
        %2368 = vmatpush1.bf16.msra.mxu0 0
        %2369 = vmatprep.subr.bf16.mxu0 0
        %2370 = vmatpush1.bf16.msra.mxu0 0
        %2371 = vmatprep.subr.bf16.mxu0 0
        %2372 = vmatpush1.bf16.msra.mxu0 0
        %2373 = vmatprep.subr.bf16.mxu0 0
        %2374 = vmatpush1.bf16.msra.mxu0 0
        %2375 = vmatprep.subr.bf16.mxu0 0
        %2376 = vmatpush1.bf16.msra.mxu0 0
        %2377 = vmatprep.subr.bf16.mxu0 0
        %2378 = vmatpush1.bf16.msra.mxu0 0
        %2379 = vmatprep.subr.bf16.mxu0 0
        %2380 = vmatpush1.bf16.msra.mxu0 0
        %2381 = vmatprep.subr.bf16.mxu0 0
        %2382 = vmatpush1.bf16.msra.mxu0 0
        %2383 = vmatprep.subr.bf16.mxu0 0
        %2384 = vmatpush1.bf16.msra.mxu0 0
        %2385 = vmatprep.subr.bf16.mxu0 0
        %2386 = vmatpush1.bf16.msra.mxu0 0
        %2387 = vmatprep.subr.bf16.mxu0 0
        %2388 = vmatpush1.bf16.msra.mxu0 0
        %2389 = vmatprep.mubr.bf16.mxu0 0
        %2390 = vmatmul.mubr.bf16.gmra.mrb[0].mxu0 %v2352
        %v2391 = vpop.f32.mrb[0].mxu0
        %v2392 = vadd.f32 0.0, %v2391
        %v2393 = vpop.f32.mrb[0].mxu0
        %v2394 = vadd.f32 0.0, %v2393
        %v2395 = vpop.f32.mrb[0].mxu0
        %v2396 = vadd.f32 0.0, %v2395
        %v2397 = vpop.f32.mrb[0].mxu0
        %v2398 = vadd.f32 0.0, %v2397
        %2399 = vmatprep.mubr.bf16.mxu0 0
        %2400 = vmatmul.mubr.bf16.gmra.mrb[0].mxu0 %v2355
        %v2401 = vpop.f32.mrb[0].mxu0
        %v2402 = vadd.f32 0.0, %v2401
        %v2403 = vpop.f32.mrb[0].mxu0
        %v2404 = vadd.f32 0.0, %v2403
        %v2405 = vpop.f32.mrb[0].mxu0
        %v2406 = vadd.f32 0.0, %v2405
        %v2407 = vpop.f32.mrb[0].mxu0
        %v2408 = vadd.f32 0.0, %v2407
        %2409 = vdwg.mxu0
        %v2410 = vadd.f32 %v2306, %v2392
        %v2411 = vadd.f32 %v2307, %v2394
        %v2412 = vadd.f32 %v2308, %v2396
        %v2413 = vadd.f32 %v2309, %v2398
        %v2414 = vadd.f32 %v2310, %v2402
        %v2415 = vadd.f32 %v2311, %v2404
        %v2416 = vadd.f32 %v2312, %v2406
        %v2417 = vadd.f32 %v2313, %v2408
        %2418 = vrot.lane.b32.xlu0 %v1673, 112
        %v2419 = vpop.permute.xlu0 %2418
        %2420 = vrot.lane.b32.xlu0 %v1674, 112
        %v2421 = vpop.permute.xlu0 %2420
        %2422 = vrot.lane.b32.xlu0 %v1675, 112
        %v2423 = vpop.permute.xlu0 %2422
        %2424 = vrot.lane.b32.xlu0 %v1676, 112
        %v2425 = vpop.permute.xlu0 %2424
        %v2426 = vsel %vm1446, %v2419, %v2421
        %v2427 = vsel %vm1446, %v2423, %v2425
        %v2431 = vsel %vm1448, %v2421, 0
        %v2434 = vsel %vm1448, %v2425, 0
        %s2436 = scalar_lea.vmem %s4, 112
        %v2437 = vld [vmem:[%s2436] sm:$0xf]
        %v2438 = vld [vmem:[%s2436 + $0x4] sm:$0xf]
        %v2439 = vld [vmem:[%s2436 + $0x8] sm:$0xf]
        %v2440 = vld [vmem:[%s2436 + $0xc] sm:$0xf]
        %v2445 = vunpack.c.l.b16 %v2437
        %v2446 = vunpack.c.l.b16 %v2438
        %v2447 = vunpack.c.l.b16 %v2439
        %v2448 = vunpack.c.l.b16 %v2440
        %v2449 = vpack.c.b16 %v2446, %v2445
        %v2450 = vpack.c.b16 %v2448, %v2447
        %v2452 = vsel %vm1677, %v2449, 0
        %v2455 = vsel %vm1677, %v2450, 0
        %2457 = vmatprep.subr.bf16.mxu0 %v2431
        %2458 = vmatpush1.bf16.msra.mxu0 %v2426
        %2459 = vmatprep.subr.bf16.mxu0 %v2434
        %2460 = vmatpush1.bf16.msra.mxu0 %v2427
        %2461 = vmatprep.subr.bf16.mxu0 0
        %2462 = vmatpush1.bf16.msra.mxu0 0
        %2463 = vmatprep.subr.bf16.mxu0 0
        %2464 = vmatpush1.bf16.msra.mxu0 0
        %2465 = vmatprep.subr.bf16.mxu0 0
        %2466 = vmatpush1.bf16.msra.mxu0 0
        %2467 = vmatprep.subr.bf16.mxu0 0
        %2468 = vmatpush1.bf16.msra.mxu0 0
        %2469 = vmatprep.subr.bf16.mxu0 0
        %2470 = vmatpush1.bf16.msra.mxu0 0
        %2471 = vmatprep.subr.bf16.mxu0 0
        %2472 = vmatpush1.bf16.msra.mxu0 0
        %2473 = vmatprep.subr.bf16.mxu0 0
        %2474 = vmatpush1.bf16.msra.mxu0 0
        %2475 = vmatprep.subr.bf16.mxu0 0
        %2476 = vmatpush1.bf16.msra.mxu0 0
        %2477 = vmatprep.subr.bf16.mxu0 0
        %2478 = vmatpush1.bf16.msra.mxu0 0
        %2479 = vmatprep.subr.bf16.mxu0 0
        %2480 = vmatpush1.bf16.msra.mxu0 0
        %2481 = vmatprep.subr.bf16.mxu0 0
        %2482 = vmatpush1.bf16.msra.mxu0 0
        %2483 = vmatprep.subr.bf16.mxu0 0
        %2484 = vmatpush1.bf16.msra.mxu0 0
        %2485 = vmatprep.subr.bf16.mxu0 0
        %2486 = vmatpush1.bf16.msra.mxu0 0
        %2487 = vmatprep.subr.bf16.mxu0 0
        %2488 = vmatpush1.bf16.msra.mxu0 0
        %2489 = vmatprep.mubr.bf16.mxu0 0
        %2490 = vmatmul.mubr.bf16.gmra.mrb[0].mxu0 %v2452
        %v2491 = vpop.f32.mrb[0].mxu0
        %v2492 = vadd.f32 0.0, %v2491
        %v2493 = vpop.f32.mrb[0].mxu0
        %v2494 = vadd.f32 0.0, %v2493
        %v2495 = vpop.f32.mrb[0].mxu0
        %v2496 = vadd.f32 0.0, %v2495
        %v2497 = vpop.f32.mrb[0].mxu0
        %v2498 = vadd.f32 0.0, %v2497
        %2499 = vmatprep.mubr.bf16.mxu0 0
        %2500 = vmatmul.mubr.bf16.gmra.mrb[0].mxu0 %v2455
        %v2501 = vpop.f32.mrb[0].mxu0
        %v2502 = vadd.f32 0.0, %v2501
        %v2503 = vpop.f32.mrb[0].mxu0
        %v2504 = vadd.f32 0.0, %v2503
        %v2505 = vpop.f32.mrb[0].mxu0
        %v2506 = vadd.f32 0.0, %v2505
        %v2507 = vpop.f32.mrb[0].mxu0
        %v2508 = vadd.f32 0.0, %v2507
        %2509 = vdwg.mxu0
        %v2510 = vadd.f32 %v2410, %v2492
        %v2511 = vadd.f32 %v2411, %v2494
        %v2512 = vadd.f32 %v2412, %v2496
        %v2513 = vadd.f32 %v2413, %v2498
        %v2514 = vadd.f32 %v2414, %v2502
        %v2515 = vadd.f32 %v2415, %v2504
        %v2516 = vadd.f32 %v2416, %v2506
        %v2517 = vadd.f32 %v2417, %v2508
        %2518 = vrot.lane.b32.xlu0 %v1673, 111
        %v2519 = vpop.permute.xlu0 %2518
        %2520 = vrot.lane.b32.xlu0 %v1674, 111
        %v2521 = vpop.permute.xlu0 %2520
        %2522 = vrot.lane.b32.xlu0 %v1675, 111
        %v2523 = vpop.permute.xlu0 %2522
        %2524 = vrot.lane.b32.xlu0 %v1676, 111
        %v2525 = vpop.permute.xlu0 %2524
        %v2526 = vsel %vm1542, %v2519, %v2521
        %v2527 = vsel %vm1542, %v2523, %v2525
        %v2531 = vsel %vm1545, %v2521, 0
        %v2534 = vsel %vm1545, %v2525, 0
        %v2536 = vmul.bf16 %v2526, %v953
        %v2537 = vmul.bf16 %v2531, %v960
        %v2538 = vmul.bf16 %v2527, %v953
        %v2539 = vmul.bf16 %v2534, %v960
        %s2540 = scalar_lea.vmem %s4, 128
        %v2541 = vld [vmem:[%s2540] sm:$0xf]
        %v2542 = vld [vmem:[%s2540 + $0x4] sm:$0xf]
        %v2543 = vld [vmem:[%s2540 + $0x8] sm:$0xf]
        %v2544 = vld [vmem:[%s2540 + $0xc] sm:$0xf]
        %v2549 = vunpack.c.l.b16 %v2541
        %v2550 = vunpack.c.l.b16 %v2542
        %v2551 = vunpack.c.l.b16 %v2543
        %v2552 = vunpack.c.l.b16 %v2544
        %v2553 = vpack.c.b16 %v2550, %v2549
        %v2554 = vpack.c.b16 %v2552, %v2551
        %v2556 = vsel %vm1677, %v2553, 0
        %v2559 = vsel %vm1677, %v2554, 0
        %2561 = vmatprep.subr.bf16.mxu0 %v2537
        %2562 = vmatpush1.bf16.msra.mxu0 %v2536
        %2563 = vmatprep.subr.bf16.mxu0 %v2539
        %2564 = vmatpush1.bf16.msra.mxu0 %v2538
        %2565 = vmatprep.subr.bf16.mxu0 0
        %2566 = vmatpush1.bf16.msra.mxu0 0
        %2567 = vmatprep.subr.bf16.mxu0 0
        %2568 = vmatpush1.bf16.msra.mxu0 0
        %2569 = vmatprep.subr.bf16.mxu0 0
        %2570 = vmatpush1.bf16.msra.mxu0 0
        %2571 = vmatprep.subr.bf16.mxu0 0
        %2572 = vmatpush1.bf16.msra.mxu0 0
        %2573 = vmatprep.subr.bf16.mxu0 0
        %2574 = vmatpush1.bf16.msra.mxu0 0
        %2575 = vmatprep.subr.bf16.mxu0 0
        %2576 = vmatpush1.bf16.msra.mxu0 0
        %2577 = vmatprep.subr.bf16.mxu0 0
        %2578 = vmatpush1.bf16.msra.mxu0 0
        %2579 = vmatprep.subr.bf16.mxu0 0
        %2580 = vmatpush1.bf16.msra.mxu0 0
        %2581 = vmatprep.subr.bf16.mxu0 0
        %2582 = vmatpush1.bf16.msra.mxu0 0
        %2583 = vmatprep.subr.bf16.mxu0 0
        %2584 = vmatpush1.bf16.msra.mxu0 0
        %2585 = vmatprep.subr.bf16.mxu0 0
        %2586 = vmatpush1.bf16.msra.mxu0 0
        %2587 = vmatprep.subr.bf16.mxu0 0
        %2588 = vmatpush1.bf16.msra.mxu0 0
        %2589 = vmatprep.subr.bf16.mxu0 0
        %2590 = vmatpush1.bf16.msra.mxu0 0
        %2591 = vmatprep.subr.bf16.mxu0 0
        %2592 = vmatpush1.bf16.msra.mxu0 0
        %2593 = vmatprep.mubr.bf16.mxu0 0
        %2594 = vmatmul.mubr.bf16.gmra.mrb[0].mxu0 %v2556
        %v2595 = vpop.f32.mrb[0].mxu0
        %v2596 = vadd.f32 0.0, %v2595
        %v2597 = vpop.f32.mrb[0].mxu0
        %v2598 = vadd.f32 0.0, %v2597
        %v2599 = vpop.f32.mrb[0].mxu0
        %v2600 = vadd.f32 0.0, %v2599
        %v2601 = vpop.f32.mrb[0].mxu0
        %v2602 = vadd.f32 0.0, %v2601
        %2603 = vmatprep.mubr.bf16.mxu0 0
        %2604 = vmatmul.mubr.bf16.gmra.mrb[0].mxu0 %v2559
        %v2605 = vpop.f32.mrb[0].mxu0
        %v2606 = vadd.f32 0.0, %v2605
        %v2607 = vpop.f32.mrb[0].mxu0
        %v2608 = vadd.f32 0.0, %v2607
        %v2609 = vpop.f32.mrb[0].mxu0
        %v2610 = vadd.f32 0.0, %v2609
        %v2611 = vpop.f32.mrb[0].mxu0
        %v2612 = vadd.f32 0.0, %v2611
        %2613 = vdwg.mxu0
        %v2614 = vadd.f32 %v2510, %v2596
        %v2615 = vadd.f32 %v2511, %v2598
        %v2616 = vadd.f32 %v2512, %v2600
        %v2617 = vadd.f32 %v2513, %v2602
        %v2618 = vadd.f32 %v2514, %v2606
        %v2619 = vadd.f32 %v2515, %v2608
        %v2620 = vadd.f32 %v2516, %v2610
        %v2621 = vadd.f32 %v2517, %v2612
        %v2622 = vld [vmem:[%s5] sm:$0xff]
        %v2623 = vld [vmem:[%s5 + $0x8] sm:$0xff]
        %v2624 = vld [vmem:[%s5 + $0x10] sm:$0xff]
        %v2625 = vld [vmem:[%s5 + $0x18] sm:$0xff]
        %2627 = vset.pattern.permute.xlu0 0
        %2628 = vperm.xlu0 %2627, %v2622
        %v2629 = vpop.permute.xlu0 %2628
        %2632 = vset.pattern.permute.xlu0 0
        %2633 = vperm.xlu0 %2632, %v2623
        %v2634 = vpop.permute.xlu0 %2633
        %2637 = vset.pattern.permute.xlu0 0
        %2638 = vperm.xlu0 %2637, %v2624
        %v2639 = vpop.permute.xlu0 %2638
        %2642 = vset.pattern.permute.xlu0 0
        %2643 = vperm.xlu0 %2642, %v2625
        %v2644 = vpop.permute.xlu0 %2643
        %v2646 = vadd.f32 %v2614, %v2629
        %v2647 = vadd.f32 %v2615, %v2629
        %v2648 = vadd.f32 %v2616, %v2634
        %v2649 = vadd.f32 %v2617, %v2634
        %v2650 = vadd.f32 %v2618, %v2639
        %v2651 = vadd.f32 %v2619, %v2639
        %v2652 = vadd.f32 %v2620, %v2644
        %v2653 = vadd.f32 %v2621, %v2644
        %v2654 = vsub.f32 0.0, %v2646
        %v2655 = vsub.f32 0.0, %v2647
        %v2656 = vsub.f32 0.0, %v2648
        %v2657 = vsub.f32 0.0, %v2649
        %v2658 = vsub.f32 0.0, %v2650
        %v2659 = vsub.f32 0.0, %v2651
        %v2660 = vsub.f32 0.0, %v2652
        %v2661 = vsub.f32 0.0, %v2653
        %v2662 = vmul.f32 %v2654, 1.442695
        %v2663 = vpow.pop %v2662
        %v2664 = vmul.f32 %v2655, 1.442695
        %v2665 = vpow.pop %v2664
        %v2666 = vmul.f32 %v2656, 1.442695
        %v2667 = vpow.pop %v2666
        %v2668 = vmul.f32 %v2657, 1.442695
        %v2669 = vpow.pop %v2668
        %v2670 = vmul.f32 %v2658, 1.442695
        %v2671 = vpow.pop %v2670
        %v2672 = vmul.f32 %v2659, 1.442695
        %v2673 = vpow.pop %v2672
        %v2674 = vmul.f32 %v2660, 1.442695
        %v2675 = vpow.pop %v2674
        %v2676 = vmul.f32 %v2661, 1.442695
        %v2677 = vpow.pop %v2676
        %v2678 = vadd.f32 %v2663, 1.0
        %v2679 = vadd.f32 %v2665, 1.0
        %v2680 = vadd.f32 %v2667, 1.0
        %v2681 = vadd.f32 %v2669, 1.0
        %v2682 = vadd.f32 %v2671, 1.0
        %v2683 = vadd.f32 %v2673, 1.0
        %v2684 = vadd.f32 %v2675, 1.0
        %v2685 = vadd.f32 %v2677, 1.0
        %v2686 = vrcp.pop %v2678
        %v2687 = vrcp.pop %v2679
        %v2688 = vrcp.pop %v2680
        %v2689 = vrcp.pop %v2681
        %v2690 = vrcp.pop %v2682
        %v2691 = vrcp.pop %v2683
        %v2692 = vrcp.pop %v2684
        %v2693 = vrcp.pop %v2685
        %v2694 = vmul.f32 %v2646, %v2686
        %v2695 = vmul.f32 %v2647, %v2687
        %v2696 = vmul.f32 %v2648, %v2688
        %v2697 = vmul.f32 %v2649, %v2689
        %v2698 = vmul.f32 %v2650, %v2690
        %v2699 = vmul.f32 %v2651, %v2691
        %v2700 = vmul.f32 %v2652, %v2692
        %v2701 = vmul.f32 %v2653, %v2693
        %v2702 = vpack.c.bf16 %v2696, %v2694
        %v2703 = vpack.c.bf16 %v2697, %v2695
        %v2704 = vpack.c.bf16 %v2700, %v2698
        %v2705 = vpack.c.bf16 %v2701, %v2699
        %2710 = vrot.lane.b32.xlu0 %v2702, 17
        %v2711 = vpop.permute.xlu0 %2710
        %2712 = vrot.lane.b32.xlu0 %v2703, 17
        %v2713 = vpop.permute.xlu0 %2712
        %2714 = vrot.lane.b32.xlu0 %v2704, 17
        %v2715 = vpop.permute.xlu0 %2714
        %2716 = vrot.lane.b32.xlu0 %v2705, 17
        %v2717 = vpop.permute.xlu0 %2716
        %v2718 = vsel %vm720, %v2711, %v2713
        %v2719 = vsel %vm720, %v2715, %v2717
        %v2723 = vsel %vm723, 0, %v2711
        %v2726 = vsel %vm723, 0, %v2715
        %v2728 = vmul.bf16 %v2723, %v757
        %v2729 = vmul.bf16 %v2718, %v764
        %v2730 = vmul.bf16 %v2726, %v757
        %v2731 = vmul.bf16 %v2719, %v764
        %v2732 = vld [vmem:[%s6] sm:$0xf]
        %v2733 = vld [vmem:[%s6 + $0x4] sm:$0xf]
        %v2734 = vld [vmem:[%s6 + $0x8] sm:$0xf]
        %v2735 = vld [vmem:[%s6 + $0xc] sm:$0xf]
        %2736 = vrot.lane.b32.xlu0 %v2702, 16
        %v2737 = vpop.permute.xlu0 %2736
        %2738 = vrot.lane.b32.xlu0 %v2703, 16
        %v2739 = vpop.permute.xlu0 %2738
        %2740 = vrot.lane.b32.xlu0 %v2704, 16
        %v2741 = vpop.permute.xlu0 %2740
        %2742 = vrot.lane.b32.xlu0 %v2705, 16
        %v2743 = vpop.permute.xlu0 %2742
        %v2744 = vsel %vm775, %v2737, %v2739
        %v2745 = vsel %vm775, %v2741, %v2743
        %v2749 = vsel %vm777, 0, %v2737
        %v2752 = vsel %vm777, 0, %v2741
        %s2754 = scalar_lea.vmem %s6, 16
        %v2755 = vld [vmem:[%s2754] sm:$0xf]
        %v2756 = vld [vmem:[%s2754 + $0x4] sm:$0xf]
        %v2757 = vld [vmem:[%s2754 + $0x8] sm:$0xf]
        %v2758 = vld [vmem:[%s2754 + $0xc] sm:$0xf]
        %v2763 = vunpack.c.l.b16 %v2755
        %v2764 = vunpack.c.l.b16 %v2756
        %v2765 = vunpack.c.l.b16 %v2757
        %v2766 = vunpack.c.l.b16 %v2758
        %v2767 = vpack.c.b16 %v2764, %v2763
        %v2768 = vpack.c.b16 %v2766, %v2765
        %v2770 = vsel %vm1677, %v2767, 0
        %v2773 = vsel %vm1677, %v2768, 0
        %2775 = vmatprep.subr.bf16.mxu0 %v2744
        %2776 = vmatpush1.bf16.msra.mxu0 %v2749
        %2777 = vmatprep.subr.bf16.mxu0 %v2745
        %2778 = vmatpush1.bf16.msra.mxu0 %v2752
        %2779 = vmatprep.subr.bf16.mxu0 0
        %2780 = vmatpush1.bf16.msra.mxu0 0
        %2781 = vmatprep.subr.bf16.mxu0 0
        %2782 = vmatpush1.bf16.msra.mxu0 0
        %2783 = vmatprep.subr.bf16.mxu0 0
        %2784 = vmatpush1.bf16.msra.mxu0 0
        %2785 = vmatprep.subr.bf16.mxu0 0
        %2786 = vmatpush1.bf16.msra.mxu0 0
        %2787 = vmatprep.subr.bf16.mxu0 0
        %2788 = vmatpush1.bf16.msra.mxu0 0
        %2789 = vmatprep.subr.bf16.mxu0 0
        %2790 = vmatpush1.bf16.msra.mxu0 0
        %2791 = vmatprep.subr.bf16.mxu0 0
        %2792 = vmatpush1.bf16.msra.mxu0 0
        %2793 = vmatprep.subr.bf16.mxu0 0
        %2794 = vmatpush1.bf16.msra.mxu0 0
        %2795 = vmatprep.subr.bf16.mxu0 0
        %2796 = vmatpush1.bf16.msra.mxu0 0
        %2797 = vmatprep.subr.bf16.mxu0 0
        %2798 = vmatpush1.bf16.msra.mxu0 0
        %2799 = vmatprep.subr.bf16.mxu0 0
        %2800 = vmatpush1.bf16.msra.mxu0 0
        %2801 = vmatprep.subr.bf16.mxu0 0
        %2802 = vmatpush1.bf16.msra.mxu0 0
        %2803 = vmatprep.subr.bf16.mxu0 0
        %2804 = vmatpush1.bf16.msra.mxu0 0
        %2805 = vmatprep.subr.bf16.mxu0 0
        %2806 = vmatpush1.bf16.msra.mxu0 0
        %2807 = vmatprep.mubr.bf16.mxu0 0
        %2808 = vmatmul.mubr.bf16.gmra.mrb[0].mxu0 %v2770
        %v2809 = vpop.f32.mrb[0].mxu0
        %v2810 = vadd.f32 0.0, %v2809
        %v2811 = vpop.f32.mrb[0].mxu0
        %v2812 = vadd.f32 0.0, %v2811
        %v2813 = vpop.f32.mrb[0].mxu0
        %v2814 = vadd.f32 0.0, %v2813
        %v2815 = vpop.f32.mrb[0].mxu0
        %v2816 = vadd.f32 0.0, %v2815
        %2817 = vmatprep.mubr.bf16.mxu0 0
        %2818 = vmatmul.mubr.bf16.gmra.mrb[0].mxu0 %v2773
        %v2819 = vpop.f32.mrb[0].mxu0
        %v2820 = vadd.f32 0.0, %v2819
        %v2821 = vpop.f32.mrb[0].mxu0
        %v2822 = vadd.f32 0.0, %v2821
        %v2823 = vpop.f32.mrb[0].mxu0
        %v2824 = vadd.f32 0.0, %v2823
        %v2825 = vpop.f32.mrb[0].mxu0
        %v2826 = vadd.f32 0.0, %v2825
        %2827 = vdwg.mxu0
        %v2832 = vunpack.c.l.b16 %v2732
        %v2833 = vunpack.c.l.b16 %v2733
        %v2834 = vunpack.c.l.b16 %v2734
        %v2835 = vunpack.c.l.b16 %v2735
        %v2836 = vpack.c.b16 %v2833, %v2832
        %v2837 = vpack.c.b16 %v2835, %v2834
        %v2839 = vsel %vm1677, %v2836, 0
        %v2842 = vsel %vm1677, %v2837, 0
        %2844 = vmatprep.subr.bf16.mxu0 %v2729
        %2845 = vmatpush1.bf16.msra.mxu0 %v2728
        %2846 = vmatprep.subr.bf16.mxu0 %v2731
        %2847 = vmatpush1.bf16.msra.mxu0 %v2730
        %2848 = vmatprep.subr.bf16.mxu0 0
        %2849 = vmatpush1.bf16.msra.mxu0 0
        %2850 = vmatprep.subr.bf16.mxu0 0
        %2851 = vmatpush1.bf16.msra.mxu0 0
        %2852 = vmatprep.subr.bf16.mxu0 0
        %2853 = vmatpush1.bf16.msra.mxu0 0
        %2854 = vmatprep.subr.bf16.mxu0 0
        %2855 = vmatpush1.bf16.msra.mxu0 0
        %2856 = vmatprep.subr.bf16.mxu0 0
        %2857 = vmatpush1.bf16.msra.mxu0 0
        %2858 = vmatprep.subr.bf16.mxu0 0
        %2859 = vmatpush1.bf16.msra.mxu0 0
        %2860 = vmatprep.subr.bf16.mxu0 0
        %2861 = vmatpush1.bf16.msra.mxu0 0
        %2862 = vmatprep.subr.bf16.mxu0 0
        %2863 = vmatpush1.bf16.msra.mxu0 0
        %2864 = vmatprep.subr.bf16.mxu0 0
        %2865 = vmatpush1.bf16.msra.mxu0 0
        %2866 = vmatprep.subr.bf16.mxu0 0
        %2867 = vmatpush1.bf16.msra.mxu0 0
        %2868 = vmatprep.subr.bf16.mxu0 0
        %2869 = vmatpush1.bf16.msra.mxu0 0
        %2870 = vmatprep.subr.bf16.mxu0 0
        %2871 = vmatpush1.bf16.msra.mxu0 0
        %2872 = vmatprep.subr.bf16.mxu0 0
        %2873 = vmatpush1.bf16.msra.mxu0 0
        %2874 = vmatprep.subr.bf16.mxu0 0
        %2875 = vmatpush1.bf16.msra.mxu0 0
        %2876 = vmatprep.mubr.bf16.mxu0 0
        %2877 = vmatmul.mubr.bf16.gmra.mrb[0].mxu0 %v2839
        %v2878 = vpop.f32.mrb[0].mxu0
        %v2879 = vadd.f32 %v2810, %v2878
        %v2880 = vpop.f32.mrb[0].mxu0
        %v2881 = vadd.f32 %v2812, %v2880
        %v2882 = vpop.f32.mrb[0].mxu0
        %v2883 = vadd.f32 %v2814, %v2882
        %v2884 = vpop.f32.mrb[0].mxu0
        %v2885 = vadd.f32 %v2816, %v2884
        %2886 = vmatprep.mubr.bf16.mxu0 0
        %2887 = vmatmul.mubr.bf16.gmra.mrb[0].mxu0 %v2842
        %v2888 = vpop.f32.mrb[0].mxu0
        %v2889 = vadd.f32 %v2820, %v2888
        %v2890 = vpop.f32.mrb[0].mxu0
        %v2891 = vadd.f32 %v2822, %v2890
        %v2892 = vpop.f32.mrb[0].mxu0
        %v2893 = vadd.f32 %v2824, %v2892
        %v2894 = vpop.f32.mrb[0].mxu0
        %v2895 = vadd.f32 %v2826, %v2894
        %2896 = vdwg.mxu0
        %2897 = vrot.lane.b32.xlu0 %v2702, 15
        %v2898 = vpop.permute.xlu0 %2897
        %2899 = vrot.lane.b32.xlu0 %v2703, 15
        %v2900 = vpop.permute.xlu0 %2899
        %2901 = vrot.lane.b32.xlu0 %v2704, 15
        %v2902 = vpop.permute.xlu0 %2901
        %2903 = vrot.lane.b32.xlu0 %v2705, 15
        %v2904 = vpop.permute.xlu0 %2903
        %v2905 = vsel %vm940, %v2898, %v2900
        %v2906 = vsel %vm940, %v2902, %v2904
        %v2910 = vsel %vm943, 0, %v2898
        %v2913 = vsel %vm943, 0, %v2902
        %v2915 = vmul.bf16 %v2910, %v953
        %v2916 = vmul.bf16 %v2905, %v960
        %v2917 = vmul.bf16 %v2913, %v953
        %v2918 = vmul.bf16 %v2906, %v960
        %s2919 = scalar_lea.vmem %s6, 32
        %v2920 = vld [vmem:[%s2919] sm:$0xf]
        %v2921 = vld [vmem:[%s2919 + $0x4] sm:$0xf]
        %v2922 = vld [vmem:[%s2919 + $0x8] sm:$0xf]
        %v2923 = vld [vmem:[%s2919 + $0xc] sm:$0xf]
        %v2928 = vunpack.c.l.b16 %v2920
        %v2929 = vunpack.c.l.b16 %v2921
        %v2930 = vunpack.c.l.b16 %v2922
        %v2931 = vunpack.c.l.b16 %v2923
        %v2932 = vpack.c.b16 %v2929, %v2928
        %v2933 = vpack.c.b16 %v2931, %v2930
        %v2935 = vsel %vm1677, %v2932, 0
        %v2938 = vsel %vm1677, %v2933, 0
        %2940 = vmatprep.subr.bf16.mxu0 %v2916
        %2941 = vmatpush1.bf16.msra.mxu0 %v2915
        %2942 = vmatprep.subr.bf16.mxu0 %v2918
        %2943 = vmatpush1.bf16.msra.mxu0 %v2917
        %2944 = vmatprep.subr.bf16.mxu0 0
        %2945 = vmatpush1.bf16.msra.mxu0 0
        %2946 = vmatprep.subr.bf16.mxu0 0
        %2947 = vmatpush1.bf16.msra.mxu0 0
        %2948 = vmatprep.subr.bf16.mxu0 0
        %2949 = vmatpush1.bf16.msra.mxu0 0
        %2950 = vmatprep.subr.bf16.mxu0 0
        %2951 = vmatpush1.bf16.msra.mxu0 0
        %2952 = vmatprep.subr.bf16.mxu0 0
        %2953 = vmatpush1.bf16.msra.mxu0 0
        %2954 = vmatprep.subr.bf16.mxu0 0
        %2955 = vmatpush1.bf16.msra.mxu0 0
        %2956 = vmatprep.subr.bf16.mxu0 0
        %2957 = vmatpush1.bf16.msra.mxu0 0
        %2958 = vmatprep.subr.bf16.mxu0 0
        %2959 = vmatpush1.bf16.msra.mxu0 0
        %2960 = vmatprep.subr.bf16.mxu0 0
        %2961 = vmatpush1.bf16.msra.mxu0 0
        %2962 = vmatprep.subr.bf16.mxu0 0
        %2963 = vmatpush1.bf16.msra.mxu0 0
        %2964 = vmatprep.subr.bf16.mxu0 0
        %2965 = vmatpush1.bf16.msra.mxu0 0
        %2966 = vmatprep.subr.bf16.mxu0 0
        %2967 = vmatpush1.bf16.msra.mxu0 0
        %2968 = vmatprep.subr.bf16.mxu0 0
        %2969 = vmatpush1.bf16.msra.mxu0 0
        %2970 = vmatprep.subr.bf16.mxu0 0
        %2971 = vmatpush1.bf16.msra.mxu0 0
        %2972 = vmatprep.mubr.bf16.mxu0 0
        %2973 = vmatmul.mubr.bf16.gmra.mrb[0].mxu0 %v2935
        %v2974 = vpop.f32.mrb[0].mxu0
        %v2975 = vadd.f32 0.0, %v2974
        %v2976 = vpop.f32.mrb[0].mxu0
        %v2977 = vadd.f32 0.0, %v2976
        %v2978 = vpop.f32.mrb[0].mxu0
        %v2979 = vadd.f32 0.0, %v2978
        %v2980 = vpop.f32.mrb[0].mxu0
        %v2981 = vadd.f32 0.0, %v2980
        %2982 = vmatprep.mubr.bf16.mxu0 0
        %2983 = vmatmul.mubr.bf16.gmra.mrb[0].mxu0 %v2938
        %v2984 = vpop.f32.mrb[0].mxu0
        %v2985 = vadd.f32 0.0, %v2984
        %v2986 = vpop.f32.mrb[0].mxu0
        %v2987 = vadd.f32 0.0, %v2986
        %v2988 = vpop.f32.mrb[0].mxu0
        %v2989 = vadd.f32 0.0, %v2988
        %v2990 = vpop.f32.mrb[0].mxu0
        %v2991 = vadd.f32 0.0, %v2990
        %2992 = vdwg.mxu0
        %v2993 = vadd.f32 %v2879, %v2975
        %v2994 = vadd.f32 %v2881, %v2977
        %v2995 = vadd.f32 %v2883, %v2979
        %v2996 = vadd.f32 %v2885, %v2981
        %v2997 = vadd.f32 %v2889, %v2985
        %v2998 = vadd.f32 %v2891, %v2987
        %v2999 = vadd.f32 %v2893, %v2989
        %v3000 = vadd.f32 %v2895, %v2991
        %3001 = vrot.lane.b32.xlu0 %v2702, 1
        %v3002 = vpop.permute.xlu0 %3001
        %3003 = vrot.lane.b32.xlu0 %v2703, 1
        %v3004 = vpop.permute.xlu0 %3003
        %3005 = vrot.lane.b32.xlu0 %v2704, 1
        %v3006 = vpop.permute.xlu0 %3005
        %3007 = vrot.lane.b32.xlu0 %v2705, 1
        %v3008 = vpop.permute.xlu0 %3007
        %v3009 = vsel %vm1055, %v3002, %v3004
        %v3010 = vsel %vm1055, %v3006, %v3008
        %v3014 = vsel %vm1058, 0, %v3002
        %v3017 = vsel %vm1058, 0, %v3006
        %v3019 = vmul.bf16 %v3014, %v757
        %v3020 = vmul.bf16 %v3009, %v764
        %v3021 = vmul.bf16 %v3017, %v757
        %v3022 = vmul.bf16 %v3010, %v764
        %s3023 = scalar_lea.vmem %s6, 48
        %v3024 = vld [vmem:[%s3023] sm:$0xf]
        %v3025 = vld [vmem:[%s3023 + $0x4] sm:$0xf]
        %v3026 = vld [vmem:[%s3023 + $0x8] sm:$0xf]
        %v3027 = vld [vmem:[%s3023 + $0xc] sm:$0xf]
        %v3032 = vunpack.c.l.b16 %v3024
        %v3033 = vunpack.c.l.b16 %v3025
        %v3034 = vunpack.c.l.b16 %v3026
        %v3035 = vunpack.c.l.b16 %v3027
        %v3036 = vpack.c.b16 %v3033, %v3032
        %v3037 = vpack.c.b16 %v3035, %v3034
        %v3039 = vsel %vm1677, %v3036, 0
        %v3042 = vsel %vm1677, %v3037, 0
        %3044 = vmatprep.subr.bf16.mxu0 %v3020
        %3045 = vmatpush1.bf16.msra.mxu0 %v3019
        %3046 = vmatprep.subr.bf16.mxu0 %v3022
        %3047 = vmatpush1.bf16.msra.mxu0 %v3021
        %3048 = vmatprep.subr.bf16.mxu0 0
        %3049 = vmatpush1.bf16.msra.mxu0 0
        %3050 = vmatprep.subr.bf16.mxu0 0
        %3051 = vmatpush1.bf16.msra.mxu0 0
        %3052 = vmatprep.subr.bf16.mxu0 0
        %3053 = vmatpush1.bf16.msra.mxu0 0
        %3054 = vmatprep.subr.bf16.mxu0 0
        %3055 = vmatpush1.bf16.msra.mxu0 0
        %3056 = vmatprep.subr.bf16.mxu0 0
        %3057 = vmatpush1.bf16.msra.mxu0 0
        %3058 = vmatprep.subr.bf16.mxu0 0
        %3059 = vmatpush1.bf16.msra.mxu0 0
        %3060 = vmatprep.subr.bf16.mxu0 0
        %3061 = vmatpush1.bf16.msra.mxu0 0
        %3062 = vmatprep.subr.bf16.mxu0 0
        %3063 = vmatpush1.bf16.msra.mxu0 0
        %3064 = vmatprep.subr.bf16.mxu0 0
        %3065 = vmatpush1.bf16.msra.mxu0 0
        %3066 = vmatprep.subr.bf16.mxu0 0
        %3067 = vmatpush1.bf16.msra.mxu0 0
        %3068 = vmatprep.subr.bf16.mxu0 0
        %3069 = vmatpush1.bf16.msra.mxu0 0
        %3070 = vmatprep.subr.bf16.mxu0 0
        %3071 = vmatpush1.bf16.msra.mxu0 0
        %3072 = vmatprep.subr.bf16.mxu0 0
        %3073 = vmatpush1.bf16.msra.mxu0 0
        %3074 = vmatprep.subr.bf16.mxu0 0
        %3075 = vmatpush1.bf16.msra.mxu0 0
        %3076 = vmatprep.mubr.bf16.mxu0 0
        %3077 = vmatmul.mubr.bf16.gmra.mrb[0].mxu0 %v3039
        %v3078 = vpop.f32.mrb[0].mxu0
        %v3079 = vadd.f32 0.0, %v3078
        %v3080 = vpop.f32.mrb[0].mxu0
        %v3081 = vadd.f32 0.0, %v3080
        %v3082 = vpop.f32.mrb[0].mxu0
        %v3083 = vadd.f32 0.0, %v3082
        %v3084 = vpop.f32.mrb[0].mxu0
        %v3085 = vadd.f32 0.0, %v3084
        %3086 = vmatprep.mubr.bf16.mxu0 0
        %3087 = vmatmul.mubr.bf16.gmra.mrb[0].mxu0 %v3042
        %v3088 = vpop.f32.mrb[0].mxu0
        %v3089 = vadd.f32 0.0, %v3088
        %v3090 = vpop.f32.mrb[0].mxu0
        %v3091 = vadd.f32 0.0, %v3090
        %v3092 = vpop.f32.mrb[0].mxu0
        %v3093 = vadd.f32 0.0, %v3092
        %v3094 = vpop.f32.mrb[0].mxu0
        %v3095 = vadd.f32 0.0, %v3094
        %3096 = vdwg.mxu0
        %v3097 = vadd.f32 %v2993, %v3079
        %v3098 = vadd.f32 %v2994, %v3081
        %v3099 = vadd.f32 %v2995, %v3083
        %v3100 = vadd.f32 %v2996, %v3085
        %v3101 = vadd.f32 %v2997, %v3089
        %v3102 = vadd.f32 %v2998, %v3091
        %v3103 = vadd.f32 %v2999, %v3093
        %v3104 = vadd.f32 %v3000, %v3095
        %s3105 = scalar_lea.vmem %s6, 64
        %v3106 = vld [vmem:[%s3105] sm:$0xf]
        %v3107 = vld [vmem:[%s3105 + $0x4] sm:$0xf]
        %v3108 = vld [vmem:[%s3105 + $0x8] sm:$0xf]
        %v3109 = vld [vmem:[%s3105 + $0xc] sm:$0xf]
        %v3114 = vunpack.c.l.b16 %v3106
        %v3115 = vunpack.c.l.b16 %v3107
        %v3116 = vunpack.c.l.b16 %v3108
        %v3117 = vunpack.c.l.b16 %v3109
        %v3118 = vpack.c.b16 %v3115, %v3114
        %v3119 = vpack.c.b16 %v3117, %v3116
        %v3121 = vsel %vm1677, %v3118, 0
        %v3124 = vsel %vm1677, %v3119, 0
        %3126 = vmatprep.subr.bf16.mxu0 %v2703
        %3127 = vmatpush1.bf16.msra.mxu0 %v2702
        %3128 = vmatprep.subr.bf16.mxu0 %v2705
        %3129 = vmatpush1.bf16.msra.mxu0 %v2704
        %3130 = vmatprep.subr.bf16.mxu0 0
        %3131 = vmatpush1.bf16.msra.mxu0 0
        %3132 = vmatprep.subr.bf16.mxu0 0
        %3133 = vmatpush1.bf16.msra.mxu0 0
        %3134 = vmatprep.subr.bf16.mxu0 0
        %3135 = vmatpush1.bf16.msra.mxu0 0
        %3136 = vmatprep.subr.bf16.mxu0 0
        %3137 = vmatpush1.bf16.msra.mxu0 0
        %3138 = vmatprep.subr.bf16.mxu0 0
        %3139 = vmatpush1.bf16.msra.mxu0 0
        %3140 = vmatprep.subr.bf16.mxu0 0
        %3141 = vmatpush1.bf16.msra.mxu0 0
        %3142 = vmatprep.subr.bf16.mxu0 0
        %3143 = vmatpush1.bf16.msra.mxu0 0
        %3144 = vmatprep.subr.bf16.mxu0 0
        %3145 = vmatpush1.bf16.msra.mxu0 0
        %3146 = vmatprep.subr.bf16.mxu0 0
        %3147 = vmatpush1.bf16.msra.mxu0 0
        %3148 = vmatprep.subr.bf16.mxu0 0
        %3149 = vmatpush1.bf16.msra.mxu0 0
        %3150 = vmatprep.subr.bf16.mxu0 0
        %3151 = vmatpush1.bf16.msra.mxu0 0
        %3152 = vmatprep.subr.bf16.mxu0 0
        %3153 = vmatpush1.bf16.msra.mxu0 0
        %3154 = vmatprep.subr.bf16.mxu0 0
        %3155 = vmatpush1.bf16.msra.mxu0 0
        %3156 = vmatprep.subr.bf16.mxu0 0
        %3157 = vmatpush1.bf16.msra.mxu0 0
        %3158 = vmatprep.mubr.bf16.mxu0 0
        %3159 = vmatmul.mubr.bf16.gmra.mrb[0].mxu0 %v3121
        %v3160 = vpop.f32.mrb[0].mxu0
        %v3161 = vadd.f32 0.0, %v3160
        %v3162 = vpop.f32.mrb[0].mxu0
        %v3163 = vadd.f32 0.0, %v3162
        %v3164 = vpop.f32.mrb[0].mxu0
        %v3165 = vadd.f32 0.0, %v3164
        %v3166 = vpop.f32.mrb[0].mxu0
        %v3167 = vadd.f32 0.0, %v3166
        %3168 = vmatprep.mubr.bf16.mxu0 0
        %3169 = vmatmul.mubr.bf16.gmra.mrb[0].mxu0 %v3124
        %v3170 = vpop.f32.mrb[0].mxu0
        %v3171 = vadd.f32 0.0, %v3170
        %v3172 = vpop.f32.mrb[0].mxu0
        %v3173 = vadd.f32 0.0, %v3172
        %v3174 = vpop.f32.mrb[0].mxu0
        %v3175 = vadd.f32 0.0, %v3174
        %v3176 = vpop.f32.mrb[0].mxu0
        %v3177 = vadd.f32 0.0, %v3176
        %3178 = vdwg.mxu0
        %v3179 = vadd.f32 %v3097, %v3161
        %v3180 = vadd.f32 %v3098, %v3163
        %v3181 = vadd.f32 %v3099, %v3165
        %v3182 = vadd.f32 %v3100, %v3167
        %v3183 = vadd.f32 %v3101, %v3171
        %v3184 = vadd.f32 %v3102, %v3173
        %v3185 = vadd.f32 %v3103, %v3175
        %v3186 = vadd.f32 %v3104, %v3177
        %3187 = vrot.lane.b32.xlu0 %v2702, 127
        %v3188 = vpop.permute.xlu0 %3187
        %3189 = vrot.lane.b32.xlu0 %v2703, 127
        %v3190 = vpop.permute.xlu0 %3189
        %3191 = vrot.lane.b32.xlu0 %v2704, 127
        %v3192 = vpop.permute.xlu0 %3191
        %3193 = vrot.lane.b32.xlu0 %v2705, 127
        %v3194 = vpop.permute.xlu0 %3193
        %v3195 = vsel %vm1244, %v3188, %v3190
        %v3196 = vsel %vm1244, %v3192, %v3194
        %v3200 = vsel %vm1247, %v3190, 0
        %v3203 = vsel %vm1247, %v3194, 0
        %v3205 = vmul.bf16 %v3195, %v953
        %v3206 = vmul.bf16 %v3200, %v960
        %v3207 = vmul.bf16 %v3196, %v953
        %v3208 = vmul.bf16 %v3203, %v960
        %s3209 = scalar_lea.vmem %s6, 80
        %v3210 = vld [vmem:[%s3209] sm:$0xf]
        %v3211 = vld [vmem:[%s3209 + $0x4] sm:$0xf]
        %v3212 = vld [vmem:[%s3209 + $0x8] sm:$0xf]
        %v3213 = vld [vmem:[%s3209 + $0xc] sm:$0xf]
        %v3218 = vunpack.c.l.b16 %v3210
        %v3219 = vunpack.c.l.b16 %v3211
        %v3220 = vunpack.c.l.b16 %v3212
        %v3221 = vunpack.c.l.b16 %v3213
        %v3222 = vpack.c.b16 %v3219, %v3218
        %v3223 = vpack.c.b16 %v3221, %v3220
        %v3225 = vsel %vm1677, %v3222, 0
        %v3228 = vsel %vm1677, %v3223, 0
        %3230 = vmatprep.subr.bf16.mxu0 %v3206
        %3231 = vmatpush1.bf16.msra.mxu0 %v3205
        %3232 = vmatprep.subr.bf16.mxu0 %v3208
        %3233 = vmatpush1.bf16.msra.mxu0 %v3207
        %3234 = vmatprep.subr.bf16.mxu0 0
        %3235 = vmatpush1.bf16.msra.mxu0 0
        %3236 = vmatprep.subr.bf16.mxu0 0
        %3237 = vmatpush1.bf16.msra.mxu0 0
        %3238 = vmatprep.subr.bf16.mxu0 0
        %3239 = vmatpush1.bf16.msra.mxu0 0
        %3240 = vmatprep.subr.bf16.mxu0 0
        %3241 = vmatpush1.bf16.msra.mxu0 0
        %3242 = vmatprep.subr.bf16.mxu0 0
        %3243 = vmatpush1.bf16.msra.mxu0 0
        %3244 = vmatprep.subr.bf16.mxu0 0
        %3245 = vmatpush1.bf16.msra.mxu0 0
        %3246 = vmatprep.subr.bf16.mxu0 0
        %3247 = vmatpush1.bf16.msra.mxu0 0
        %3248 = vmatprep.subr.bf16.mxu0 0
        %3249 = vmatpush1.bf16.msra.mxu0 0
        %3250 = vmatprep.subr.bf16.mxu0 0
        %3251 = vmatpush1.bf16.msra.mxu0 0
        %3252 = vmatprep.subr.bf16.mxu0 0
        %3253 = vmatpush1.bf16.msra.mxu0 0
        %3254 = vmatprep.subr.bf16.mxu0 0
        %3255 = vmatpush1.bf16.msra.mxu0 0
        %3256 = vmatprep.subr.bf16.mxu0 0
        %3257 = vmatpush1.bf16.msra.mxu0 0
        %3258 = vmatprep.subr.bf16.mxu0 0
        %3259 = vmatpush1.bf16.msra.mxu0 0
        %3260 = vmatprep.subr.bf16.mxu0 0
        %3261 = vmatpush1.bf16.msra.mxu0 0
        %3262 = vmatprep.mubr.bf16.mxu0 0
        %3263 = vmatmul.mubr.bf16.gmra.mrb[0].mxu0 %v3225
        %v3264 = vpop.f32.mrb[0].mxu0
        %v3265 = vadd.f32 0.0, %v3264
        %v3266 = vpop.f32.mrb[0].mxu0
        %v3267 = vadd.f32 0.0, %v3266
        %v3268 = vpop.f32.mrb[0].mxu0
        %v3269 = vadd.f32 0.0, %v3268
        %v3270 = vpop.f32.mrb[0].mxu0
        %v3271 = vadd.f32 0.0, %v3270
        %3272 = vmatprep.mubr.bf16.mxu0 0
        %3273 = vmatmul.mubr.bf16.gmra.mrb[0].mxu0 %v3228
        %v3274 = vpop.f32.mrb[0].mxu0
        %v3275 = vadd.f32 0.0, %v3274
        %v3276 = vpop.f32.mrb[0].mxu0
        %v3277 = vadd.f32 0.0, %v3276
        %v3278 = vpop.f32.mrb[0].mxu0
        %v3279 = vadd.f32 0.0, %v3278
        %v3280 = vpop.f32.mrb[0].mxu0
        %v3281 = vadd.f32 0.0, %v3280
        %3282 = vdwg.mxu0
        %v3283 = vadd.f32 %v3179, %v3265
        %v3284 = vadd.f32 %v3180, %v3267
        %v3285 = vadd.f32 %v3181, %v3269
        %v3286 = vadd.f32 %v3182, %v3271
        %v3287 = vadd.f32 %v3183, %v3275
        %v3288 = vadd.f32 %v3184, %v3277
        %v3289 = vadd.f32 %v3185, %v3279
        %v3290 = vadd.f32 %v3186, %v3281
        %3291 = vrot.lane.b32.xlu0 %v2702, 113
        %v3292 = vpop.permute.xlu0 %3291
        %3293 = vrot.lane.b32.xlu0 %v2703, 113
        %v3294 = vpop.permute.xlu0 %3293
        %3295 = vrot.lane.b32.xlu0 %v2704, 113
        %v3296 = vpop.permute.xlu0 %3295
        %3297 = vrot.lane.b32.xlu0 %v2705, 113
        %v3298 = vpop.permute.xlu0 %3297
        %v3299 = vsel %vm1345, %v3292, %v3294
        %v3300 = vsel %vm1345, %v3296, %v3298
        %v3304 = vsel %vm1348, %v3294, 0
        %v3307 = vsel %vm1348, %v3298, 0
        %v3309 = vmul.bf16 %v3299, %v757
        %v3310 = vmul.bf16 %v3304, %v764
        %v3311 = vmul.bf16 %v3300, %v757
        %v3312 = vmul.bf16 %v3307, %v764
        %s3313 = scalar_lea.vmem %s6, 96
        %v3314 = vld [vmem:[%s3313] sm:$0xf]
        %v3315 = vld [vmem:[%s3313 + $0x4] sm:$0xf]
        %v3316 = vld [vmem:[%s3313 + $0x8] sm:$0xf]
        %v3317 = vld [vmem:[%s3313 + $0xc] sm:$0xf]
        %v3322 = vunpack.c.l.b16 %v3314
        %v3323 = vunpack.c.l.b16 %v3315
        %v3324 = vunpack.c.l.b16 %v3316
        %v3325 = vunpack.c.l.b16 %v3317
        %v3326 = vpack.c.b16 %v3323, %v3322
        %v3327 = vpack.c.b16 %v3325, %v3324
        %v3329 = vsel %vm1677, %v3326, 0
        %v3332 = vsel %vm1677, %v3327, 0
        %3334 = vmatprep.subr.bf16.mxu0 %v3310
        %3335 = vmatpush1.bf16.msra.mxu0 %v3309
        %3336 = vmatprep.subr.bf16.mxu0 %v3312
        %3337 = vmatpush1.bf16.msra.mxu0 %v3311
        %3338 = vmatprep.subr.bf16.mxu0 0
        %3339 = vmatpush1.bf16.msra.mxu0 0
        %3340 = vmatprep.subr.bf16.mxu0 0
        %3341 = vmatpush1.bf16.msra.mxu0 0
        %3342 = vmatprep.subr.bf16.mxu0 0
        %3343 = vmatpush1.bf16.msra.mxu0 0
        %3344 = vmatprep.subr.bf16.mxu0 0
        %3345 = vmatpush1.bf16.msra.mxu0 0
        %3346 = vmatprep.subr.bf16.mxu0 0
        %3347 = vmatpush1.bf16.msra.mxu0 0
        %3348 = vmatprep.subr.bf16.mxu0 0
        %3349 = vmatpush1.bf16.msra.mxu0 0
        %3350 = vmatprep.subr.bf16.mxu0 0
        %3351 = vmatpush1.bf16.msra.mxu0 0
        %3352 = vmatprep.subr.bf16.mxu0 0
        %3353 = vmatpush1.bf16.msra.mxu0 0
        %3354 = vmatprep.subr.bf16.mxu0 0
        %3355 = vmatpush1.bf16.msra.mxu0 0
        %3356 = vmatprep.subr.bf16.mxu0 0
        %3357 = vmatpush1.bf16.msra.mxu0 0
        %3358 = vmatprep.subr.bf16.mxu0 0
        %3359 = vmatpush1.bf16.msra.mxu0 0
        %3360 = vmatprep.subr.bf16.mxu0 0
        %3361 = vmatpush1.bf16.msra.mxu0 0
        %3362 = vmatprep.subr.bf16.mxu0 0
        %3363 = vmatpush1.bf16.msra.mxu0 0
        %3364 = vmatprep.subr.bf16.mxu0 0
        %3365 = vmatpush1.bf16.msra.mxu0 0
        %3366 = vmatprep.mubr.bf16.mxu0 0
        %3367 = vmatmul.mubr.bf16.gmra.mrb[0].mxu0 %v3329
        %v3368 = vpop.f32.mrb[0].mxu0
        %v3369 = vadd.f32 0.0, %v3368
        %v3370 = vpop.f32.mrb[0].mxu0
        %v3371 = vadd.f32 0.0, %v3370
        %v3372 = vpop.f32.mrb[0].mxu0
        %v3373 = vadd.f32 0.0, %v3372
        %v3374 = vpop.f32.mrb[0].mxu0
        %v3375 = vadd.f32 0.0, %v3374
        %3376 = vmatprep.mubr.bf16.mxu0 0
        %3377 = vmatmul.mubr.bf16.gmra.mrb[0].mxu0 %v3332
        %v3378 = vpop.f32.mrb[0].mxu0
        %v3379 = vadd.f32 0.0, %v3378
        %v3380 = vpop.f32.mrb[0].mxu0
        %v3381 = vadd.f32 0.0, %v3380
        %v3382 = vpop.f32.mrb[0].mxu0
        %v3383 = vadd.f32 0.0, %v3382
        %v3384 = vpop.f32.mrb[0].mxu0
        %v3385 = vadd.f32 0.0, %v3384
        %3386 = vdwg.mxu0
        %v3387 = vadd.f32 %v3283, %v3369
        %v3388 = vadd.f32 %v3284, %v3371
        %v3389 = vadd.f32 %v3285, %v3373
        %v3390 = vadd.f32 %v3286, %v3375
        %v3391 = vadd.f32 %v3287, %v3379
        %v3392 = vadd.f32 %v3288, %v3381
        %v3393 = vadd.f32 %v3289, %v3383
        %v3394 = vadd.f32 %v3290, %v3385
        %3395 = vrot.lane.b32.xlu0 %v2702, 112
        %v3396 = vpop.permute.xlu0 %3395
        %3397 = vrot.lane.b32.xlu0 %v2703, 112
        %v3398 = vpop.permute.xlu0 %3397
        %3399 = vrot.lane.b32.xlu0 %v2704, 112
        %v3400 = vpop.permute.xlu0 %3399
        %3401 = vrot.lane.b32.xlu0 %v2705, 112
        %v3402 = vpop.permute.xlu0 %3401
        %v3403 = vsel %vm1446, %v3396, %v3398
        %v3404 = vsel %vm1446, %v3400, %v3402
        %v3408 = vsel %vm1448, %v3398, 0
        %v3411 = vsel %vm1448, %v3402, 0
        %s3413 = scalar_lea.vmem %s6, 112
        %v3414 = vld [vmem:[%s3413] sm:$0xf]
        %v3415 = vld [vmem:[%s3413 + $0x4] sm:$0xf]
        %v3416 = vld [vmem:[%s3413 + $0x8] sm:$0xf]
        %v3417 = vld [vmem:[%s3413 + $0xc] sm:$0xf]
        %v3422 = vunpack.c.l.b16 %v3414
        %v3423 = vunpack.c.l.b16 %v3415
        %v3424 = vunpack.c.l.b16 %v3416
        %v3425 = vunpack.c.l.b16 %v3417
        %v3426 = vpack.c.b16 %v3423, %v3422
        %v3427 = vpack.c.b16 %v3425, %v3424
        %v3429 = vsel %vm1677, %v3426, 0
        %v3432 = vsel %vm1677, %v3427, 0
        %3434 = vmatprep.subr.bf16.mxu0 %v3408
        %3435 = vmatpush1.bf16.msra.mxu0 %v3403
        %3436 = vmatprep.subr.bf16.mxu0 %v3411
        %3437 = vmatpush1.bf16.msra.mxu0 %v3404
        %3438 = vmatprep.subr.bf16.mxu0 0
        %3439 = vmatpush1.bf16.msra.mxu0 0
        %3440 = vmatprep.subr.bf16.mxu0 0
        %3441 = vmatpush1.bf16.msra.mxu0 0
        %3442 = vmatprep.subr.bf16.mxu0 0
        %3443 = vmatpush1.bf16.msra.mxu0 0
        %3444 = vmatprep.subr.bf16.mxu0 0
        %3445 = vmatpush1.bf16.msra.mxu0 0
        %3446 = vmatprep.subr.bf16.mxu0 0
        %3447 = vmatpush1.bf16.msra.mxu0 0
        %3448 = vmatprep.subr.bf16.mxu0 0
        %3449 = vmatpush1.bf16.msra.mxu0 0
        %3450 = vmatprep.subr.bf16.mxu0 0
        %3451 = vmatpush1.bf16.msra.mxu0 0
        %3452 = vmatprep.subr.bf16.mxu0 0
        %3453 = vmatpush1.bf16.msra.mxu0 0
        %3454 = vmatprep.subr.bf16.mxu0 0
        %3455 = vmatpush1.bf16.msra.mxu0 0
        %3456 = vmatprep.subr.bf16.mxu0 0
        %3457 = vmatpush1.bf16.msra.mxu0 0
        %3458 = vmatprep.subr.bf16.mxu0 0
        %3459 = vmatpush1.bf16.msra.mxu0 0
        %3460 = vmatprep.subr.bf16.mxu0 0
        %3461 = vmatpush1.bf16.msra.mxu0 0
        %3462 = vmatprep.subr.bf16.mxu0 0
        %3463 = vmatpush1.bf16.msra.mxu0 0
        %3464 = vmatprep.subr.bf16.mxu0 0
        %3465 = vmatpush1.bf16.msra.mxu0 0
        %3466 = vmatprep.mubr.bf16.mxu0 0
        %3467 = vmatmul.mubr.bf16.gmra.mrb[0].mxu0 %v3429
        %v3468 = vpop.f32.mrb[0].mxu0
        %v3469 = vadd.f32 0.0, %v3468
        %v3470 = vpop.f32.mrb[0].mxu0
        %v3471 = vadd.f32 0.0, %v3470
        %v3472 = vpop.f32.mrb[0].mxu0
        %v3473 = vadd.f32 0.0, %v3472
        %v3474 = vpop.f32.mrb[0].mxu0
        %v3475 = vadd.f32 0.0, %v3474
        %3476 = vmatprep.mubr.bf16.mxu0 0
        %3477 = vmatmul.mubr.bf16.gmra.mrb[0].mxu0 %v3432
        %v3478 = vpop.f32.mrb[0].mxu0
        %v3479 = vadd.f32 0.0, %v3478
        %v3480 = vpop.f32.mrb[0].mxu0
        %v3481 = vadd.f32 0.0, %v3480
        %v3482 = vpop.f32.mrb[0].mxu0
        %v3483 = vadd.f32 0.0, %v3482
        %v3484 = vpop.f32.mrb[0].mxu0
        %v3485 = vadd.f32 0.0, %v3484
        %3486 = vdwg.mxu0
        %v3487 = vadd.f32 %v3387, %v3469
        %v3488 = vadd.f32 %v3388, %v3471
        %v3489 = vadd.f32 %v3389, %v3473
        %v3490 = vadd.f32 %v3390, %v3475
        %v3491 = vadd.f32 %v3391, %v3479
        %v3492 = vadd.f32 %v3392, %v3481
        %v3493 = vadd.f32 %v3393, %v3483
        %v3494 = vadd.f32 %v3394, %v3485
        %3495 = vrot.lane.b32.xlu0 %v2702, 111
        %v3496 = vpop.permute.xlu0 %3495
        %3497 = vrot.lane.b32.xlu0 %v2703, 111
        %v3498 = vpop.permute.xlu0 %3497
        %3499 = vrot.lane.b32.xlu0 %v2704, 111
        %v3500 = vpop.permute.xlu0 %3499
        %3501 = vrot.lane.b32.xlu0 %v2705, 111
        %v3502 = vpop.permute.xlu0 %3501
        %v3503 = vsel %vm1542, %v3496, %v3498
        %v3504 = vsel %vm1542, %v3500, %v3502
        %v3508 = vsel %vm1545, %v3498, 0
        %v3511 = vsel %vm1545, %v3502, 0
        %v3513 = vmul.bf16 %v3503, %v953
        %v3514 = vmul.bf16 %v3508, %v960
        %v3515 = vmul.bf16 %v3504, %v953
        %v3516 = vmul.bf16 %v3511, %v960
        %s3517 = scalar_lea.vmem %s6, 128
        %v3518 = vld [vmem:[%s3517] sm:$0xf]
        %v3519 = vld [vmem:[%s3517 + $0x4] sm:$0xf]
        %v3520 = vld [vmem:[%s3517 + $0x8] sm:$0xf]
        %v3521 = vld [vmem:[%s3517 + $0xc] sm:$0xf]
        %v3526 = vunpack.c.l.b16 %v3518
        %v3527 = vunpack.c.l.b16 %v3519
        %v3528 = vunpack.c.l.b16 %v3520
        %v3529 = vunpack.c.l.b16 %v3521
        %v3530 = vpack.c.b16 %v3527, %v3526
        %v3531 = vpack.c.b16 %v3529, %v3528
        %v3533 = vsel %vm1677, %v3530, 0
        %v3536 = vsel %vm1677, %v3531, 0
        %3538 = vmatprep.subr.bf16.mxu0 %v3514
        %3539 = vmatpush1.bf16.msra.mxu0 %v3513
        %3540 = vmatprep.subr.bf16.mxu0 %v3516
        %3541 = vmatpush1.bf16.msra.mxu0 %v3515
        %3542 = vmatprep.subr.bf16.mxu0 0
        %3543 = vmatpush1.bf16.msra.mxu0 0
        %3544 = vmatprep.subr.bf16.mxu0 0
        %3545 = vmatpush1.bf16.msra.mxu0 0
        %3546 = vmatprep.subr.bf16.mxu0 0
        %3547 = vmatpush1.bf16.msra.mxu0 0
        %3548 = vmatprep.subr.bf16.mxu0 0
        %3549 = vmatpush1.bf16.msra.mxu0 0
        %3550 = vmatprep.subr.bf16.mxu0 0
        %3551 = vmatpush1.bf16.msra.mxu0 0
        %3552 = vmatprep.subr.bf16.mxu0 0
        %3553 = vmatpush1.bf16.msra.mxu0 0
        %3554 = vmatprep.subr.bf16.mxu0 0
        %3555 = vmatpush1.bf16.msra.mxu0 0
        %3556 = vmatprep.subr.bf16.mxu0 0
        %3557 = vmatpush1.bf16.msra.mxu0 0
        %3558 = vmatprep.subr.bf16.mxu0 0
        %3559 = vmatpush1.bf16.msra.mxu0 0
        %3560 = vmatprep.subr.bf16.mxu0 0
        %3561 = vmatpush1.bf16.msra.mxu0 0
        %3562 = vmatprep.subr.bf16.mxu0 0
        %3563 = vmatpush1.bf16.msra.mxu0 0
        %3564 = vmatprep.subr.bf16.mxu0 0
        %3565 = vmatpush1.bf16.msra.mxu0 0
        %3566 = vmatprep.subr.bf16.mxu0 0
        %3567 = vmatpush1.bf16.msra.mxu0 0
        %3568 = vmatprep.subr.bf16.mxu0 0
        %3569 = vmatpush1.bf16.msra.mxu0 0
        %3570 = vmatprep.mubr.bf16.mxu0 0
        %3571 = vmatmul.mubr.bf16.gmra.mrb[0].mxu0 %v3533
        %v3572 = vpop.f32.mrb[0].mxu0
        %v3573 = vadd.f32 0.0, %v3572
        %v3574 = vpop.f32.mrb[0].mxu0
        %v3575 = vadd.f32 0.0, %v3574
        %v3576 = vpop.f32.mrb[0].mxu0
        %v3577 = vadd.f32 0.0, %v3576
        %v3578 = vpop.f32.mrb[0].mxu0
        %v3579 = vadd.f32 0.0, %v3578
        %3580 = vmatprep.mubr.bf16.mxu0 0
        %3581 = vmatmul.mubr.bf16.gmra.mrb[0].mxu0 %v3536
        %v3582 = vpop.f32.mrb[0].mxu0
        %v3583 = vadd.f32 0.0, %v3582
        %v3584 = vpop.f32.mrb[0].mxu0
        %v3585 = vadd.f32 0.0, %v3584
        %v3586 = vpop.f32.mrb[0].mxu0
        %v3587 = vadd.f32 0.0, %v3586
        %v3588 = vpop.f32.mrb[0].mxu0
        %v3589 = vadd.f32 0.0, %v3588
        %3590 = vdwg.mxu0
        %v3591 = vadd.f32 %v3487, %v3573
        %v3592 = vadd.f32 %v3488, %v3575
        %v3593 = vadd.f32 %v3489, %v3577
        %v3594 = vadd.f32 %v3490, %v3579
        %v3595 = vadd.f32 %v3491, %v3583
        %v3596 = vadd.f32 %v3492, %v3585
        %v3597 = vadd.f32 %v3493, %v3587
        %v3598 = vadd.f32 %v3494, %v3589
        %v3599 = vld [vmem:[%s7] sm:$0xff]
        %v3600 = vld [vmem:[%s7 + $0x8] sm:$0xff]
        %v3601 = vld [vmem:[%s7 + $0x10] sm:$0xff]
        %v3602 = vld [vmem:[%s7 + $0x18] sm:$0xff]
        %3604 = vset.pattern.permute.xlu0 0
        %3605 = vperm.xlu0 %3604, %v3599
        %v3606 = vpop.permute.xlu0 %3605
        %3609 = vset.pattern.permute.xlu0 0
        %3610 = vperm.xlu0 %3609, %v3600
        %v3611 = vpop.permute.xlu0 %3610
        %3614 = vset.pattern.permute.xlu0 0
        %3615 = vperm.xlu0 %3614, %v3601
        %v3616 = vpop.permute.xlu0 %3615
        %3619 = vset.pattern.permute.xlu0 0
        %3620 = vperm.xlu0 %3619, %v3602
        %v3621 = vpop.permute.xlu0 %3620
        %v3623 = vadd.f32 %v3591, %v3606
        %v3624 = vadd.f32 %v3592, %v3606
        %v3625 = vadd.f32 %v3593, %v3611
        %v3626 = vadd.f32 %v3594, %v3611
        %v3627 = vadd.f32 %v3595, %v3616
        %v3628 = vadd.f32 %v3596, %v3616
        %v3629 = vadd.f32 %v3597, %v3621
        %v3630 = vadd.f32 %v3598, %v3621
        %v3631 = vsub.f32 0.0, %v3623
        %v3632 = vsub.f32 0.0, %v3624
        %v3633 = vsub.f32 0.0, %v3625
        %v3634 = vsub.f32 0.0, %v3626
        %v3635 = vsub.f32 0.0, %v3627
        %v3636 = vsub.f32 0.0, %v3628
        %v3637 = vsub.f32 0.0, %v3629
        %v3638 = vsub.f32 0.0, %v3630
        %v3639 = vmul.f32 %v3631, 1.442695
        %v3640 = vpow.pop %v3639
        %v3641 = vmul.f32 %v3632, 1.442695
        %v3642 = vpow.pop %v3641
        %v3643 = vmul.f32 %v3633, 1.442695
        %v3644 = vpow.pop %v3643
        %v3645 = vmul.f32 %v3634, 1.442695
        %v3646 = vpow.pop %v3645
        %v3647 = vmul.f32 %v3635, 1.442695
        %v3648 = vpow.pop %v3647
        %v3649 = vmul.f32 %v3636, 1.442695
        %v3650 = vpow.pop %v3649
        %v3651 = vmul.f32 %v3637, 1.442695
        %v3652 = vpow.pop %v3651
        %v3653 = vmul.f32 %v3638, 1.442695
        %v3654 = vpow.pop %v3653
        %v3655 = vadd.f32 %v3640, 1.0
        %v3656 = vadd.f32 %v3642, 1.0
        %v3657 = vadd.f32 %v3644, 1.0
        %v3658 = vadd.f32 %v3646, 1.0
        %v3659 = vadd.f32 %v3648, 1.0
        %v3660 = vadd.f32 %v3650, 1.0
        %v3661 = vadd.f32 %v3652, 1.0
        %v3662 = vadd.f32 %v3654, 1.0
        %v3663 = vrcp.pop %v3655
        %v3664 = vrcp.pop %v3656
        %v3665 = vrcp.pop %v3657
        %v3666 = vrcp.pop %v3658
        %v3667 = vrcp.pop %v3659
        %v3668 = vrcp.pop %v3660
        %v3669 = vrcp.pop %v3661
        %v3670 = vrcp.pop %v3662
        %v3671 = vmul.f32 %v3623, %v3663
        %v3672 = vmul.f32 %v3624, %v3664
        %v3673 = vmul.f32 %v3625, %v3665
        %v3674 = vmul.f32 %v3626, %v3666
        %v3675 = vmul.f32 %v3627, %v3667
        %v3676 = vmul.f32 %v3628, %v3668
        %v3677 = vmul.f32 %v3629, %v3669
        %v3678 = vmul.f32 %v3630, %v3670
        %v3679 = vpack.c.bf16 %v3673, %v3671
        %v3680 = vpack.c.bf16 %v3674, %v3672
        %v3681 = vpack.c.bf16 %v3677, %v3675
        %v3682 = vpack.c.bf16 %v3678, %v3676
        %3687 = vrot.lane.b32.xlu0 %v3679, 17
        %v3688 = vpop.permute.xlu0 %3687
        %3689 = vrot.lane.b32.xlu0 %v3680, 17
        %v3690 = vpop.permute.xlu0 %3689
        %3691 = vrot.lane.b32.xlu0 %v3681, 17
        %v3692 = vpop.permute.xlu0 %3691
        %3693 = vrot.lane.b32.xlu0 %v3682, 17
        %v3694 = vpop.permute.xlu0 %3693
        %v3695 = vsel %vm720, %v3688, %v3690
        %v3696 = vsel %vm720, %v3692, %v3694
        %v3700 = vsel %vm723, 0, %v3688
        %v3703 = vsel %vm723, 0, %v3692
        %v3705 = vmul.bf16 %v3700, %v757
        %v3706 = vmul.bf16 %v3695, %v764
        %v3707 = vmul.bf16 %v3703, %v757
        %v3708 = vmul.bf16 %v3696, %v764
        %v3709 = vld [vmem:[%s8] sm:$0xf]
        %v3710 = vld [vmem:[%s8 + $0x4] sm:$0xf]
        %v3711 = vld [vmem:[%s8 + $0x8] sm:$0xf]
        %v3712 = vld [vmem:[%s8 + $0xc] sm:$0xf]
        %3713 = vrot.lane.b32.xlu0 %v3679, 16
        %v3714 = vpop.permute.xlu0 %3713
        %3715 = vrot.lane.b32.xlu0 %v3680, 16
        %v3716 = vpop.permute.xlu0 %3715
        %3717 = vrot.lane.b32.xlu0 %v3681, 16
        %v3718 = vpop.permute.xlu0 %3717
        %3719 = vrot.lane.b32.xlu0 %v3682, 16
        %v3720 = vpop.permute.xlu0 %3719
        %v3721 = vsel %vm775, %v3714, %v3716
        %v3722 = vsel %vm775, %v3718, %v3720
        %v3726 = vsel %vm777, 0, %v3714
        %v3729 = vsel %vm777, 0, %v3718
        %s3731 = scalar_lea.vmem %s8, 16
        %v3732 = vld [vmem:[%s3731] sm:$0xf]
        %v3733 = vld [vmem:[%s3731 + $0x4] sm:$0xf]
        %v3734 = vld [vmem:[%s3731 + $0x8] sm:$0xf]
        %v3735 = vld [vmem:[%s3731 + $0xc] sm:$0xf]
        %v3740 = vunpack.c.l.b16 %v3732
        %v3741 = vunpack.c.l.b16 %v3733
        %v3742 = vunpack.c.l.b16 %v3734
        %v3743 = vunpack.c.l.b16 %v3735
        %v3744 = vpack.c.b16 %v3741, %v3740
        %v3745 = vpack.c.b16 %v3743, %v3742
        %v3747 = vsel %vm1677, %v3744, 0
        %v3750 = vsel %vm1677, %v3745, 0
        %3752 = vmatprep.subr.bf16.mxu0 %v3721
        %3753 = vmatpush1.bf16.msra.mxu0 %v3726
        %3754 = vmatprep.subr.bf16.mxu0 %v3722
        %3755 = vmatpush1.bf16.msra.mxu0 %v3729
        %3756 = vmatprep.subr.bf16.mxu0 0
        %3757 = vmatpush1.bf16.msra.mxu0 0
        %3758 = vmatprep.subr.bf16.mxu0 0
        %3759 = vmatpush1.bf16.msra.mxu0 0
        %3760 = vmatprep.subr.bf16.mxu0 0
        %3761 = vmatpush1.bf16.msra.mxu0 0
        %3762 = vmatprep.subr.bf16.mxu0 0
        %3763 = vmatpush1.bf16.msra.mxu0 0
        %3764 = vmatprep.subr.bf16.mxu0 0
        %3765 = vmatpush1.bf16.msra.mxu0 0
        %3766 = vmatprep.subr.bf16.mxu0 0
        %3767 = vmatpush1.bf16.msra.mxu0 0
        %3768 = vmatprep.subr.bf16.mxu0 0
        %3769 = vmatpush1.bf16.msra.mxu0 0
        %3770 = vmatprep.subr.bf16.mxu0 0
        %3771 = vmatpush1.bf16.msra.mxu0 0
        %3772 = vmatprep.subr.bf16.mxu0 0
        %3773 = vmatpush1.bf16.msra.mxu0 0
        %3774 = vmatprep.subr.bf16.mxu0 0
        %3775 = vmatpush1.bf16.msra.mxu0 0
        %3776 = vmatprep.subr.bf16.mxu0 0
        %3777 = vmatpush1.bf16.msra.mxu0 0
        %3778 = vmatprep.subr.bf16.mxu0 0
        %3779 = vmatpush1.bf16.msra.mxu0 0
        %3780 = vmatprep.subr.bf16.mxu0 0
        %3781 = vmatpush1.bf16.msra.mxu0 0
        %3782 = vmatprep.subr.bf16.mxu0 0
        %3783 = vmatpush1.bf16.msra.mxu0 0
        %3784 = vmatprep.mubr.bf16.mxu0 0
        %3785 = vmatmul.mubr.bf16.gmra.mrb[0].mxu0 %v3747
        %v3786 = vpop.f32.mrb[0].mxu0
        %v3787 = vadd.f32 0.0, %v3786
        %v3788 = vpop.f32.mrb[0].mxu0
        %v3789 = vadd.f32 0.0, %v3788
        %v3790 = vpop.f32.mrb[0].mxu0
        %v3791 = vadd.f32 0.0, %v3790
        %v3792 = vpop.f32.mrb[0].mxu0
        %v3793 = vadd.f32 0.0, %v3792
        %3794 = vmatprep.mubr.bf16.mxu0 0
        %3795 = vmatmul.mubr.bf16.gmra.mrb[0].mxu0 %v3750
        %v3796 = vpop.f32.mrb[0].mxu0
        %v3797 = vadd.f32 0.0, %v3796
        %v3798 = vpop.f32.mrb[0].mxu0
        %v3799 = vadd.f32 0.0, %v3798
        %v3800 = vpop.f32.mrb[0].mxu0
        %v3801 = vadd.f32 0.0, %v3800
        %v3802 = vpop.f32.mrb[0].mxu0
        %v3803 = vadd.f32 0.0, %v3802
        %3804 = vdwg.mxu0
        %v3809 = vunpack.c.l.b16 %v3709
        %v3810 = vunpack.c.l.b16 %v3710
        %v3811 = vunpack.c.l.b16 %v3711
        %v3812 = vunpack.c.l.b16 %v3712
        %v3813 = vpack.c.b16 %v3810, %v3809
        %v3814 = vpack.c.b16 %v3812, %v3811
        %v3816 = vsel %vm1677, %v3813, 0
        %v3819 = vsel %vm1677, %v3814, 0
        %3821 = vmatprep.subr.bf16.mxu0 %v3706
        %3822 = vmatpush1.bf16.msra.mxu0 %v3705
        %3823 = vmatprep.subr.bf16.mxu0 %v3708
        %3824 = vmatpush1.bf16.msra.mxu0 %v3707
        %3825 = vmatprep.subr.bf16.mxu0 0
        %3826 = vmatpush1.bf16.msra.mxu0 0
        %3827 = vmatprep.subr.bf16.mxu0 0
        %3828 = vmatpush1.bf16.msra.mxu0 0
        %3829 = vmatprep.subr.bf16.mxu0 0
        %3830 = vmatpush1.bf16.msra.mxu0 0
        %3831 = vmatprep.subr.bf16.mxu0 0
        %3832 = vmatpush1.bf16.msra.mxu0 0
        %3833 = vmatprep.subr.bf16.mxu0 0
        %3834 = vmatpush1.bf16.msra.mxu0 0
        %3835 = vmatprep.subr.bf16.mxu0 0
        %3836 = vmatpush1.bf16.msra.mxu0 0
        %3837 = vmatprep.subr.bf16.mxu0 0
        %3838 = vmatpush1.bf16.msra.mxu0 0
        %3839 = vmatprep.subr.bf16.mxu0 0
        %3840 = vmatpush1.bf16.msra.mxu0 0
        %3841 = vmatprep.subr.bf16.mxu0 0
        %3842 = vmatpush1.bf16.msra.mxu0 0
        %3843 = vmatprep.subr.bf16.mxu0 0
        %3844 = vmatpush1.bf16.msra.mxu0 0
        %3845 = vmatprep.subr.bf16.mxu0 0
        %3846 = vmatpush1.bf16.msra.mxu0 0
        %3847 = vmatprep.subr.bf16.mxu0 0
        %3848 = vmatpush1.bf16.msra.mxu0 0
        %3849 = vmatprep.subr.bf16.mxu0 0
        %3850 = vmatpush1.bf16.msra.mxu0 0
        %3851 = vmatprep.subr.bf16.mxu0 0
        %3852 = vmatpush1.bf16.msra.mxu0 0
        %3853 = vmatprep.mubr.bf16.mxu0 0
        %3854 = vmatmul.mubr.bf16.gmra.mrb[0].mxu0 %v3816
        %v3855 = vpop.f32.mrb[0].mxu0
        %v3856 = vadd.f32 %v3787, %v3855
        %v3857 = vpop.f32.mrb[0].mxu0
        %v3858 = vadd.f32 %v3789, %v3857
        %v3859 = vpop.f32.mrb[0].mxu0
        %v3860 = vadd.f32 %v3791, %v3859
        %v3861 = vpop.f32.mrb[0].mxu0
        %v3862 = vadd.f32 %v3793, %v3861
        %3863 = vmatprep.mubr.bf16.mxu0 0
        %3864 = vmatmul.mubr.bf16.gmra.mrb[0].mxu0 %v3819
        %v3865 = vpop.f32.mrb[0].mxu0
        %v3866 = vadd.f32 %v3797, %v3865
        %v3867 = vpop.f32.mrb[0].mxu0
        %v3868 = vadd.f32 %v3799, %v3867
        %v3869 = vpop.f32.mrb[0].mxu0
        %v3870 = vadd.f32 %v3801, %v3869
        %v3871 = vpop.f32.mrb[0].mxu0
        %v3872 = vadd.f32 %v3803, %v3871
        %3873 = vdwg.mxu0
        %3874 = vrot.lane.b32.xlu0 %v3679, 15
        %v3875 = vpop.permute.xlu0 %3874
        %3876 = vrot.lane.b32.xlu0 %v3680, 15
        %v3877 = vpop.permute.xlu0 %3876
        %3878 = vrot.lane.b32.xlu0 %v3681, 15
        %v3879 = vpop.permute.xlu0 %3878
        %3880 = vrot.lane.b32.xlu0 %v3682, 15
        %v3881 = vpop.permute.xlu0 %3880
        %v3882 = vsel %vm940, %v3875, %v3877
        %v3883 = vsel %vm940, %v3879, %v3881
        %v3887 = vsel %vm943, 0, %v3875
        %v3890 = vsel %vm943, 0, %v3879
        %v3892 = vmul.bf16 %v3887, %v953
        %v3893 = vmul.bf16 %v3882, %v960
        %v3894 = vmul.bf16 %v3890, %v953
        %v3895 = vmul.bf16 %v3883, %v960
        %s3896 = scalar_lea.vmem %s8, 32
        %v3897 = vld [vmem:[%s3896] sm:$0xf]
        %v3898 = vld [vmem:[%s3896 + $0x4] sm:$0xf]
        %v3899 = vld [vmem:[%s3896 + $0x8] sm:$0xf]
        %v3900 = vld [vmem:[%s3896 + $0xc] sm:$0xf]
        %v3905 = vunpack.c.l.b16 %v3897
        %v3906 = vunpack.c.l.b16 %v3898
        %v3907 = vunpack.c.l.b16 %v3899
        %v3908 = vunpack.c.l.b16 %v3900
        %v3909 = vpack.c.b16 %v3906, %v3905
        %v3910 = vpack.c.b16 %v3908, %v3907
        %v3912 = vsel %vm1677, %v3909, 0
        %v3915 = vsel %vm1677, %v3910, 0
        %3917 = vmatprep.subr.bf16.mxu0 %v3893
        %3918 = vmatpush1.bf16.msra.mxu0 %v3892
        %3919 = vmatprep.subr.bf16.mxu0 %v3895
        %3920 = vmatpush1.bf16.msra.mxu0 %v3894
        %3921 = vmatprep.subr.bf16.mxu0 0
        %3922 = vmatpush1.bf16.msra.mxu0 0
        %3923 = vmatprep.subr.bf16.mxu0 0
        %3924 = vmatpush1.bf16.msra.mxu0 0
        %3925 = vmatprep.subr.bf16.mxu0 0
        %3926 = vmatpush1.bf16.msra.mxu0 0
        %3927 = vmatprep.subr.bf16.mxu0 0
        %3928 = vmatpush1.bf16.msra.mxu0 0
        %3929 = vmatprep.subr.bf16.mxu0 0
        %3930 = vmatpush1.bf16.msra.mxu0 0
        %3931 = vmatprep.subr.bf16.mxu0 0
        %3932 = vmatpush1.bf16.msra.mxu0 0
        %3933 = vmatprep.subr.bf16.mxu0 0
        %3934 = vmatpush1.bf16.msra.mxu0 0
        %3935 = vmatprep.subr.bf16.mxu0 0
        %3936 = vmatpush1.bf16.msra.mxu0 0
        %3937 = vmatprep.subr.bf16.mxu0 0
        %3938 = vmatpush1.bf16.msra.mxu0 0
        %3939 = vmatprep.subr.bf16.mxu0 0
        %3940 = vmatpush1.bf16.msra.mxu0 0
        %3941 = vmatprep.subr.bf16.mxu0 0
        %3942 = vmatpush1.bf16.msra.mxu0 0
        %3943 = vmatprep.subr.bf16.mxu0 0
        %3944 = vmatpush1.bf16.msra.mxu0 0
        %3945 = vmatprep.subr.bf16.mxu0 0
        %3946 = vmatpush1.bf16.msra.mxu0 0
        %3947 = vmatprep.subr.bf16.mxu0 0
        %3948 = vmatpush1.bf16.msra.mxu0 0
        %3949 = vmatprep.mubr.bf16.mxu0 0
        %3950 = vmatmul.mubr.bf16.gmra.mrb[0].mxu0 %v3912
        %v3951 = vpop.f32.mrb[0].mxu0
        %v3952 = vadd.f32 0.0, %v3951
        %v3953 = vpop.f32.mrb[0].mxu0
        %v3954 = vadd.f32 0.0, %v3953
        %v3955 = vpop.f32.mrb[0].mxu0
        %v3956 = vadd.f32 0.0, %v3955
        %v3957 = vpop.f32.mrb[0].mxu0
        %v3958 = vadd.f32 0.0, %v3957
        %3959 = vmatprep.mubr.bf16.mxu0 0
        %3960 = vmatmul.mubr.bf16.gmra.mrb[0].mxu0 %v3915
        %v3961 = vpop.f32.mrb[0].mxu0
        %v3962 = vadd.f32 0.0, %v3961
        %v3963 = vpop.f32.mrb[0].mxu0
        %v3964 = vadd.f32 0.0, %v3963
        %v3965 = vpop.f32.mrb[0].mxu0
        %v3966 = vadd.f32 0.0, %v3965
        %v3967 = vpop.f32.mrb[0].mxu0
        %v3968 = vadd.f32 0.0, %v3967
        %3969 = vdwg.mxu0
        %v3970 = vadd.f32 %v3856, %v3952
        %v3971 = vadd.f32 %v3858, %v3954
        %v3972 = vadd.f32 %v3860, %v3956
        %v3973 = vadd.f32 %v3862, %v3958
        %v3974 = vadd.f32 %v3866, %v3962
        %v3975 = vadd.f32 %v3868, %v3964
        %v3976 = vadd.f32 %v3870, %v3966
        %v3977 = vadd.f32 %v3872, %v3968
        %3978 = vrot.lane.b32.xlu0 %v3679, 1
        %v3979 = vpop.permute.xlu0 %3978
        %3980 = vrot.lane.b32.xlu0 %v3680, 1
        %v3981 = vpop.permute.xlu0 %3980
        %3982 = vrot.lane.b32.xlu0 %v3681, 1
        %v3983 = vpop.permute.xlu0 %3982
        %3984 = vrot.lane.b32.xlu0 %v3682, 1
        %v3985 = vpop.permute.xlu0 %3984
        %v3986 = vsel %vm1055, %v3979, %v3981
        %v3987 = vsel %vm1055, %v3983, %v3985
        %v3991 = vsel %vm1058, 0, %v3979
        %v3994 = vsel %vm1058, 0, %v3983
        %v3996 = vmul.bf16 %v3991, %v757
        %v3997 = vmul.bf16 %v3986, %v764
        %v3998 = vmul.bf16 %v3994, %v757
        %v3999 = vmul.bf16 %v3987, %v764
        %s4000 = scalar_lea.vmem %s8, 48
        %v4001 = vld [vmem:[%s4000] sm:$0xf]
        %v4002 = vld [vmem:[%s4000 + $0x4] sm:$0xf]
        %v4003 = vld [vmem:[%s4000 + $0x8] sm:$0xf]
        %v4004 = vld [vmem:[%s4000 + $0xc] sm:$0xf]
        %v4009 = vunpack.c.l.b16 %v4001
        %v4010 = vunpack.c.l.b16 %v4002
        %v4011 = vunpack.c.l.b16 %v4003
        %v4012 = vunpack.c.l.b16 %v4004
        %v4013 = vpack.c.b16 %v4010, %v4009
        %v4014 = vpack.c.b16 %v4012, %v4011
        %v4016 = vsel %vm1677, %v4013, 0
        %v4019 = vsel %vm1677, %v4014, 0
        %4021 = vmatprep.subr.bf16.mxu0 %v3997
        %4022 = vmatpush1.bf16.msra.mxu0 %v3996
        %4023 = vmatprep.subr.bf16.mxu0 %v3999
        %4024 = vmatpush1.bf16.msra.mxu0 %v3998
        %4025 = vmatprep.subr.bf16.mxu0 0
        %4026 = vmatpush1.bf16.msra.mxu0 0
        %4027 = vmatprep.subr.bf16.mxu0 0
        %4028 = vmatpush1.bf16.msra.mxu0 0
        %4029 = vmatprep.subr.bf16.mxu0 0
        %4030 = vmatpush1.bf16.msra.mxu0 0
        %4031 = vmatprep.subr.bf16.mxu0 0
        %4032 = vmatpush1.bf16.msra.mxu0 0
        %4033 = vmatprep.subr.bf16.mxu0 0
        %4034 = vmatpush1.bf16.msra.mxu0 0
        %4035 = vmatprep.subr.bf16.mxu0 0
        %4036 = vmatpush1.bf16.msra.mxu0 0
        %4037 = vmatprep.subr.bf16.mxu0 0
        %4038 = vmatpush1.bf16.msra.mxu0 0
        %4039 = vmatprep.subr.bf16.mxu0 0
        %4040 = vmatpush1.bf16.msra.mxu0 0
        %4041 = vmatprep.subr.bf16.mxu0 0
        %4042 = vmatpush1.bf16.msra.mxu0 0
        %4043 = vmatprep.subr.bf16.mxu0 0
        %4044 = vmatpush1.bf16.msra.mxu0 0
        %4045 = vmatprep.subr.bf16.mxu0 0
        %4046 = vmatpush1.bf16.msra.mxu0 0
        %4047 = vmatprep.subr.bf16.mxu0 0
        %4048 = vmatpush1.bf16.msra.mxu0 0
        %4049 = vmatprep.subr.bf16.mxu0 0
        %4050 = vmatpush1.bf16.msra.mxu0 0
        %4051 = vmatprep.subr.bf16.mxu0 0
        %4052 = vmatpush1.bf16.msra.mxu0 0
        %4053 = vmatprep.mubr.bf16.mxu0 0
        %4054 = vmatmul.mubr.bf16.gmra.mrb[0].mxu0 %v4016
        %v4055 = vpop.f32.mrb[0].mxu0
        %v4056 = vadd.f32 0.0, %v4055
        %v4057 = vpop.f32.mrb[0].mxu0
        %v4058 = vadd.f32 0.0, %v4057
        %v4059 = vpop.f32.mrb[0].mxu0
        %v4060 = vadd.f32 0.0, %v4059
        %v4061 = vpop.f32.mrb[0].mxu0
        %v4062 = vadd.f32 0.0, %v4061
        %4063 = vmatprep.mubr.bf16.mxu0 0
        %4064 = vmatmul.mubr.bf16.gmra.mrb[0].mxu0 %v4019
        %v4065 = vpop.f32.mrb[0].mxu0
        %v4066 = vadd.f32 0.0, %v4065
        %v4067 = vpop.f32.mrb[0].mxu0
        %v4068 = vadd.f32 0.0, %v4067
        %v4069 = vpop.f32.mrb[0].mxu0
        %v4070 = vadd.f32 0.0, %v4069
        %v4071 = vpop.f32.mrb[0].mxu0
        %v4072 = vadd.f32 0.0, %v4071
        %4073 = vdwg.mxu0
        %v4074 = vadd.f32 %v3970, %v4056
        %v4075 = vadd.f32 %v3971, %v4058
        %v4076 = vadd.f32 %v3972, %v4060
        %v4077 = vadd.f32 %v3973, %v4062
        %v4078 = vadd.f32 %v3974, %v4066
        %v4079 = vadd.f32 %v3975, %v4068
        %v4080 = vadd.f32 %v3976, %v4070
        %v4081 = vadd.f32 %v3977, %v4072
        %s4082 = scalar_lea.vmem %s8, 64
        %v4083 = vld [vmem:[%s4082] sm:$0xf]
        %v4084 = vld [vmem:[%s4082 + $0x4] sm:$0xf]
        %v4085 = vld [vmem:[%s4082 + $0x8] sm:$0xf]
        %v4086 = vld [vmem:[%s4082 + $0xc] sm:$0xf]
        %v4091 = vunpack.c.l.b16 %v4083
        %v4092 = vunpack.c.l.b16 %v4084
        %v4093 = vunpack.c.l.b16 %v4085
        %v4094 = vunpack.c.l.b16 %v4086
        %v4095 = vpack.c.b16 %v4092, %v4091
        %v4096 = vpack.c.b16 %v4094, %v4093
        %v4098 = vsel %vm1677, %v4095, 0
        %v4101 = vsel %vm1677, %v4096, 0
        %4103 = vmatprep.subr.bf16.mxu0 %v3680
        %4104 = vmatpush1.bf16.msra.mxu0 %v3679
        %4105 = vmatprep.subr.bf16.mxu0 %v3682
        %4106 = vmatpush1.bf16.msra.mxu0 %v3681
        %4107 = vmatprep.subr.bf16.mxu0 0
        %4108 = vmatpush1.bf16.msra.mxu0 0
        %4109 = vmatprep.subr.bf16.mxu0 0
        %4110 = vmatpush1.bf16.msra.mxu0 0
        %4111 = vmatprep.subr.bf16.mxu0 0
        %4112 = vmatpush1.bf16.msra.mxu0 0
        %4113 = vmatprep.subr.bf16.mxu0 0
        %4114 = vmatpush1.bf16.msra.mxu0 0
        %4115 = vmatprep.subr.bf16.mxu0 0
        %4116 = vmatpush1.bf16.msra.mxu0 0
        %4117 = vmatprep.subr.bf16.mxu0 0
        %4118 = vmatpush1.bf16.msra.mxu0 0
        %4119 = vmatprep.subr.bf16.mxu0 0
        %4120 = vmatpush1.bf16.msra.mxu0 0
        %4121 = vmatprep.subr.bf16.mxu0 0
        %4122 = vmatpush1.bf16.msra.mxu0 0
        %4123 = vmatprep.subr.bf16.mxu0 0
        %4124 = vmatpush1.bf16.msra.mxu0 0
        %4125 = vmatprep.subr.bf16.mxu0 0
        %4126 = vmatpush1.bf16.msra.mxu0 0
        %4127 = vmatprep.subr.bf16.mxu0 0
        %4128 = vmatpush1.bf16.msra.mxu0 0
        %4129 = vmatprep.subr.bf16.mxu0 0
        %4130 = vmatpush1.bf16.msra.mxu0 0
        %4131 = vmatprep.subr.bf16.mxu0 0
        %4132 = vmatpush1.bf16.msra.mxu0 0
        %4133 = vmatprep.subr.bf16.mxu0 0
        %4134 = vmatpush1.bf16.msra.mxu0 0
        %4135 = vmatprep.mubr.bf16.mxu0 0
        %4136 = vmatmul.mubr.bf16.gmra.mrb[0].mxu0 %v4098
        %v4137 = vpop.f32.mrb[0].mxu0
        %v4138 = vadd.f32 0.0, %v4137
        %v4139 = vpop.f32.mrb[0].mxu0
        %v4140 = vadd.f32 0.0, %v4139
        %v4141 = vpop.f32.mrb[0].mxu0
        %v4142 = vadd.f32 0.0, %v4141
        %v4143 = vpop.f32.mrb[0].mxu0
        %v4144 = vadd.f32 0.0, %v4143
        %4145 = vmatprep.mubr.bf16.mxu0 0
        %4146 = vmatmul.mubr.bf16.gmra.mrb[0].mxu0 %v4101
        %v4147 = vpop.f32.mrb[0].mxu0
        %v4148 = vadd.f32 0.0, %v4147
        %v4149 = vpop.f32.mrb[0].mxu0
        %v4150 = vadd.f32 0.0, %v4149
        %v4151 = vpop.f32.mrb[0].mxu0
        %v4152 = vadd.f32 0.0, %v4151
        %v4153 = vpop.f32.mrb[0].mxu0
        %v4154 = vadd.f32 0.0, %v4153
        %4155 = vdwg.mxu0
        %v4156 = vadd.f32 %v4074, %v4138
        %v4157 = vadd.f32 %v4075, %v4140
        %v4158 = vadd.f32 %v4076, %v4142
        %v4159 = vadd.f32 %v4077, %v4144
        %v4160 = vadd.f32 %v4078, %v4148
        %v4161 = vadd.f32 %v4079, %v4150
        %v4162 = vadd.f32 %v4080, %v4152
        %v4163 = vadd.f32 %v4081, %v4154
        %4164 = vrot.lane.b32.xlu0 %v3679, 127
        %v4165 = vpop.permute.xlu0 %4164
        %4166 = vrot.lane.b32.xlu0 %v3680, 127
        %v4167 = vpop.permute.xlu0 %4166
        %4168 = vrot.lane.b32.xlu0 %v3681, 127
        %v4169 = vpop.permute.xlu0 %4168
        %4170 = vrot.lane.b32.xlu0 %v3682, 127
        %v4171 = vpop.permute.xlu0 %4170
        %v4172 = vsel %vm1244, %v4165, %v4167
        %v4173 = vsel %vm1244, %v4169, %v4171
        %v4177 = vsel %vm1247, %v4167, 0
        %v4180 = vsel %vm1247, %v4171, 0
        %v4182 = vmul.bf16 %v4172, %v953
        %v4183 = vmul.bf16 %v4177, %v960
        %v4184 = vmul.bf16 %v4173, %v953
        %v4185 = vmul.bf16 %v4180, %v960
        %s4186 = scalar_lea.vmem %s8, 80
        %v4187 = vld [vmem:[%s4186] sm:$0xf]
        %v4188 = vld [vmem:[%s4186 + $0x4] sm:$0xf]
        %v4189 = vld [vmem:[%s4186 + $0x8] sm:$0xf]
        %v4190 = vld [vmem:[%s4186 + $0xc] sm:$0xf]
        %v4195 = vunpack.c.l.b16 %v4187
        %v4196 = vunpack.c.l.b16 %v4188
        %v4197 = vunpack.c.l.b16 %v4189
        %v4198 = vunpack.c.l.b16 %v4190
        %v4199 = vpack.c.b16 %v4196, %v4195
        %v4200 = vpack.c.b16 %v4198, %v4197
        %v4202 = vsel %vm1677, %v4199, 0
        %v4205 = vsel %vm1677, %v4200, 0
        %4207 = vmatprep.subr.bf16.mxu0 %v4183
        %4208 = vmatpush1.bf16.msra.mxu0 %v4182
        %4209 = vmatprep.subr.bf16.mxu0 %v4185
        %4210 = vmatpush1.bf16.msra.mxu0 %v4184
        %4211 = vmatprep.subr.bf16.mxu0 0
        %4212 = vmatpush1.bf16.msra.mxu0 0
        %4213 = vmatprep.subr.bf16.mxu0 0
        %4214 = vmatpush1.bf16.msra.mxu0 0
        %4215 = vmatprep.subr.bf16.mxu0 0
        %4216 = vmatpush1.bf16.msra.mxu0 0
        %4217 = vmatprep.subr.bf16.mxu0 0
        %4218 = vmatpush1.bf16.msra.mxu0 0
        %4219 = vmatprep.subr.bf16.mxu0 0
        %4220 = vmatpush1.bf16.msra.mxu0 0
        %4221 = vmatprep.subr.bf16.mxu0 0
        %4222 = vmatpush1.bf16.msra.mxu0 0
        %4223 = vmatprep.subr.bf16.mxu0 0
        %4224 = vmatpush1.bf16.msra.mxu0 0
        %4225 = vmatprep.subr.bf16.mxu0 0
        %4226 = vmatpush1.bf16.msra.mxu0 0
        %4227 = vmatprep.subr.bf16.mxu0 0
        %4228 = vmatpush1.bf16.msra.mxu0 0
        %4229 = vmatprep.subr.bf16.mxu0 0
        %4230 = vmatpush1.bf16.msra.mxu0 0
        %4231 = vmatprep.subr.bf16.mxu0 0
        %4232 = vmatpush1.bf16.msra.mxu0 0
        %4233 = vmatprep.subr.bf16.mxu0 0
        %4234 = vmatpush1.bf16.msra.mxu0 0
        %4235 = vmatprep.subr.bf16.mxu0 0
        %4236 = vmatpush1.bf16.msra.mxu0 0
        %4237 = vmatprep.subr.bf16.mxu0 0
        %4238 = vmatpush1.bf16.msra.mxu0 0
        %4239 = vmatprep.mubr.bf16.mxu0 0
        %4240 = vmatmul.mubr.bf16.gmra.mrb[0].mxu0 %v4202
        %v4241 = vpop.f32.mrb[0].mxu0
        %v4242 = vadd.f32 0.0, %v4241
        %v4243 = vpop.f32.mrb[0].mxu0
        %v4244 = vadd.f32 0.0, %v4243
        %v4245 = vpop.f32.mrb[0].mxu0
        %v4246 = vadd.f32 0.0, %v4245
        %v4247 = vpop.f32.mrb[0].mxu0
        %v4248 = vadd.f32 0.0, %v4247
        %4249 = vmatprep.mubr.bf16.mxu0 0
        %4250 = vmatmul.mubr.bf16.gmra.mrb[0].mxu0 %v4205
        %v4251 = vpop.f32.mrb[0].mxu0
        %v4252 = vadd.f32 0.0, %v4251
        %v4253 = vpop.f32.mrb[0].mxu0
        %v4254 = vadd.f32 0.0, %v4253
        %v4255 = vpop.f32.mrb[0].mxu0
        %v4256 = vadd.f32 0.0, %v4255
        %v4257 = vpop.f32.mrb[0].mxu0
        %v4258 = vadd.f32 0.0, %v4257
        %4259 = vdwg.mxu0
        %v4260 = vadd.f32 %v4156, %v4242
        %v4261 = vadd.f32 %v4157, %v4244
        %v4262 = vadd.f32 %v4158, %v4246
        %v4263 = vadd.f32 %v4159, %v4248
        %v4264 = vadd.f32 %v4160, %v4252
        %v4265 = vadd.f32 %v4161, %v4254
        %v4266 = vadd.f32 %v4162, %v4256
        %v4267 = vadd.f32 %v4163, %v4258
        %4268 = vrot.lane.b32.xlu0 %v3679, 113
        %v4269 = vpop.permute.xlu0 %4268
        %4270 = vrot.lane.b32.xlu0 %v3680, 113
        %v4271 = vpop.permute.xlu0 %4270
        %4272 = vrot.lane.b32.xlu0 %v3681, 113
        %v4273 = vpop.permute.xlu0 %4272
        %4274 = vrot.lane.b32.xlu0 %v3682, 113
        %v4275 = vpop.permute.xlu0 %4274
        %v4276 = vsel %vm1345, %v4269, %v4271
        %v4277 = vsel %vm1345, %v4273, %v4275
        %v4281 = vsel %vm1348, %v4271, 0
        %v4284 = vsel %vm1348, %v4275, 0
        %v4286 = vmul.bf16 %v4276, %v757
        %v4287 = vmul.bf16 %v4281, %v764
        %v4288 = vmul.bf16 %v4277, %v757
        %v4289 = vmul.bf16 %v4284, %v764
        %s4290 = scalar_lea.vmem %s8, 96
        %v4291 = vld [vmem:[%s4290] sm:$0xf]
        %v4292 = vld [vmem:[%s4290 + $0x4] sm:$0xf]
        %v4293 = vld [vmem:[%s4290 + $0x8] sm:$0xf]
        %v4294 = vld [vmem:[%s4290 + $0xc] sm:$0xf]
        %v4299 = vunpack.c.l.b16 %v4291
        %v4300 = vunpack.c.l.b16 %v4292
        %v4301 = vunpack.c.l.b16 %v4293
        %v4302 = vunpack.c.l.b16 %v4294
        %v4303 = vpack.c.b16 %v4300, %v4299
        %v4304 = vpack.c.b16 %v4302, %v4301
        %v4306 = vsel %vm1677, %v4303, 0
        %v4309 = vsel %vm1677, %v4304, 0
        %4311 = vmatprep.subr.bf16.mxu0 %v4287
        %4312 = vmatpush1.bf16.msra.mxu0 %v4286
        %4313 = vmatprep.subr.bf16.mxu0 %v4289
        %4314 = vmatpush1.bf16.msra.mxu0 %v4288
        %4315 = vmatprep.subr.bf16.mxu0 0
        %4316 = vmatpush1.bf16.msra.mxu0 0
        %4317 = vmatprep.subr.bf16.mxu0 0
        %4318 = vmatpush1.bf16.msra.mxu0 0
        %4319 = vmatprep.subr.bf16.mxu0 0
        %4320 = vmatpush1.bf16.msra.mxu0 0
        %4321 = vmatprep.subr.bf16.mxu0 0
        %4322 = vmatpush1.bf16.msra.mxu0 0
        %4323 = vmatprep.subr.bf16.mxu0 0
        %4324 = vmatpush1.bf16.msra.mxu0 0
        %4325 = vmatprep.subr.bf16.mxu0 0
        %4326 = vmatpush1.bf16.msra.mxu0 0
        %4327 = vmatprep.subr.bf16.mxu0 0
        %4328 = vmatpush1.bf16.msra.mxu0 0
        %4329 = vmatprep.subr.bf16.mxu0 0
        %4330 = vmatpush1.bf16.msra.mxu0 0
        %4331 = vmatprep.subr.bf16.mxu0 0
        %4332 = vmatpush1.bf16.msra.mxu0 0
        %4333 = vmatprep.subr.bf16.mxu0 0
        %4334 = vmatpush1.bf16.msra.mxu0 0
        %4335 = vmatprep.subr.bf16.mxu0 0
        %4336 = vmatpush1.bf16.msra.mxu0 0
        %4337 = vmatprep.subr.bf16.mxu0 0
        %4338 = vmatpush1.bf16.msra.mxu0 0
        %4339 = vmatprep.subr.bf16.mxu0 0
        %4340 = vmatpush1.bf16.msra.mxu0 0
        %4341 = vmatprep.subr.bf16.mxu0 0
        %4342 = vmatpush1.bf16.msra.mxu0 0
        %4343 = vmatprep.mubr.bf16.mxu0 0
        %4344 = vmatmul.mubr.bf16.gmra.mrb[0].mxu0 %v4306
        %v4345 = vpop.f32.mrb[0].mxu0
        %v4346 = vadd.f32 0.0, %v4345
        %v4347 = vpop.f32.mrb[0].mxu0
        %v4348 = vadd.f32 0.0, %v4347
        %v4349 = vpop.f32.mrb[0].mxu0
        %v4350 = vadd.f32 0.0, %v4349
        %v4351 = vpop.f32.mrb[0].mxu0
        %v4352 = vadd.f32 0.0, %v4351
        %4353 = vmatprep.mubr.bf16.mxu0 0
        %4354 = vmatmul.mubr.bf16.gmra.mrb[0].mxu0 %v4309
        %v4355 = vpop.f32.mrb[0].mxu0
        %v4356 = vadd.f32 0.0, %v4355
        %v4357 = vpop.f32.mrb[0].mxu0
        %v4358 = vadd.f32 0.0, %v4357
        %v4359 = vpop.f32.mrb[0].mxu0
        %v4360 = vadd.f32 0.0, %v4359
        %v4361 = vpop.f32.mrb[0].mxu0
        %v4362 = vadd.f32 0.0, %v4361
        %4363 = vdwg.mxu0
        %v4364 = vadd.f32 %v4260, %v4346
        %v4365 = vadd.f32 %v4261, %v4348
        %v4366 = vadd.f32 %v4262, %v4350
        %v4367 = vadd.f32 %v4263, %v4352
        %v4368 = vadd.f32 %v4264, %v4356
        %v4369 = vadd.f32 %v4265, %v4358
        %v4370 = vadd.f32 %v4266, %v4360
        %v4371 = vadd.f32 %v4267, %v4362
        %4372 = vrot.lane.b32.xlu0 %v3679, 112
        %v4373 = vpop.permute.xlu0 %4372
        %4374 = vrot.lane.b32.xlu0 %v3680, 112
        %v4375 = vpop.permute.xlu0 %4374
        %4376 = vrot.lane.b32.xlu0 %v3681, 112
        %v4377 = vpop.permute.xlu0 %4376
        %4378 = vrot.lane.b32.xlu0 %v3682, 112
        %v4379 = vpop.permute.xlu0 %4378
        %v4380 = vsel %vm1446, %v4373, %v4375
        %v4381 = vsel %vm1446, %v4377, %v4379
        %v4385 = vsel %vm1448, %v4375, 0
        %v4388 = vsel %vm1448, %v4379, 0
        %s4390 = scalar_lea.vmem %s8, 112
        %v4391 = vld [vmem:[%s4390] sm:$0xf]
        %v4392 = vld [vmem:[%s4390 + $0x4] sm:$0xf]
        %v4393 = vld [vmem:[%s4390 + $0x8] sm:$0xf]
        %v4394 = vld [vmem:[%s4390 + $0xc] sm:$0xf]
        %v4399 = vunpack.c.l.b16 %v4391
        %v4400 = vunpack.c.l.b16 %v4392
        %v4401 = vunpack.c.l.b16 %v4393
        %v4402 = vunpack.c.l.b16 %v4394
        %v4403 = vpack.c.b16 %v4400, %v4399
        %v4404 = vpack.c.b16 %v4402, %v4401
        %v4406 = vsel %vm1677, %v4403, 0
        %v4409 = vsel %vm1677, %v4404, 0
        %4411 = vmatprep.subr.bf16.mxu0 %v4385
        %4412 = vmatpush1.bf16.msra.mxu0 %v4380
        %4413 = vmatprep.subr.bf16.mxu0 %v4388
        %4414 = vmatpush1.bf16.msra.mxu0 %v4381
        %4415 = vmatprep.subr.bf16.mxu0 0
        %4416 = vmatpush1.bf16.msra.mxu0 0
        %4417 = vmatprep.subr.bf16.mxu0 0
        %4418 = vmatpush1.bf16.msra.mxu0 0
        %4419 = vmatprep.subr.bf16.mxu0 0
        %4420 = vmatpush1.bf16.msra.mxu0 0
        %4421 = vmatprep.subr.bf16.mxu0 0
        %4422 = vmatpush1.bf16.msra.mxu0 0
        %4423 = vmatprep.subr.bf16.mxu0 0
        %4424 = vmatpush1.bf16.msra.mxu0 0
        %4425 = vmatprep.subr.bf16.mxu0 0
        %4426 = vmatpush1.bf16.msra.mxu0 0
        %4427 = vmatprep.subr.bf16.mxu0 0
        %4428 = vmatpush1.bf16.msra.mxu0 0
        %4429 = vmatprep.subr.bf16.mxu0 0
        %4430 = vmatpush1.bf16.msra.mxu0 0
        %4431 = vmatprep.subr.bf16.mxu0 0
        %4432 = vmatpush1.bf16.msra.mxu0 0
        %4433 = vmatprep.subr.bf16.mxu0 0
        %4434 = vmatpush1.bf16.msra.mxu0 0
        %4435 = vmatprep.subr.bf16.mxu0 0
        %4436 = vmatpush1.bf16.msra.mxu0 0
        %4437 = vmatprep.subr.bf16.mxu0 0
        %4438 = vmatpush1.bf16.msra.mxu0 0
        %4439 = vmatprep.subr.bf16.mxu0 0
        %4440 = vmatpush1.bf16.msra.mxu0 0
        %4441 = vmatprep.subr.bf16.mxu0 0
        %4442 = vmatpush1.bf16.msra.mxu0 0
        %4443 = vmatprep.mubr.bf16.mxu0 0
        %4444 = vmatmul.mubr.bf16.gmra.mrb[0].mxu0 %v4406
        %v4445 = vpop.f32.mrb[0].mxu0
        %v4446 = vadd.f32 0.0, %v4445
        %v4447 = vpop.f32.mrb[0].mxu0
        %v4448 = vadd.f32 0.0, %v4447
        %v4449 = vpop.f32.mrb[0].mxu0
        %v4450 = vadd.f32 0.0, %v4449
        %v4451 = vpop.f32.mrb[0].mxu0
        %v4452 = vadd.f32 0.0, %v4451
        %4453 = vmatprep.mubr.bf16.mxu0 0
        %4454 = vmatmul.mubr.bf16.gmra.mrb[0].mxu0 %v4409
        %v4455 = vpop.f32.mrb[0].mxu0
        %v4456 = vadd.f32 0.0, %v4455
        %v4457 = vpop.f32.mrb[0].mxu0
        %v4458 = vadd.f32 0.0, %v4457
        %v4459 = vpop.f32.mrb[0].mxu0
        %v4460 = vadd.f32 0.0, %v4459
        %v4461 = vpop.f32.mrb[0].mxu0
        %v4462 = vadd.f32 0.0, %v4461
        %4463 = vdwg.mxu0
        %v4464 = vadd.f32 %v4364, %v4446
        %v4465 = vadd.f32 %v4365, %v4448
        %v4466 = vadd.f32 %v4366, %v4450
        %v4467 = vadd.f32 %v4367, %v4452
        %v4468 = vadd.f32 %v4368, %v4456
        %v4469 = vadd.f32 %v4369, %v4458
        %v4470 = vadd.f32 %v4370, %v4460
        %v4471 = vadd.f32 %v4371, %v4462
        %4472 = vrot.lane.b32.xlu0 %v3679, 111
        %v4473 = vpop.permute.xlu0 %4472
        %4474 = vrot.lane.b32.xlu0 %v3680, 111
        %v4475 = vpop.permute.xlu0 %4474
        %4476 = vrot.lane.b32.xlu0 %v3681, 111
        %v4477 = vpop.permute.xlu0 %4476
        %4478 = vrot.lane.b32.xlu0 %v3682, 111
        %v4479 = vpop.permute.xlu0 %4478
        %v4480 = vsel %vm1542, %v4473, %v4475
        %v4481 = vsel %vm1542, %v4477, %v4479
        %v4485 = vsel %vm1545, %v4475, 0
        %v4488 = vsel %vm1545, %v4479, 0
        %v4490 = vmul.bf16 %v4480, %v953
        %v4491 = vmul.bf16 %v4485, %v960
        %v4492 = vmul.bf16 %v4481, %v953
        %v4493 = vmul.bf16 %v4488, %v960
        %s4494 = scalar_lea.vmem %s8, 128
        %v4495 = vld [vmem:[%s4494] sm:$0xf]
        %v4496 = vld [vmem:[%s4494 + $0x4] sm:$0xf]
        %v4497 = vld [vmem:[%s4494 + $0x8] sm:$0xf]
        %v4498 = vld [vmem:[%s4494 + $0xc] sm:$0xf]
        %v4503 = vunpack.c.l.b16 %v4495
        %v4504 = vunpack.c.l.b16 %v4496
        %v4505 = vunpack.c.l.b16 %v4497
        %v4506 = vunpack.c.l.b16 %v4498
        %v4507 = vpack.c.b16 %v4504, %v4503
        %v4508 = vpack.c.b16 %v4506, %v4505
        %v4510 = vsel %vm1677, %v4507, 0
        %v4513 = vsel %vm1677, %v4508, 0
        %4515 = vmatprep.subr.bf16.mxu0 %v4491
        %4516 = vmatpush1.bf16.msra.mxu0 %v4490
        %4517 = vmatprep.subr.bf16.mxu0 %v4493
        %4518 = vmatpush1.bf16.msra.mxu0 %v4492
        %4519 = vmatprep.subr.bf16.mxu0 0
        %4520 = vmatpush1.bf16.msra.mxu0 0
        %4521 = vmatprep.subr.bf16.mxu0 0
        %4522 = vmatpush1.bf16.msra.mxu0 0
        %4523 = vmatprep.subr.bf16.mxu0 0
        %4524 = vmatpush1.bf16.msra.mxu0 0
        %4525 = vmatprep.subr.bf16.mxu0 0
        %4526 = vmatpush1.bf16.msra.mxu0 0
        %4527 = vmatprep.subr.bf16.mxu0 0
        %4528 = vmatpush1.bf16.msra.mxu0 0
        %4529 = vmatprep.subr.bf16.mxu0 0
        %4530 = vmatpush1.bf16.msra.mxu0 0
        %4531 = vmatprep.subr.bf16.mxu0 0
        %4532 = vmatpush1.bf16.msra.mxu0 0
        %4533 = vmatprep.subr.bf16.mxu0 0
        %4534 = vmatpush1.bf16.msra.mxu0 0
        %4535 = vmatprep.subr.bf16.mxu0 0
        %4536 = vmatpush1.bf16.msra.mxu0 0
        %4537 = vmatprep.subr.bf16.mxu0 0
        %4538 = vmatpush1.bf16.msra.mxu0 0
        %4539 = vmatprep.subr.bf16.mxu0 0
        %4540 = vmatpush1.bf16.msra.mxu0 0
        %4541 = vmatprep.subr.bf16.mxu0 0
        %4542 = vmatpush1.bf16.msra.mxu0 0
        %4543 = vmatprep.subr.bf16.mxu0 0
        %4544 = vmatpush1.bf16.msra.mxu0 0
        %4545 = vmatprep.subr.bf16.mxu0 0
        %4546 = vmatpush1.bf16.msra.mxu0 0
        %4547 = vmatprep.mubr.bf16.mxu0 0
        %4548 = vmatmul.mubr.bf16.gmra.mrb[0].mxu0 %v4510
        %v4549 = vpop.f32.mrb[0].mxu0
        %v4550 = vadd.f32 0.0, %v4549
        %v4551 = vpop.f32.mrb[0].mxu0
        %v4552 = vadd.f32 0.0, %v4551
        %v4553 = vpop.f32.mrb[0].mxu0
        %v4554 = vadd.f32 0.0, %v4553
        %v4555 = vpop.f32.mrb[0].mxu0
        %v4556 = vadd.f32 0.0, %v4555
        %4557 = vmatprep.mubr.bf16.mxu0 0
        %4558 = vmatmul.mubr.bf16.gmra.mrb[0].mxu0 %v4513
        %v4559 = vpop.f32.mrb[0].mxu0
        %v4560 = vadd.f32 0.0, %v4559
        %v4561 = vpop.f32.mrb[0].mxu0
        %v4562 = vadd.f32 0.0, %v4561
        %v4563 = vpop.f32.mrb[0].mxu0
        %v4564 = vadd.f32 0.0, %v4563
        %v4565 = vpop.f32.mrb[0].mxu0
        %v4566 = vadd.f32 0.0, %v4565
        %4567 = vdwg.mxu0
        %v4568 = vadd.f32 %v4464, %v4550
        %v4569 = vadd.f32 %v4465, %v4552
        %v4570 = vadd.f32 %v4466, %v4554
        %v4571 = vadd.f32 %v4467, %v4556
        %v4572 = vadd.f32 %v4468, %v4560
        %v4573 = vadd.f32 %v4469, %v4562
        %v4574 = vadd.f32 %v4470, %v4564
        %v4575 = vadd.f32 %v4471, %v4566
        %v4576 = vld [vmem:[%s9] sm:$0xff]
        %v4577 = vld [vmem:[%s9 + $0x8] sm:$0xff]
        %v4578 = vld [vmem:[%s9 + $0x10] sm:$0xff]
        %v4579 = vld [vmem:[%s9 + $0x18] sm:$0xff]
        %4581 = vset.pattern.permute.xlu0 0
        %4582 = vperm.xlu0 %4581, %v4576
        %v4583 = vpop.permute.xlu0 %4582
        %4586 = vset.pattern.permute.xlu0 0
        %4587 = vperm.xlu0 %4586, %v4577
        %v4588 = vpop.permute.xlu0 %4587
        %4591 = vset.pattern.permute.xlu0 0
        %4592 = vperm.xlu0 %4591, %v4578
        %v4593 = vpop.permute.xlu0 %4592
        %4596 = vset.pattern.permute.xlu0 0
        %4597 = vperm.xlu0 %4596, %v4579
        %v4598 = vpop.permute.xlu0 %4597
        %v4600 = vadd.f32 %v4568, %v4583
        %v4601 = vadd.f32 %v4569, %v4583
        %v4602 = vadd.f32 %v4570, %v4588
        %v4603 = vadd.f32 %v4571, %v4588
        %v4604 = vadd.f32 %v4572, %v4593
        %v4605 = vadd.f32 %v4573, %v4593
        %v4606 = vadd.f32 %v4574, %v4598
        %v4607 = vadd.f32 %v4575, %v4598
        %v4608 = vsub.f32 0.0, %v4600
        %v4609 = vsub.f32 0.0, %v4601
        %v4610 = vsub.f32 0.0, %v4602
        %v4611 = vsub.f32 0.0, %v4603
        %v4612 = vsub.f32 0.0, %v4604
        %v4613 = vsub.f32 0.0, %v4605
        %v4614 = vsub.f32 0.0, %v4606
        %v4615 = vsub.f32 0.0, %v4607
        %v4616 = vmul.f32 %v4608, 1.442695
        %v4617 = vpow.pop %v4616
        %v4618 = vmul.f32 %v4609, 1.442695
        %v4619 = vpow.pop %v4618
        %v4620 = vmul.f32 %v4610, 1.442695
        %v4621 = vpow.pop %v4620
        %v4622 = vmul.f32 %v4611, 1.442695
        %v4623 = vpow.pop %v4622
        %v4624 = vmul.f32 %v4612, 1.442695
        %v4625 = vpow.pop %v4624
        %v4626 = vmul.f32 %v4613, 1.442695
        %v4627 = vpow.pop %v4626
        %v4628 = vmul.f32 %v4614, 1.442695
        %v4629 = vpow.pop %v4628
        %v4630 = vmul.f32 %v4615, 1.442695
        %v4631 = vpow.pop %v4630
        %v4632 = vadd.f32 %v4617, 1.0
        %v4633 = vadd.f32 %v4619, 1.0
        %v4634 = vadd.f32 %v4621, 1.0
        %v4635 = vadd.f32 %v4623, 1.0
        %v4636 = vadd.f32 %v4625, 1.0
        %v4637 = vadd.f32 %v4627, 1.0
        %v4638 = vadd.f32 %v4629, 1.0
        %v4639 = vadd.f32 %v4631, 1.0
        %v4640 = vrcp.pop %v4632
        %v4641 = vrcp.pop %v4633
        %v4642 = vrcp.pop %v4634
        %v4643 = vrcp.pop %v4635
        %v4644 = vrcp.pop %v4636
        %v4645 = vrcp.pop %v4637
        %v4646 = vrcp.pop %v4638
        %v4647 = vrcp.pop %v4639
        %v4648 = vsub.f32 %v4640, 0.5
        %v4649 = vsub.f32 %v4641, 0.5
        %v4650 = vsub.f32 %v4642, 0.5
        %v4651 = vsub.f32 %v4643, 0.5
        %v4652 = vsub.f32 %v4644, 0.5
        %v4653 = vsub.f32 %v4645, 0.5
        %v4654 = vsub.f32 %v4646, 0.5
        %v4655 = vsub.f32 %v4647, 0.5
        %v4656 = vadd.f32 %v4600, %v1663
        %v4657 = vadd.f32 %v4601, %v1664
        %v4658 = vadd.f32 %v4602, %v1665
        %v4659 = vadd.f32 %v4603, %v1666
        %v4660 = vadd.f32 %v4604, %v1667
        %v4661 = vadd.f32 %v4605, %v1668
        %v4662 = vadd.f32 %v4606, %v1669
        %v4663 = vadd.f32 %v4607, %v1670
        %v4664 = vmul.f32 %v4656, %v4648
        %v4665 = vmul.f32 %v4657, %v4649
        %v4666 = vmul.f32 %v4658, %v4650
        %v4667 = vmul.f32 %v4659, %v4651
        %v4668 = vmul.f32 %v4660, %v4652
        %v4669 = vmul.f32 %v4661, %v4653
        %v4670 = vmul.f32 %v4662, %v4654
        %v4671 = vmul.f32 %v4663, %v4655
        %s4672 = scalar_lea.vmem %s18, 4
        %v4673 = vld [vmem:[%s4672] sm:$0x3]
        %v4674 = vpack.c.bf16 %v4666, %v4664
        %v4675 = vpack.c.bf16 %v4667, %v4665
        %v4676 = vpack.c.bf16 %v4670, %v4668
        %v4677 = vpack.c.bf16 %v4671, %v4669
        %v4679 = vsel %vm1677, %v4673, 0
        %4681 = vmatprep.subr.bf16.mxu0 %v4675
        %4682 = vmatpush1.bf16.msra.mxu0 %v4674
        %4683 = vmatprep.subr.bf16.mxu0 %v4677
        %4684 = vmatpush1.bf16.msra.mxu0 %v4676
        %4685 = vmatprep.subr.bf16.mxu0 0
        %4686 = vmatpush1.bf16.msra.mxu0 0
        %4687 = vmatprep.subr.bf16.mxu0 0
        %4688 = vmatpush1.bf16.msra.mxu0 0
        %4689 = vmatprep.subr.bf16.mxu0 0
        %4690 = vmatpush1.bf16.msra.mxu0 0
        %4691 = vmatprep.subr.bf16.mxu0 0
        %4692 = vmatpush1.bf16.msra.mxu0 0
        %4693 = vmatprep.subr.bf16.mxu0 0
        %4694 = vmatpush1.bf16.msra.mxu0 0
        %4695 = vmatprep.subr.bf16.mxu0 0
        %4696 = vmatpush1.bf16.msra.mxu0 0
        %4697 = vmatprep.subr.bf16.mxu0 0
        %4698 = vmatpush1.bf16.msra.mxu0 0
        %4699 = vmatprep.subr.bf16.mxu0 0
        %4700 = vmatpush1.bf16.msra.mxu0 0
        %4701 = vmatprep.subr.bf16.mxu0 0
        %4702 = vmatpush1.bf16.msra.mxu0 0
        %4703 = vmatprep.subr.bf16.mxu0 0
        %4704 = vmatpush1.bf16.msra.mxu0 0
        %4705 = vmatprep.subr.bf16.mxu0 0
        %4706 = vmatpush1.bf16.msra.mxu0 0
        %4707 = vmatprep.subr.bf16.mxu0 0
        %4708 = vmatpush1.bf16.msra.mxu0 0
        %4709 = vmatprep.subr.bf16.mxu0 0
        %4710 = vmatpush1.bf16.msra.mxu0 0
        %4711 = vmatprep.subr.bf16.mxu0 0
        %4712 = vmatpush1.bf16.msra.mxu0 0
        %4713 = vmatprep.mubr.bf16.mxu0 0
        %4714 = vmatmul.mubr.bf16.gmra.mrb[0].mxu0 %v4679
        %v4715 = vpop.f32.mrb[0].mxu0
        %v4716 = vadd.f32 0.0, %v4715
        %v4717 = vpop.f32.mrb[0].mxu0
        %v4718 = vadd.f32 0.0, %v4717
        %v4719 = vpop.f32.mrb[0].mxu0
        %v4720 = vpop.f32.mrb[0].mxu0
        %4721 = vdwg.mxu0
        %v4722 = vadd.f32 %v1727, %v4716
        %v4723 = vadd.f32 %v1728, %v4718
        %4728 = vrot.lane.b32.xlu0 %v4674, 17
        %v4729 = vpop.permute.xlu0 %4728
        %4730 = vrot.lane.b32.xlu0 %v4675, 17
        %v4731 = vpop.permute.xlu0 %4730
        %4732 = vrot.lane.b32.xlu0 %v4676, 17
        %v4733 = vpop.permute.xlu0 %4732
        %4734 = vrot.lane.b32.xlu0 %v4677, 17
        %v4735 = vpop.permute.xlu0 %4734
        %v4736 = vsel %vm720, %v4729, %v4731
        %v4737 = vsel %vm720, %v4733, %v4735
        %v4741 = vsel %vm723, 0, %v4729
        %v4744 = vsel %vm723, 0, %v4733
        %v4746 = vmul.bf16 %v4741, %v757
        %v4747 = vmul.bf16 %v4736, %v764
        %v4748 = vmul.bf16 %v4744, %v757
        %v4749 = vmul.bf16 %v4737, %v764
        %v4750 = vld [vmem:[#allocation5] sm:$0xf]
        %v4751 = vld [vmem:[#allocation5 + $0x4] sm:$0xf]
        %v4752 = vld [vmem:[#allocation5 + $0x8] sm:$0xf]
        %v4753 = vld [vmem:[#allocation5 + $0xc] sm:$0xf]
        %4754 = vrot.lane.b32.xlu0 %v4674, 16
        %v4755 = vpop.permute.xlu0 %4754
        %4756 = vrot.lane.b32.xlu0 %v4675, 16
        %v4757 = vpop.permute.xlu0 %4756
        %4758 = vrot.lane.b32.xlu0 %v4676, 16
        %v4759 = vpop.permute.xlu0 %4758
        %4760 = vrot.lane.b32.xlu0 %v4677, 16
        %v4761 = vpop.permute.xlu0 %4760
        %v4762 = vsel %vm775, %v4755, %v4757
        %v4763 = vsel %vm775, %v4759, %v4761
        %v4767 = vsel %vm777, 0, %v4755
        %v4770 = vsel %vm777, 0, %v4759
        %s4772 = scalar_lea.vmem [#allocation5], 16
        %v4773 = vld [vmem:[%s4772] sm:$0xf]
        %v4774 = vld [vmem:[%s4772 + $0x4] sm:$0xf]
        %v4775 = vld [vmem:[%s4772 + $0x8] sm:$0xf]
        %v4776 = vld [vmem:[%s4772 + $0xc] sm:$0xf]
        %v4781 = vunpack.c.l.b16 %v4773
        %v4782 = vunpack.c.l.b16 %v4774
        %v4783 = vunpack.c.l.b16 %v4775
        %v4784 = vunpack.c.l.b16 %v4776
        %v4785 = vpack.c.b16 %v4782, %v4781
        %v4786 = vpack.c.b16 %v4784, %v4783
        %v4788 = vsel %vm1677, %v4785, 0
        %v4791 = vsel %vm1677, %v4786, 0
        %4793 = vmatprep.subr.bf16.mxu0 %v4762
        %4794 = vmatpush1.bf16.msra.mxu0 %v4767
        %4795 = vmatprep.subr.bf16.mxu0 %v4763
        %4796 = vmatpush1.bf16.msra.mxu0 %v4770
        %4797 = vmatprep.subr.bf16.mxu0 0
        %4798 = vmatpush1.bf16.msra.mxu0 0
        %4799 = vmatprep.subr.bf16.mxu0 0
        %4800 = vmatpush1.bf16.msra.mxu0 0
        %4801 = vmatprep.subr.bf16.mxu0 0
        %4802 = vmatpush1.bf16.msra.mxu0 0
        %4803 = vmatprep.subr.bf16.mxu0 0
        %4804 = vmatpush1.bf16.msra.mxu0 0
        %4805 = vmatprep.subr.bf16.mxu0 0
        %4806 = vmatpush1.bf16.msra.mxu0 0
        %4807 = vmatprep.subr.bf16.mxu0 0
        %4808 = vmatpush1.bf16.msra.mxu0 0
        %4809 = vmatprep.subr.bf16.mxu0 0
        %4810 = vmatpush1.bf16.msra.mxu0 0
        %4811 = vmatprep.subr.bf16.mxu0 0
        %4812 = vmatpush1.bf16.msra.mxu0 0
        %4813 = vmatprep.subr.bf16.mxu0 0
        %4814 = vmatpush1.bf16.msra.mxu0 0
        %4815 = vmatprep.subr.bf16.mxu0 0
        %4816 = vmatpush1.bf16.msra.mxu0 0
        %4817 = vmatprep.subr.bf16.mxu0 0
        %4818 = vmatpush1.bf16.msra.mxu0 0
        %4819 = vmatprep.subr.bf16.mxu0 0
        %4820 = vmatpush1.bf16.msra.mxu0 0
        %4821 = vmatprep.subr.bf16.mxu0 0
        %4822 = vmatpush1.bf16.msra.mxu0 0
        %4823 = vmatprep.subr.bf16.mxu0 0
        %4824 = vmatpush1.bf16.msra.mxu0 0
        %4825 = vmatprep.mubr.bf16.mxu0 0
        %4826 = vmatmul.mubr.bf16.gmra.mrb[0].mxu0 %v4788
        %v4827 = vpop.f32.mrb[0].mxu0
        %v4828 = vadd.f32 0.0, %v4827
        %v4829 = vpop.f32.mrb[0].mxu0
        %v4830 = vadd.f32 0.0, %v4829
        %v4831 = vpop.f32.mrb[0].mxu0
        %v4832 = vadd.f32 0.0, %v4831
        %v4833 = vpop.f32.mrb[0].mxu0
        %v4834 = vadd.f32 0.0, %v4833
        %4835 = vmatprep.mubr.bf16.mxu0 0
        %4836 = vmatmul.mubr.bf16.gmra.mrb[0].mxu0 %v4791
        %v4837 = vpop.f32.mrb[0].mxu0
        %v4838 = vadd.f32 0.0, %v4837
        %v4839 = vpop.f32.mrb[0].mxu0
        %v4840 = vadd.f32 0.0, %v4839
        %v4841 = vpop.f32.mrb[0].mxu0
        %v4842 = vadd.f32 0.0, %v4841
        %v4843 = vpop.f32.mrb[0].mxu0
        %v4844 = vadd.f32 0.0, %v4843
        %4845 = vdwg.mxu0
        %v4850 = vunpack.c.l.b16 %v4750
        %v4851 = vunpack.c.l.b16 %v4751
        %v4852 = vunpack.c.l.b16 %v4752
        %v4853 = vunpack.c.l.b16 %v4753
        %v4854 = vpack.c.b16 %v4851, %v4850
        %v4855 = vpack.c.b16 %v4853, %v4852
        %v4857 = vsel %vm1677, %v4854, 0
        %v4860 = vsel %vm1677, %v4855, 0
        %4862 = vmatprep.subr.bf16.mxu0 %v4747
        %4863 = vmatpush1.bf16.msra.mxu0 %v4746
        %4864 = vmatprep.subr.bf16.mxu0 %v4749
        %4865 = vmatpush1.bf16.msra.mxu0 %v4748
        %4866 = vmatprep.subr.bf16.mxu0 0
        %4867 = vmatpush1.bf16.msra.mxu0 0
        %4868 = vmatprep.subr.bf16.mxu0 0
        %4869 = vmatpush1.bf16.msra.mxu0 0
        %4870 = vmatprep.subr.bf16.mxu0 0
        %4871 = vmatpush1.bf16.msra.mxu0 0
        %4872 = vmatprep.subr.bf16.mxu0 0
        %4873 = vmatpush1.bf16.msra.mxu0 0
        %4874 = vmatprep.subr.bf16.mxu0 0
        %4875 = vmatpush1.bf16.msra.mxu0 0
        %4876 = vmatprep.subr.bf16.mxu0 0
        %4877 = vmatpush1.bf16.msra.mxu0 0
        %4878 = vmatprep.subr.bf16.mxu0 0
        %4879 = vmatpush1.bf16.msra.mxu0 0
        %4880 = vmatprep.subr.bf16.mxu0 0
        %4881 = vmatpush1.bf16.msra.mxu0 0
        %4882 = vmatprep.subr.bf16.mxu0 0
        %4883 = vmatpush1.bf16.msra.mxu0 0
        %4884 = vmatprep.subr.bf16.mxu0 0
        %4885 = vmatpush1.bf16.msra.mxu0 0
        %4886 = vmatprep.subr.bf16.mxu0 0
        %4887 = vmatpush1.bf16.msra.mxu0 0
        %4888 = vmatprep.subr.bf16.mxu0 0
        %4889 = vmatpush1.bf16.msra.mxu0 0
        %4890 = vmatprep.subr.bf16.mxu0 0
        %4891 = vmatpush1.bf16.msra.mxu0 0
        %4892 = vmatprep.subr.bf16.mxu0 0
        %4893 = vmatpush1.bf16.msra.mxu0 0
        %4894 = vmatprep.mubr.bf16.mxu0 0
        %4895 = vmatmul.mubr.bf16.gmra.mrb[0].mxu0 %v4857
        %v4896 = vpop.f32.mrb[0].mxu0
        %v4897 = vadd.f32 %v4828, %v4896
        %v4898 = vpop.f32.mrb[0].mxu0
        %v4899 = vadd.f32 %v4830, %v4898
        %v4900 = vpop.f32.mrb[0].mxu0
        %v4901 = vadd.f32 %v4832, %v4900
        %v4902 = vpop.f32.mrb[0].mxu0
        %v4903 = vadd.f32 %v4834, %v4902
        %4904 = vmatprep.mubr.bf16.mxu0 0
        %4905 = vmatmul.mubr.bf16.gmra.mrb[0].mxu0 %v4860
        %v4906 = vpop.f32.mrb[0].mxu0
        %v4907 = vadd.f32 %v4838, %v4906
        %v4908 = vpop.f32.mrb[0].mxu0
        %v4909 = vadd.f32 %v4840, %v4908
        %v4910 = vpop.f32.mrb[0].mxu0
        %v4911 = vadd.f32 %v4842, %v4910
        %v4912 = vpop.f32.mrb[0].mxu0
        %v4913 = vadd.f32 %v4844, %v4912
        %4914 = vdwg.mxu0
        %4915 = vrot.lane.b32.xlu0 %v4674, 15
        %v4916 = vpop.permute.xlu0 %4915
        %4917 = vrot.lane.b32.xlu0 %v4675, 15
        %v4918 = vpop.permute.xlu0 %4917
        %4919 = vrot.lane.b32.xlu0 %v4676, 15
        %v4920 = vpop.permute.xlu0 %4919
        %4921 = vrot.lane.b32.xlu0 %v4677, 15
        %v4922 = vpop.permute.xlu0 %4921
        %v4923 = vsel %vm940, %v4916, %v4918
        %v4924 = vsel %vm940, %v4920, %v4922
        %v4928 = vsel %vm943, 0, %v4916
        %v4931 = vsel %vm943, 0, %v4920
        %v4933 = vmul.bf16 %v4928, %v953
        %v4934 = vmul.bf16 %v4923, %v960
        %v4935 = vmul.bf16 %v4931, %v953
        %v4936 = vmul.bf16 %v4924, %v960
        %s4937 = scalar_lea.vmem [#allocation5], 32
        %v4938 = vld [vmem:[%s4937] sm:$0xf]
        %v4939 = vld [vmem:[%s4937 + $0x4] sm:$0xf]
        %v4940 = vld [vmem:[%s4937 + $0x8] sm:$0xf]
        %v4941 = vld [vmem:[%s4937 + $0xc] sm:$0xf]
        %v4946 = vunpack.c.l.b16 %v4938
        %v4947 = vunpack.c.l.b16 %v4939
        %v4948 = vunpack.c.l.b16 %v4940
        %v4949 = vunpack.c.l.b16 %v4941
        %v4950 = vpack.c.b16 %v4947, %v4946
        %v4951 = vpack.c.b16 %v4949, %v4948
        %v4953 = vsel %vm1677, %v4950, 0
        %v4956 = vsel %vm1677, %v4951, 0
        %4958 = vmatprep.subr.bf16.mxu0 %v4934
        %4959 = vmatpush1.bf16.msra.mxu0 %v4933
        %4960 = vmatprep.subr.bf16.mxu0 %v4936
        %4961 = vmatpush1.bf16.msra.mxu0 %v4935
        %4962 = vmatprep.subr.bf16.mxu0 0
        %4963 = vmatpush1.bf16.msra.mxu0 0
        %4964 = vmatprep.subr.bf16.mxu0 0
        %4965 = vmatpush1.bf16.msra.mxu0 0
        %4966 = vmatprep.subr.bf16.mxu0 0
        %4967 = vmatpush1.bf16.msra.mxu0 0
        %4968 = vmatprep.subr.bf16.mxu0 0
        %4969 = vmatpush1.bf16.msra.mxu0 0
        %4970 = vmatprep.subr.bf16.mxu0 0
        %4971 = vmatpush1.bf16.msra.mxu0 0
        %4972 = vmatprep.subr.bf16.mxu0 0
        %4973 = vmatpush1.bf16.msra.mxu0 0
        %4974 = vmatprep.subr.bf16.mxu0 0
        %4975 = vmatpush1.bf16.msra.mxu0 0
        %4976 = vmatprep.subr.bf16.mxu0 0
        %4977 = vmatpush1.bf16.msra.mxu0 0
        %4978 = vmatprep.subr.bf16.mxu0 0
        %4979 = vmatpush1.bf16.msra.mxu0 0
        %4980 = vmatprep.subr.bf16.mxu0 0
        %4981 = vmatpush1.bf16.msra.mxu0 0
        %4982 = vmatprep.subr.bf16.mxu0 0
        %4983 = vmatpush1.bf16.msra.mxu0 0
        %4984 = vmatprep.subr.bf16.mxu0 0
        %4985 = vmatpush1.bf16.msra.mxu0 0
        %4986 = vmatprep.subr.bf16.mxu0 0
        %4987 = vmatpush1.bf16.msra.mxu0 0
        %4988 = vmatprep.subr.bf16.mxu0 0
        %4989 = vmatpush1.bf16.msra.mxu0 0
        %4990 = vmatprep.mubr.bf16.mxu0 0
        %4991 = vmatmul.mubr.bf16.gmra.mrb[0].mxu0 %v4953
        %v4992 = vpop.f32.mrb[0].mxu0
        %v4993 = vadd.f32 0.0, %v4992
        %v4994 = vpop.f32.mrb[0].mxu0
        %v4995 = vadd.f32 0.0, %v4994
        %v4996 = vpop.f32.mrb[0].mxu0
        %v4997 = vadd.f32 0.0, %v4996
        %v4998 = vpop.f32.mrb[0].mxu0
        %v4999 = vadd.f32 0.0, %v4998
        %5000 = vmatprep.mubr.bf16.mxu0 0
        %5001 = vmatmul.mubr.bf16.gmra.mrb[0].mxu0 %v4956
        %v5002 = vpop.f32.mrb[0].mxu0
        %v5003 = vadd.f32 0.0, %v5002
        %v5004 = vpop.f32.mrb[0].mxu0
        %v5005 = vadd.f32 0.0, %v5004
        %v5006 = vpop.f32.mrb[0].mxu0
        %v5007 = vadd.f32 0.0, %v5006
        %v5008 = vpop.f32.mrb[0].mxu0
        %v5009 = vadd.f32 0.0, %v5008
        %5010 = vdwg.mxu0
        %v5011 = vadd.f32 %v4897, %v4993
        %v5012 = vadd.f32 %v4899, %v4995
        %v5013 = vadd.f32 %v4901, %v4997
        %v5014 = vadd.f32 %v4903, %v4999
        %v5015 = vadd.f32 %v4907, %v5003
        %v5016 = vadd.f32 %v4909, %v5005
        %v5017 = vadd.f32 %v4911, %v5007
        %v5018 = vadd.f32 %v4913, %v5009
        %5019 = vrot.lane.b32.xlu0 %v4674, 1
        %v5020 = vpop.permute.xlu0 %5019
        %5021 = vrot.lane.b32.xlu0 %v4675, 1
        %v5022 = vpop.permute.xlu0 %5021
        %5023 = vrot.lane.b32.xlu0 %v4676, 1
        %v5024 = vpop.permute.xlu0 %5023
        %5025 = vrot.lane.b32.xlu0 %v4677, 1
        %v5026 = vpop.permute.xlu0 %5025
        %v5027 = vsel %vm1055, %v5020, %v5022
        %v5028 = vsel %vm1055, %v5024, %v5026
        %v5032 = vsel %vm1058, 0, %v5020
        %v5035 = vsel %vm1058, 0, %v5024
        %v5037 = vmul.bf16 %v5032, %v757
        %v5038 = vmul.bf16 %v5027, %v764
        %v5039 = vmul.bf16 %v5035, %v757
        %v5040 = vmul.bf16 %v5028, %v764
        %s5041 = scalar_lea.vmem [#allocation5], 48
        %v5042 = vld [vmem:[%s5041] sm:$0xf]
        %v5043 = vld [vmem:[%s5041 + $0x4] sm:$0xf]
        %v5044 = vld [vmem:[%s5041 + $0x8] sm:$0xf]
        %v5045 = vld [vmem:[%s5041 + $0xc] sm:$0xf]
        %v5050 = vunpack.c.l.b16 %v5042
        %v5051 = vunpack.c.l.b16 %v5043
        %v5052 = vunpack.c.l.b16 %v5044
        %v5053 = vunpack.c.l.b16 %v5045
        %v5054 = vpack.c.b16 %v5051, %v5050
        %v5055 = vpack.c.b16 %v5053, %v5052
        %v5057 = vsel %vm1677, %v5054, 0
        %v5060 = vsel %vm1677, %v5055, 0
        %5062 = vmatprep.subr.bf16.mxu0 %v5038
        %5063 = vmatpush1.bf16.msra.mxu0 %v5037
        %5064 = vmatprep.subr.bf16.mxu0 %v5040
        %5065 = vmatpush1.bf16.msra.mxu0 %v5039
        %5066 = vmatprep.subr.bf16.mxu0 0
        %5067 = vmatpush1.bf16.msra.mxu0 0
        %5068 = vmatprep.subr.bf16.mxu0 0
        %5069 = vmatpush1.bf16.msra.mxu0 0
        %5070 = vmatprep.subr.bf16.mxu0 0
        %5071 = vmatpush1.bf16.msra.mxu0 0
        %5072 = vmatprep.subr.bf16.mxu0 0
        %5073 = vmatpush1.bf16.msra.mxu0 0
        %5074 = vmatprep.subr.bf16.mxu0 0
        %5075 = vmatpush1.bf16.msra.mxu0 0
        %5076 = vmatprep.subr.bf16.mxu0 0
        %5077 = vmatpush1.bf16.msra.mxu0 0
        %5078 = vmatprep.subr.bf16.mxu0 0
        %5079 = vmatpush1.bf16.msra.mxu0 0
        %5080 = vmatprep.subr.bf16.mxu0 0
        %5081 = vmatpush1.bf16.msra.mxu0 0
        %5082 = vmatprep.subr.bf16.mxu0 0
        %5083 = vmatpush1.bf16.msra.mxu0 0
        %5084 = vmatprep.subr.bf16.mxu0 0
        %5085 = vmatpush1.bf16.msra.mxu0 0
        %5086 = vmatprep.subr.bf16.mxu0 0
        %5087 = vmatpush1.bf16.msra.mxu0 0
        %5088 = vmatprep.subr.bf16.mxu0 0
        %5089 = vmatpush1.bf16.msra.mxu0 0
        %5090 = vmatprep.subr.bf16.mxu0 0
        %5091 = vmatpush1.bf16.msra.mxu0 0
        %5092 = vmatprep.subr.bf16.mxu0 0
        %5093 = vmatpush1.bf16.msra.mxu0 0
        %5094 = vmatprep.mubr.bf16.mxu0 0
        %5095 = vmatmul.mubr.bf16.gmra.mrb[0].mxu0 %v5057
        %v5096 = vpop.f32.mrb[0].mxu0
        %v5097 = vadd.f32 0.0, %v5096
        %v5098 = vpop.f32.mrb[0].mxu0
        %v5099 = vadd.f32 0.0, %v5098
        %v5100 = vpop.f32.mrb[0].mxu0
        %v5101 = vadd.f32 0.0, %v5100
        %v5102 = vpop.f32.mrb[0].mxu0
        %v5103 = vadd.f32 0.0, %v5102
        %5104 = vmatprep.mubr.bf16.mxu0 0
        %5105 = vmatmul.mubr.bf16.gmra.mrb[0].mxu0 %v5060
        %v5106 = vpop.f32.mrb[0].mxu0
        %v5107 = vadd.f32 0.0, %v5106
        %v5108 = vpop.f32.mrb[0].mxu0
        %v5109 = vadd.f32 0.0, %v5108
        %v5110 = vpop.f32.mrb[0].mxu0
        %v5111 = vadd.f32 0.0, %v5110
        %v5112 = vpop.f32.mrb[0].mxu0
        %v5113 = vadd.f32 0.0, %v5112
        %5114 = vdwg.mxu0
        %v5115 = vadd.f32 %v5011, %v5097
        %v5116 = vadd.f32 %v5012, %v5099
        %v5117 = vadd.f32 %v5013, %v5101
        %v5118 = vadd.f32 %v5014, %v5103
        %v5119 = vadd.f32 %v5015, %v5107
        %v5120 = vadd.f32 %v5016, %v5109
        %v5121 = vadd.f32 %v5017, %v5111
        %v5122 = vadd.f32 %v5018, %v5113
        %s5123 = scalar_lea.vmem [#allocation5], 64
        %v5124 = vld [vmem:[%s5123] sm:$0xf]
        %v5125 = vld [vmem:[%s5123 + $0x4] sm:$0xf]
        %v5126 = vld [vmem:[%s5123 + $0x8] sm:$0xf]
        %v5127 = vld [vmem:[%s5123 + $0xc] sm:$0xf]
        %v5132 = vunpack.c.l.b16 %v5124
        %v5133 = vunpack.c.l.b16 %v5125
        %v5134 = vunpack.c.l.b16 %v5126
        %v5135 = vunpack.c.l.b16 %v5127
        %v5136 = vpack.c.b16 %v5133, %v5132
        %v5137 = vpack.c.b16 %v5135, %v5134
        %v5139 = vsel %vm1677, %v5136, 0
        %v5142 = vsel %vm1677, %v5137, 0
        %5144 = vmatprep.subr.bf16.mxu0 %v4675
        %5145 = vmatpush1.bf16.msra.mxu0 %v4674
        %5146 = vmatprep.subr.bf16.mxu0 %v4677
        %5147 = vmatpush1.bf16.msra.mxu0 %v4676
        %5148 = vmatprep.subr.bf16.mxu0 0
        %5149 = vmatpush1.bf16.msra.mxu0 0
        %5150 = vmatprep.subr.bf16.mxu0 0
        %5151 = vmatpush1.bf16.msra.mxu0 0
        %5152 = vmatprep.subr.bf16.mxu0 0
        %5153 = vmatpush1.bf16.msra.mxu0 0
        %5154 = vmatprep.subr.bf16.mxu0 0
        %5155 = vmatpush1.bf16.msra.mxu0 0
        %5156 = vmatprep.subr.bf16.mxu0 0
        %5157 = vmatpush1.bf16.msra.mxu0 0
        %5158 = vmatprep.subr.bf16.mxu0 0
        %5159 = vmatpush1.bf16.msra.mxu0 0
        %5160 = vmatprep.subr.bf16.mxu0 0
        %5161 = vmatpush1.bf16.msra.mxu0 0
        %5162 = vmatprep.subr.bf16.mxu0 0
        %5163 = vmatpush1.bf16.msra.mxu0 0
        %5164 = vmatprep.subr.bf16.mxu0 0
        %5165 = vmatpush1.bf16.msra.mxu0 0
        %5166 = vmatprep.subr.bf16.mxu0 0
        %5167 = vmatpush1.bf16.msra.mxu0 0
        %5168 = vmatprep.subr.bf16.mxu0 0
        %5169 = vmatpush1.bf16.msra.mxu0 0
        %5170 = vmatprep.subr.bf16.mxu0 0
        %5171 = vmatpush1.bf16.msra.mxu0 0
        %5172 = vmatprep.subr.bf16.mxu0 0
        %5173 = vmatpush1.bf16.msra.mxu0 0
        %5174 = vmatprep.subr.bf16.mxu0 0
        %5175 = vmatpush1.bf16.msra.mxu0 0
        %5176 = vmatprep.mubr.bf16.mxu0 0
        %5177 = vmatmul.mubr.bf16.gmra.mrb[0].mxu0 %v5139
        %v5178 = vpop.f32.mrb[0].mxu0
        %v5179 = vadd.f32 0.0, %v5178
        %v5180 = vpop.f32.mrb[0].mxu0
        %v5181 = vadd.f32 0.0, %v5180
        %v5182 = vpop.f32.mrb[0].mxu0
        %v5183 = vadd.f32 0.0, %v5182
        %v5184 = vpop.f32.mrb[0].mxu0
        %v5185 = vadd.f32 0.0, %v5184
        %5186 = vmatprep.mubr.bf16.mxu0 0
        %5187 = vmatmul.mubr.bf16.gmra.mrb[0].mxu0 %v5142
        %v5188 = vpop.f32.mrb[0].mxu0
        %v5189 = vadd.f32 0.0, %v5188
        %v5190 = vpop.f32.mrb[0].mxu0
        %v5191 = vadd.f32 0.0, %v5190
        %v5192 = vpop.f32.mrb[0].mxu0
        %v5193 = vadd.f32 0.0, %v5192
        %v5194 = vpop.f32.mrb[0].mxu0
        %v5195 = vadd.f32 0.0, %v5194
        %5196 = vdwg.mxu0
        %v5197 = vadd.f32 %v5115, %v5179
        %v5198 = vadd.f32 %v5116, %v5181
        %v5199 = vadd.f32 %v5117, %v5183
        %v5200 = vadd.f32 %v5118, %v5185
        %v5201 = vadd.f32 %v5119, %v5189
        %v5202 = vadd.f32 %v5120, %v5191
        %v5203 = vadd.f32 %v5121, %v5193
        %v5204 = vadd.f32 %v5122, %v5195
        %5205 = vrot.lane.b32.xlu0 %v4674, 127
        %v5206 = vpop.permute.xlu0 %5205
        %5207 = vrot.lane.b32.xlu0 %v4675, 127
        %v5208 = vpop.permute.xlu0 %5207
        %5209 = vrot.lane.b32.xlu0 %v4676, 127
        %v5210 = vpop.permute.xlu0 %5209
        %5211 = vrot.lane.b32.xlu0 %v4677, 127
        %v5212 = vpop.permute.xlu0 %5211
        %v5213 = vsel %vm1244, %v5206, %v5208
        %v5214 = vsel %vm1244, %v5210, %v5212
        %v5218 = vsel %vm1247, %v5208, 0
        %v5221 = vsel %vm1247, %v5212, 0
        %v5223 = vmul.bf16 %v5213, %v953
        %v5224 = vmul.bf16 %v5218, %v960
        %v5225 = vmul.bf16 %v5214, %v953
        %v5226 = vmul.bf16 %v5221, %v960
        %s5227 = scalar_lea.vmem [#allocation5], 80
        %v5228 = vld [vmem:[%s5227] sm:$0xf]
        %v5229 = vld [vmem:[%s5227 + $0x4] sm:$0xf]
        %v5230 = vld [vmem:[%s5227 + $0x8] sm:$0xf]
        %v5231 = vld [vmem:[%s5227 + $0xc] sm:$0xf]
        %v5236 = vunpack.c.l.b16 %v5228
        %v5237 = vunpack.c.l.b16 %v5229
        %v5238 = vunpack.c.l.b16 %v5230
        %v5239 = vunpack.c.l.b16 %v5231
        %v5240 = vpack.c.b16 %v5237, %v5236
        %v5241 = vpack.c.b16 %v5239, %v5238
        %v5243 = vsel %vm1677, %v5240, 0
        %v5246 = vsel %vm1677, %v5241, 0
        %5248 = vmatprep.subr.bf16.mxu0 %v5224
        %5249 = vmatpush1.bf16.msra.mxu0 %v5223
        %5250 = vmatprep.subr.bf16.mxu0 %v5226
        %5251 = vmatpush1.bf16.msra.mxu0 %v5225
        %5252 = vmatprep.subr.bf16.mxu0 0
        %5253 = vmatpush1.bf16.msra.mxu0 0
        %5254 = vmatprep.subr.bf16.mxu0 0
        %5255 = vmatpush1.bf16.msra.mxu0 0
        %5256 = vmatprep.subr.bf16.mxu0 0
        %5257 = vmatpush1.bf16.msra.mxu0 0
        %5258 = vmatprep.subr.bf16.mxu0 0
        %5259 = vmatpush1.bf16.msra.mxu0 0
        %5260 = vmatprep.subr.bf16.mxu0 0
        %5261 = vmatpush1.bf16.msra.mxu0 0
        %5262 = vmatprep.subr.bf16.mxu0 0
        %5263 = vmatpush1.bf16.msra.mxu0 0
        %5264 = vmatprep.subr.bf16.mxu0 0
        %5265 = vmatpush1.bf16.msra.mxu0 0
        %5266 = vmatprep.subr.bf16.mxu0 0
        %5267 = vmatpush1.bf16.msra.mxu0 0
        %5268 = vmatprep.subr.bf16.mxu0 0
        %5269 = vmatpush1.bf16.msra.mxu0 0
        %5270 = vmatprep.subr.bf16.mxu0 0
        %5271 = vmatpush1.bf16.msra.mxu0 0
        %5272 = vmatprep.subr.bf16.mxu0 0
        %5273 = vmatpush1.bf16.msra.mxu0 0
        %5274 = vmatprep.subr.bf16.mxu0 0
        %5275 = vmatpush1.bf16.msra.mxu0 0
        %5276 = vmatprep.subr.bf16.mxu0 0
        %5277 = vmatpush1.bf16.msra.mxu0 0
        %5278 = vmatprep.subr.bf16.mxu0 0
        %5279 = vmatpush1.bf16.msra.mxu0 0
        %5280 = vmatprep.mubr.bf16.mxu0 0
        %5281 = vmatmul.mubr.bf16.gmra.mrb[0].mxu0 %v5243
        %v5282 = vpop.f32.mrb[0].mxu0
        %v5283 = vadd.f32 0.0, %v5282
        %v5284 = vpop.f32.mrb[0].mxu0
        %v5285 = vadd.f32 0.0, %v5284
        %v5286 = vpop.f32.mrb[0].mxu0
        %v5287 = vadd.f32 0.0, %v5286
        %v5288 = vpop.f32.mrb[0].mxu0
        %v5289 = vadd.f32 0.0, %v5288
        %5290 = vmatprep.mubr.bf16.mxu0 0
        %5291 = vmatmul.mubr.bf16.gmra.mrb[0].mxu0 %v5246
        %v5292 = vpop.f32.mrb[0].mxu0
        %v5293 = vadd.f32 0.0, %v5292
        %v5294 = vpop.f32.mrb[0].mxu0
        %v5295 = vadd.f32 0.0, %v5294
        %v5296 = vpop.f32.mrb[0].mxu0
        %v5297 = vadd.f32 0.0, %v5296
        %v5298 = vpop.f32.mrb[0].mxu0
        %v5299 = vadd.f32 0.0, %v5298
        %5300 = vdwg.mxu0
        %v5301 = vadd.f32 %v5197, %v5283
        %v5302 = vadd.f32 %v5198, %v5285
        %v5303 = vadd.f32 %v5199, %v5287
        %v5304 = vadd.f32 %v5200, %v5289
        %v5305 = vadd.f32 %v5201, %v5293
        %v5306 = vadd.f32 %v5202, %v5295
        %v5307 = vadd.f32 %v5203, %v5297
        %v5308 = vadd.f32 %v5204, %v5299
        %5309 = vrot.lane.b32.xlu0 %v4674, 113
        %v5310 = vpop.permute.xlu0 %5309
        %5311 = vrot.lane.b32.xlu0 %v4675, 113
        %v5312 = vpop.permute.xlu0 %5311
        %5313 = vrot.lane.b32.xlu0 %v4676, 113
        %v5314 = vpop.permute.xlu0 %5313
        %5315 = vrot.lane.b32.xlu0 %v4677, 113
        %v5316 = vpop.permute.xlu0 %5315
        %v5317 = vsel %vm1345, %v5310, %v5312
        %v5318 = vsel %vm1345, %v5314, %v5316
        %v5322 = vsel %vm1348, %v5312, 0
        %v5325 = vsel %vm1348, %v5316, 0
        %v5327 = vmul.bf16 %v5317, %v757
        %v5328 = vmul.bf16 %v5322, %v764
        %v5329 = vmul.bf16 %v5318, %v757
        %v5330 = vmul.bf16 %v5325, %v764
        %s5331 = scalar_lea.vmem [#allocation5], 96
        %v5332 = vld [vmem:[%s5331] sm:$0xf]
        %v5333 = vld [vmem:[%s5331 + $0x4] sm:$0xf]
        %v5334 = vld [vmem:[%s5331 + $0x8] sm:$0xf]
        %v5335 = vld [vmem:[%s5331 + $0xc] sm:$0xf]
        %v5340 = vunpack.c.l.b16 %v5332
        %v5341 = vunpack.c.l.b16 %v5333
        %v5342 = vunpack.c.l.b16 %v5334
        %v5343 = vunpack.c.l.b16 %v5335
        %v5344 = vpack.c.b16 %v5341, %v5340
        %v5345 = vpack.c.b16 %v5343, %v5342
        %v5347 = vsel %vm1677, %v5344, 0
        %v5350 = vsel %vm1677, %v5345, 0
        %5352 = vmatprep.subr.bf16.mxu0 %v5328
        %5353 = vmatpush1.bf16.msra.mxu0 %v5327
        %5354 = vmatprep.subr.bf16.mxu0 %v5330
        %5355 = vmatpush1.bf16.msra.mxu0 %v5329
        %5356 = vmatprep.subr.bf16.mxu0 0
        %5357 = vmatpush1.bf16.msra.mxu0 0
        %5358 = vmatprep.subr.bf16.mxu0 0
        %5359 = vmatpush1.bf16.msra.mxu0 0
        %5360 = vmatprep.subr.bf16.mxu0 0
        %5361 = vmatpush1.bf16.msra.mxu0 0
        %5362 = vmatprep.subr.bf16.mxu0 0
        %5363 = vmatpush1.bf16.msra.mxu0 0
        %5364 = vmatprep.subr.bf16.mxu0 0
        %5365 = vmatpush1.bf16.msra.mxu0 0
        %5366 = vmatprep.subr.bf16.mxu0 0
        %5367 = vmatpush1.bf16.msra.mxu0 0
        %5368 = vmatprep.subr.bf16.mxu0 0
        %5369 = vmatpush1.bf16.msra.mxu0 0
        %5370 = vmatprep.subr.bf16.mxu0 0
        %5371 = vmatpush1.bf16.msra.mxu0 0
        %5372 = vmatprep.subr.bf16.mxu0 0
        %5373 = vmatpush1.bf16.msra.mxu0 0
        %5374 = vmatprep.subr.bf16.mxu0 0
        %5375 = vmatpush1.bf16.msra.mxu0 0
        %5376 = vmatprep.subr.bf16.mxu0 0
        %5377 = vmatpush1.bf16.msra.mxu0 0
        %5378 = vmatprep.subr.bf16.mxu0 0
        %5379 = vmatpush1.bf16.msra.mxu0 0
        %5380 = vmatprep.subr.bf16.mxu0 0
        %5381 = vmatpush1.bf16.msra.mxu0 0
        %5382 = vmatprep.subr.bf16.mxu0 0
        %5383 = vmatpush1.bf16.msra.mxu0 0
        %5384 = vmatprep.mubr.bf16.mxu0 0
        %5385 = vmatmul.mubr.bf16.gmra.mrb[0].mxu0 %v5347
        %v5386 = vpop.f32.mrb[0].mxu0
        %v5387 = vadd.f32 0.0, %v5386
        %v5388 = vpop.f32.mrb[0].mxu0
        %v5389 = vadd.f32 0.0, %v5388
        %v5390 = vpop.f32.mrb[0].mxu0
        %v5391 = vadd.f32 0.0, %v5390
        %v5392 = vpop.f32.mrb[0].mxu0
        %v5393 = vadd.f32 0.0, %v5392
        %5394 = vmatprep.mubr.bf16.mxu0 0
        %5395 = vmatmul.mubr.bf16.gmra.mrb[0].mxu0 %v5350
        %v5396 = vpop.f32.mrb[0].mxu0
        %v5397 = vadd.f32 0.0, %v5396
        %v5398 = vpop.f32.mrb[0].mxu0
        %v5399 = vadd.f32 0.0, %v5398
        %v5400 = vpop.f32.mrb[0].mxu0
        %v5401 = vadd.f32 0.0, %v5400
        %v5402 = vpop.f32.mrb[0].mxu0
        %v5403 = vadd.f32 0.0, %v5402
        %5404 = vdwg.mxu0
        %v5405 = vadd.f32 %v5301, %v5387
        %v5406 = vadd.f32 %v5302, %v5389
        %v5407 = vadd.f32 %v5303, %v5391
        %v5408 = vadd.f32 %v5304, %v5393
        %v5409 = vadd.f32 %v5305, %v5397
        %v5410 = vadd.f32 %v5306, %v5399
        %v5411 = vadd.f32 %v5307, %v5401
        %v5412 = vadd.f32 %v5308, %v5403
        %5413 = vrot.lane.b32.xlu0 %v4674, 112
        %v5414 = vpop.permute.xlu0 %5413
        %5415 = vrot.lane.b32.xlu0 %v4675, 112
        %v5416 = vpop.permute.xlu0 %5415
        %5417 = vrot.lane.b32.xlu0 %v4676, 112
        %v5418 = vpop.permute.xlu0 %5417
        %5419 = vrot.lane.b32.xlu0 %v4677, 112
        %v5420 = vpop.permute.xlu0 %5419
        %v5421 = vsel %vm1446, %v5414, %v5416
        %v5422 = vsel %vm1446, %v5418, %v5420
        %v5426 = vsel %vm1448, %v5416, 0
        %v5429 = vsel %vm1448, %v5420, 0
        %s5431 = scalar_lea.vmem [#allocation5], 112
        %v5432 = vld [vmem:[%s5431] sm:$0xf]
        %v5433 = vld [vmem:[%s5431 + $0x4] sm:$0xf]
        %v5434 = vld [vmem:[%s5431 + $0x8] sm:$0xf]
        %v5435 = vld [vmem:[%s5431 + $0xc] sm:$0xf]
        %v5440 = vunpack.c.l.b16 %v5432
        %v5441 = vunpack.c.l.b16 %v5433
        %v5442 = vunpack.c.l.b16 %v5434
        %v5443 = vunpack.c.l.b16 %v5435
        %v5444 = vpack.c.b16 %v5441, %v5440
        %v5445 = vpack.c.b16 %v5443, %v5442
        %v5447 = vsel %vm1677, %v5444, 0
        %v5450 = vsel %vm1677, %v5445, 0
        %5452 = vmatprep.subr.bf16.mxu0 %v5426
        %5453 = vmatpush1.bf16.msra.mxu0 %v5421
        %5454 = vmatprep.subr.bf16.mxu0 %v5429
        %5455 = vmatpush1.bf16.msra.mxu0 %v5422
        %5456 = vmatprep.subr.bf16.mxu0 0
        %5457 = vmatpush1.bf16.msra.mxu0 0
        %5458 = vmatprep.subr.bf16.mxu0 0
        %5459 = vmatpush1.bf16.msra.mxu0 0
        %5460 = vmatprep.subr.bf16.mxu0 0
        %5461 = vmatpush1.bf16.msra.mxu0 0
        %5462 = vmatprep.subr.bf16.mxu0 0
        %5463 = vmatpush1.bf16.msra.mxu0 0
        %5464 = vmatprep.subr.bf16.mxu0 0
        %5465 = vmatpush1.bf16.msra.mxu0 0
        %5466 = vmatprep.subr.bf16.mxu0 0
        %5467 = vmatpush1.bf16.msra.mxu0 0
        %5468 = vmatprep.subr.bf16.mxu0 0
        %5469 = vmatpush1.bf16.msra.mxu0 0
        %5470 = vmatprep.subr.bf16.mxu0 0
        %5471 = vmatpush1.bf16.msra.mxu0 0
        %5472 = vmatprep.subr.bf16.mxu0 0
        %5473 = vmatpush1.bf16.msra.mxu0 0
        %5474 = vmatprep.subr.bf16.mxu0 0
        %5475 = vmatpush1.bf16.msra.mxu0 0
        %5476 = vmatprep.subr.bf16.mxu0 0
        %5477 = vmatpush1.bf16.msra.mxu0 0
        %5478 = vmatprep.subr.bf16.mxu0 0
        %5479 = vmatpush1.bf16.msra.mxu0 0
        %5480 = vmatprep.subr.bf16.mxu0 0
        %5481 = vmatpush1.bf16.msra.mxu0 0
        %5482 = vmatprep.subr.bf16.mxu0 0
        %5483 = vmatpush1.bf16.msra.mxu0 0
        %5484 = vmatprep.mubr.bf16.mxu0 0
        %5485 = vmatmul.mubr.bf16.gmra.mrb[0].mxu0 %v5447
        %v5486 = vpop.f32.mrb[0].mxu0
        %v5487 = vadd.f32 0.0, %v5486
        %v5488 = vpop.f32.mrb[0].mxu0
        %v5489 = vadd.f32 0.0, %v5488
        %v5490 = vpop.f32.mrb[0].mxu0
        %v5491 = vadd.f32 0.0, %v5490
        %v5492 = vpop.f32.mrb[0].mxu0
        %v5493 = vadd.f32 0.0, %v5492
        %5494 = vmatprep.mubr.bf16.mxu0 0
        %5495 = vmatmul.mubr.bf16.gmra.mrb[0].mxu0 %v5450
        %v5496 = vpop.f32.mrb[0].mxu0
        %v5497 = vadd.f32 0.0, %v5496
        %v5498 = vpop.f32.mrb[0].mxu0
        %v5499 = vadd.f32 0.0, %v5498
        %v5500 = vpop.f32.mrb[0].mxu0
        %v5501 = vadd.f32 0.0, %v5500
        %v5502 = vpop.f32.mrb[0].mxu0
        %v5503 = vadd.f32 0.0, %v5502
        %5504 = vdwg.mxu0
        %v5505 = vadd.f32 %v5405, %v5487
        %v5506 = vadd.f32 %v5406, %v5489
        %v5507 = vadd.f32 %v5407, %v5491
        %v5508 = vadd.f32 %v5408, %v5493
        %v5509 = vadd.f32 %v5409, %v5497
        %v5510 = vadd.f32 %v5410, %v5499
        %v5511 = vadd.f32 %v5411, %v5501
        %v5512 = vadd.f32 %v5412, %v5503
        %5513 = vrot.lane.b32.xlu0 %v4674, 111
        %v5514 = vpop.permute.xlu0 %5513
        %5515 = vrot.lane.b32.xlu0 %v4675, 111
        %v5516 = vpop.permute.xlu0 %5515
        %5517 = vrot.lane.b32.xlu0 %v4676, 111
        %v5518 = vpop.permute.xlu0 %5517
        %5519 = vrot.lane.b32.xlu0 %v4677, 111
        %v5520 = vpop.permute.xlu0 %5519
        %v5521 = vsel %vm1542, %v5514, %v5516
        %v5522 = vsel %vm1542, %v5518, %v5520
        %v5526 = vsel %vm1545, %v5516, 0
        %v5529 = vsel %vm1545, %v5520, 0
        %v5531 = vmul.bf16 %v5521, %v953
        %v5532 = vmul.bf16 %v5526, %v960
        %v5533 = vmul.bf16 %v5522, %v953
        %v5534 = vmul.bf16 %v5529, %v960
        %s5535 = scalar_lea.vmem [#allocation5], 128
        %v5536 = vld [vmem:[%s5535] sm:$0xf]
        %v5537 = vld [vmem:[%s5535 + $0x4] sm:$0xf]
        %v5538 = vld [vmem:[%s5535 + $0x8] sm:$0xf]
        %v5539 = vld [vmem:[%s5535 + $0xc] sm:$0xf]
        %v5544 = vunpack.c.l.b16 %v5536
        %v5545 = vunpack.c.l.b16 %v5537
        %v5546 = vunpack.c.l.b16 %v5538
        %v5547 = vunpack.c.l.b16 %v5539
        %v5548 = vpack.c.b16 %v5545, %v5544
        %v5549 = vpack.c.b16 %v5547, %v5546
        %v5551 = vsel %vm1677, %v5548, 0
        %v5554 = vsel %vm1677, %v5549, 0
        %5556 = vmatprep.subr.bf16.mxu0 %v5532
        %5557 = vmatpush1.bf16.msra.mxu0 %v5531
        %5558 = vmatprep.subr.bf16.mxu0 %v5534
        %5559 = vmatpush1.bf16.msra.mxu0 %v5533
        %5560 = vmatprep.subr.bf16.mxu0 0
        %5561 = vmatpush1.bf16.msra.mxu0 0
        %5562 = vmatprep.subr.bf16.mxu0 0
        %5563 = vmatpush1.bf16.msra.mxu0 0
        %5564 = vmatprep.subr.bf16.mxu0 0
        %5565 = vmatpush1.bf16.msra.mxu0 0
        %5566 = vmatprep.subr.bf16.mxu0 0
        %5567 = vmatpush1.bf16.msra.mxu0 0
        %5568 = vmatprep.subr.bf16.mxu0 0
        %5569 = vmatpush1.bf16.msra.mxu0 0
        %5570 = vmatprep.subr.bf16.mxu0 0
        %5571 = vmatpush1.bf16.msra.mxu0 0
        %5572 = vmatprep.subr.bf16.mxu0 0
        %5573 = vmatpush1.bf16.msra.mxu0 0
        %5574 = vmatprep.subr.bf16.mxu0 0
        %5575 = vmatpush1.bf16.msra.mxu0 0
        %5576 = vmatprep.subr.bf16.mxu0 0
        %5577 = vmatpush1.bf16.msra.mxu0 0
        %5578 = vmatprep.subr.bf16.mxu0 0
        %5579 = vmatpush1.bf16.msra.mxu0 0
        %5580 = vmatprep.subr.bf16.mxu0 0
        %5581 = vmatpush1.bf16.msra.mxu0 0
        %5582 = vmatprep.subr.bf16.mxu0 0
        %5583 = vmatpush1.bf16.msra.mxu0 0
        %5584 = vmatprep.subr.bf16.mxu0 0
        %5585 = vmatpush1.bf16.msra.mxu0 0
        %5586 = vmatprep.subr.bf16.mxu0 0
        %5587 = vmatpush1.bf16.msra.mxu0 0
        %5588 = vmatprep.mubr.bf16.mxu0 0
        %5589 = vmatmul.mubr.bf16.gmra.mrb[0].mxu0 %v5551
        %v5590 = vpop.f32.mrb[0].mxu0
        %v5591 = vadd.f32 0.0, %v5590
        %v5592 = vpop.f32.mrb[0].mxu0
        %v5593 = vadd.f32 0.0, %v5592
        %v5594 = vpop.f32.mrb[0].mxu0
        %v5595 = vadd.f32 0.0, %v5594
        %v5596 = vpop.f32.mrb[0].mxu0
        %v5597 = vadd.f32 0.0, %v5596
        %5598 = vmatprep.mubr.bf16.mxu0 0
        %5599 = vmatmul.mubr.bf16.gmra.mrb[0].mxu0 %v5554
        %v5600 = vpop.f32.mrb[0].mxu0
        %v5601 = vadd.f32 0.0, %v5600
        %v5602 = vpop.f32.mrb[0].mxu0
        %v5603 = vadd.f32 0.0, %v5602
        %v5604 = vpop.f32.mrb[0].mxu0
        %v5605 = vadd.f32 0.0, %v5604
        %v5606 = vpop.f32.mrb[0].mxu0
        %v5607 = vadd.f32 0.0, %v5606
        %5608 = vdwg.mxu0
        %v5609 = vadd.f32 %v5505, %v5591
        %v5610 = vadd.f32 %v5506, %v5593
        %v5611 = vadd.f32 %v5507, %v5595
        %v5612 = vadd.f32 %v5508, %v5597
        %v5613 = vadd.f32 %v5509, %v5601
        %v5614 = vadd.f32 %v5510, %v5603
        %v5615 = vadd.f32 %v5511, %v5605
        %v5616 = vadd.f32 %v5512, %v5607
        %v5617 = vld [vmem:[%s11] sm:$0xff]
        %v5618 = vld [vmem:[%s11 + $0x8] sm:$0xff]
        %v5619 = vld [vmem:[%s11 + $0x10] sm:$0xff]
        %v5620 = vld [vmem:[%s11 + $0x18] sm:$0xff]
        %5622 = vset.pattern.permute.xlu0 0
        %5623 = vperm.xlu0 %5622, %v5617
        %v5624 = vpop.permute.xlu0 %5623
        %5627 = vset.pattern.permute.xlu0 0
        %5628 = vperm.xlu0 %5627, %v5618
        %v5629 = vpop.permute.xlu0 %5628
        %5632 = vset.pattern.permute.xlu0 0
        %5633 = vperm.xlu0 %5632, %v5619
        %v5634 = vpop.permute.xlu0 %5633
        %5637 = vset.pattern.permute.xlu0 0
        %5638 = vperm.xlu0 %5637, %v5620
        %v5639 = vpop.permute.xlu0 %5638
        %v5641 = vadd.f32 %v5609, %v5624
        %v5642 = vadd.f32 %v5610, %v5624
        %v5643 = vadd.f32 %v5611, %v5629
        %v5644 = vadd.f32 %v5612, %v5629
        %v5645 = vadd.f32 %v5613, %v5634
        %v5646 = vadd.f32 %v5614, %v5634
        %v5647 = vadd.f32 %v5615, %v5639
        %v5648 = vadd.f32 %v5616, %v5639
        %v5649 = vsub.f32 0.0, %v5641
        %v5650 = vsub.f32 0.0, %v5642
        %v5651 = vsub.f32 0.0, %v5643
        %v5652 = vsub.f32 0.0, %v5644
        %v5653 = vsub.f32 0.0, %v5645
        %v5654 = vsub.f32 0.0, %v5646
        %v5655 = vsub.f32 0.0, %v5647
        %v5656 = vsub.f32 0.0, %v5648
        %v5657 = vmul.f32 %v5649, 1.442695
        %v5658 = vpow.pop %v5657
        %v5659 = vmul.f32 %v5650, 1.442695
        %v5660 = vpow.pop %v5659
        %v5661 = vmul.f32 %v5651, 1.442695
        %v5662 = vpow.pop %v5661
        %v5663 = vmul.f32 %v5652, 1.442695
        %v5664 = vpow.pop %v5663
        %v5665 = vmul.f32 %v5653, 1.442695
        %v5666 = vpow.pop %v5665
        %v5667 = vmul.f32 %v5654, 1.442695
        %v5668 = vpow.pop %v5667
        %v5669 = vmul.f32 %v5655, 1.442695
        %v5670 = vpow.pop %v5669
        %v5671 = vmul.f32 %v5656, 1.442695
        %v5672 = vpow.pop %v5671
        %v5673 = vadd.f32 %v5658, 1.0
        %v5674 = vadd.f32 %v5660, 1.0
        %v5675 = vadd.f32 %v5662, 1.0
        %v5676 = vadd.f32 %v5664, 1.0
        %v5677 = vadd.f32 %v5666, 1.0
        %v5678 = vadd.f32 %v5668, 1.0
        %v5679 = vadd.f32 %v5670, 1.0
        %v5680 = vadd.f32 %v5672, 1.0
        %v5681 = vrcp.pop %v5673
        %v5682 = vrcp.pop %v5674
        %v5683 = vrcp.pop %v5675
        %v5684 = vrcp.pop %v5676
        %v5685 = vrcp.pop %v5677
        %v5686 = vrcp.pop %v5678
        %v5687 = vrcp.pop %v5679
        %v5688 = vrcp.pop %v5680
        %v5689 = vmul.f32 %v5641, %v5681
        %v5690 = vmul.f32 %v5642, %v5682
        %v5691 = vmul.f32 %v5643, %v5683
        %v5692 = vmul.f32 %v5644, %v5684
        %v5693 = vmul.f32 %v5645, %v5685
        %v5694 = vmul.f32 %v5646, %v5686
        %v5695 = vmul.f32 %v5647, %v5687
        %v5696 = vmul.f32 %v5648, %v5688
        %v5697 = vpack.c.bf16 %v5691, %v5689
        %v5698 = vpack.c.bf16 %v5692, %v5690
        %v5699 = vpack.c.bf16 %v5695, %v5693
        %v5700 = vpack.c.bf16 %v5696, %v5694
        %5705 = vrot.lane.b32.xlu0 %v5697, 17
        %v5706 = vpop.permute.xlu0 %5705
        %5707 = vrot.lane.b32.xlu0 %v5698, 17
        %v5708 = vpop.permute.xlu0 %5707
        %5709 = vrot.lane.b32.xlu0 %v5699, 17
        %v5710 = vpop.permute.xlu0 %5709
        %5711 = vrot.lane.b32.xlu0 %v5700, 17
        %v5712 = vpop.permute.xlu0 %5711
        %v5713 = vsel %vm720, %v5706, %v5708
        %v5714 = vsel %vm720, %v5710, %v5712
        %v5718 = vsel %vm723, 0, %v5706
        %v5721 = vsel %vm723, 0, %v5710
        %v5723 = vmul.bf16 %v5718, %v757
        %v5724 = vmul.bf16 %v5713, %v764
        %v5725 = vmul.bf16 %v5721, %v757
        %v5726 = vmul.bf16 %v5714, %v764
        %v5727 = vld [vmem:[#allocation7] sm:$0xf]
        %v5728 = vld [vmem:[#allocation7 + $0x4] sm:$0xf]
        %v5729 = vld [vmem:[#allocation7 + $0x8] sm:$0xf]
        %v5730 = vld [vmem:[#allocation7 + $0xc] sm:$0xf]
        %5731 = vrot.lane.b32.xlu0 %v5697, 16
        %v5732 = vpop.permute.xlu0 %5731
        %5733 = vrot.lane.b32.xlu0 %v5698, 16
        %v5734 = vpop.permute.xlu0 %5733
        %5735 = vrot.lane.b32.xlu0 %v5699, 16
        %v5736 = vpop.permute.xlu0 %5735
        %5737 = vrot.lane.b32.xlu0 %v5700, 16
        %v5738 = vpop.permute.xlu0 %5737
        %v5739 = vsel %vm775, %v5732, %v5734
        %v5740 = vsel %vm775, %v5736, %v5738
        %v5744 = vsel %vm777, 0, %v5732
        %v5747 = vsel %vm777, 0, %v5736
        %s5749 = scalar_lea.vmem [#allocation7], 16
        %v5750 = vld [vmem:[%s5749] sm:$0xf]
        %v5751 = vld [vmem:[%s5749 + $0x4] sm:$0xf]
        %v5752 = vld [vmem:[%s5749 + $0x8] sm:$0xf]
        %v5753 = vld [vmem:[%s5749 + $0xc] sm:$0xf]
        %v5758 = vunpack.c.l.b16 %v5750
        %v5759 = vunpack.c.l.b16 %v5751
        %v5760 = vunpack.c.l.b16 %v5752
        %v5761 = vunpack.c.l.b16 %v5753
        %v5762 = vpack.c.b16 %v5759, %v5758
        %v5763 = vpack.c.b16 %v5761, %v5760
        %v5765 = vsel %vm1677, %v5762, 0
        %v5768 = vsel %vm1677, %v5763, 0
        %5770 = vmatprep.subr.bf16.mxu0 %v5739
        %5771 = vmatpush1.bf16.msra.mxu0 %v5744
        %5772 = vmatprep.subr.bf16.mxu0 %v5740
        %5773 = vmatpush1.bf16.msra.mxu0 %v5747
        %5774 = vmatprep.subr.bf16.mxu0 0
        %5775 = vmatpush1.bf16.msra.mxu0 0
        %5776 = vmatprep.subr.bf16.mxu0 0
        %5777 = vmatpush1.bf16.msra.mxu0 0
        %5778 = vmatprep.subr.bf16.mxu0 0
        %5779 = vmatpush1.bf16.msra.mxu0 0
        %5780 = vmatprep.subr.bf16.mxu0 0
        %5781 = vmatpush1.bf16.msra.mxu0 0
        %5782 = vmatprep.subr.bf16.mxu0 0
        %5783 = vmatpush1.bf16.msra.mxu0 0
        %5784 = vmatprep.subr.bf16.mxu0 0
        %5785 = vmatpush1.bf16.msra.mxu0 0
        %5786 = vmatprep.subr.bf16.mxu0 0
        %5787 = vmatpush1.bf16.msra.mxu0 0
        %5788 = vmatprep.subr.bf16.mxu0 0
        %5789 = vmatpush1.bf16.msra.mxu0 0
        %5790 = vmatprep.subr.bf16.mxu0 0
        %5791 = vmatpush1.bf16.msra.mxu0 0
        %5792 = vmatprep.subr.bf16.mxu0 0
        %5793 = vmatpush1.bf16.msra.mxu0 0
        %5794 = vmatprep.subr.bf16.mxu0 0
        %5795 = vmatpush1.bf16.msra.mxu0 0
        %5796 = vmatprep.subr.bf16.mxu0 0
        %5797 = vmatpush1.bf16.msra.mxu0 0
        %5798 = vmatprep.subr.bf16.mxu0 0
        %5799 = vmatpush1.bf16.msra.mxu0 0
        %5800 = vmatprep.subr.bf16.mxu0 0
        %5801 = vmatpush1.bf16.msra.mxu0 0
        %5802 = vmatprep.mubr.bf16.mxu0 0
        %5803 = vmatmul.mubr.bf16.gmra.mrb[0].mxu0 %v5765
        %v5804 = vpop.f32.mrb[0].mxu0
        %v5805 = vadd.f32 0.0, %v5804
        %v5806 = vpop.f32.mrb[0].mxu0
        %v5807 = vadd.f32 0.0, %v5806
        %v5808 = vpop.f32.mrb[0].mxu0
        %v5809 = vadd.f32 0.0, %v5808
        %v5810 = vpop.f32.mrb[0].mxu0
        %v5811 = vadd.f32 0.0, %v5810
        %5812 = vmatprep.mubr.bf16.mxu0 0
        %5813 = vmatmul.mubr.bf16.gmra.mrb[0].mxu0 %v5768
        %v5814 = vpop.f32.mrb[0].mxu0
        %v5815 = vadd.f32 0.0, %v5814
        %v5816 = vpop.f32.mrb[0].mxu0
        %v5817 = vadd.f32 0.0, %v5816
        %v5818 = vpop.f32.mrb[0].mxu0
        %v5819 = vadd.f32 0.0, %v5818
        %v5820 = vpop.f32.mrb[0].mxu0
        %v5821 = vadd.f32 0.0, %v5820
        %5822 = vdwg.mxu0
        %v5827 = vunpack.c.l.b16 %v5727
        %v5828 = vunpack.c.l.b16 %v5728
        %v5829 = vunpack.c.l.b16 %v5729
        %v5830 = vunpack.c.l.b16 %v5730
        %v5831 = vpack.c.b16 %v5828, %v5827
        %v5832 = vpack.c.b16 %v5830, %v5829
        %v5834 = vsel %vm1677, %v5831, 0
        %v5837 = vsel %vm1677, %v5832, 0
        %5839 = vmatprep.subr.bf16.mxu0 %v5724
        %5840 = vmatpush1.bf16.msra.mxu0 %v5723
        %5841 = vmatprep.subr.bf16.mxu0 %v5726
        %5842 = vmatpush1.bf16.msra.mxu0 %v5725
        %5843 = vmatprep.subr.bf16.mxu0 0
        %5844 = vmatpush1.bf16.msra.mxu0 0
        %5845 = vmatprep.subr.bf16.mxu0 0
        %5846 = vmatpush1.bf16.msra.mxu0 0
        %5847 = vmatprep.subr.bf16.mxu0 0
        %5848 = vmatpush1.bf16.msra.mxu0 0
        %5849 = vmatprep.subr.bf16.mxu0 0
        %5850 = vmatpush1.bf16.msra.mxu0 0
        %5851 = vmatprep.subr.bf16.mxu0 0
        %5852 = vmatpush1.bf16.msra.mxu0 0
        %5853 = vmatprep.subr.bf16.mxu0 0
        %5854 = vmatpush1.bf16.msra.mxu0 0
        %5855 = vmatprep.subr.bf16.mxu0 0
        %5856 = vmatpush1.bf16.msra.mxu0 0
        %5857 = vmatprep.subr.bf16.mxu0 0
        %5858 = vmatpush1.bf16.msra.mxu0 0
        %5859 = vmatprep.subr.bf16.mxu0 0
        %5860 = vmatpush1.bf16.msra.mxu0 0
        %5861 = vmatprep.subr.bf16.mxu0 0
        %5862 = vmatpush1.bf16.msra.mxu0 0
        %5863 = vmatprep.subr.bf16.mxu0 0
        %5864 = vmatpush1.bf16.msra.mxu0 0
        %5865 = vmatprep.subr.bf16.mxu0 0
        %5866 = vmatpush1.bf16.msra.mxu0 0
        %5867 = vmatprep.subr.bf16.mxu0 0
        %5868 = vmatpush1.bf16.msra.mxu0 0
        %5869 = vmatprep.subr.bf16.mxu0 0
        %5870 = vmatpush1.bf16.msra.mxu0 0
        %5871 = vmatprep.mubr.bf16.mxu0 0
        %5872 = vmatmul.mubr.bf16.gmra.mrb[0].mxu0 %v5834
        %v5873 = vpop.f32.mrb[0].mxu0
        %v5874 = vadd.f32 %v5805, %v5873
        %v5875 = vpop.f32.mrb[0].mxu0
        %v5876 = vadd.f32 %v5807, %v5875
        %v5877 = vpop.f32.mrb[0].mxu0
        %v5878 = vadd.f32 %v5809, %v5877
        %v5879 = vpop.f32.mrb[0].mxu0
        %v5880 = vadd.f32 %v5811, %v5879
        %5881 = vmatprep.mubr.bf16.mxu0 0
        %5882 = vmatmul.mubr.bf16.gmra.mrb[0].mxu0 %v5837
        %v5883 = vpop.f32.mrb[0].mxu0
        %v5884 = vadd.f32 %v5815, %v5883
        %v5885 = vpop.f32.mrb[0].mxu0
        %v5886 = vadd.f32 %v5817, %v5885
        %v5887 = vpop.f32.mrb[0].mxu0
        %v5888 = vadd.f32 %v5819, %v5887
        %v5889 = vpop.f32.mrb[0].mxu0
        %v5890 = vadd.f32 %v5821, %v5889
        %5891 = vdwg.mxu0
        %5892 = vrot.lane.b32.xlu0 %v5697, 15
        %v5893 = vpop.permute.xlu0 %5892
        %5894 = vrot.lane.b32.xlu0 %v5698, 15
        %v5895 = vpop.permute.xlu0 %5894
        %5896 = vrot.lane.b32.xlu0 %v5699, 15
        %v5897 = vpop.permute.xlu0 %5896
        %5898 = vrot.lane.b32.xlu0 %v5700, 15
        %v5899 = vpop.permute.xlu0 %5898
        %v5900 = vsel %vm940, %v5893, %v5895
        %v5901 = vsel %vm940, %v5897, %v5899
        %v5905 = vsel %vm943, 0, %v5893
        %v5908 = vsel %vm943, 0, %v5897
        %v5910 = vmul.bf16 %v5905, %v953
        %v5911 = vmul.bf16 %v5900, %v960
        %v5912 = vmul.bf16 %v5908, %v953
        %v5913 = vmul.bf16 %v5901, %v960
        %s5914 = scalar_lea.vmem [#allocation7], 32
        %v5915 = vld [vmem:[%s5914] sm:$0xf]
        %v5916 = vld [vmem:[%s5914 + $0x4] sm:$0xf]
        %v5917 = vld [vmem:[%s5914 + $0x8] sm:$0xf]
        %v5918 = vld [vmem:[%s5914 + $0xc] sm:$0xf]
        %v5923 = vunpack.c.l.b16 %v5915
        %v5924 = vunpack.c.l.b16 %v5916
        %v5925 = vunpack.c.l.b16 %v5917
        %v5926 = vunpack.c.l.b16 %v5918
        %v5927 = vpack.c.b16 %v5924, %v5923
        %v5928 = vpack.c.b16 %v5926, %v5925
        %v5930 = vsel %vm1677, %v5927, 0
        %v5933 = vsel %vm1677, %v5928, 0
        %5935 = vmatprep.subr.bf16.mxu0 %v5911
        %5936 = vmatpush1.bf16.msra.mxu0 %v5910
        %5937 = vmatprep.subr.bf16.mxu0 %v5913
        %5938 = vmatpush1.bf16.msra.mxu0 %v5912
        %5939 = vmatprep.subr.bf16.mxu0 0
        %5940 = vmatpush1.bf16.msra.mxu0 0
        %5941 = vmatprep.subr.bf16.mxu0 0
        %5942 = vmatpush1.bf16.msra.mxu0 0
        %5943 = vmatprep.subr.bf16.mxu0 0
        %5944 = vmatpush1.bf16.msra.mxu0 0
        %5945 = vmatprep.subr.bf16.mxu0 0
        %5946 = vmatpush1.bf16.msra.mxu0 0
        %5947 = vmatprep.subr.bf16.mxu0 0
        %5948 = vmatpush1.bf16.msra.mxu0 0
        %5949 = vmatprep.subr.bf16.mxu0 0
        %5950 = vmatpush1.bf16.msra.mxu0 0
        %5951 = vmatprep.subr.bf16.mxu0 0
        %5952 = vmatpush1.bf16.msra.mxu0 0
        %5953 = vmatprep.subr.bf16.mxu0 0
        %5954 = vmatpush1.bf16.msra.mxu0 0
        %5955 = vmatprep.subr.bf16.mxu0 0
        %5956 = vmatpush1.bf16.msra.mxu0 0
        %5957 = vmatprep.subr.bf16.mxu0 0
        %5958 = vmatpush1.bf16.msra.mxu0 0
        %5959 = vmatprep.subr.bf16.mxu0 0
        %5960 = vmatpush1.bf16.msra.mxu0 0
        %5961 = vmatprep.subr.bf16.mxu0 0
        %5962 = vmatpush1.bf16.msra.mxu0 0
        %5963 = vmatprep.subr.bf16.mxu0 0
        %5964 = vmatpush1.bf16.msra.mxu0 0
        %5965 = vmatprep.subr.bf16.mxu0 0
        %5966 = vmatpush1.bf16.msra.mxu0 0
        %5967 = vmatprep.mubr.bf16.mxu0 0
        %5968 = vmatmul.mubr.bf16.gmra.mrb[0].mxu0 %v5930
        %v5969 = vpop.f32.mrb[0].mxu0
        %v5970 = vadd.f32 0.0, %v5969
        %v5971 = vpop.f32.mrb[0].mxu0
        %v5972 = vadd.f32 0.0, %v5971
        %v5973 = vpop.f32.mrb[0].mxu0
        %v5974 = vadd.f32 0.0, %v5973
        %v5975 = vpop.f32.mrb[0].mxu0
        %v5976 = vadd.f32 0.0, %v5975
        %5977 = vmatprep.mubr.bf16.mxu0 0
        %5978 = vmatmul.mubr.bf16.gmra.mrb[0].mxu0 %v5933
        %v5979 = vpop.f32.mrb[0].mxu0
        %v5980 = vadd.f32 0.0, %v5979
        %v5981 = vpop.f32.mrb[0].mxu0
        %v5982 = vadd.f32 0.0, %v5981
        %v5983 = vpop.f32.mrb[0].mxu0
        %v5984 = vadd.f32 0.0, %v5983
        %v5985 = vpop.f32.mrb[0].mxu0
        %v5986 = vadd.f32 0.0, %v5985
        %5987 = vdwg.mxu0
        %v5988 = vadd.f32 %v5874, %v5970
        %v5989 = vadd.f32 %v5876, %v5972
        %v5990 = vadd.f32 %v5878, %v5974
        %v5991 = vadd.f32 %v5880, %v5976
        %v5992 = vadd.f32 %v5884, %v5980
        %v5993 = vadd.f32 %v5886, %v5982
        %v5994 = vadd.f32 %v5888, %v5984
        %v5995 = vadd.f32 %v5890, %v5986
        %5996 = vrot.lane.b32.xlu0 %v5697, 1
        %v5997 = vpop.permute.xlu0 %5996
        %5998 = vrot.lane.b32.xlu0 %v5698, 1
        %v5999 = vpop.permute.xlu0 %5998
        %6000 = vrot.lane.b32.xlu0 %v5699, 1
        %v6001 = vpop.permute.xlu0 %6000
        %6002 = vrot.lane.b32.xlu0 %v5700, 1
        %v6003 = vpop.permute.xlu0 %6002
        %v6004 = vsel %vm1055, %v5997, %v5999
        %v6005 = vsel %vm1055, %v6001, %v6003
        %v6009 = vsel %vm1058, 0, %v5997
        %v6012 = vsel %vm1058, 0, %v6001
        %v6014 = vmul.bf16 %v6009, %v757
        %v6015 = vmul.bf16 %v6004, %v764
        %v6016 = vmul.bf16 %v6012, %v757
        %v6017 = vmul.bf16 %v6005, %v764
        %s6018 = scalar_lea.vmem [#allocation7], 48
        %v6019 = vld [vmem:[%s6018] sm:$0xf]
        %v6020 = vld [vmem:[%s6018 + $0x4] sm:$0xf]
        %v6021 = vld [vmem:[%s6018 + $0x8] sm:$0xf]
        %v6022 = vld [vmem:[%s6018 + $0xc] sm:$0xf]
        %v6027 = vunpack.c.l.b16 %v6019
        %v6028 = vunpack.c.l.b16 %v6020
        %v6029 = vunpack.c.l.b16 %v6021
        %v6030 = vunpack.c.l.b16 %v6022
        %v6031 = vpack.c.b16 %v6028, %v6027
        %v6032 = vpack.c.b16 %v6030, %v6029
        %v6034 = vsel %vm1677, %v6031, 0
        %v6037 = vsel %vm1677, %v6032, 0
        %6039 = vmatprep.subr.bf16.mxu0 %v6015
        %6040 = vmatpush1.bf16.msra.mxu0 %v6014
        %6041 = vmatprep.subr.bf16.mxu0 %v6017
        %6042 = vmatpush1.bf16.msra.mxu0 %v6016
        %6043 = vmatprep.subr.bf16.mxu0 0
        %6044 = vmatpush1.bf16.msra.mxu0 0
        %6045 = vmatprep.subr.bf16.mxu0 0
        %6046 = vmatpush1.bf16.msra.mxu0 0
        %6047 = vmatprep.subr.bf16.mxu0 0
        %6048 = vmatpush1.bf16.msra.mxu0 0
        %6049 = vmatprep.subr.bf16.mxu0 0
        %6050 = vmatpush1.bf16.msra.mxu0 0
        %6051 = vmatprep.subr.bf16.mxu0 0
        %6052 = vmatpush1.bf16.msra.mxu0 0
        %6053 = vmatprep.subr.bf16.mxu0 0
        %6054 = vmatpush1.bf16.msra.mxu0 0
        %6055 = vmatprep.subr.bf16.mxu0 0
        %6056 = vmatpush1.bf16.msra.mxu0 0
        %6057 = vmatprep.subr.bf16.mxu0 0
        %6058 = vmatpush1.bf16.msra.mxu0 0
        %6059 = vmatprep.subr.bf16.mxu0 0
        %6060 = vmatpush1.bf16.msra.mxu0 0
        %6061 = vmatprep.subr.bf16.mxu0 0
        %6062 = vmatpush1.bf16.msra.mxu0 0
        %6063 = vmatprep.subr.bf16.mxu0 0
        %6064 = vmatpush1.bf16.msra.mxu0 0
        %6065 = vmatprep.subr.bf16.mxu0 0
        %6066 = vmatpush1.bf16.msra.mxu0 0
        %6067 = vmatprep.subr.bf16.mxu0 0
        %6068 = vmatpush1.bf16.msra.mxu0 0
        %6069 = vmatprep.subr.bf16.mxu0 0
        %6070 = vmatpush1.bf16.msra.mxu0 0
        %6071 = vmatprep.mubr.bf16.mxu0 0
        %6072 = vmatmul.mubr.bf16.gmra.mrb[0].mxu0 %v6034
        %v6073 = vpop.f32.mrb[0].mxu0
        %v6074 = vadd.f32 0.0, %v6073
        %v6075 = vpop.f32.mrb[0].mxu0
        %v6076 = vadd.f32 0.0, %v6075
        %v6077 = vpop.f32.mrb[0].mxu0
        %v6078 = vadd.f32 0.0, %v6077
        %v6079 = vpop.f32.mrb[0].mxu0
        %v6080 = vadd.f32 0.0, %v6079
        %6081 = vmatprep.mubr.bf16.mxu0 0
        %6082 = vmatmul.mubr.bf16.gmra.mrb[0].mxu0 %v6037
        %v6083 = vpop.f32.mrb[0].mxu0
        %v6084 = vadd.f32 0.0, %v6083
        %v6085 = vpop.f32.mrb[0].mxu0
        %v6086 = vadd.f32 0.0, %v6085
        %v6087 = vpop.f32.mrb[0].mxu0
        %v6088 = vadd.f32 0.0, %v6087
        %v6089 = vpop.f32.mrb[0].mxu0
        %v6090 = vadd.f32 0.0, %v6089
        %6091 = vdwg.mxu0
        %v6092 = vadd.f32 %v5988, %v6074
        %v6093 = vadd.f32 %v5989, %v6076
        %v6094 = vadd.f32 %v5990, %v6078
        %v6095 = vadd.f32 %v5991, %v6080
        %v6096 = vadd.f32 %v5992, %v6084
        %v6097 = vadd.f32 %v5993, %v6086
        %v6098 = vadd.f32 %v5994, %v6088
        %v6099 = vadd.f32 %v5995, %v6090
        %s6100 = scalar_lea.vmem [#allocation7], 64
        %v6101 = vld [vmem:[%s6100] sm:$0xf]
        %v6102 = vld [vmem:[%s6100 + $0x4] sm:$0xf]
        %v6103 = vld [vmem:[%s6100 + $0x8] sm:$0xf]
        %v6104 = vld [vmem:[%s6100 + $0xc] sm:$0xf]
        %v6109 = vunpack.c.l.b16 %v6101
        %v6110 = vunpack.c.l.b16 %v6102
        %v6111 = vunpack.c.l.b16 %v6103
        %v6112 = vunpack.c.l.b16 %v6104
        %v6113 = vpack.c.b16 %v6110, %v6109
        %v6114 = vpack.c.b16 %v6112, %v6111
        %v6116 = vsel %vm1677, %v6113, 0
        %v6119 = vsel %vm1677, %v6114, 0
        %6121 = vmatprep.subr.bf16.mxu0 %v5698
        %6122 = vmatpush1.bf16.msra.mxu0 %v5697
        %6123 = vmatprep.subr.bf16.mxu0 %v5700
        %6124 = vmatpush1.bf16.msra.mxu0 %v5699
        %6125 = vmatprep.subr.bf16.mxu0 0
        %6126 = vmatpush1.bf16.msra.mxu0 0
        %6127 = vmatprep.subr.bf16.mxu0 0
        %6128 = vmatpush1.bf16.msra.mxu0 0
        %6129 = vmatprep.subr.bf16.mxu0 0
        %6130 = vmatpush1.bf16.msra.mxu0 0
        %6131 = vmatprep.subr.bf16.mxu0 0
        %6132 = vmatpush1.bf16.msra.mxu0 0
        %6133 = vmatprep.subr.bf16.mxu0 0
        %6134 = vmatpush1.bf16.msra.mxu0 0
        %6135 = vmatprep.subr.bf16.mxu0 0
        %6136 = vmatpush1.bf16.msra.mxu0 0
        %6137 = vmatprep.subr.bf16.mxu0 0
        %6138 = vmatpush1.bf16.msra.mxu0 0
        %6139 = vmatprep.subr.bf16.mxu0 0
        %6140 = vmatpush1.bf16.msra.mxu0 0
        %6141 = vmatprep.subr.bf16.mxu0 0
        %6142 = vmatpush1.bf16.msra.mxu0 0
        %6143 = vmatprep.subr.bf16.mxu0 0
        %6144 = vmatpush1.bf16.msra.mxu0 0
        %6145 = vmatprep.subr.bf16.mxu0 0
        %6146 = vmatpush1.bf16.msra.mxu0 0
        %6147 = vmatprep.subr.bf16.mxu0 0
        %6148 = vmatpush1.bf16.msra.mxu0 0
        %6149 = vmatprep.subr.bf16.mxu0 0
        %6150 = vmatpush1.bf16.msra.mxu0 0
        %6151 = vmatprep.subr.bf16.mxu0 0
        %6152 = vmatpush1.bf16.msra.mxu0 0
        %6153 = vmatprep.mubr.bf16.mxu0 0
        %6154 = vmatmul.mubr.bf16.gmra.mrb[0].mxu0 %v6116
        %v6155 = vpop.f32.mrb[0].mxu0
        %v6156 = vadd.f32 0.0, %v6155
        %v6157 = vpop.f32.mrb[0].mxu0
        %v6158 = vadd.f32 0.0, %v6157
        %v6159 = vpop.f32.mrb[0].mxu0
        %v6160 = vadd.f32 0.0, %v6159
        %v6161 = vpop.f32.mrb[0].mxu0
        %v6162 = vadd.f32 0.0, %v6161
        %6163 = vmatprep.mubr.bf16.mxu0 0
        %6164 = vmatmul.mubr.bf16.gmra.mrb[0].mxu0 %v6119
        %v6165 = vpop.f32.mrb[0].mxu0
        %v6166 = vadd.f32 0.0, %v6165
        %v6167 = vpop.f32.mrb[0].mxu0
        %v6168 = vadd.f32 0.0, %v6167
        %v6169 = vpop.f32.mrb[0].mxu0
        %v6170 = vadd.f32 0.0, %v6169
        %v6171 = vpop.f32.mrb[0].mxu0
        %v6172 = vadd.f32 0.0, %v6171
        %6173 = vdwg.mxu0
        %v6174 = vadd.f32 %v6092, %v6156
        %v6175 = vadd.f32 %v6093, %v6158
        %v6176 = vadd.f32 %v6094, %v6160
        %v6177 = vadd.f32 %v6095, %v6162
        %v6178 = vadd.f32 %v6096, %v6166
        %v6179 = vadd.f32 %v6097, %v6168
        %v6180 = vadd.f32 %v6098, %v6170
        %v6181 = vadd.f32 %v6099, %v6172
        %6182 = vrot.lane.b32.xlu0 %v5697, 127
        %v6183 = vpop.permute.xlu0 %6182
        %6184 = vrot.lane.b32.xlu0 %v5698, 127
        %v6185 = vpop.permute.xlu0 %6184
        %6186 = vrot.lane.b32.xlu0 %v5699, 127
        %v6187 = vpop.permute.xlu0 %6186
        %6188 = vrot.lane.b32.xlu0 %v5700, 127
        %v6189 = vpop.permute.xlu0 %6188
        %v6190 = vsel %vm1244, %v6183, %v6185
        %v6191 = vsel %vm1244, %v6187, %v6189
        %v6195 = vsel %vm1247, %v6185, 0
        %v6198 = vsel %vm1247, %v6189, 0
        %v6200 = vmul.bf16 %v6190, %v953
        %v6201 = vmul.bf16 %v6195, %v960
        %v6202 = vmul.bf16 %v6191, %v953
        %v6203 = vmul.bf16 %v6198, %v960
        %s6204 = scalar_lea.vmem [#allocation7], 80
        %v6205 = vld [vmem:[%s6204] sm:$0xf]
        %v6206 = vld [vmem:[%s6204 + $0x4] sm:$0xf]
        %v6207 = vld [vmem:[%s6204 + $0x8] sm:$0xf]
        %v6208 = vld [vmem:[%s6204 + $0xc] sm:$0xf]
        %v6213 = vunpack.c.l.b16 %v6205
        %v6214 = vunpack.c.l.b16 %v6206
        %v6215 = vunpack.c.l.b16 %v6207
        %v6216 = vunpack.c.l.b16 %v6208
        %v6217 = vpack.c.b16 %v6214, %v6213
        %v6218 = vpack.c.b16 %v6216, %v6215
        %v6220 = vsel %vm1677, %v6217, 0
        %v6223 = vsel %vm1677, %v6218, 0
        %6225 = vmatprep.subr.bf16.mxu0 %v6201
        %6226 = vmatpush1.bf16.msra.mxu0 %v6200
        %6227 = vmatprep.subr.bf16.mxu0 %v6203
        %6228 = vmatpush1.bf16.msra.mxu0 %v6202
        %6229 = vmatprep.subr.bf16.mxu0 0
        %6230 = vmatpush1.bf16.msra.mxu0 0
        %6231 = vmatprep.subr.bf16.mxu0 0
        %6232 = vmatpush1.bf16.msra.mxu0 0
        %6233 = vmatprep.subr.bf16.mxu0 0
        %6234 = vmatpush1.bf16.msra.mxu0 0
        %6235 = vmatprep.subr.bf16.mxu0 0
        %6236 = vmatpush1.bf16.msra.mxu0 0
        %6237 = vmatprep.subr.bf16.mxu0 0
        %6238 = vmatpush1.bf16.msra.mxu0 0
        %6239 = vmatprep.subr.bf16.mxu0 0
        %6240 = vmatpush1.bf16.msra.mxu0 0
        %6241 = vmatprep.subr.bf16.mxu0 0
        %6242 = vmatpush1.bf16.msra.mxu0 0
        %6243 = vmatprep.subr.bf16.mxu0 0
        %6244 = vmatpush1.bf16.msra.mxu0 0
        %6245 = vmatprep.subr.bf16.mxu0 0
        %6246 = vmatpush1.bf16.msra.mxu0 0
        %6247 = vmatprep.subr.bf16.mxu0 0
        %6248 = vmatpush1.bf16.msra.mxu0 0
        %6249 = vmatprep.subr.bf16.mxu0 0
        %6250 = vmatpush1.bf16.msra.mxu0 0
        %6251 = vmatprep.subr.bf16.mxu0 0
        %6252 = vmatpush1.bf16.msra.mxu0 0
        %6253 = vmatprep.subr.bf16.mxu0 0
        %6254 = vmatpush1.bf16.msra.mxu0 0
        %6255 = vmatprep.subr.bf16.mxu0 0
        %6256 = vmatpush1.bf16.msra.mxu0 0
        %6257 = vmatprep.mubr.bf16.mxu0 0
        %6258 = vmatmul.mubr.bf16.gmra.mrb[0].mxu0 %v6220
        %v6259 = vpop.f32.mrb[0].mxu0
        %v6260 = vadd.f32 0.0, %v6259
        %v6261 = vpop.f32.mrb[0].mxu0
        %v6262 = vadd.f32 0.0, %v6261
        %v6263 = vpop.f32.mrb[0].mxu0
        %v6264 = vadd.f32 0.0, %v6263
        %v6265 = vpop.f32.mrb[0].mxu0
        %v6266 = vadd.f32 0.0, %v6265
        %6267 = vmatprep.mubr.bf16.mxu0 0
        %6268 = vmatmul.mubr.bf16.gmra.mrb[0].mxu0 %v6223
        %v6269 = vpop.f32.mrb[0].mxu0
        %v6270 = vadd.f32 0.0, %v6269
        %v6271 = vpop.f32.mrb[0].mxu0
        %v6272 = vadd.f32 0.0, %v6271
        %v6273 = vpop.f32.mrb[0].mxu0
        %v6274 = vadd.f32 0.0, %v6273
        %v6275 = vpop.f32.mrb[0].mxu0
        %v6276 = vadd.f32 0.0, %v6275
        %6277 = vdwg.mxu0
        %v6278 = vadd.f32 %v6174, %v6260
        %v6279 = vadd.f32 %v6175, %v6262
        %v6280 = vadd.f32 %v6176, %v6264
        %v6281 = vadd.f32 %v6177, %v6266
        %v6282 = vadd.f32 %v6178, %v6270
        %v6283 = vadd.f32 %v6179, %v6272
        %v6284 = vadd.f32 %v6180, %v6274
        %v6285 = vadd.f32 %v6181, %v6276
        %6286 = vrot.lane.b32.xlu0 %v5697, 113
        %v6287 = vpop.permute.xlu0 %6286
        %6288 = vrot.lane.b32.xlu0 %v5698, 113
        %v6289 = vpop.permute.xlu0 %6288
        %6290 = vrot.lane.b32.xlu0 %v5699, 113
        %v6291 = vpop.permute.xlu0 %6290
        %6292 = vrot.lane.b32.xlu0 %v5700, 113
        %v6293 = vpop.permute.xlu0 %6292
        %v6294 = vsel %vm1345, %v6287, %v6289
        %v6295 = vsel %vm1345, %v6291, %v6293
        %v6299 = vsel %vm1348, %v6289, 0
        %v6302 = vsel %vm1348, %v6293, 0
        %v6304 = vmul.bf16 %v6294, %v757
        %v6305 = vmul.bf16 %v6299, %v764
        %v6306 = vmul.bf16 %v6295, %v757
        %v6307 = vmul.bf16 %v6302, %v764
        %s6308 = scalar_lea.vmem [#allocation7], 96
        %v6309 = vld [vmem:[%s6308] sm:$0xf]
        %v6310 = vld [vmem:[%s6308 + $0x4] sm:$0xf]
        %v6311 = vld [vmem:[%s6308 + $0x8] sm:$0xf]
        %v6312 = vld [vmem:[%s6308 + $0xc] sm:$0xf]
        %v6317 = vunpack.c.l.b16 %v6309
        %v6318 = vunpack.c.l.b16 %v6310
        %v6319 = vunpack.c.l.b16 %v6311
        %v6320 = vunpack.c.l.b16 %v6312
        %v6321 = vpack.c.b16 %v6318, %v6317
        %v6322 = vpack.c.b16 %v6320, %v6319
        %v6324 = vsel %vm1677, %v6321, 0
        %v6327 = vsel %vm1677, %v6322, 0
        %6329 = vmatprep.subr.bf16.mxu0 %v6305
        %6330 = vmatpush1.bf16.msra.mxu0 %v6304
        %6331 = vmatprep.subr.bf16.mxu0 %v6307
        %6332 = vmatpush1.bf16.msra.mxu0 %v6306
        %6333 = vmatprep.subr.bf16.mxu0 0
        %6334 = vmatpush1.bf16.msra.mxu0 0
        %6335 = vmatprep.subr.bf16.mxu0 0
        %6336 = vmatpush1.bf16.msra.mxu0 0
        %6337 = vmatprep.subr.bf16.mxu0 0
        %6338 = vmatpush1.bf16.msra.mxu0 0
        %6339 = vmatprep.subr.bf16.mxu0 0
        %6340 = vmatpush1.bf16.msra.mxu0 0
        %6341 = vmatprep.subr.bf16.mxu0 0
        %6342 = vmatpush1.bf16.msra.mxu0 0
        %6343 = vmatprep.subr.bf16.mxu0 0
        %6344 = vmatpush1.bf16.msra.mxu0 0
        %6345 = vmatprep.subr.bf16.mxu0 0
        %6346 = vmatpush1.bf16.msra.mxu0 0
        %6347 = vmatprep.subr.bf16.mxu0 0
        %6348 = vmatpush1.bf16.msra.mxu0 0
        %6349 = vmatprep.subr.bf16.mxu0 0
        %6350 = vmatpush1.bf16.msra.mxu0 0
        %6351 = vmatprep.subr.bf16.mxu0 0
        %6352 = vmatpush1.bf16.msra.mxu0 0
        %6353 = vmatprep.subr.bf16.mxu0 0
        %6354 = vmatpush1.bf16.msra.mxu0 0
        %6355 = vmatprep.subr.bf16.mxu0 0
        %6356 = vmatpush1.bf16.msra.mxu0 0
        %6357 = vmatprep.subr.bf16.mxu0 0
        %6358 = vmatpush1.bf16.msra.mxu0 0
        %6359 = vmatprep.subr.bf16.mxu0 0
        %6360 = vmatpush1.bf16.msra.mxu0 0
        %6361 = vmatprep.mubr.bf16.mxu0 0
        %6362 = vmatmul.mubr.bf16.gmra.mrb[0].mxu0 %v6324
        %v6363 = vpop.f32.mrb[0].mxu0
        %v6364 = vadd.f32 0.0, %v6363
        %v6365 = vpop.f32.mrb[0].mxu0
        %v6366 = vadd.f32 0.0, %v6365
        %v6367 = vpop.f32.mrb[0].mxu0
        %v6368 = vadd.f32 0.0, %v6367
        %v6369 = vpop.f32.mrb[0].mxu0
        %v6370 = vadd.f32 0.0, %v6369
        %6371 = vmatprep.mubr.bf16.mxu0 0
        %6372 = vmatmul.mubr.bf16.gmra.mrb[0].mxu0 %v6327
        %v6373 = vpop.f32.mrb[0].mxu0
        %v6374 = vadd.f32 0.0, %v6373
        %v6375 = vpop.f32.mrb[0].mxu0
        %v6376 = vadd.f32 0.0, %v6375
        %v6377 = vpop.f32.mrb[0].mxu0
        %v6378 = vadd.f32 0.0, %v6377
        %v6379 = vpop.f32.mrb[0].mxu0
        %v6380 = vadd.f32 0.0, %v6379
        %6381 = vdwg.mxu0
        %v6382 = vadd.f32 %v6278, %v6364
        %v6383 = vadd.f32 %v6279, %v6366
        %v6384 = vadd.f32 %v6280, %v6368
        %v6385 = vadd.f32 %v6281, %v6370
        %v6386 = vadd.f32 %v6282, %v6374
        %v6387 = vadd.f32 %v6283, %v6376
        %v6388 = vadd.f32 %v6284, %v6378
        %v6389 = vadd.f32 %v6285, %v6380
        %6390 = vrot.lane.b32.xlu0 %v5697, 112
        %v6391 = vpop.permute.xlu0 %6390
        %6392 = vrot.lane.b32.xlu0 %v5698, 112
        %v6393 = vpop.permute.xlu0 %6392
        %6394 = vrot.lane.b32.xlu0 %v5699, 112
        %v6395 = vpop.permute.xlu0 %6394
        %6396 = vrot.lane.b32.xlu0 %v5700, 112
        %v6397 = vpop.permute.xlu0 %6396
        %v6398 = vsel %vm1446, %v6391, %v6393
        %v6399 = vsel %vm1446, %v6395, %v6397
        %v6403 = vsel %vm1448, %v6393, 0
        %v6406 = vsel %vm1448, %v6397, 0
        %s6408 = scalar_lea.vmem [#allocation7], 112
        %v6409 = vld [vmem:[%s6408] sm:$0xf]
        %v6410 = vld [vmem:[%s6408 + $0x4] sm:$0xf]
        %v6411 = vld [vmem:[%s6408 + $0x8] sm:$0xf]
        %v6412 = vld [vmem:[%s6408 + $0xc] sm:$0xf]
        %v6417 = vunpack.c.l.b16 %v6409
        %v6418 = vunpack.c.l.b16 %v6410
        %v6419 = vunpack.c.l.b16 %v6411
        %v6420 = vunpack.c.l.b16 %v6412
        %v6421 = vpack.c.b16 %v6418, %v6417
        %v6422 = vpack.c.b16 %v6420, %v6419
        %v6424 = vsel %vm1677, %v6421, 0
        %v6427 = vsel %vm1677, %v6422, 0
        %6429 = vmatprep.subr.bf16.mxu0 %v6403
        %6430 = vmatpush1.bf16.msra.mxu0 %v6398
        %6431 = vmatprep.subr.bf16.mxu0 %v6406
        %6432 = vmatpush1.bf16.msra.mxu0 %v6399
        %6433 = vmatprep.subr.bf16.mxu0 0
        %6434 = vmatpush1.bf16.msra.mxu0 0
        %6435 = vmatprep.subr.bf16.mxu0 0
        %6436 = vmatpush1.bf16.msra.mxu0 0
        %6437 = vmatprep.subr.bf16.mxu0 0
        %6438 = vmatpush1.bf16.msra.mxu0 0
        %6439 = vmatprep.subr.bf16.mxu0 0
        %6440 = vmatpush1.bf16.msra.mxu0 0
        %6441 = vmatprep.subr.bf16.mxu0 0
        %6442 = vmatpush1.bf16.msra.mxu0 0
        %6443 = vmatprep.subr.bf16.mxu0 0
        %6444 = vmatpush1.bf16.msra.mxu0 0
        %6445 = vmatprep.subr.bf16.mxu0 0
        %6446 = vmatpush1.bf16.msra.mxu0 0
        %6447 = vmatprep.subr.bf16.mxu0 0
        %6448 = vmatpush1.bf16.msra.mxu0 0
        %6449 = vmatprep.subr.bf16.mxu0 0
        %6450 = vmatpush1.bf16.msra.mxu0 0
        %6451 = vmatprep.subr.bf16.mxu0 0
        %6452 = vmatpush1.bf16.msra.mxu0 0
        %6453 = vmatprep.subr.bf16.mxu0 0
        %6454 = vmatpush1.bf16.msra.mxu0 0
        %6455 = vmatprep.subr.bf16.mxu0 0
        %6456 = vmatpush1.bf16.msra.mxu0 0
        %6457 = vmatprep.subr.bf16.mxu0 0
        %6458 = vmatpush1.bf16.msra.mxu0 0
        %6459 = vmatprep.subr.bf16.mxu0 0
        %6460 = vmatpush1.bf16.msra.mxu0 0
        %6461 = vmatprep.mubr.bf16.mxu0 0
        %6462 = vmatmul.mubr.bf16.gmra.mrb[0].mxu0 %v6424
        %v6463 = vpop.f32.mrb[0].mxu0
        %v6464 = vadd.f32 0.0, %v6463
        %v6465 = vpop.f32.mrb[0].mxu0
        %v6466 = vadd.f32 0.0, %v6465
        %v6467 = vpop.f32.mrb[0].mxu0
        %v6468 = vadd.f32 0.0, %v6467
        %v6469 = vpop.f32.mrb[0].mxu0
        %v6470 = vadd.f32 0.0, %v6469
        %6471 = vmatprep.mubr.bf16.mxu0 0
        %6472 = vmatmul.mubr.bf16.gmra.mrb[0].mxu0 %v6427
        %v6473 = vpop.f32.mrb[0].mxu0
        %v6474 = vadd.f32 0.0, %v6473
        %v6475 = vpop.f32.mrb[0].mxu0
        %v6476 = vadd.f32 0.0, %v6475
        %v6477 = vpop.f32.mrb[0].mxu0
        %v6478 = vadd.f32 0.0, %v6477
        %v6479 = vpop.f32.mrb[0].mxu0
        %v6480 = vadd.f32 0.0, %v6479
        %6481 = vdwg.mxu0
        %v6482 = vadd.f32 %v6382, %v6464
        %v6483 = vadd.f32 %v6383, %v6466
        %v6484 = vadd.f32 %v6384, %v6468
        %v6485 = vadd.f32 %v6385, %v6470
        %v6486 = vadd.f32 %v6386, %v6474
        %v6487 = vadd.f32 %v6387, %v6476
        %v6488 = vadd.f32 %v6388, %v6478
        %v6489 = vadd.f32 %v6389, %v6480
        %6490 = vrot.lane.b32.xlu0 %v5697, 111
        %v6491 = vpop.permute.xlu0 %6490
        %6492 = vrot.lane.b32.xlu0 %v5698, 111
        %v6493 = vpop.permute.xlu0 %6492
        %6494 = vrot.lane.b32.xlu0 %v5699, 111
        %v6495 = vpop.permute.xlu0 %6494
        %6496 = vrot.lane.b32.xlu0 %v5700, 111
        %v6497 = vpop.permute.xlu0 %6496
        %v6498 = vsel %vm1542, %v6491, %v6493
        %v6499 = vsel %vm1542, %v6495, %v6497
        %v6503 = vsel %vm1545, %v6493, 0
        %v6506 = vsel %vm1545, %v6497, 0
        %v6508 = vmul.bf16 %v6498, %v953
        %v6509 = vmul.bf16 %v6503, %v960
        %v6510 = vmul.bf16 %v6499, %v953
        %v6511 = vmul.bf16 %v6506, %v960
        %s6512 = scalar_lea.vmem [#allocation7], 128
        %v6513 = vld [vmem:[%s6512] sm:$0xf]
        %v6514 = vld [vmem:[%s6512 + $0x4] sm:$0xf]
        %v6515 = vld [vmem:[%s6512 + $0x8] sm:$0xf]
        %v6516 = vld [vmem:[%s6512 + $0xc] sm:$0xf]
        %v6521 = vunpack.c.l.b16 %v6513
        %v6522 = vunpack.c.l.b16 %v6514
        %v6523 = vunpack.c.l.b16 %v6515
        %v6524 = vunpack.c.l.b16 %v6516
        %v6525 = vpack.c.b16 %v6522, %v6521
        %v6526 = vpack.c.b16 %v6524, %v6523
        %v6528 = vsel %vm1677, %v6525, 0
        %v6531 = vsel %vm1677, %v6526, 0
        %6533 = vmatprep.subr.bf16.mxu0 %v6509
        %6534 = vmatpush1.bf16.msra.mxu0 %v6508
        %6535 = vmatprep.subr.bf16.mxu0 %v6511
        %6536 = vmatpush1.bf16.msra.mxu0 %v6510
        %6537 = vmatprep.subr.bf16.mxu0 0
        %6538 = vmatpush1.bf16.msra.mxu0 0
        %6539 = vmatprep.subr.bf16.mxu0 0
        %6540 = vmatpush1.bf16.msra.mxu0 0
        %6541 = vmatprep.subr.bf16.mxu0 0
        %6542 = vmatpush1.bf16.msra.mxu0 0
        %6543 = vmatprep.subr.bf16.mxu0 0
        %6544 = vmatpush1.bf16.msra.mxu0 0
        %6545 = vmatprep.subr.bf16.mxu0 0
        %6546 = vmatpush1.bf16.msra.mxu0 0
        %6547 = vmatprep.subr.bf16.mxu0 0
        %6548 = vmatpush1.bf16.msra.mxu0 0
        %6549 = vmatprep.subr.bf16.mxu0 0
        %6550 = vmatpush1.bf16.msra.mxu0 0
        %6551 = vmatprep.subr.bf16.mxu0 0
        %6552 = vmatpush1.bf16.msra.mxu0 0
        %6553 = vmatprep.subr.bf16.mxu0 0
        %6554 = vmatpush1.bf16.msra.mxu0 0
        %6555 = vmatprep.subr.bf16.mxu0 0
        %6556 = vmatpush1.bf16.msra.mxu0 0
        %6557 = vmatprep.subr.bf16.mxu0 0
        %6558 = vmatpush1.bf16.msra.mxu0 0
        %6559 = vmatprep.subr.bf16.mxu0 0
        %6560 = vmatpush1.bf16.msra.mxu0 0
        %6561 = vmatprep.subr.bf16.mxu0 0
        %6562 = vmatpush1.bf16.msra.mxu0 0
        %6563 = vmatprep.subr.bf16.mxu0 0
        %6564 = vmatpush1.bf16.msra.mxu0 0
        %6565 = vmatprep.mubr.bf16.mxu0 0
        %6566 = vmatmul.mubr.bf16.gmra.mrb[0].mxu0 %v6528
        %v6567 = vpop.f32.mrb[0].mxu0
        %v6568 = vadd.f32 0.0, %v6567
        %v6569 = vpop.f32.mrb[0].mxu0
        %v6570 = vadd.f32 0.0, %v6569
        %v6571 = vpop.f32.mrb[0].mxu0
        %v6572 = vadd.f32 0.0, %v6571
        %v6573 = vpop.f32.mrb[0].mxu0
        %v6574 = vadd.f32 0.0, %v6573
        %6575 = vmatprep.mubr.bf16.mxu0 0
        %6576 = vmatmul.mubr.bf16.gmra.mrb[0].mxu0 %v6531
        %v6577 = vpop.f32.mrb[0].mxu0
        %v6578 = vadd.f32 0.0, %v6577
        %v6579 = vpop.f32.mrb[0].mxu0
        %v6580 = vadd.f32 0.0, %v6579
        %v6581 = vpop.f32.mrb[0].mxu0
        %v6582 = vadd.f32 0.0, %v6581
        %v6583 = vpop.f32.mrb[0].mxu0
        %v6584 = vadd.f32 0.0, %v6583
        %6585 = vdwg.mxu0
        %v6586 = vadd.f32 %v6482, %v6568
        %v6587 = vadd.f32 %v6483, %v6570
        %v6588 = vadd.f32 %v6484, %v6572
        %v6589 = vadd.f32 %v6485, %v6574
        %v6590 = vadd.f32 %v6486, %v6578
        %v6591 = vadd.f32 %v6487, %v6580
        %v6592 = vadd.f32 %v6488, %v6582
        %v6593 = vadd.f32 %v6489, %v6584
        %v6594 = vld [vmem:[%s13] sm:$0xff]
        %v6595 = vld [vmem:[%s13 + $0x8] sm:$0xff]
        %v6596 = vld [vmem:[%s13 + $0x10] sm:$0xff]
        %v6597 = vld [vmem:[%s13 + $0x18] sm:$0xff]
        %6599 = vset.pattern.permute.xlu0 0
        %6600 = vperm.xlu0 %6599, %v6594
        %v6601 = vpop.permute.xlu0 %6600
        %6604 = vset.pattern.permute.xlu0 0
        %6605 = vperm.xlu0 %6604, %v6595
        %v6606 = vpop.permute.xlu0 %6605
        %6609 = vset.pattern.permute.xlu0 0
        %6610 = vperm.xlu0 %6609, %v6596
        %v6611 = vpop.permute.xlu0 %6610
        %6614 = vset.pattern.permute.xlu0 0
        %6615 = vperm.xlu0 %6614, %v6597
        %v6616 = vpop.permute.xlu0 %6615
        %v6618 = vadd.f32 %v6586, %v6601
        %v6619 = vadd.f32 %v6587, %v6601
        %v6620 = vadd.f32 %v6588, %v6606
        %v6621 = vadd.f32 %v6589, %v6606
        %v6622 = vadd.f32 %v6590, %v6611
        %v6623 = vadd.f32 %v6591, %v6611
        %v6624 = vadd.f32 %v6592, %v6616
        %v6625 = vadd.f32 %v6593, %v6616
        %v6626 = vsub.f32 0.0, %v6618
        %v6627 = vsub.f32 0.0, %v6619
        %v6628 = vsub.f32 0.0, %v6620
        %v6629 = vsub.f32 0.0, %v6621
        %v6630 = vsub.f32 0.0, %v6622
        %v6631 = vsub.f32 0.0, %v6623
        %v6632 = vsub.f32 0.0, %v6624
        %v6633 = vsub.f32 0.0, %v6625
        %v6634 = vmul.f32 %v6626, 1.442695
        %v6635 = vpow.pop %v6634
        %v6636 = vmul.f32 %v6627, 1.442695
        %v6637 = vpow.pop %v6636
        %v6638 = vmul.f32 %v6628, 1.442695
        %v6639 = vpow.pop %v6638
        %v6640 = vmul.f32 %v6629, 1.442695
        %v6641 = vpow.pop %v6640
        %v6642 = vmul.f32 %v6630, 1.442695
        %v6643 = vpow.pop %v6642
        %v6644 = vmul.f32 %v6631, 1.442695
        %v6645 = vpow.pop %v6644
        %v6646 = vmul.f32 %v6632, 1.442695
        %v6647 = vpow.pop %v6646
        %v6648 = vmul.f32 %v6633, 1.442695
        %v6649 = vpow.pop %v6648
        %v6650 = vadd.f32 %v6635, 1.0
        %v6651 = vadd.f32 %v6637, 1.0
        %v6652 = vadd.f32 %v6639, 1.0
        %v6653 = vadd.f32 %v6641, 1.0
        %v6654 = vadd.f32 %v6643, 1.0
        %v6655 = vadd.f32 %v6645, 1.0
        %v6656 = vadd.f32 %v6647, 1.0
        %v6657 = vadd.f32 %v6649, 1.0
        %v6658 = vrcp.pop %v6650
        %v6659 = vrcp.pop %v6651
        %v6660 = vrcp.pop %v6652
        %v6661 = vrcp.pop %v6653
        %v6662 = vrcp.pop %v6654
        %v6663 = vrcp.pop %v6655
        %v6664 = vrcp.pop %v6656
        %v6665 = vrcp.pop %v6657
        %v6666 = vmul.f32 %v6618, %v6658
        %v6667 = vmul.f32 %v6619, %v6659
        %v6668 = vmul.f32 %v6620, %v6660
        %v6669 = vmul.f32 %v6621, %v6661
        %v6670 = vmul.f32 %v6622, %v6662
        %v6671 = vmul.f32 %v6623, %v6663
        %v6672 = vmul.f32 %v6624, %v6664
        %v6673 = vmul.f32 %v6625, %v6665
        %v6674 = vpack.c.bf16 %v6668, %v6666
        %v6675 = vpack.c.bf16 %v6669, %v6667
        %v6676 = vpack.c.bf16 %v6672, %v6670
        %v6677 = vpack.c.bf16 %v6673, %v6671
        %6682 = vrot.lane.b32.xlu0 %v6674, 17
        %v6683 = vpop.permute.xlu0 %6682
        %6684 = vrot.lane.b32.xlu0 %v6675, 17
        %v6685 = vpop.permute.xlu0 %6684
        %6686 = vrot.lane.b32.xlu0 %v6676, 17
        %v6687 = vpop.permute.xlu0 %6686
        %6688 = vrot.lane.b32.xlu0 %v6677, 17
        %v6689 = vpop.permute.xlu0 %6688
        %v6690 = vsel %vm720, %v6683, %v6685
        %v6691 = vsel %vm720, %v6687, %v6689
        %v6695 = vsel %vm723, 0, %v6683
        %v6698 = vsel %vm723, 0, %v6687
        %v6700 = vmul.bf16 %v6695, %v757
        %v6701 = vmul.bf16 %v6690, %v764
        %v6702 = vmul.bf16 %v6698, %v757
        %v6703 = vmul.bf16 %v6691, %v764
        %v6704 = vld [vmem:[#allocation8] sm:$0xf]
        %v6705 = vld [vmem:[#allocation8 + $0x4] sm:$0xf]
        %v6706 = vld [vmem:[#allocation8 + $0x8] sm:$0xf]
        %v6707 = vld [vmem:[#allocation8 + $0xc] sm:$0xf]
        %6708 = vrot.lane.b32.xlu0 %v6674, 16
        %v6709 = vpop.permute.xlu0 %6708
        %6710 = vrot.lane.b32.xlu0 %v6675, 16
        %v6711 = vpop.permute.xlu0 %6710
        %6712 = vrot.lane.b32.xlu0 %v6676, 16
        %v6713 = vpop.permute.xlu0 %6712
        %6714 = vrot.lane.b32.xlu0 %v6677, 16
        %v6715 = vpop.permute.xlu0 %6714
        %v6716 = vsel %vm775, %v6709, %v6711
        %v6717 = vsel %vm775, %v6713, %v6715
        %v6721 = vsel %vm777, 0, %v6709
        %v6724 = vsel %vm777, 0, %v6713
        %s6726 = scalar_lea.vmem [#allocation8], 16
        %v6727 = vld [vmem:[%s6726] sm:$0xf]
        %v6728 = vld [vmem:[%s6726 + $0x4] sm:$0xf]
        %v6729 = vld [vmem:[%s6726 + $0x8] sm:$0xf]
        %v6730 = vld [vmem:[%s6726 + $0xc] sm:$0xf]
        %v6735 = vunpack.c.l.b16 %v6727
        %v6736 = vunpack.c.l.b16 %v6728
        %v6737 = vunpack.c.l.b16 %v6729
        %v6738 = vunpack.c.l.b16 %v6730
        %v6739 = vpack.c.b16 %v6736, %v6735
        %v6740 = vpack.c.b16 %v6738, %v6737
        %v6742 = vsel %vm1677, %v6739, 0
        %v6745 = vsel %vm1677, %v6740, 0
        %6747 = vmatprep.subr.bf16.mxu0 %v6716
        %6748 = vmatpush1.bf16.msra.mxu0 %v6721
        %6749 = vmatprep.subr.bf16.mxu0 %v6717
        %6750 = vmatpush1.bf16.msra.mxu0 %v6724
        %6751 = vmatprep.subr.bf16.mxu0 0
        %6752 = vmatpush1.bf16.msra.mxu0 0
        %6753 = vmatprep.subr.bf16.mxu0 0
        %6754 = vmatpush1.bf16.msra.mxu0 0
        %6755 = vmatprep.subr.bf16.mxu0 0
        %6756 = vmatpush1.bf16.msra.mxu0 0
        %6757 = vmatprep.subr.bf16.mxu0 0
        %6758 = vmatpush1.bf16.msra.mxu0 0
        %6759 = vmatprep.subr.bf16.mxu0 0
        %6760 = vmatpush1.bf16.msra.mxu0 0
        %6761 = vmatprep.subr.bf16.mxu0 0
        %6762 = vmatpush1.bf16.msra.mxu0 0
        %6763 = vmatprep.subr.bf16.mxu0 0
        %6764 = vmatpush1.bf16.msra.mxu0 0
        %6765 = vmatprep.subr.bf16.mxu0 0
        %6766 = vmatpush1.bf16.msra.mxu0 0
        %6767 = vmatprep.subr.bf16.mxu0 0
        %6768 = vmatpush1.bf16.msra.mxu0 0
        %6769 = vmatprep.subr.bf16.mxu0 0
        %6770 = vmatpush1.bf16.msra.mxu0 0
        %6771 = vmatprep.subr.bf16.mxu0 0
        %6772 = vmatpush1.bf16.msra.mxu0 0
        %6773 = vmatprep.subr.bf16.mxu0 0
        %6774 = vmatpush1.bf16.msra.mxu0 0
        %6775 = vmatprep.subr.bf16.mxu0 0
        %6776 = vmatpush1.bf16.msra.mxu0 0
        %6777 = vmatprep.subr.bf16.mxu0 0
        %6778 = vmatpush1.bf16.msra.mxu0 0
        %6779 = vmatprep.mubr.bf16.mxu0 0
        %6780 = vmatmul.mubr.bf16.gmra.mrb[0].mxu0 %v6742
        %v6781 = vpop.f32.mrb[0].mxu0
        %v6782 = vadd.f32 0.0, %v6781
        %v6783 = vpop.f32.mrb[0].mxu0
        %v6784 = vadd.f32 0.0, %v6783
        %v6785 = vpop.f32.mrb[0].mxu0
        %v6786 = vadd.f32 0.0, %v6785
        %v6787 = vpop.f32.mrb[0].mxu0
        %v6788 = vadd.f32 0.0, %v6787
        %6789 = vmatprep.mubr.bf16.mxu0 0
        %6790 = vmatmul.mubr.bf16.gmra.mrb[0].mxu0 %v6745
        %v6791 = vpop.f32.mrb[0].mxu0
        %v6792 = vadd.f32 0.0, %v6791
        %v6793 = vpop.f32.mrb[0].mxu0
        %v6794 = vadd.f32 0.0, %v6793
        %v6795 = vpop.f32.mrb[0].mxu0
        %v6796 = vadd.f32 0.0, %v6795
        %v6797 = vpop.f32.mrb[0].mxu0
        %v6798 = vadd.f32 0.0, %v6797
        %6799 = vdwg.mxu0
        %v6804 = vunpack.c.l.b16 %v6704
        %v6805 = vunpack.c.l.b16 %v6705
        %v6806 = vunpack.c.l.b16 %v6706
        %v6807 = vunpack.c.l.b16 %v6707
        %v6808 = vpack.c.b16 %v6805, %v6804
        %v6809 = vpack.c.b16 %v6807, %v6806
        %v6811 = vsel %vm1677, %v6808, 0
        %v6814 = vsel %vm1677, %v6809, 0
        %6816 = vmatprep.subr.bf16.mxu0 %v6701
        %6817 = vmatpush1.bf16.msra.mxu0 %v6700
        %6818 = vmatprep.subr.bf16.mxu0 %v6703
        %6819 = vmatpush1.bf16.msra.mxu0 %v6702
        %6820 = vmatprep.subr.bf16.mxu0 0
        %6821 = vmatpush1.bf16.msra.mxu0 0
        %6822 = vmatprep.subr.bf16.mxu0 0
        %6823 = vmatpush1.bf16.msra.mxu0 0
        %6824 = vmatprep.subr.bf16.mxu0 0
        %6825 = vmatpush1.bf16.msra.mxu0 0
        %6826 = vmatprep.subr.bf16.mxu0 0
        %6827 = vmatpush1.bf16.msra.mxu0 0
        %6828 = vmatprep.subr.bf16.mxu0 0
        %6829 = vmatpush1.bf16.msra.mxu0 0
        %6830 = vmatprep.subr.bf16.mxu0 0
        %6831 = vmatpush1.bf16.msra.mxu0 0
        %6832 = vmatprep.subr.bf16.mxu0 0
        %6833 = vmatpush1.bf16.msra.mxu0 0
        %6834 = vmatprep.subr.bf16.mxu0 0
        %6835 = vmatpush1.bf16.msra.mxu0 0
        %6836 = vmatprep.subr.bf16.mxu0 0
        %6837 = vmatpush1.bf16.msra.mxu0 0
        %6838 = vmatprep.subr.bf16.mxu0 0
        %6839 = vmatpush1.bf16.msra.mxu0 0
        %6840 = vmatprep.subr.bf16.mxu0 0
        %6841 = vmatpush1.bf16.msra.mxu0 0
        %6842 = vmatprep.subr.bf16.mxu0 0
        %6843 = vmatpush1.bf16.msra.mxu0 0
        %6844 = vmatprep.subr.bf16.mxu0 0
        %6845 = vmatpush1.bf16.msra.mxu0 0
        %6846 = vmatprep.subr.bf16.mxu0 0
        %6847 = vmatpush1.bf16.msra.mxu0 0
        %6848 = vmatprep.mubr.bf16.mxu0 0
        %6849 = vmatmul.mubr.bf16.gmra.mrb[0].mxu0 %v6811
        %v6850 = vpop.f32.mrb[0].mxu0
        %v6851 = vadd.f32 %v6782, %v6850
        %v6852 = vpop.f32.mrb[0].mxu0
        %v6853 = vadd.f32 %v6784, %v6852
        %v6854 = vpop.f32.mrb[0].mxu0
        %v6855 = vadd.f32 %v6786, %v6854
        %v6856 = vpop.f32.mrb[0].mxu0
        %v6857 = vadd.f32 %v6788, %v6856
        %6858 = vmatprep.mubr.bf16.mxu0 0
        %6859 = vmatmul.mubr.bf16.gmra.mrb[0].mxu0 %v6814
        %v6860 = vpop.f32.mrb[0].mxu0
        %v6861 = vadd.f32 %v6792, %v6860
        %v6862 = vpop.f32.mrb[0].mxu0
        %v6863 = vadd.f32 %v6794, %v6862
        %v6864 = vpop.f32.mrb[0].mxu0
        %v6865 = vadd.f32 %v6796, %v6864
        %v6866 = vpop.f32.mrb[0].mxu0
        %v6867 = vadd.f32 %v6798, %v6866
        %6868 = vdwg.mxu0
        %6869 = vrot.lane.b32.xlu0 %v6674, 15
        %v6870 = vpop.permute.xlu0 %6869
        %6871 = vrot.lane.b32.xlu0 %v6675, 15
        %v6872 = vpop.permute.xlu0 %6871
        %6873 = vrot.lane.b32.xlu0 %v6676, 15
        %v6874 = vpop.permute.xlu0 %6873
        %6875 = vrot.lane.b32.xlu0 %v6677, 15
        %v6876 = vpop.permute.xlu0 %6875
        %v6877 = vsel %vm940, %v6870, %v6872
        %v6878 = vsel %vm940, %v6874, %v6876
        %v6882 = vsel %vm943, 0, %v6870
        %v6885 = vsel %vm943, 0, %v6874
        %v6887 = vmul.bf16 %v6882, %v953
        %v6888 = vmul.bf16 %v6877, %v960
        %v6889 = vmul.bf16 %v6885, %v953
        %v6890 = vmul.bf16 %v6878, %v960
        %s6891 = scalar_lea.vmem [#allocation8], 32
        %v6892 = vld [vmem:[%s6891] sm:$0xf]
        %v6893 = vld [vmem:[%s6891 + $0x4] sm:$0xf]
        %v6894 = vld [vmem:[%s6891 + $0x8] sm:$0xf]
        %v6895 = vld [vmem:[%s6891 + $0xc] sm:$0xf]
        %v6900 = vunpack.c.l.b16 %v6892
        %v6901 = vunpack.c.l.b16 %v6893
        %v6902 = vunpack.c.l.b16 %v6894
        %v6903 = vunpack.c.l.b16 %v6895
        %v6904 = vpack.c.b16 %v6901, %v6900
        %v6905 = vpack.c.b16 %v6903, %v6902
        %v6907 = vsel %vm1677, %v6904, 0
        %v6910 = vsel %vm1677, %v6905, 0
        %6912 = vmatprep.subr.bf16.mxu0 %v6888
        %6913 = vmatpush1.bf16.msra.mxu0 %v6887
        %6914 = vmatprep.subr.bf16.mxu0 %v6890
        %6915 = vmatpush1.bf16.msra.mxu0 %v6889
        %6916 = vmatprep.subr.bf16.mxu0 0
        %6917 = vmatpush1.bf16.msra.mxu0 0
        %6918 = vmatprep.subr.bf16.mxu0 0
        %6919 = vmatpush1.bf16.msra.mxu0 0
        %6920 = vmatprep.subr.bf16.mxu0 0
        %6921 = vmatpush1.bf16.msra.mxu0 0
        %6922 = vmatprep.subr.bf16.mxu0 0
        %6923 = vmatpush1.bf16.msra.mxu0 0
        %6924 = vmatprep.subr.bf16.mxu0 0
        %6925 = vmatpush1.bf16.msra.mxu0 0
        %6926 = vmatprep.subr.bf16.mxu0 0
        %6927 = vmatpush1.bf16.msra.mxu0 0
        %6928 = vmatprep.subr.bf16.mxu0 0
        %6929 = vmatpush1.bf16.msra.mxu0 0
        %6930 = vmatprep.subr.bf16.mxu0 0
        %6931 = vmatpush1.bf16.msra.mxu0 0
        %6932 = vmatprep.subr.bf16.mxu0 0
        %6933 = vmatpush1.bf16.msra.mxu0 0
        %6934 = vmatprep.subr.bf16.mxu0 0
        %6935 = vmatpush1.bf16.msra.mxu0 0
        %6936 = vmatprep.subr.bf16.mxu0 0
        %6937 = vmatpush1.bf16.msra.mxu0 0
        %6938 = vmatprep.subr.bf16.mxu0 0
        %6939 = vmatpush1.bf16.msra.mxu0 0
        %6940 = vmatprep.subr.bf16.mxu0 0
        %6941 = vmatpush1.bf16.msra.mxu0 0
        %6942 = vmatprep.subr.bf16.mxu0 0
        %6943 = vmatpush1.bf16.msra.mxu0 0
        %6944 = vmatprep.mubr.bf16.mxu0 0
        %6945 = vmatmul.mubr.bf16.gmra.mrb[0].mxu0 %v6907
        %v6946 = vpop.f32.mrb[0].mxu0
        %v6947 = vadd.f32 0.0, %v6946
        %v6948 = vpop.f32.mrb[0].mxu0
        %v6949 = vadd.f32 0.0, %v6948
        %v6950 = vpop.f32.mrb[0].mxu0
        %v6951 = vadd.f32 0.0, %v6950
        %v6952 = vpop.f32.mrb[0].mxu0
        %v6953 = vadd.f32 0.0, %v6952
        %6954 = vmatprep.mubr.bf16.mxu0 0
        %6955 = vmatmul.mubr.bf16.gmra.mrb[0].mxu0 %v6910
        %v6956 = vpop.f32.mrb[0].mxu0
        %v6957 = vadd.f32 0.0, %v6956
        %v6958 = vpop.f32.mrb[0].mxu0
        %v6959 = vadd.f32 0.0, %v6958
        %v6960 = vpop.f32.mrb[0].mxu0
        %v6961 = vadd.f32 0.0, %v6960
        %v6962 = vpop.f32.mrb[0].mxu0
        %v6963 = vadd.f32 0.0, %v6962
        %6964 = vdwg.mxu0
        %v6965 = vadd.f32 %v6851, %v6947
        %v6966 = vadd.f32 %v6853, %v6949
        %v6967 = vadd.f32 %v6855, %v6951
        %v6968 = vadd.f32 %v6857, %v6953
        %v6969 = vadd.f32 %v6861, %v6957
        %v6970 = vadd.f32 %v6863, %v6959
        %v6971 = vadd.f32 %v6865, %v6961
        %v6972 = vadd.f32 %v6867, %v6963
        %6973 = vrot.lane.b32.xlu0 %v6674, 1
        %v6974 = vpop.permute.xlu0 %6973
        %6975 = vrot.lane.b32.xlu0 %v6675, 1
        %v6976 = vpop.permute.xlu0 %6975
        %6977 = vrot.lane.b32.xlu0 %v6676, 1
        %v6978 = vpop.permute.xlu0 %6977
        %6979 = vrot.lane.b32.xlu0 %v6677, 1
        %v6980 = vpop.permute.xlu0 %6979
        %v6981 = vsel %vm1055, %v6974, %v6976
        %v6982 = vsel %vm1055, %v6978, %v6980
        %v6986 = vsel %vm1058, 0, %v6974
        %v6989 = vsel %vm1058, 0, %v6978
        %v6991 = vmul.bf16 %v6986, %v757
        %v6992 = vmul.bf16 %v6981, %v764
        %v6993 = vmul.bf16 %v6989, %v757
        %v6994 = vmul.bf16 %v6982, %v764
        %s6995 = scalar_lea.vmem [#allocation8], 48
        %v6996 = vld [vmem:[%s6995] sm:$0xf]
        %v6997 = vld [vmem:[%s6995 + $0x4] sm:$0xf]
        %v6998 = vld [vmem:[%s6995 + $0x8] sm:$0xf]
        %v6999 = vld [vmem:[%s6995 + $0xc] sm:$0xf]
        %v7004 = vunpack.c.l.b16 %v6996
        %v7005 = vunpack.c.l.b16 %v6997
        %v7006 = vunpack.c.l.b16 %v6998
        %v7007 = vunpack.c.l.b16 %v6999
        %v7008 = vpack.c.b16 %v7005, %v7004
        %v7009 = vpack.c.b16 %v7007, %v7006
        %v7011 = vsel %vm1677, %v7008, 0
        %v7014 = vsel %vm1677, %v7009, 0
        %7016 = vmatprep.subr.bf16.mxu0 %v6992
        %7017 = vmatpush1.bf16.msra.mxu0 %v6991
        %7018 = vmatprep.subr.bf16.mxu0 %v6994
        %7019 = vmatpush1.bf16.msra.mxu0 %v6993
        %7020 = vmatprep.subr.bf16.mxu0 0
        %7021 = vmatpush1.bf16.msra.mxu0 0
        %7022 = vmatprep.subr.bf16.mxu0 0
        %7023 = vmatpush1.bf16.msra.mxu0 0
        %7024 = vmatprep.subr.bf16.mxu0 0
        %7025 = vmatpush1.bf16.msra.mxu0 0
        %7026 = vmatprep.subr.bf16.mxu0 0
        %7027 = vmatpush1.bf16.msra.mxu0 0
        %7028 = vmatprep.subr.bf16.mxu0 0
        %7029 = vmatpush1.bf16.msra.mxu0 0
        %7030 = vmatprep.subr.bf16.mxu0 0
        %7031 = vmatpush1.bf16.msra.mxu0 0
        %7032 = vmatprep.subr.bf16.mxu0 0
        %7033 = vmatpush1.bf16.msra.mxu0 0
        %7034 = vmatprep.subr.bf16.mxu0 0
        %7035 = vmatpush1.bf16.msra.mxu0 0
        %7036 = vmatprep.subr.bf16.mxu0 0
        %7037 = vmatpush1.bf16.msra.mxu0 0
        %7038 = vmatprep.subr.bf16.mxu0 0
        %7039 = vmatpush1.bf16.msra.mxu0 0
        %7040 = vmatprep.subr.bf16.mxu0 0
        %7041 = vmatpush1.bf16.msra.mxu0 0
        %7042 = vmatprep.subr.bf16.mxu0 0
        %7043 = vmatpush1.bf16.msra.mxu0 0
        %7044 = vmatprep.subr.bf16.mxu0 0
        %7045 = vmatpush1.bf16.msra.mxu0 0
        %7046 = vmatprep.subr.bf16.mxu0 0
        %7047 = vmatpush1.bf16.msra.mxu0 0
        %7048 = vmatprep.mubr.bf16.mxu0 0
        %7049 = vmatmul.mubr.bf16.gmra.mrb[0].mxu0 %v7011
        %v7050 = vpop.f32.mrb[0].mxu0
        %v7051 = vadd.f32 0.0, %v7050
        %v7052 = vpop.f32.mrb[0].mxu0
        %v7053 = vadd.f32 0.0, %v7052
        %v7054 = vpop.f32.mrb[0].mxu0
        %v7055 = vadd.f32 0.0, %v7054
        %v7056 = vpop.f32.mrb[0].mxu0
        %v7057 = vadd.f32 0.0, %v7056
        %7058 = vmatprep.mubr.bf16.mxu0 0
        %7059 = vmatmul.mubr.bf16.gmra.mrb[0].mxu0 %v7014
        %v7060 = vpop.f32.mrb[0].mxu0
        %v7061 = vadd.f32 0.0, %v7060
        %v7062 = vpop.f32.mrb[0].mxu0
        %v7063 = vadd.f32 0.0, %v7062
        %v7064 = vpop.f32.mrb[0].mxu0
        %v7065 = vadd.f32 0.0, %v7064
        %v7066 = vpop.f32.mrb[0].mxu0
        %v7067 = vadd.f32 0.0, %v7066
        %7068 = vdwg.mxu0
        %v7069 = vadd.f32 %v6965, %v7051
        %v7070 = vadd.f32 %v6966, %v7053
        %v7071 = vadd.f32 %v6967, %v7055
        %v7072 = vadd.f32 %v6968, %v7057
        %v7073 = vadd.f32 %v6969, %v7061
        %v7074 = vadd.f32 %v6970, %v7063
        %v7075 = vadd.f32 %v6971, %v7065
        %v7076 = vadd.f32 %v6972, %v7067
        %s7077 = scalar_lea.vmem [#allocation8], 64
        %v7078 = vld [vmem:[%s7077] sm:$0xf]
        %v7079 = vld [vmem:[%s7077 + $0x4] sm:$0xf]
        %v7080 = vld [vmem:[%s7077 + $0x8] sm:$0xf]
        %v7081 = vld [vmem:[%s7077 + $0xc] sm:$0xf]
        %v7086 = vunpack.c.l.b16 %v7078
        %v7087 = vunpack.c.l.b16 %v7079
        %v7088 = vunpack.c.l.b16 %v7080
        %v7089 = vunpack.c.l.b16 %v7081
        %v7090 = vpack.c.b16 %v7087, %v7086
        %v7091 = vpack.c.b16 %v7089, %v7088
        %v7093 = vsel %vm1677, %v7090, 0
        %v7096 = vsel %vm1677, %v7091, 0
        %7098 = vmatprep.subr.bf16.mxu0 %v6675
        %7099 = vmatpush1.bf16.msra.mxu0 %v6674
        %7100 = vmatprep.subr.bf16.mxu0 %v6677
        %7101 = vmatpush1.bf16.msra.mxu0 %v6676
        %7102 = vmatprep.subr.bf16.mxu0 0
        %7103 = vmatpush1.bf16.msra.mxu0 0
        %7104 = vmatprep.subr.bf16.mxu0 0
        %7105 = vmatpush1.bf16.msra.mxu0 0
        %7106 = vmatprep.subr.bf16.mxu0 0
        %7107 = vmatpush1.bf16.msra.mxu0 0
        %7108 = vmatprep.subr.bf16.mxu0 0
        %7109 = vmatpush1.bf16.msra.mxu0 0
        %7110 = vmatprep.subr.bf16.mxu0 0
        %7111 = vmatpush1.bf16.msra.mxu0 0
        %7112 = vmatprep.subr.bf16.mxu0 0
        %7113 = vmatpush1.bf16.msra.mxu0 0
        %7114 = vmatprep.subr.bf16.mxu0 0
        %7115 = vmatpush1.bf16.msra.mxu0 0
        %7116 = vmatprep.subr.bf16.mxu0 0
        %7117 = vmatpush1.bf16.msra.mxu0 0
        %7118 = vmatprep.subr.bf16.mxu0 0
        %7119 = vmatpush1.bf16.msra.mxu0 0
        %7120 = vmatprep.subr.bf16.mxu0 0
        %7121 = vmatpush1.bf16.msra.mxu0 0
        %7122 = vmatprep.subr.bf16.mxu0 0
        %7123 = vmatpush1.bf16.msra.mxu0 0
        %7124 = vmatprep.subr.bf16.mxu0 0
        %7125 = vmatpush1.bf16.msra.mxu0 0
        %7126 = vmatprep.subr.bf16.mxu0 0
        %7127 = vmatpush1.bf16.msra.mxu0 0
        %7128 = vmatprep.subr.bf16.mxu0 0
        %7129 = vmatpush1.bf16.msra.mxu0 0
        %7130 = vmatprep.mubr.bf16.mxu0 0
        %7131 = vmatmul.mubr.bf16.gmra.mrb[0].mxu0 %v7093
        %v7132 = vpop.f32.mrb[0].mxu0
        %v7133 = vadd.f32 0.0, %v7132
        %v7134 = vpop.f32.mrb[0].mxu0
        %v7135 = vadd.f32 0.0, %v7134
        %v7136 = vpop.f32.mrb[0].mxu0
        %v7137 = vadd.f32 0.0, %v7136
        %v7138 = vpop.f32.mrb[0].mxu0
        %v7139 = vadd.f32 0.0, %v7138
        %7140 = vmatprep.mubr.bf16.mxu0 0
        %7141 = vmatmul.mubr.bf16.gmra.mrb[0].mxu0 %v7096
        %v7142 = vpop.f32.mrb[0].mxu0
        %v7143 = vadd.f32 0.0, %v7142
        %v7144 = vpop.f32.mrb[0].mxu0
        %v7145 = vadd.f32 0.0, %v7144
        %v7146 = vpop.f32.mrb[0].mxu0
        %v7147 = vadd.f32 0.0, %v7146
        %v7148 = vpop.f32.mrb[0].mxu0
        %v7149 = vadd.f32 0.0, %v7148
        %7150 = vdwg.mxu0
        %v7151 = vadd.f32 %v7069, %v7133
        %v7152 = vadd.f32 %v7070, %v7135
        %v7153 = vadd.f32 %v7071, %v7137
        %v7154 = vadd.f32 %v7072, %v7139
        %v7155 = vadd.f32 %v7073, %v7143
        %v7156 = vadd.f32 %v7074, %v7145
        %v7157 = vadd.f32 %v7075, %v7147
        %v7158 = vadd.f32 %v7076, %v7149
        %7159 = vrot.lane.b32.xlu0 %v6674, 127
        %v7160 = vpop.permute.xlu0 %7159
        %7161 = vrot.lane.b32.xlu0 %v6675, 127
        %v7162 = vpop.permute.xlu0 %7161
        %7163 = vrot.lane.b32.xlu0 %v6676, 127
        %v7164 = vpop.permute.xlu0 %7163
        %7165 = vrot.lane.b32.xlu0 %v6677, 127
        %v7166 = vpop.permute.xlu0 %7165
        %v7167 = vsel %vm1244, %v7160, %v7162
        %v7168 = vsel %vm1244, %v7164, %v7166
        %v7172 = vsel %vm1247, %v7162, 0
        %v7175 = vsel %vm1247, %v7166, 0
        %v7177 = vmul.bf16 %v7167, %v953
        %v7178 = vmul.bf16 %v7172, %v960
        %v7179 = vmul.bf16 %v7168, %v953
        %v7180 = vmul.bf16 %v7175, %v960
        %s7181 = scalar_lea.vmem [#allocation8], 80
        %v7182 = vld [vmem:[%s7181] sm:$0xf]
        %v7183 = vld [vmem:[%s7181 + $0x4] sm:$0xf]
        %v7184 = vld [vmem:[%s7181 + $0x8] sm:$0xf]
        %v7185 = vld [vmem:[%s7181 + $0xc] sm:$0xf]
        %v7190 = vunpack.c.l.b16 %v7182
        %v7191 = vunpack.c.l.b16 %v7183
        %v7192 = vunpack.c.l.b16 %v7184
        %v7193 = vunpack.c.l.b16 %v7185
        %v7194 = vpack.c.b16 %v7191, %v7190
        %v7195 = vpack.c.b16 %v7193, %v7192
        %v7197 = vsel %vm1677, %v7194, 0
        %v7200 = vsel %vm1677, %v7195, 0
        %7202 = vmatprep.subr.bf16.mxu0 %v7178
        %7203 = vmatpush1.bf16.msra.mxu0 %v7177
        %7204 = vmatprep.subr.bf16.mxu0 %v7180
        %7205 = vmatpush1.bf16.msra.mxu0 %v7179
        %7206 = vmatprep.subr.bf16.mxu0 0
        %7207 = vmatpush1.bf16.msra.mxu0 0
        %7208 = vmatprep.subr.bf16.mxu0 0
        %7209 = vmatpush1.bf16.msra.mxu0 0
        %7210 = vmatprep.subr.bf16.mxu0 0
        %7211 = vmatpush1.bf16.msra.mxu0 0
        %7212 = vmatprep.subr.bf16.mxu0 0
        %7213 = vmatpush1.bf16.msra.mxu0 0
        %7214 = vmatprep.subr.bf16.mxu0 0
        %7215 = vmatpush1.bf16.msra.mxu0 0
        %7216 = vmatprep.subr.bf16.mxu0 0
        %7217 = vmatpush1.bf16.msra.mxu0 0
        %7218 = vmatprep.subr.bf16.mxu0 0
        %7219 = vmatpush1.bf16.msra.mxu0 0
        %7220 = vmatprep.subr.bf16.mxu0 0
        %7221 = vmatpush1.bf16.msra.mxu0 0
        %7222 = vmatprep.subr.bf16.mxu0 0
        %7223 = vmatpush1.bf16.msra.mxu0 0
        %7224 = vmatprep.subr.bf16.mxu0 0
        %7225 = vmatpush1.bf16.msra.mxu0 0
        %7226 = vmatprep.subr.bf16.mxu0 0
        %7227 = vmatpush1.bf16.msra.mxu0 0
        %7228 = vmatprep.subr.bf16.mxu0 0
        %7229 = vmatpush1.bf16.msra.mxu0 0
        %7230 = vmatprep.subr.bf16.mxu0 0
        %7231 = vmatpush1.bf16.msra.mxu0 0
        %7232 = vmatprep.subr.bf16.mxu0 0
        %7233 = vmatpush1.bf16.msra.mxu0 0
        %7234 = vmatprep.mubr.bf16.mxu0 0
        %7235 = vmatmul.mubr.bf16.gmra.mrb[0].mxu0 %v7197
        %v7236 = vpop.f32.mrb[0].mxu0
        %v7237 = vadd.f32 0.0, %v7236
        %v7238 = vpop.f32.mrb[0].mxu0
        %v7239 = vadd.f32 0.0, %v7238
        %v7240 = vpop.f32.mrb[0].mxu0
        %v7241 = vadd.f32 0.0, %v7240
        %v7242 = vpop.f32.mrb[0].mxu0
        %v7243 = vadd.f32 0.0, %v7242
        %7244 = vmatprep.mubr.bf16.mxu0 0
        %7245 = vmatmul.mubr.bf16.gmra.mrb[0].mxu0 %v7200
        %v7246 = vpop.f32.mrb[0].mxu0
        %v7247 = vadd.f32 0.0, %v7246
        %v7248 = vpop.f32.mrb[0].mxu0
        %v7249 = vadd.f32 0.0, %v7248
        %v7250 = vpop.f32.mrb[0].mxu0
        %v7251 = vadd.f32 0.0, %v7250
        %v7252 = vpop.f32.mrb[0].mxu0
        %v7253 = vadd.f32 0.0, %v7252
        %7254 = vdwg.mxu0
        %v7255 = vadd.f32 %v7151, %v7237
        %v7256 = vadd.f32 %v7152, %v7239
        %v7257 = vadd.f32 %v7153, %v7241
        %v7258 = vadd.f32 %v7154, %v7243
        %v7259 = vadd.f32 %v7155, %v7247
        %v7260 = vadd.f32 %v7156, %v7249
        %v7261 = vadd.f32 %v7157, %v7251
        %v7262 = vadd.f32 %v7158, %v7253
        %7263 = vrot.lane.b32.xlu0 %v6674, 113
        %v7264 = vpop.permute.xlu0 %7263
        %7265 = vrot.lane.b32.xlu0 %v6675, 113
        %v7266 = vpop.permute.xlu0 %7265
        %7267 = vrot.lane.b32.xlu0 %v6676, 113
        %v7268 = vpop.permute.xlu0 %7267
        %7269 = vrot.lane.b32.xlu0 %v6677, 113
        %v7270 = vpop.permute.xlu0 %7269
        %v7271 = vsel %vm1345, %v7264, %v7266
        %v7272 = vsel %vm1345, %v7268, %v7270
        %v7276 = vsel %vm1348, %v7266, 0
        %v7279 = vsel %vm1348, %v7270, 0
        %v7281 = vmul.bf16 %v7271, %v757
        %v7282 = vmul.bf16 %v7276, %v764
        %v7283 = vmul.bf16 %v7272, %v757
        %v7284 = vmul.bf16 %v7279, %v764
        %s7285 = scalar_lea.vmem [#allocation8], 96
        %v7286 = vld [vmem:[%s7285] sm:$0xf]
        %v7287 = vld [vmem:[%s7285 + $0x4] sm:$0xf]
        %v7288 = vld [vmem:[%s7285 + $0x8] sm:$0xf]
        %v7289 = vld [vmem:[%s7285 + $0xc] sm:$0xf]
        %v7294 = vunpack.c.l.b16 %v7286
        %v7295 = vunpack.c.l.b16 %v7287
        %v7296 = vunpack.c.l.b16 %v7288
        %v7297 = vunpack.c.l.b16 %v7289
        %v7298 = vpack.c.b16 %v7295, %v7294
        %v7299 = vpack.c.b16 %v7297, %v7296
        %v7301 = vsel %vm1677, %v7298, 0
        %v7304 = vsel %vm1677, %v7299, 0
        %7306 = vmatprep.subr.bf16.mxu0 %v7282
        %7307 = vmatpush1.bf16.msra.mxu0 %v7281
        %7308 = vmatprep.subr.bf16.mxu0 %v7284
        %7309 = vmatpush1.bf16.msra.mxu0 %v7283
        %7310 = vmatprep.subr.bf16.mxu0 0
        %7311 = vmatpush1.bf16.msra.mxu0 0
        %7312 = vmatprep.subr.bf16.mxu0 0
        %7313 = vmatpush1.bf16.msra.mxu0 0
        %7314 = vmatprep.subr.bf16.mxu0 0
        %7315 = vmatpush1.bf16.msra.mxu0 0
        %7316 = vmatprep.subr.bf16.mxu0 0
        %7317 = vmatpush1.bf16.msra.mxu0 0
        %7318 = vmatprep.subr.bf16.mxu0 0
        %7319 = vmatpush1.bf16.msra.mxu0 0
        %7320 = vmatprep.subr.bf16.mxu0 0
        %7321 = vmatpush1.bf16.msra.mxu0 0
        %7322 = vmatprep.subr.bf16.mxu0 0
        %7323 = vmatpush1.bf16.msra.mxu0 0
        %7324 = vmatprep.subr.bf16.mxu0 0
        %7325 = vmatpush1.bf16.msra.mxu0 0
        %7326 = vmatprep.subr.bf16.mxu0 0
        %7327 = vmatpush1.bf16.msra.mxu0 0
        %7328 = vmatprep.subr.bf16.mxu0 0
        %7329 = vmatpush1.bf16.msra.mxu0 0
        %7330 = vmatprep.subr.bf16.mxu0 0
        %7331 = vmatpush1.bf16.msra.mxu0 0
        %7332 = vmatprep.subr.bf16.mxu0 0
        %7333 = vmatpush1.bf16.msra.mxu0 0
        %7334 = vmatprep.subr.bf16.mxu0 0
        %7335 = vmatpush1.bf16.msra.mxu0 0
        %7336 = vmatprep.subr.bf16.mxu0 0
        %7337 = vmatpush1.bf16.msra.mxu0 0
        %7338 = vmatprep.mubr.bf16.mxu0 0
        %7339 = vmatmul.mubr.bf16.gmra.mrb[0].mxu0 %v7301
        %v7340 = vpop.f32.mrb[0].mxu0
        %v7341 = vadd.f32 0.0, %v7340
        %v7342 = vpop.f32.mrb[0].mxu0
        %v7343 = vadd.f32 0.0, %v7342
        %v7344 = vpop.f32.mrb[0].mxu0
        %v7345 = vadd.f32 0.0, %v7344
        %v7346 = vpop.f32.mrb[0].mxu0
        %v7347 = vadd.f32 0.0, %v7346
        %7348 = vmatprep.mubr.bf16.mxu0 0
        %7349 = vmatmul.mubr.bf16.gmra.mrb[0].mxu0 %v7304
        %v7350 = vpop.f32.mrb[0].mxu0
        %v7351 = vadd.f32 0.0, %v7350
        %v7352 = vpop.f32.mrb[0].mxu0
        %v7353 = vadd.f32 0.0, %v7352
        %v7354 = vpop.f32.mrb[0].mxu0
        %v7355 = vadd.f32 0.0, %v7354
        %v7356 = vpop.f32.mrb[0].mxu0
        %v7357 = vadd.f32 0.0, %v7356
        %7358 = vdwg.mxu0
        %v7359 = vadd.f32 %v7255, %v7341
        %v7360 = vadd.f32 %v7256, %v7343
        %v7361 = vadd.f32 %v7257, %v7345
        %v7362 = vadd.f32 %v7258, %v7347
        %v7363 = vadd.f32 %v7259, %v7351
        %v7364 = vadd.f32 %v7260, %v7353
        %v7365 = vadd.f32 %v7261, %v7355
        %v7366 = vadd.f32 %v7262, %v7357
        %7367 = vrot.lane.b32.xlu0 %v6674, 112
        %v7368 = vpop.permute.xlu0 %7367
        %7369 = vrot.lane.b32.xlu0 %v6675, 112
        %v7370 = vpop.permute.xlu0 %7369
        %7371 = vrot.lane.b32.xlu0 %v6676, 112
        %v7372 = vpop.permute.xlu0 %7371
        %7373 = vrot.lane.b32.xlu0 %v6677, 112
        %v7374 = vpop.permute.xlu0 %7373
        %v7375 = vsel %vm1446, %v7368, %v7370
        %v7376 = vsel %vm1446, %v7372, %v7374
        %v7380 = vsel %vm1448, %v7370, 0
        %v7383 = vsel %vm1448, %v7374, 0
        %s7385 = scalar_lea.vmem [#allocation8], 112
        %v7386 = vld [vmem:[%s7385] sm:$0xf]
        %v7387 = vld [vmem:[%s7385 + $0x4] sm:$0xf]
        %v7388 = vld [vmem:[%s7385 + $0x8] sm:$0xf]
        %v7389 = vld [vmem:[%s7385 + $0xc] sm:$0xf]
        %v7394 = vunpack.c.l.b16 %v7386
        %v7395 = vunpack.c.l.b16 %v7387
        %v7396 = vunpack.c.l.b16 %v7388
        %v7397 = vunpack.c.l.b16 %v7389
        %v7398 = vpack.c.b16 %v7395, %v7394
        %v7399 = vpack.c.b16 %v7397, %v7396
        %v7401 = vsel %vm1677, %v7398, 0
        %v7404 = vsel %vm1677, %v7399, 0
        %7406 = vmatprep.subr.bf16.mxu0 %v7380
        %7407 = vmatpush1.bf16.msra.mxu0 %v7375
        %7408 = vmatprep.subr.bf16.mxu0 %v7383
        %7409 = vmatpush1.bf16.msra.mxu0 %v7376
        %7410 = vmatprep.subr.bf16.mxu0 0
        %7411 = vmatpush1.bf16.msra.mxu0 0
        %7412 = vmatprep.subr.bf16.mxu0 0
        %7413 = vmatpush1.bf16.msra.mxu0 0
        %7414 = vmatprep.subr.bf16.mxu0 0
        %7415 = vmatpush1.bf16.msra.mxu0 0
        %7416 = vmatprep.subr.bf16.mxu0 0
        %7417 = vmatpush1.bf16.msra.mxu0 0
        %7418 = vmatprep.subr.bf16.mxu0 0
        %7419 = vmatpush1.bf16.msra.mxu0 0
        %7420 = vmatprep.subr.bf16.mxu0 0
        %7421 = vmatpush1.bf16.msra.mxu0 0
        %7422 = vmatprep.subr.bf16.mxu0 0
        %7423 = vmatpush1.bf16.msra.mxu0 0
        %7424 = vmatprep.subr.bf16.mxu0 0
        %7425 = vmatpush1.bf16.msra.mxu0 0
        %7426 = vmatprep.subr.bf16.mxu0 0
        %7427 = vmatpush1.bf16.msra.mxu0 0
        %7428 = vmatprep.subr.bf16.mxu0 0
        %7429 = vmatpush1.bf16.msra.mxu0 0
        %7430 = vmatprep.subr.bf16.mxu0 0
        %7431 = vmatpush1.bf16.msra.mxu0 0
        %7432 = vmatprep.subr.bf16.mxu0 0
        %7433 = vmatpush1.bf16.msra.mxu0 0
        %7434 = vmatprep.subr.bf16.mxu0 0
        %7435 = vmatpush1.bf16.msra.mxu0 0
        %7436 = vmatprep.subr.bf16.mxu0 0
        %7437 = vmatpush1.bf16.msra.mxu0 0
        %7438 = vmatprep.mubr.bf16.mxu0 0
        %7439 = vmatmul.mubr.bf16.gmra.mrb[0].mxu0 %v7401
        %v7440 = vpop.f32.mrb[0].mxu0
        %v7441 = vadd.f32 0.0, %v7440
        %v7442 = vpop.f32.mrb[0].mxu0
        %v7443 = vadd.f32 0.0, %v7442
        %v7444 = vpop.f32.mrb[0].mxu0
        %v7445 = vadd.f32 0.0, %v7444
        %v7446 = vpop.f32.mrb[0].mxu0
        %v7447 = vadd.f32 0.0, %v7446
        %7448 = vmatprep.mubr.bf16.mxu0 0
        %7449 = vmatmul.mubr.bf16.gmra.mrb[0].mxu0 %v7404
        %v7450 = vpop.f32.mrb[0].mxu0
        %v7451 = vadd.f32 0.0, %v7450
        %v7452 = vpop.f32.mrb[0].mxu0
        %v7453 = vadd.f32 0.0, %v7452
        %v7454 = vpop.f32.mrb[0].mxu0
        %v7455 = vadd.f32 0.0, %v7454
        %v7456 = vpop.f32.mrb[0].mxu0
        %v7457 = vadd.f32 0.0, %v7456
        %7458 = vdwg.mxu0
        %v7459 = vadd.f32 %v7359, %v7441
        %v7460 = vadd.f32 %v7360, %v7443
        %v7461 = vadd.f32 %v7361, %v7445
        %v7462 = vadd.f32 %v7362, %v7447
        %v7463 = vadd.f32 %v7363, %v7451
        %v7464 = vadd.f32 %v7364, %v7453
        %v7465 = vadd.f32 %v7365, %v7455
        %v7466 = vadd.f32 %v7366, %v7457
        %7467 = vrot.lane.b32.xlu0 %v6674, 111
        %v7468 = vpop.permute.xlu0 %7467
        %7469 = vrot.lane.b32.xlu0 %v6675, 111
        %v7470 = vpop.permute.xlu0 %7469
        %7471 = vrot.lane.b32.xlu0 %v6676, 111
        %v7472 = vpop.permute.xlu0 %7471
        %7473 = vrot.lane.b32.xlu0 %v6677, 111
        %v7474 = vpop.permute.xlu0 %7473
        %v7475 = vsel %vm1542, %v7468, %v7470
        %v7476 = vsel %vm1542, %v7472, %v7474
        %v7480 = vsel %vm1545, %v7470, 0
        %v7483 = vsel %vm1545, %v7474, 0
        %v7485 = vmul.bf16 %v7475, %v953
        %v7486 = vmul.bf16 %v7480, %v960
        %v7487 = vmul.bf16 %v7476, %v953
        %v7488 = vmul.bf16 %v7483, %v960
        %s7489 = scalar_lea.vmem [#allocation8], 128
        %v7490 = vld [vmem:[%s7489] sm:$0xf]
        %v7491 = vld [vmem:[%s7489 + $0x4] sm:$0xf]
        %v7492 = vld [vmem:[%s7489 + $0x8] sm:$0xf]
        %v7493 = vld [vmem:[%s7489 + $0xc] sm:$0xf]
        %v7498 = vunpack.c.l.b16 %v7490
        %v7499 = vunpack.c.l.b16 %v7491
        %v7500 = vunpack.c.l.b16 %v7492
        %v7501 = vunpack.c.l.b16 %v7493
        %v7502 = vpack.c.b16 %v7499, %v7498
        %v7503 = vpack.c.b16 %v7501, %v7500
        %v7505 = vsel %vm1677, %v7502, 0
        %v7508 = vsel %vm1677, %v7503, 0
        %7510 = vmatprep.subr.bf16.mxu0 %v7486
        %7511 = vmatpush1.bf16.msra.mxu0 %v7485
        %7512 = vmatprep.subr.bf16.mxu0 %v7488
        %7513 = vmatpush1.bf16.msra.mxu0 %v7487
        %7514 = vmatprep.subr.bf16.mxu0 0
        %7515 = vmatpush1.bf16.msra.mxu0 0
        %7516 = vmatprep.subr.bf16.mxu0 0
        %7517 = vmatpush1.bf16.msra.mxu0 0
        %7518 = vmatprep.subr.bf16.mxu0 0
        %7519 = vmatpush1.bf16.msra.mxu0 0
        %7520 = vmatprep.subr.bf16.mxu0 0
        %7521 = vmatpush1.bf16.msra.mxu0 0
        %7522 = vmatprep.subr.bf16.mxu0 0
        %7523 = vmatpush1.bf16.msra.mxu0 0
        %7524 = vmatprep.subr.bf16.mxu0 0
        %7525 = vmatpush1.bf16.msra.mxu0 0
        %7526 = vmatprep.subr.bf16.mxu0 0
        %7527 = vmatpush1.bf16.msra.mxu0 0
        %7528 = vmatprep.subr.bf16.mxu0 0
        %7529 = vmatpush1.bf16.msra.mxu0 0
        %7530 = vmatprep.subr.bf16.mxu0 0
        %7531 = vmatpush1.bf16.msra.mxu0 0
        %7532 = vmatprep.subr.bf16.mxu0 0
        %7533 = vmatpush1.bf16.msra.mxu0 0
        %7534 = vmatprep.subr.bf16.mxu0 0
        %7535 = vmatpush1.bf16.msra.mxu0 0
        %7536 = vmatprep.subr.bf16.mxu0 0
        %7537 = vmatpush1.bf16.msra.mxu0 0
        %7538 = vmatprep.subr.bf16.mxu0 0
        %7539 = vmatpush1.bf16.msra.mxu0 0
        %7540 = vmatprep.subr.bf16.mxu0 0
        %7541 = vmatpush1.bf16.msra.mxu0 0
        %7542 = vmatprep.mubr.bf16.mxu0 0
        %7543 = vmatmul.mubr.bf16.gmra.mrb[0].mxu0 %v7505
        %v7544 = vpop.f32.mrb[0].mxu0
        %v7545 = vadd.f32 0.0, %v7544
        %v7546 = vpop.f32.mrb[0].mxu0
        %v7547 = vadd.f32 0.0, %v7546
        %v7548 = vpop.f32.mrb[0].mxu0
        %v7549 = vadd.f32 0.0, %v7548
        %v7550 = vpop.f32.mrb[0].mxu0
        %v7551 = vadd.f32 0.0, %v7550
        %7552 = vmatprep.mubr.bf16.mxu0 0
        %7553 = vmatmul.mubr.bf16.gmra.mrb[0].mxu0 %v7508
        %v7554 = vpop.f32.mrb[0].mxu0
        %v7555 = vadd.f32 0.0, %v7554
        %v7556 = vpop.f32.mrb[0].mxu0
        %v7557 = vadd.f32 0.0, %v7556
        %v7558 = vpop.f32.mrb[0].mxu0
        %v7559 = vadd.f32 0.0, %v7558
        %v7560 = vpop.f32.mrb[0].mxu0
        %v7561 = vadd.f32 0.0, %v7560
        %7562 = vdwg.mxu0
        %v7563 = vadd.f32 %v7459, %v7545
        %v7564 = vadd.f32 %v7460, %v7547
        %v7565 = vadd.f32 %v7461, %v7549
        %v7566 = vadd.f32 %v7462, %v7551
        %v7567 = vadd.f32 %v7463, %v7555
        %v7568 = vadd.f32 %v7464, %v7557
        %v7569 = vadd.f32 %v7465, %v7559
        %v7570 = vadd.f32 %v7466, %v7561
        %v7571 = vld [vmem:[%s15] sm:$0xff]
        %v7572 = vld [vmem:[%s15 + $0x8] sm:$0xff]
        %v7573 = vld [vmem:[%s15 + $0x10] sm:$0xff]
        %v7574 = vld [vmem:[%s15 + $0x18] sm:$0xff]
        %7576 = vset.pattern.permute.xlu0 0
        %7577 = vperm.xlu0 %7576, %v7571
        %v7578 = vpop.permute.xlu0 %7577
        %7581 = vset.pattern.permute.xlu0 0
        %7582 = vperm.xlu0 %7581, %v7572
        %v7583 = vpop.permute.xlu0 %7582
        %7586 = vset.pattern.permute.xlu0 0
        %7587 = vperm.xlu0 %7586, %v7573
        %v7588 = vpop.permute.xlu0 %7587
        %7591 = vset.pattern.permute.xlu0 0
        %7592 = vperm.xlu0 %7591, %v7574
        %v7593 = vpop.permute.xlu0 %7592
        %v7595 = vadd.f32 %v7563, %v7578
        %v7596 = vadd.f32 %v7564, %v7578
        %v7597 = vadd.f32 %v7565, %v7583
        %v7598 = vadd.f32 %v7566, %v7583
        %v7599 = vadd.f32 %v7567, %v7588
        %v7600 = vadd.f32 %v7568, %v7588
        %v7601 = vadd.f32 %v7569, %v7593
        %v7602 = vadd.f32 %v7570, %v7593
        %v7603 = vsub.f32 0.0, %v7595
        %v7604 = vsub.f32 0.0, %v7596
        %v7605 = vsub.f32 0.0, %v7597
        %v7606 = vsub.f32 0.0, %v7598
        %v7607 = vsub.f32 0.0, %v7599
        %v7608 = vsub.f32 0.0, %v7600
        %v7609 = vsub.f32 0.0, %v7601
        %v7610 = vsub.f32 0.0, %v7602
        %v7611 = vmul.f32 %v7603, 1.442695
        %v7612 = vpow.pop %v7611
        %v7613 = vmul.f32 %v7604, 1.442695
        %v7614 = vpow.pop %v7613
        %v7615 = vmul.f32 %v7605, 1.442695
        %v7616 = vpow.pop %v7615
        %v7617 = vmul.f32 %v7606, 1.442695
        %v7618 = vpow.pop %v7617
        %v7619 = vmul.f32 %v7607, 1.442695
        %v7620 = vpow.pop %v7619
        %v7621 = vmul.f32 %v7608, 1.442695
        %v7622 = vpow.pop %v7621
        %v7623 = vmul.f32 %v7609, 1.442695
        %v7624 = vpow.pop %v7623
        %v7625 = vmul.f32 %v7610, 1.442695
        %v7626 = vpow.pop %v7625
        %v7627 = vadd.f32 %v7612, 1.0
        %v7628 = vadd.f32 %v7614, 1.0
        %v7629 = vadd.f32 %v7616, 1.0
        %v7630 = vadd.f32 %v7618, 1.0
        %v7631 = vadd.f32 %v7620, 1.0
        %v7632 = vadd.f32 %v7622, 1.0
        %v7633 = vadd.f32 %v7624, 1.0
        %v7634 = vadd.f32 %v7626, 1.0
        %v7635 = vrcp.pop %v7627
        %v7636 = vrcp.pop %v7628
        %v7637 = vrcp.pop %v7629
        %v7638 = vrcp.pop %v7630
        %v7639 = vrcp.pop %v7631
        %v7640 = vrcp.pop %v7632
        %v7641 = vrcp.pop %v7633
        %v7642 = vrcp.pop %v7634
        %v7643 = vsub.f32 %v7635, 0.5
        %v7644 = vsub.f32 %v7636, 0.5
        %v7645 = vsub.f32 %v7637, 0.5
        %v7646 = vsub.f32 %v7638, 0.5
        %v7647 = vsub.f32 %v7639, 0.5
        %v7648 = vsub.f32 %v7640, 0.5
        %v7649 = vsub.f32 %v7641, 0.5
        %v7650 = vsub.f32 %v7642, 0.5
        %v7651 = vadd.f32 %v7595, %v4664
        %v7652 = vadd.f32 %v7596, %v4665
        %v7653 = vadd.f32 %v7597, %v4666
        %v7654 = vadd.f32 %v7598, %v4667
        %v7655 = vadd.f32 %v7599, %v4668
        %v7656 = vadd.f32 %v7600, %v4669
        %v7657 = vadd.f32 %v7601, %v4670
        %v7658 = vadd.f32 %v7602, %v4671
        %v7659 = vmul.f32 %v7651, %v7643
        %v7660 = vmul.f32 %v7652, %v7644
        %v7661 = vmul.f32 %v7653, %v7645
        %v7662 = vmul.f32 %v7654, %v7646
        %v7663 = vmul.f32 %v7655, %v7647
        %v7664 = vmul.f32 %v7656, %v7648
        %v7665 = vmul.f32 %v7657, %v7649
        %v7666 = vmul.f32 %v7658, %v7650
        %s7667 = scalar_lea.vmem %s18, 6
        %v7668 = vld [vmem:[%s7667] sm:$0x3]
        %v7669 = vpack.c.bf16 %v5643, %v5641
        %v7670 = vpack.c.bf16 %v5644, %v5642
        %v7671 = vpack.c.bf16 %v5647, %v5645
        %v7672 = vpack.c.bf16 %v5648, %v5646
        %v7674 = vsel %vm1677, %v7668, 0
        %7676 = vmatprep.subr.bf16.mxu0 %v7670
        %7677 = vmatpush1.bf16.msra.mxu0 %v7669
        %7678 = vmatprep.subr.bf16.mxu0 %v7672
        %7679 = vmatpush1.bf16.msra.mxu0 %v7671
        %7680 = vmatprep.subr.bf16.mxu0 0
        %7681 = vmatpush1.bf16.msra.mxu0 0
        %7682 = vmatprep.subr.bf16.mxu0 0
        %7683 = vmatpush1.bf16.msra.mxu0 0
        %7684 = vmatprep.subr.bf16.mxu0 0
        %7685 = vmatpush1.bf16.msra.mxu0 0
        %7686 = vmatprep.subr.bf16.mxu0 0
        %7687 = vmatpush1.bf16.msra.mxu0 0
        %7688 = vmatprep.subr.bf16.mxu0 0
        %7689 = vmatpush1.bf16.msra.mxu0 0
        %7690 = vmatprep.subr.bf16.mxu0 0
        %7691 = vmatpush1.bf16.msra.mxu0 0
        %7692 = vmatprep.subr.bf16.mxu0 0
        %7693 = vmatpush1.bf16.msra.mxu0 0
        %7694 = vmatprep.subr.bf16.mxu0 0
        %7695 = vmatpush1.bf16.msra.mxu0 0
        %7696 = vmatprep.subr.bf16.mxu0 0
        %7697 = vmatpush1.bf16.msra.mxu0 0
        %7698 = vmatprep.subr.bf16.mxu0 0
        %7699 = vmatpush1.bf16.msra.mxu0 0
        %7700 = vmatprep.subr.bf16.mxu0 0
        %7701 = vmatpush1.bf16.msra.mxu0 0
        %7702 = vmatprep.subr.bf16.mxu0 0
        %7703 = vmatpush1.bf16.msra.mxu0 0
        %7704 = vmatprep.subr.bf16.mxu0 0
        %7705 = vmatpush1.bf16.msra.mxu0 0
        %7706 = vmatprep.subr.bf16.mxu0 0
        %7707 = vmatpush1.bf16.msra.mxu0 0
        %7708 = vmatprep.mubr.bf16.mxu0 0
        %7709 = vmatmul.mubr.bf16.gmra.mrb[0].mxu0 %v7674
        %v7710 = vpop.f32.mrb[0].mxu0
        %v7711 = vadd.f32 0.0, %v7710
        %v7712 = vpop.f32.mrb[0].mxu0
        %v7713 = vadd.f32 0.0, %v7712
        %v7714 = vpop.f32.mrb[0].mxu0
        %v7715 = vpop.f32.mrb[0].mxu0
        %7716 = vdwg.mxu0
        %v7717 = vadd.f32 %v4722, %v7711
        %v7718 = vadd.f32 %v4723, %v7713
        %v7719 = vpack.c.bf16 %v7661, %v7659
        %v7720 = vpack.c.bf16 %v7662, %v7660
        %v7721 = vpack.c.bf16 %v7665, %v7663
        %v7722 = vpack.c.bf16 %v7666, %v7664
        %7727 = vrot.lane.b32.xlu0 %v7719, 17
        %v7728 = vpop.permute.xlu0 %7727
        %7729 = vrot.lane.b32.xlu0 %v7720, 17
        %v7730 = vpop.permute.xlu0 %7729
        %7731 = vrot.lane.b32.xlu0 %v7721, 17
        %v7732 = vpop.permute.xlu0 %7731
        %7733 = vrot.lane.b32.xlu0 %v7722, 17
        %v7734 = vpop.permute.xlu0 %7733
        %v7735 = vsel %vm720, %v7728, %v7730
        %v7736 = vsel %vm720, %v7732, %v7734
        %v7740 = vsel %vm723, 0, %v7728
        %v7743 = vsel %vm723, 0, %v7732
        %v7745 = vmul.bf16 %v7740, %v757
        %v7746 = vmul.bf16 %v7735, %v764
        %v7747 = vmul.bf16 %v7743, %v757
        %v7748 = vmul.bf16 %v7736, %v764
        %v7749 = vld [vmem:[#allocation10] sm:$0xf]
        %v7750 = vld [vmem:[#allocation10 + $0x4] sm:$0xf]
        %v7751 = vld [vmem:[#allocation10 + $0x8] sm:$0xf]
        %v7752 = vld [vmem:[#allocation10 + $0xc] sm:$0xf]
        %7753 = vrot.lane.b32.xlu0 %v7719, 16
        %v7754 = vpop.permute.xlu0 %7753
        %7755 = vrot.lane.b32.xlu0 %v7720, 16
        %v7756 = vpop.permute.xlu0 %7755
        %7757 = vrot.lane.b32.xlu0 %v7721, 16
        %v7758 = vpop.permute.xlu0 %7757
        %7759 = vrot.lane.b32.xlu0 %v7722, 16
        %v7760 = vpop.permute.xlu0 %7759
        %v7761 = vsel %vm775, %v7754, %v7756
        %v7762 = vsel %vm775, %v7758, %v7760
        %v7766 = vsel %vm777, 0, %v7754
        %v7769 = vsel %vm777, 0, %v7758
        %s7771 = scalar_lea.vmem [#allocation10], 16
        %v7772 = vld [vmem:[%s7771] sm:$0xf]
        %v7773 = vld [vmem:[%s7771 + $0x4] sm:$0xf]
        %v7774 = vld [vmem:[%s7771 + $0x8] sm:$0xf]
        %v7775 = vld [vmem:[%s7771 + $0xc] sm:$0xf]
        %v7780 = vunpack.c.l.b16 %v7772
        %v7781 = vunpack.c.l.b16 %v7773
        %v7782 = vunpack.c.l.b16 %v7774
        %v7783 = vunpack.c.l.b16 %v7775
        %v7784 = vpack.c.b16 %v7781, %v7780
        %v7785 = vpack.c.b16 %v7783, %v7782
        %v7787 = vsel %vm1677, %v7784, 0
        %v7790 = vsel %vm1677, %v7785, 0
        %7792 = vmatprep.subr.bf16.mxu0 %v7761
        %7793 = vmatpush1.bf16.msra.mxu0 %v7766
        %7794 = vmatprep.subr.bf16.mxu0 %v7762
        %7795 = vmatpush1.bf16.msra.mxu0 %v7769
        %7796 = vmatprep.subr.bf16.mxu0 0
        %7797 = vmatpush1.bf16.msra.mxu0 0
        %7798 = vmatprep.subr.bf16.mxu0 0
        %7799 = vmatpush1.bf16.msra.mxu0 0
        %7800 = vmatprep.subr.bf16.mxu0 0
        %7801 = vmatpush1.bf16.msra.mxu0 0
        %7802 = vmatprep.subr.bf16.mxu0 0
        %7803 = vmatpush1.bf16.msra.mxu0 0
        %7804 = vmatprep.subr.bf16.mxu0 0
        %7805 = vmatpush1.bf16.msra.mxu0 0
        %7806 = vmatprep.subr.bf16.mxu0 0
        %7807 = vmatpush1.bf16.msra.mxu0 0
        %7808 = vmatprep.subr.bf16.mxu0 0
        %7809 = vmatpush1.bf16.msra.mxu0 0
        %7810 = vmatprep.subr.bf16.mxu0 0
        %7811 = vmatpush1.bf16.msra.mxu0 0
        %7812 = vmatprep.subr.bf16.mxu0 0
        %7813 = vmatpush1.bf16.msra.mxu0 0
        %7814 = vmatprep.subr.bf16.mxu0 0
        %7815 = vmatpush1.bf16.msra.mxu0 0
        %7816 = vmatprep.subr.bf16.mxu0 0
        %7817 = vmatpush1.bf16.msra.mxu0 0
        %7818 = vmatprep.subr.bf16.mxu0 0
        %7819 = vmatpush1.bf16.msra.mxu0 0
        %7820 = vmatprep.subr.bf16.mxu0 0
        %7821 = vmatpush1.bf16.msra.mxu0 0
        %7822 = vmatprep.subr.bf16.mxu0 0
        %7823 = vmatpush1.bf16.msra.mxu0 0
        %7824 = vmatprep.mubr.bf16.mxu0 0
        %7825 = vmatmul.mubr.bf16.gmra.mrb[0].mxu0 %v7787
        %v7826 = vpop.f32.mrb[0].mxu0
        %v7827 = vadd.f32 0.0, %v7826
        %v7828 = vpop.f32.mrb[0].mxu0
        %v7829 = vadd.f32 0.0, %v7828
        %v7830 = vpop.f32.mrb[0].mxu0
        %v7831 = vadd.f32 0.0, %v7830
        %v7832 = vpop.f32.mrb[0].mxu0
        %v7833 = vadd.f32 0.0, %v7832
        %7834 = vmatprep.mubr.bf16.mxu0 0
        %7835 = vmatmul.mubr.bf16.gmra.mrb[0].mxu0 %v7790
        %v7836 = vpop.f32.mrb[0].mxu0
        %v7837 = vadd.f32 0.0, %v7836
        %v7838 = vpop.f32.mrb[0].mxu0
        %v7839 = vadd.f32 0.0, %v7838
        %v7840 = vpop.f32.mrb[0].mxu0
        %v7841 = vadd.f32 0.0, %v7840
        %v7842 = vpop.f32.mrb[0].mxu0
        %v7843 = vadd.f32 0.0, %v7842
        %7844 = vdwg.mxu0
        %v7849 = vunpack.c.l.b16 %v7749
        %v7850 = vunpack.c.l.b16 %v7750
        %v7851 = vunpack.c.l.b16 %v7751
        %v7852 = vunpack.c.l.b16 %v7752
        %v7853 = vpack.c.b16 %v7850, %v7849
        %v7854 = vpack.c.b16 %v7852, %v7851
        %v7856 = vsel %vm1677, %v7853, 0
        %v7859 = vsel %vm1677, %v7854, 0
        %7861 = vmatprep.subr.bf16.mxu0 %v7746
        %7862 = vmatpush1.bf16.msra.mxu0 %v7745
        %7863 = vmatprep.subr.bf16.mxu0 %v7748
        %7864 = vmatpush1.bf16.msra.mxu0 %v7747
        %7865 = vmatprep.subr.bf16.mxu0 0
        %7866 = vmatpush1.bf16.msra.mxu0 0
        %7867 = vmatprep.subr.bf16.mxu0 0
        %7868 = vmatpush1.bf16.msra.mxu0 0
        %7869 = vmatprep.subr.bf16.mxu0 0
        %7870 = vmatpush1.bf16.msra.mxu0 0
        %7871 = vmatprep.subr.bf16.mxu0 0
        %7872 = vmatpush1.bf16.msra.mxu0 0
        %7873 = vmatprep.subr.bf16.mxu0 0
        %7874 = vmatpush1.bf16.msra.mxu0 0
        %7875 = vmatprep.subr.bf16.mxu0 0
        %7876 = vmatpush1.bf16.msra.mxu0 0
        %7877 = vmatprep.subr.bf16.mxu0 0
        %7878 = vmatpush1.bf16.msra.mxu0 0
        %7879 = vmatprep.subr.bf16.mxu0 0
        %7880 = vmatpush1.bf16.msra.mxu0 0
        %7881 = vmatprep.subr.bf16.mxu0 0
        %7882 = vmatpush1.bf16.msra.mxu0 0
        %7883 = vmatprep.subr.bf16.mxu0 0
        %7884 = vmatpush1.bf16.msra.mxu0 0
        %7885 = vmatprep.subr.bf16.mxu0 0
        %7886 = vmatpush1.bf16.msra.mxu0 0
        %7887 = vmatprep.subr.bf16.mxu0 0
        %7888 = vmatpush1.bf16.msra.mxu0 0
        %7889 = vmatprep.subr.bf16.mxu0 0
        %7890 = vmatpush1.bf16.msra.mxu0 0
        %7891 = vmatprep.subr.bf16.mxu0 0
        %7892 = vmatpush1.bf16.msra.mxu0 0
        %7893 = vmatprep.mubr.bf16.mxu0 0
        %7894 = vmatmul.mubr.bf16.gmra.mrb[0].mxu0 %v7856
        %v7895 = vpop.f32.mrb[0].mxu0
        %v7896 = vadd.f32 %v7827, %v7895
        %v7897 = vpop.f32.mrb[0].mxu0
        %v7898 = vadd.f32 %v7829, %v7897
        %v7899 = vpop.f32.mrb[0].mxu0
        %v7900 = vadd.f32 %v7831, %v7899
        %v7901 = vpop.f32.mrb[0].mxu0
        %v7902 = vadd.f32 %v7833, %v7901
        %7903 = vmatprep.mubr.bf16.mxu0 0
        %7904 = vmatmul.mubr.bf16.gmra.mrb[0].mxu0 %v7859
        %v7905 = vpop.f32.mrb[0].mxu0
        %v7906 = vadd.f32 %v7837, %v7905
        %v7907 = vpop.f32.mrb[0].mxu0
        %v7908 = vadd.f32 %v7839, %v7907
        %v7909 = vpop.f32.mrb[0].mxu0
        %v7910 = vadd.f32 %v7841, %v7909
        %v7911 = vpop.f32.mrb[0].mxu0
        %v7912 = vadd.f32 %v7843, %v7911
        %7913 = vdwg.mxu0
        %7914 = vrot.lane.b32.xlu0 %v7719, 15
        %v7915 = vpop.permute.xlu0 %7914
        %7916 = vrot.lane.b32.xlu0 %v7720, 15
        %v7917 = vpop.permute.xlu0 %7916
        %7918 = vrot.lane.b32.xlu0 %v7721, 15
        %v7919 = vpop.permute.xlu0 %7918
        %7920 = vrot.lane.b32.xlu0 %v7722, 15
        %v7921 = vpop.permute.xlu0 %7920
        %v7922 = vsel %vm940, %v7915, %v7917
        %v7923 = vsel %vm940, %v7919, %v7921
        %v7927 = vsel %vm943, 0, %v7915
        %v7930 = vsel %vm943, 0, %v7919
        %v7932 = vmul.bf16 %v7927, %v953
        %v7933 = vmul.bf16 %v7922, %v960
        %v7934 = vmul.bf16 %v7930, %v953
        %v7935 = vmul.bf16 %v7923, %v960
        %s7936 = scalar_lea.vmem [#allocation10], 32
        %v7937 = vld [vmem:[%s7936] sm:$0xf]
        %v7938 = vld [vmem:[%s7936 + $0x4] sm:$0xf]
        %v7939 = vld [vmem:[%s7936 + $0x8] sm:$0xf]
        %v7940 = vld [vmem:[%s7936 + $0xc] sm:$0xf]
        %v7945 = vunpack.c.l.b16 %v7937
        %v7946 = vunpack.c.l.b16 %v7938
        %v7947 = vunpack.c.l.b16 %v7939
        %v7948 = vunpack.c.l.b16 %v7940
        %v7949 = vpack.c.b16 %v7946, %v7945
        %v7950 = vpack.c.b16 %v7948, %v7947
        %v7952 = vsel %vm1677, %v7949, 0
        %v7955 = vsel %vm1677, %v7950, 0
        %7957 = vmatprep.subr.bf16.mxu0 %v7933
        %7958 = vmatpush1.bf16.msra.mxu0 %v7932
        %7959 = vmatprep.subr.bf16.mxu0 %v7935
        %7960 = vmatpush1.bf16.msra.mxu0 %v7934
        %7961 = vmatprep.subr.bf16.mxu0 0
        %7962 = vmatpush1.bf16.msra.mxu0 0
        %7963 = vmatprep.subr.bf16.mxu0 0
        %7964 = vmatpush1.bf16.msra.mxu0 0
        %7965 = vmatprep.subr.bf16.mxu0 0
        %7966 = vmatpush1.bf16.msra.mxu0 0
        %7967 = vmatprep.subr.bf16.mxu0 0
        %7968 = vmatpush1.bf16.msra.mxu0 0
        %7969 = vmatprep.subr.bf16.mxu0 0
        %7970 = vmatpush1.bf16.msra.mxu0 0
        %7971 = vmatprep.subr.bf16.mxu0 0
        %7972 = vmatpush1.bf16.msra.mxu0 0
        %7973 = vmatprep.subr.bf16.mxu0 0
        %7974 = vmatpush1.bf16.msra.mxu0 0
        %7975 = vmatprep.subr.bf16.mxu0 0
        %7976 = vmatpush1.bf16.msra.mxu0 0
        %7977 = vmatprep.subr.bf16.mxu0 0
        %7978 = vmatpush1.bf16.msra.mxu0 0
        %7979 = vmatprep.subr.bf16.mxu0 0
        %7980 = vmatpush1.bf16.msra.mxu0 0
        %7981 = vmatprep.subr.bf16.mxu0 0
        %7982 = vmatpush1.bf16.msra.mxu0 0
        %7983 = vmatprep.subr.bf16.mxu0 0
        %7984 = vmatpush1.bf16.msra.mxu0 0
        %7985 = vmatprep.subr.bf16.mxu0 0
        %7986 = vmatpush1.bf16.msra.mxu0 0
        %7987 = vmatprep.subr.bf16.mxu0 0
        %7988 = vmatpush1.bf16.msra.mxu0 0
        %7989 = vmatprep.mubr.bf16.mxu0 0
        %7990 = vmatmul.mubr.bf16.gmra.mrb[0].mxu0 %v7952
        %v7991 = vpop.f32.mrb[0].mxu0
        %v7992 = vadd.f32 0.0, %v7991
        %v7993 = vpop.f32.mrb[0].mxu0
        %v7994 = vadd.f32 0.0, %v7993
        %v7995 = vpop.f32.mrb[0].mxu0
        %v7996 = vadd.f32 0.0, %v7995
        %v7997 = vpop.f32.mrb[0].mxu0
        %v7998 = vadd.f32 0.0, %v7997
        %7999 = vmatprep.mubr.bf16.mxu0 0
        %8000 = vmatmul.mubr.bf16.gmra.mrb[0].mxu0 %v7955
        %v8001 = vpop.f32.mrb[0].mxu0
        %v8002 = vadd.f32 0.0, %v8001
        %v8003 = vpop.f32.mrb[0].mxu0
        %v8004 = vadd.f32 0.0, %v8003
        %v8005 = vpop.f32.mrb[0].mxu0
        %v8006 = vadd.f32 0.0, %v8005
        %v8007 = vpop.f32.mrb[0].mxu0
        %v8008 = vadd.f32 0.0, %v8007
        %8009 = vdwg.mxu0
        %v8010 = vadd.f32 %v7896, %v7992
        %v8011 = vadd.f32 %v7898, %v7994
        %v8012 = vadd.f32 %v7900, %v7996
        %v8013 = vadd.f32 %v7902, %v7998
        %v8014 = vadd.f32 %v7906, %v8002
        %v8015 = vadd.f32 %v7908, %v8004
        %v8016 = vadd.f32 %v7910, %v8006
        %v8017 = vadd.f32 %v7912, %v8008
        %8018 = vrot.lane.b32.xlu0 %v7719, 1
        %v8019 = vpop.permute.xlu0 %8018
        %8020 = vrot.lane.b32.xlu0 %v7720, 1
        %v8021 = vpop.permute.xlu0 %8020
        %8022 = vrot.lane.b32.xlu0 %v7721, 1
        %v8023 = vpop.permute.xlu0 %8022
        %8024 = vrot.lane.b32.xlu0 %v7722, 1
        %v8025 = vpop.permute.xlu0 %8024
        %v8026 = vsel %vm1055, %v8019, %v8021
        %v8027 = vsel %vm1055, %v8023, %v8025
        %v8031 = vsel %vm1058, 0, %v8019
        %v8034 = vsel %vm1058, 0, %v8023
        %v8036 = vmul.bf16 %v8031, %v757
        %v8037 = vmul.bf16 %v8026, %v764
        %v8038 = vmul.bf16 %v8034, %v757
        %v8039 = vmul.bf16 %v8027, %v764
        %s8040 = scalar_lea.vmem [#allocation10], 48
        %v8041 = vld [vmem:[%s8040] sm:$0xf]
        %v8042 = vld [vmem:[%s8040 + $0x4] sm:$0xf]
        %v8043 = vld [vmem:[%s8040 + $0x8] sm:$0xf]
        %v8044 = vld [vmem:[%s8040 + $0xc] sm:$0xf]
        %v8049 = vunpack.c.l.b16 %v8041
        %v8050 = vunpack.c.l.b16 %v8042
        %v8051 = vunpack.c.l.b16 %v8043
        %v8052 = vunpack.c.l.b16 %v8044
        %v8053 = vpack.c.b16 %v8050, %v8049
        %v8054 = vpack.c.b16 %v8052, %v8051
        %v8056 = vsel %vm1677, %v8053, 0
        %v8059 = vsel %vm1677, %v8054, 0
        %8061 = vmatprep.subr.bf16.mxu0 %v8037
        %8062 = vmatpush1.bf16.msra.mxu0 %v8036
        %8063 = vmatprep.subr.bf16.mxu0 %v8039
        %8064 = vmatpush1.bf16.msra.mxu0 %v8038
        %8065 = vmatprep.subr.bf16.mxu0 0
        %8066 = vmatpush1.bf16.msra.mxu0 0
        %8067 = vmatprep.subr.bf16.mxu0 0
        %8068 = vmatpush1.bf16.msra.mxu0 0
        %8069 = vmatprep.subr.bf16.mxu0 0
        %8070 = vmatpush1.bf16.msra.mxu0 0
        %8071 = vmatprep.subr.bf16.mxu0 0
        %8072 = vmatpush1.bf16.msra.mxu0 0
        %8073 = vmatprep.subr.bf16.mxu0 0
        %8074 = vmatpush1.bf16.msra.mxu0 0
        %8075 = vmatprep.subr.bf16.mxu0 0
        %8076 = vmatpush1.bf16.msra.mxu0 0
        %8077 = vmatprep.subr.bf16.mxu0 0
        %8078 = vmatpush1.bf16.msra.mxu0 0
        %8079 = vmatprep.subr.bf16.mxu0 0
        %8080 = vmatpush1.bf16.msra.mxu0 0
        %8081 = vmatprep.subr.bf16.mxu0 0
        %8082 = vmatpush1.bf16.msra.mxu0 0
        %8083 = vmatprep.subr.bf16.mxu0 0
        %8084 = vmatpush1.bf16.msra.mxu0 0
        %8085 = vmatprep.subr.bf16.mxu0 0
        %8086 = vmatpush1.bf16.msra.mxu0 0
        %8087 = vmatprep.subr.bf16.mxu0 0
        %8088 = vmatpush1.bf16.msra.mxu0 0
        %8089 = vmatprep.subr.bf16.mxu0 0
        %8090 = vmatpush1.bf16.msra.mxu0 0
        %8091 = vmatprep.subr.bf16.mxu0 0
        %8092 = vmatpush1.bf16.msra.mxu0 0
        %8093 = vmatprep.mubr.bf16.mxu0 0
        %8094 = vmatmul.mubr.bf16.gmra.mrb[0].mxu0 %v8056
        %v8095 = vpop.f32.mrb[0].mxu0
        %v8096 = vadd.f32 0.0, %v8095
        %v8097 = vpop.f32.mrb[0].mxu0
        %v8098 = vadd.f32 0.0, %v8097
        %v8099 = vpop.f32.mrb[0].mxu0
        %v8100 = vadd.f32 0.0, %v8099
        %v8101 = vpop.f32.mrb[0].mxu0
        %v8102 = vadd.f32 0.0, %v8101
        %8103 = vmatprep.mubr.bf16.mxu0 0
        %8104 = vmatmul.mubr.bf16.gmra.mrb[0].mxu0 %v8059
        %v8105 = vpop.f32.mrb[0].mxu0
        %v8106 = vadd.f32 0.0, %v8105
        %v8107 = vpop.f32.mrb[0].mxu0
        %v8108 = vadd.f32 0.0, %v8107
        %v8109 = vpop.f32.mrb[0].mxu0
        %v8110 = vadd.f32 0.0, %v8109
        %v8111 = vpop.f32.mrb[0].mxu0
        %v8112 = vadd.f32 0.0, %v8111
        %8113 = vdwg.mxu0
        %v8114 = vadd.f32 %v8010, %v8096
        %v8115 = vadd.f32 %v8011, %v8098
        %v8116 = vadd.f32 %v8012, %v8100
        %v8117 = vadd.f32 %v8013, %v8102
        %v8118 = vadd.f32 %v8014, %v8106
        %v8119 = vadd.f32 %v8015, %v8108
        %v8120 = vadd.f32 %v8016, %v8110
        %v8121 = vadd.f32 %v8017, %v8112
        %s8122 = scalar_lea.vmem [#allocation10], 64
        %v8123 = vld [vmem:[%s8122] sm:$0xf]
        %v8124 = vld [vmem:[%s8122 + $0x4] sm:$0xf]
        %v8125 = vld [vmem:[%s8122 + $0x8] sm:$0xf]
        %v8126 = vld [vmem:[%s8122 + $0xc] sm:$0xf]
        %v8131 = vunpack.c.l.b16 %v8123
        %v8132 = vunpack.c.l.b16 %v8124
        %v8133 = vunpack.c.l.b16 %v8125
        %v8134 = vunpack.c.l.b16 %v8126
        %v8135 = vpack.c.b16 %v8132, %v8131
        %v8136 = vpack.c.b16 %v8134, %v8133
        %v8138 = vsel %vm1677, %v8135, 0
        %v8141 = vsel %vm1677, %v8136, 0
        %8143 = vmatprep.subr.bf16.mxu0 %v7720
        %8144 = vmatpush1.bf16.msra.mxu0 %v7719
        %8145 = vmatprep.subr.bf16.mxu0 %v7722
        %8146 = vmatpush1.bf16.msra.mxu0 %v7721
        %8147 = vmatprep.subr.bf16.mxu0 0
        %8148 = vmatpush1.bf16.msra.mxu0 0
        %8149 = vmatprep.subr.bf16.mxu0 0
        %8150 = vmatpush1.bf16.msra.mxu0 0
        %8151 = vmatprep.subr.bf16.mxu0 0
        %8152 = vmatpush1.bf16.msra.mxu0 0
        %8153 = vmatprep.subr.bf16.mxu0 0
        %8154 = vmatpush1.bf16.msra.mxu0 0
        %8155 = vmatprep.subr.bf16.mxu0 0
        %8156 = vmatpush1.bf16.msra.mxu0 0
        %8157 = vmatprep.subr.bf16.mxu0 0
        %8158 = vmatpush1.bf16.msra.mxu0 0
        %8159 = vmatprep.subr.bf16.mxu0 0
        %8160 = vmatpush1.bf16.msra.mxu0 0
        %8161 = vmatprep.subr.bf16.mxu0 0
        %8162 = vmatpush1.bf16.msra.mxu0 0
        %8163 = vmatprep.subr.bf16.mxu0 0
        %8164 = vmatpush1.bf16.msra.mxu0 0
        %8165 = vmatprep.subr.bf16.mxu0 0
        %8166 = vmatpush1.bf16.msra.mxu0 0
        %8167 = vmatprep.subr.bf16.mxu0 0
        %8168 = vmatpush1.bf16.msra.mxu0 0
        %8169 = vmatprep.subr.bf16.mxu0 0
        %8170 = vmatpush1.bf16.msra.mxu0 0
        %8171 = vmatprep.subr.bf16.mxu0 0
        %8172 = vmatpush1.bf16.msra.mxu0 0
        %8173 = vmatprep.subr.bf16.mxu0 0
        %8174 = vmatpush1.bf16.msra.mxu0 0
        %8175 = vmatprep.mubr.bf16.mxu0 0
        %8176 = vmatmul.mubr.bf16.gmra.mrb[0].mxu0 %v8138
        %v8177 = vpop.f32.mrb[0].mxu0
        %v8178 = vadd.f32 0.0, %v8177
        %v8179 = vpop.f32.mrb[0].mxu0
        %v8180 = vadd.f32 0.0, %v8179
        %v8181 = vpop.f32.mrb[0].mxu0
        %v8182 = vadd.f32 0.0, %v8181
        %v8183 = vpop.f32.mrb[0].mxu0
        %v8184 = vadd.f32 0.0, %v8183
        %8185 = vmatprep.mubr.bf16.mxu0 0
        %8186 = vmatmul.mubr.bf16.gmra.mrb[0].mxu0 %v8141
        %v8187 = vpop.f32.mrb[0].mxu0
        %v8188 = vadd.f32 0.0, %v8187
        %v8189 = vpop.f32.mrb[0].mxu0
        %v8190 = vadd.f32 0.0, %v8189
        %v8191 = vpop.f32.mrb[0].mxu0
        %v8192 = vadd.f32 0.0, %v8191
        %v8193 = vpop.f32.mrb[0].mxu0
        %v8194 = vadd.f32 0.0, %v8193
        %8195 = vdwg.mxu0
        %v8196 = vadd.f32 %v8114, %v8178
        %v8197 = vadd.f32 %v8115, %v8180
        %v8198 = vadd.f32 %v8116, %v8182
        %v8199 = vadd.f32 %v8117, %v8184
        %v8200 = vadd.f32 %v8118, %v8188
        %v8201 = vadd.f32 %v8119, %v8190
        %v8202 = vadd.f32 %v8120, %v8192
        %v8203 = vadd.f32 %v8121, %v8194
        %8204 = vrot.lane.b32.xlu0 %v7719, 127
        %v8205 = vpop.permute.xlu0 %8204
        %8206 = vrot.lane.b32.xlu0 %v7720, 127
        %v8207 = vpop.permute.xlu0 %8206
        %8208 = vrot.lane.b32.xlu0 %v7721, 127
        %v8209 = vpop.permute.xlu0 %8208
        %8210 = vrot.lane.b32.xlu0 %v7722, 127
        %v8211 = vpop.permute.xlu0 %8210
        %v8212 = vsel %vm1244, %v8205, %v8207
        %v8213 = vsel %vm1244, %v8209, %v8211
        %v8217 = vsel %vm1247, %v8207, 0
        %v8220 = vsel %vm1247, %v8211, 0
        %v8222 = vmul.bf16 %v8212, %v953
        %v8223 = vmul.bf16 %v8217, %v960
        %v8224 = vmul.bf16 %v8213, %v953
        %v8225 = vmul.bf16 %v8220, %v960
        %s8226 = scalar_lea.vmem [#allocation10], 80
        %v8227 = vld [vmem:[%s8226] sm:$0xf]
        %v8228 = vld [vmem:[%s8226 + $0x4] sm:$0xf]
        %v8229 = vld [vmem:[%s8226 + $0x8] sm:$0xf]
        %v8230 = vld [vmem:[%s8226 + $0xc] sm:$0xf]
        %v8235 = vunpack.c.l.b16 %v8227
        %v8236 = vunpack.c.l.b16 %v8228
        %v8237 = vunpack.c.l.b16 %v8229
        %v8238 = vunpack.c.l.b16 %v8230
        %v8239 = vpack.c.b16 %v8236, %v8235
        %v8240 = vpack.c.b16 %v8238, %v8237
        %v8242 = vsel %vm1677, %v8239, 0
        %v8245 = vsel %vm1677, %v8240, 0
        %8247 = vmatprep.subr.bf16.mxu0 %v8223
        %8248 = vmatpush1.bf16.msra.mxu0 %v8222
        %8249 = vmatprep.subr.bf16.mxu0 %v8225
        %8250 = vmatpush1.bf16.msra.mxu0 %v8224
        %8251 = vmatprep.subr.bf16.mxu0 0
        %8252 = vmatpush1.bf16.msra.mxu0 0
        %8253 = vmatprep.subr.bf16.mxu0 0
        %8254 = vmatpush1.bf16.msra.mxu0 0
        %8255 = vmatprep.subr.bf16.mxu0 0
        %8256 = vmatpush1.bf16.msra.mxu0 0
        %8257 = vmatprep.subr.bf16.mxu0 0
        %8258 = vmatpush1.bf16.msra.mxu0 0
        %8259 = vmatprep.subr.bf16.mxu0 0
        %8260 = vmatpush1.bf16.msra.mxu0 0
        %8261 = vmatprep.subr.bf16.mxu0 0
        %8262 = vmatpush1.bf16.msra.mxu0 0
        %8263 = vmatprep.subr.bf16.mxu0 0
        %8264 = vmatpush1.bf16.msra.mxu0 0
        %8265 = vmatprep.subr.bf16.mxu0 0
        %8266 = vmatpush1.bf16.msra.mxu0 0
        %8267 = vmatprep.subr.bf16.mxu0 0
        %8268 = vmatpush1.bf16.msra.mxu0 0
        %8269 = vmatprep.subr.bf16.mxu0 0
        %8270 = vmatpush1.bf16.msra.mxu0 0
        %8271 = vmatprep.subr.bf16.mxu0 0
        %8272 = vmatpush1.bf16.msra.mxu0 0
        %8273 = vmatprep.subr.bf16.mxu0 0
        %8274 = vmatpush1.bf16.msra.mxu0 0
        %8275 = vmatprep.subr.bf16.mxu0 0
        %8276 = vmatpush1.bf16.msra.mxu0 0
        %8277 = vmatprep.subr.bf16.mxu0 0
        %8278 = vmatpush1.bf16.msra.mxu0 0
        %8279 = vmatprep.mubr.bf16.mxu0 0
        %8280 = vmatmul.mubr.bf16.gmra.mrb[0].mxu0 %v8242
        %v8281 = vpop.f32.mrb[0].mxu0
        %v8282 = vadd.f32 0.0, %v8281
        %v8283 = vpop.f32.mrb[0].mxu0
        %v8284 = vadd.f32 0.0, %v8283
        %v8285 = vpop.f32.mrb[0].mxu0
        %v8286 = vadd.f32 0.0, %v8285
        %v8287 = vpop.f32.mrb[0].mxu0
        %v8288 = vadd.f32 0.0, %v8287
        %8289 = vmatprep.mubr.bf16.mxu0 0
        %8290 = vmatmul.mubr.bf16.gmra.mrb[0].mxu0 %v8245
        %v8291 = vpop.f32.mrb[0].mxu0
        %v8292 = vadd.f32 0.0, %v8291
        %v8293 = vpop.f32.mrb[0].mxu0
        %v8294 = vadd.f32 0.0, %v8293
        %v8295 = vpop.f32.mrb[0].mxu0
        %v8296 = vadd.f32 0.0, %v8295
        %v8297 = vpop.f32.mrb[0].mxu0
        %v8298 = vadd.f32 0.0, %v8297
        %8299 = vdwg.mxu0
        %v8300 = vadd.f32 %v8196, %v8282
        %v8301 = vadd.f32 %v8197, %v8284
        %v8302 = vadd.f32 %v8198, %v8286
        %v8303 = vadd.f32 %v8199, %v8288
        %v8304 = vadd.f32 %v8200, %v8292
        %v8305 = vadd.f32 %v8201, %v8294
        %v8306 = vadd.f32 %v8202, %v8296
        %v8307 = vadd.f32 %v8203, %v8298
        %8308 = vrot.lane.b32.xlu0 %v7719, 113
        %v8309 = vpop.permute.xlu0 %8308
        %8310 = vrot.lane.b32.xlu0 %v7720, 113
        %v8311 = vpop.permute.xlu0 %8310
        %8312 = vrot.lane.b32.xlu0 %v7721, 113
        %v8313 = vpop.permute.xlu0 %8312
        %8314 = vrot.lane.b32.xlu0 %v7722, 113
        %v8315 = vpop.permute.xlu0 %8314
        %v8316 = vsel %vm1345, %v8309, %v8311
        %v8317 = vsel %vm1345, %v8313, %v8315
        %v8321 = vsel %vm1348, %v8311, 0
        %v8324 = vsel %vm1348, %v8315, 0
        %v8326 = vmul.bf16 %v8316, %v757
        %v8327 = vmul.bf16 %v8321, %v764
        %v8328 = vmul.bf16 %v8317, %v757
        %v8329 = vmul.bf16 %v8324, %v764
        %s8330 = scalar_lea.vmem [#allocation10], 96
        %v8331 = vld [vmem:[%s8330] sm:$0xf]
        %v8332 = vld [vmem:[%s8330 + $0x4] sm:$0xf]
        %v8333 = vld [vmem:[%s8330 + $0x8] sm:$0xf]
        %v8334 = vld [vmem:[%s8330 + $0xc] sm:$0xf]
        %v8339 = vunpack.c.l.b16 %v8331
        %v8340 = vunpack.c.l.b16 %v8332
        %v8341 = vunpack.c.l.b16 %v8333
        %v8342 = vunpack.c.l.b16 %v8334
        %v8343 = vpack.c.b16 %v8340, %v8339
        %v8344 = vpack.c.b16 %v8342, %v8341
        %v8346 = vsel %vm1677, %v8343, 0
        %v8349 = vsel %vm1677, %v8344, 0
        %8351 = vmatprep.subr.bf16.mxu0 %v8327
        %8352 = vmatpush1.bf16.msra.mxu0 %v8326
        %8353 = vmatprep.subr.bf16.mxu0 %v8329
        %8354 = vmatpush1.bf16.msra.mxu0 %v8328
        %8355 = vmatprep.subr.bf16.mxu0 0
        %8356 = vmatpush1.bf16.msra.mxu0 0
        %8357 = vmatprep.subr.bf16.mxu0 0
        %8358 = vmatpush1.bf16.msra.mxu0 0
        %8359 = vmatprep.subr.bf16.mxu0 0
        %8360 = vmatpush1.bf16.msra.mxu0 0
        %8361 = vmatprep.subr.bf16.mxu0 0
        %8362 = vmatpush1.bf16.msra.mxu0 0
        %8363 = vmatprep.subr.bf16.mxu0 0
        %8364 = vmatpush1.bf16.msra.mxu0 0
        %8365 = vmatprep.subr.bf16.mxu0 0
        %8366 = vmatpush1.bf16.msra.mxu0 0
        %8367 = vmatprep.subr.bf16.mxu0 0
        %8368 = vmatpush1.bf16.msra.mxu0 0
        %8369 = vmatprep.subr.bf16.mxu0 0
        %8370 = vmatpush1.bf16.msra.mxu0 0
        %8371 = vmatprep.subr.bf16.mxu0 0
        %8372 = vmatpush1.bf16.msra.mxu0 0
        %8373 = vmatprep.subr.bf16.mxu0 0
        %8374 = vmatpush1.bf16.msra.mxu0 0
        %8375 = vmatprep.subr.bf16.mxu0 0
        %8376 = vmatpush1.bf16.msra.mxu0 0
        %8377 = vmatprep.subr.bf16.mxu0 0
        %8378 = vmatpush1.bf16.msra.mxu0 0
        %8379 = vmatprep.subr.bf16.mxu0 0
        %8380 = vmatpush1.bf16.msra.mxu0 0
        %8381 = vmatprep.subr.bf16.mxu0 0
        %8382 = vmatpush1.bf16.msra.mxu0 0
        %8383 = vmatprep.mubr.bf16.mxu0 0
        %8384 = vmatmul.mubr.bf16.gmra.mrb[0].mxu0 %v8346
        %v8385 = vpop.f32.mrb[0].mxu0
        %v8386 = vadd.f32 0.0, %v8385
        %v8387 = vpop.f32.mrb[0].mxu0
        %v8388 = vadd.f32 0.0, %v8387
        %v8389 = vpop.f32.mrb[0].mxu0
        %v8390 = vadd.f32 0.0, %v8389
        %v8391 = vpop.f32.mrb[0].mxu0
        %v8392 = vadd.f32 0.0, %v8391
        %8393 = vmatprep.mubr.bf16.mxu0 0
        %8394 = vmatmul.mubr.bf16.gmra.mrb[0].mxu0 %v8349
        %v8395 = vpop.f32.mrb[0].mxu0
        %v8396 = vadd.f32 0.0, %v8395
        %v8397 = vpop.f32.mrb[0].mxu0
        %v8398 = vadd.f32 0.0, %v8397
        %v8399 = vpop.f32.mrb[0].mxu0
        %v8400 = vadd.f32 0.0, %v8399
        %v8401 = vpop.f32.mrb[0].mxu0
        %v8402 = vadd.f32 0.0, %v8401
        %8403 = vdwg.mxu0
        %v8404 = vadd.f32 %v8300, %v8386
        %v8405 = vadd.f32 %v8301, %v8388
        %v8406 = vadd.f32 %v8302, %v8390
        %v8407 = vadd.f32 %v8303, %v8392
        %v8408 = vadd.f32 %v8304, %v8396
        %v8409 = vadd.f32 %v8305, %v8398
        %v8410 = vadd.f32 %v8306, %v8400
        %v8411 = vadd.f32 %v8307, %v8402
        %8412 = vrot.lane.b32.xlu0 %v7719, 112
        %v8413 = vpop.permute.xlu0 %8412
        %8414 = vrot.lane.b32.xlu0 %v7720, 112
        %v8415 = vpop.permute.xlu0 %8414
        %8416 = vrot.lane.b32.xlu0 %v7721, 112
        %v8417 = vpop.permute.xlu0 %8416
        %8418 = vrot.lane.b32.xlu0 %v7722, 112
        %v8419 = vpop.permute.xlu0 %8418
        %v8420 = vsel %vm1446, %v8413, %v8415
        %v8421 = vsel %vm1446, %v8417, %v8419
        %v8425 = vsel %vm1448, %v8415, 0
        %v8428 = vsel %vm1448, %v8419, 0
        %s8430 = scalar_lea.vmem [#allocation10], 112
        %v8431 = vld [vmem:[%s8430] sm:$0xf]
        %v8432 = vld [vmem:[%s8430 + $0x4] sm:$0xf]
        %v8433 = vld [vmem:[%s8430 + $0x8] sm:$0xf]
        %v8434 = vld [vmem:[%s8430 + $0xc] sm:$0xf]
        %v8439 = vunpack.c.l.b16 %v8431
        %v8440 = vunpack.c.l.b16 %v8432
        %v8441 = vunpack.c.l.b16 %v8433
        %v8442 = vunpack.c.l.b16 %v8434
        %v8443 = vpack.c.b16 %v8440, %v8439
        %v8444 = vpack.c.b16 %v8442, %v8441
        %v8446 = vsel %vm1677, %v8443, 0
        %v8449 = vsel %vm1677, %v8444, 0
        %8451 = vmatprep.subr.bf16.mxu0 %v8425
        %8452 = vmatpush1.bf16.msra.mxu0 %v8420
        %8453 = vmatprep.subr.bf16.mxu0 %v8428
        %8454 = vmatpush1.bf16.msra.mxu0 %v8421
        %8455 = vmatprep.subr.bf16.mxu0 0
        %8456 = vmatpush1.bf16.msra.mxu0 0
        %8457 = vmatprep.subr.bf16.mxu0 0
        %8458 = vmatpush1.bf16.msra.mxu0 0
        %8459 = vmatprep.subr.bf16.mxu0 0
        %8460 = vmatpush1.bf16.msra.mxu0 0
        %8461 = vmatprep.subr.bf16.mxu0 0
        %8462 = vmatpush1.bf16.msra.mxu0 0
        %8463 = vmatprep.subr.bf16.mxu0 0
        %8464 = vmatpush1.bf16.msra.mxu0 0
        %8465 = vmatprep.subr.bf16.mxu0 0
        %8466 = vmatpush1.bf16.msra.mxu0 0
        %8467 = vmatprep.subr.bf16.mxu0 0
        %8468 = vmatpush1.bf16.msra.mxu0 0
        %8469 = vmatprep.subr.bf16.mxu0 0
        %8470 = vmatpush1.bf16.msra.mxu0 0
        %8471 = vmatprep.subr.bf16.mxu0 0
        %8472 = vmatpush1.bf16.msra.mxu0 0
        %8473 = vmatprep.subr.bf16.mxu0 0
        %8474 = vmatpush1.bf16.msra.mxu0 0
        %8475 = vmatprep.subr.bf16.mxu0 0
        %8476 = vmatpush1.bf16.msra.mxu0 0
        %8477 = vmatprep.subr.bf16.mxu0 0
        %8478 = vmatpush1.bf16.msra.mxu0 0
        %8479 = vmatprep.subr.bf16.mxu0 0
        %8480 = vmatpush1.bf16.msra.mxu0 0
        %8481 = vmatprep.subr.bf16.mxu0 0
        %8482 = vmatpush1.bf16.msra.mxu0 0
        %8483 = vmatprep.mubr.bf16.mxu0 0
        %8484 = vmatmul.mubr.bf16.gmra.mrb[0].mxu0 %v8446
        %v8485 = vpop.f32.mrb[0].mxu0
        %v8486 = vadd.f32 0.0, %v8485
        %v8487 = vpop.f32.mrb[0].mxu0
        %v8488 = vadd.f32 0.0, %v8487
        %v8489 = vpop.f32.mrb[0].mxu0
        %v8490 = vadd.f32 0.0, %v8489
        %v8491 = vpop.f32.mrb[0].mxu0
        %v8492 = vadd.f32 0.0, %v8491
        %8493 = vmatprep.mubr.bf16.mxu0 0
        %8494 = vmatmul.mubr.bf16.gmra.mrb[0].mxu0 %v8449
        %v8495 = vpop.f32.mrb[0].mxu0
        %v8496 = vadd.f32 0.0, %v8495
        %v8497 = vpop.f32.mrb[0].mxu0
        %v8498 = vadd.f32 0.0, %v8497
        %v8499 = vpop.f32.mrb[0].mxu0
        %v8500 = vadd.f32 0.0, %v8499
        %v8501 = vpop.f32.mrb[0].mxu0
        %v8502 = vadd.f32 0.0, %v8501
        %8503 = vdwg.mxu0
        %v8504 = vadd.f32 %v8404, %v8486
        %v8505 = vadd.f32 %v8405, %v8488
        %v8506 = vadd.f32 %v8406, %v8490
        %v8507 = vadd.f32 %v8407, %v8492
        %v8508 = vadd.f32 %v8408, %v8496
        %v8509 = vadd.f32 %v8409, %v8498
        %v8510 = vadd.f32 %v8410, %v8500
        %v8511 = vadd.f32 %v8411, %v8502
        %8512 = vrot.lane.b32.xlu0 %v7719, 111
        %v8513 = vpop.permute.xlu0 %8512
        %8514 = vrot.lane.b32.xlu0 %v7720, 111
        %v8515 = vpop.permute.xlu0 %8514
        %8516 = vrot.lane.b32.xlu0 %v7721, 111
        %v8517 = vpop.permute.xlu0 %8516
        %8518 = vrot.lane.b32.xlu0 %v7722, 111
        %v8519 = vpop.permute.xlu0 %8518
        %v8520 = vsel %vm1542, %v8513, %v8515
        %v8521 = vsel %vm1542, %v8517, %v8519
        %v8525 = vsel %vm1545, %v8515, 0
        %v8528 = vsel %vm1545, %v8519, 0
        %v8530 = vmul.bf16 %v8520, %v953
        %v8531 = vmul.bf16 %v8525, %v960
        %v8532 = vmul.bf16 %v8521, %v953
        %v8533 = vmul.bf16 %v8528, %v960
        %s8534 = scalar_lea.vmem [#allocation10], 128
        %v8535 = vld [vmem:[%s8534] sm:$0xf]
        %v8536 = vld [vmem:[%s8534 + $0x4] sm:$0xf]
        %v8537 = vld [vmem:[%s8534 + $0x8] sm:$0xf]
        %v8538 = vld [vmem:[%s8534 + $0xc] sm:$0xf]
        %v8543 = vunpack.c.l.b16 %v8535
        %v8544 = vunpack.c.l.b16 %v8536
        %v8545 = vunpack.c.l.b16 %v8537
        %v8546 = vunpack.c.l.b16 %v8538
        %v8547 = vpack.c.b16 %v8544, %v8543
        %v8548 = vpack.c.b16 %v8546, %v8545
        %v8550 = vsel %vm1677, %v8547, 0
        %v8553 = vsel %vm1677, %v8548, 0
        %8555 = vmatprep.subr.bf16.mxu0 %v8531
        %8556 = vmatpush1.bf16.msra.mxu0 %v8530
        %8557 = vmatprep.subr.bf16.mxu0 %v8533
        %8558 = vmatpush1.bf16.msra.mxu0 %v8532
        %8559 = vmatprep.subr.bf16.mxu0 0
        %8560 = vmatpush1.bf16.msra.mxu0 0
        %8561 = vmatprep.subr.bf16.mxu0 0
        %8562 = vmatpush1.bf16.msra.mxu0 0
        %8563 = vmatprep.subr.bf16.mxu0 0
        %8564 = vmatpush1.bf16.msra.mxu0 0
        %8565 = vmatprep.subr.bf16.mxu0 0
        %8566 = vmatpush1.bf16.msra.mxu0 0
        %8567 = vmatprep.subr.bf16.mxu0 0
        %8568 = vmatpush1.bf16.msra.mxu0 0
        %8569 = vmatprep.subr.bf16.mxu0 0
        %8570 = vmatpush1.bf16.msra.mxu0 0
        %8571 = vmatprep.subr.bf16.mxu0 0
        %8572 = vmatpush1.bf16.msra.mxu0 0
        %8573 = vmatprep.subr.bf16.mxu0 0
        %8574 = vmatpush1.bf16.msra.mxu0 0
        %8575 = vmatprep.subr.bf16.mxu0 0
        %8576 = vmatpush1.bf16.msra.mxu0 0
        %8577 = vmatprep.subr.bf16.mxu0 0
        %8578 = vmatpush1.bf16.msra.mxu0 0
        %8579 = vmatprep.subr.bf16.mxu0 0
        %8580 = vmatpush1.bf16.msra.mxu0 0
        %8581 = vmatprep.subr.bf16.mxu0 0
        %8582 = vmatpush1.bf16.msra.mxu0 0
        %8583 = vmatprep.subr.bf16.mxu0 0
        %8584 = vmatpush1.bf16.msra.mxu0 0
        %8585 = vmatprep.subr.bf16.mxu0 0
        %8586 = vmatpush1.bf16.msra.mxu0 0
        %8587 = vmatprep.mubr.bf16.mxu0 0
        %8588 = vmatmul.mubr.bf16.gmra.mrb[0].mxu0 %v8550
        %v8589 = vpop.f32.mrb[0].mxu0
        %v8590 = vadd.f32 0.0, %v8589
        %v8591 = vpop.f32.mrb[0].mxu0
        %v8592 = vadd.f32 0.0, %v8591
        %v8593 = vpop.f32.mrb[0].mxu0
        %v8594 = vadd.f32 0.0, %v8593
        %v8595 = vpop.f32.mrb[0].mxu0
        %v8596 = vadd.f32 0.0, %v8595
        %8597 = vmatprep.mubr.bf16.mxu0 0
        %8598 = vmatmul.mubr.bf16.gmra.mrb[0].mxu0 %v8553
        %v8599 = vpop.f32.mrb[0].mxu0
        %v8600 = vadd.f32 0.0, %v8599
        %v8601 = vpop.f32.mrb[0].mxu0
        %v8602 = vadd.f32 0.0, %v8601
        %v8603 = vpop.f32.mrb[0].mxu0
        %v8604 = vadd.f32 0.0, %v8603
        %v8605 = vpop.f32.mrb[0].mxu0
        %v8606 = vadd.f32 0.0, %v8605
        %8607 = vdwg.mxu0
        %v8608 = vadd.f32 %v8504, %v8590
        %v8609 = vadd.f32 %v8505, %v8592
        %v8610 = vadd.f32 %v8506, %v8594
        %v8611 = vadd.f32 %v8507, %v8596
        %v8612 = vadd.f32 %v8508, %v8600
        %v8613 = vadd.f32 %v8509, %v8602
        %v8614 = vadd.f32 %v8510, %v8604
        %v8615 = vadd.f32 %v8511, %v8606
        %v8616 = vld [vmem:[%s17] sm:$0xff]
        %v8617 = vld [vmem:[%s17 + $0x8] sm:$0xff]
        %v8618 = vld [vmem:[%s17 + $0x10] sm:$0xff]
        %v8619 = vld [vmem:[%s17 + $0x18] sm:$0xff]
        %8621 = vset.pattern.permute.xlu0 0
        %8622 = vperm.xlu0 %8621, %v8616
        %v8623 = vpop.permute.xlu0 %8622
        %8626 = vset.pattern.permute.xlu0 0
        %8627 = vperm.xlu0 %8626, %v8617
        %v8628 = vpop.permute.xlu0 %8627
        %8631 = vset.pattern.permute.xlu0 0
        %8632 = vperm.xlu0 %8631, %v8618
        %v8633 = vpop.permute.xlu0 %8632
        %8636 = vset.pattern.permute.xlu0 0
        %8637 = vperm.xlu0 %8636, %v8619
        %v8638 = vpop.permute.xlu0 %8637
        %v8640 = vadd.f32 %v8608, %v8623
        %v8641 = vadd.f32 %v8609, %v8623
        %v8642 = vadd.f32 %v8610, %v8628
        %v8643 = vadd.f32 %v8611, %v8628
        %v8644 = vadd.f32 %v8612, %v8633
        %v8645 = vadd.f32 %v8613, %v8633
        %v8646 = vadd.f32 %v8614, %v8638
        %v8647 = vadd.f32 %v8615, %v8638
        %s8648 = scalar_lea.vmem %s18, 2
        %v8649 = vld [vmem:[%s8648] sm:$0x3]
        %v8650 = vpack.c.bf16 %v8642, %v8640
        %v8651 = vpack.c.bf16 %v8643, %v8641
        %v8652 = vpack.c.bf16 %v8646, %v8644
        %v8653 = vpack.c.bf16 %v8647, %v8645
        %v8655 = vsel %vm1677, %v8649, 0
        %8657 = vmatprep.subr.bf16.mxu0 %v8651
        %8658 = vmatpush1.bf16.msra.mxu0 %v8650
        %8659 = vmatprep.subr.bf16.mxu0 %v8653
        %8660 = vmatpush1.bf16.msra.mxu0 %v8652
        %8661 = vmatprep.subr.bf16.mxu0 0
        %8662 = vmatpush1.bf16.msra.mxu0 0
        %8663 = vmatprep.subr.bf16.mxu0 0
        %8664 = vmatpush1.bf16.msra.mxu0 0
        %8665 = vmatprep.subr.bf16.mxu0 0
        %8666 = vmatpush1.bf16.msra.mxu0 0
        %8667 = vmatprep.subr.bf16.mxu0 0
        %8668 = vmatpush1.bf16.msra.mxu0 0
        %8669 = vmatprep.subr.bf16.mxu0 0
        %8670 = vmatpush1.bf16.msra.mxu0 0
        %8671 = vmatprep.subr.bf16.mxu0 0
        %8672 = vmatpush1.bf16.msra.mxu0 0
        %8673 = vmatprep.subr.bf16.mxu0 0
        %8674 = vmatpush1.bf16.msra.mxu0 0
        %8675 = vmatprep.subr.bf16.mxu0 0
        %8676 = vmatpush1.bf16.msra.mxu0 0
        %8677 = vmatprep.subr.bf16.mxu0 0
        %8678 = vmatpush1.bf16.msra.mxu0 0
        %8679 = vmatprep.subr.bf16.mxu0 0
        %8680 = vmatpush1.bf16.msra.mxu0 0
        %8681 = vmatprep.subr.bf16.mxu0 0
        %8682 = vmatpush1.bf16.msra.mxu0 0
        %8683 = vmatprep.subr.bf16.mxu0 0
        %8684 = vmatpush1.bf16.msra.mxu0 0
        %8685 = vmatprep.subr.bf16.mxu0 0
        %8686 = vmatpush1.bf16.msra.mxu0 0
        %8687 = vmatprep.subr.bf16.mxu0 0
        %8688 = vmatpush1.bf16.msra.mxu0 0
        %8689 = vmatprep.mubr.bf16.mxu0 0
        %8690 = vmatmul.mubr.bf16.gmra.mrb[0].mxu0 %v8655
        %v8691 = vpop.f32.mrb[0].mxu0
        %v8692 = vadd.f32 0.0, %v8691
        %v8693 = vpop.f32.mrb[0].mxu0
        %v8694 = vadd.f32 0.0, %v8693
        %v8695 = vpop.f32.mrb[0].mxu0
        %v8696 = vpop.f32.mrb[0].mxu0
        %8697 = vdwg.mxu0
        %v8698 = vadd.f32 %v7717, %v8692
        %v8699 = vadd.f32 %v7718, %v8694
        %v8702 = vcombine.low %v8698, %v8699
        %8704 = vst [vmem:[%s703] sm:$0xff] %v8702
        %s8705 = sand.u32 %s472, 1
        %s8706 = scalar_lea.sflag [#allocation4], %s8705
        %s8707 = sand.u32 %s472, 1
        %s8708 = smul.addr %s8707, 8
        %s8709 = scalar_lea.vmem [#allocation11], %s8708
        // Predicated region
        $region121: #{tpu_custom_call.1} parent=99 // pred_check
          %p8710 = pneg %p482
        $region122: #{tpu_custom_call.1} parent=99 // pred_check_branch
          %8712 = sbr.rel (%p8710) target = $region124
        $region123: #{tpu_custom_call.1} parent=99 // pred_region
          %s8714 = ssub.s32 128, 128
          %8715 = vsyncadd %s8706, %s8714
          %s8716 = smul.addr %s39, 2
          %s8717 = smul.addr %s8716, 64
          %s8718 = scalar_lea.hbm %s20, %s8717
          %s8720 = sshll.u32 %s8709, 4
          %s8721 = int_to_ptr.vmem [resolvable:$true] %s8720
          %8723 = dma.vmem_to_hbm [thread:$0]  %s8721, 128, %s8718, %s8706
        $region124: #{tpu_custom_call.1} parent=99 // pred_fallthru
          _
      $region100: #{tpu_custom_call.1} parent=5 // pred_fallthru
        _
      %p8724 = scmp.le.s32.totalorder 2, %s34
      // Predicated region
      $region125: #{tpu_custom_call.1} parent=5 // pred_check
        %p8725 = pneg %p8724
      $region126: #{tpu_custom_call.1} parent=5 // pred_check_branch
        %8727 = sbr.rel (%p8725) target = $region128
      $region127: #{tpu_custom_call.1} parent=5 // pred_region
        %s8728 = ssub.s32 %s34, 2
        // Predicated region
        $region129: #{tpu_custom_call.1} parent=127 // pred_check
          %p8729 = pneg %p488
        $region130: #{tpu_custom_call.1} parent=127 // pred_check_branch
          %8731 = sbr.rel (%p8729) target = $region132
        $region131: #{tpu_custom_call.1} parent=127 // pred_region
          %s8732 = sand.u32 %s473, 1
          %s8733 = scalar_lea.sflag [#allocation4], %s8732
          %s8734 = sand.u32 %s473, 1
          %s8735 = smul.addr %s8734, 8
          %s8736 = scalar_lea.vmem [#allocation11], %s8735
          %8737 = dma.done %s8733, 128
        $region132: #{tpu_custom_call.1} parent=127 // pred_fallthru
          _
      $region128: #{tpu_custom_call.1} parent=5 // pred_fallthru
        _
    $region6: #{tpu_custom_call.1} parent=1 // loop_footer
      %s38 = sadd.s32 1, %s34
    $region7: #{tpu_custom_call.1} parent=1 // loop_footer_branch
      %33 = sbr.rel target = $region3
    $region8: #{tpu_custom_call.1} parent=1 // loop_exit
      _
    %8738 = vsyncpa [#allocation3], 1
    %s8739 = scalar_lea.sflag [#allocation3], 1
    %8740 = vsyncpa %s8739, 1
    %8741 = vsyncpa [#allocation6], 1
    %8742 = vsyncpa [#allocation9], 1
    %8743 = vsyncpa [#allocation4], 1
    %s8744 = scalar_lea.sflag [#allocation4], 1
    %8745 = vsyncpa %s8744, 1

</llo_original>
